<compile_context>
chip_gen: v7x
topology: tpu7x:2x2x1
jax: 0.10.0
libtpu: 0.0.40
codegen_flags: <defaults>
</compile_context>

<pallas_src>
import functools

import jax
import jax.numpy as jnp
from jax import lax
from jax.experimental import pallas as pl
from jax.experimental.pallas import tpu as pltpu

# Keep XLA-side f32 matmuls at full precision so the folded-weight precompute and the
# pure-JAX reference agree to <1e-4 with the in-kernel f32 MXU matmuls.
jax.config.update("jax_default_matmul_precision", "highest")


def lstm_lstm_kernel(xg_ref, we_hh_ref, xg0_ref, wd_hh_ref, wdp_ref, bdp_ref,
                     w_out_ref, b_out_ref, out_ref, h_hist_ref):
    # xg    : [T_in, B, 4H]  precomputed encoder input gates (x_t @ We_ih + be)
    # we_hh : [H, 4H]        encoder recurrent weights
    # xg0   : [B, 4H]        precomputed decoder step-0 input gates (xt0 @ Wd_ih + bd)
    # wd_hh : [H, 4H]        decoder recurrent weights (step 0)
    # wdp   : [H, 4H]  bdp : [1, 4H]   decoder recurrence with fc folded in (steps 1..)
    # w_out : [1, H]   b_out : [1, 1]  last fc row (target feature)
    # out   : [T_out, B]
    # h_hist: [T_out, B, H]  VMEM scratch holding decoder hidden states
    # Gate order along the 4H axis is [i, f, o, g] (reordered in the wrapper).
    T_in, B, G = xg_ref.shape
    H = we_hh_ref.shape[0]
    T_out = out_ref.shape[0]

    # hoist weight loads / bias broadcasts out of the loops (no CSE of broadcasts)
    we_hh = we_hh_ref[...]
    wd_hh = wd_hh_ref[...]
    wdp = wdp_ref[...]
    bdp_b = jnp.broadcast_to(bdp_ref[...], (B, G))

    def act(gates, c):
        # one contiguous sigmoid over [i,f,o] lanes, one tanh over the g lanes
        sg = jax.nn.sigmoid(gates[:, :3 * H])
        i = sg[:, 0 * H:1 * H]
        f = sg[:, 1 * H:2 * H]
        o = sg[:, 2 * H:3 * H]
        g = jnp.tanh(gates[:, 3 * H:])
        c_new = f * c + i * g
        h_new = o * jnp.tanh(c_new)
        return h_new, c_new

    h0 = jnp.zeros((B, H), jnp.float32)
    c0 = jnp.zeros((B, H), jnp.float32)

    # ---- encoder: input projections precomputed; one recurrent dot per step ----
    def enc_body(t, carry):
        h, c = carry
        gates = xg_ref[t] + jnp.dot(h, we_hh, preferred_element_type=jnp.float32)
        return act(gates, c)

    h, c = lax.fori_loop(0, T_in, enc_body, (h0, c0), unroll=True)

    # ---- decoder step 0 (seed projection precomputed off-chain -> one dot) ----
    gates = xg0_ref[...] + jnp.dot(h, wd_hh, preferred_element_type=jnp.float32)
    h, c = act(gates, c)
    h_hist_ref[0] = h

    # ---- decoder steps 1..T_out-1: fc folded into recurrence -> one dot per step ----
    def dec_body(t, carry):
        h, c = carry
        gates = jnp.dot(h, wdp, preferred_element_type=jnp.float32) + bdp_b
        h, c = act(gates, c)
        h_hist_ref[t] = h
        return h, c

    lax.fori_loop(1, T_out, dec_body, (h, c), unroll=True)

    # ---- single projection of all decoder states + one contiguous store ----
    hs = h_hist_ref[...]                                     # [T_out, B, H]
    w_out = w_out_ref[...]                                   # [1, H]
    out = jnp.sum(hs * w_out[None, :, :], axis=-1)           # [T_out, B]
    out_ref[...] = out + b_out_ref[...]                      # broadcast [1,1]


def _reorder_gates(w, h):
    # PyTorch gate order [i, f, g, o] -> kernel order [i, f, o, g] along the 4H axis
    return jnp.concatenate(
        [w[..., :2 * h], w[..., 3 * h:4 * h], w[..., 2 * h:3 * h]], axis=-1)


@functools.partial(jax.jit, static_argnames=("output_len",))
def lstm_lstm_forward(x, params, output_len):
    B, T_in, E = x.shape
    H = params["we_hh"].shape[0]
    D = params["wfc"].shape[1]

    # Parallel, non-recurrent preprocessing (off the serial chain), done in XLA:
    #   * gate-column reorder [i,f,g,o] -> [i,f,o,g] (lets the kernel use one
    #     contiguous sigmoid + one tanh per step)
    #   * batched encoder input-gate projection, laid out [T_in, B, 4H]
    #   * decoder step-0 input-gate projection
    #   * fc folded into the decoder recurrence: W' = Wfc@Wd_ih + Wd_hh,
    #     b' = bfc@Wd_ih + bd
    we_ih = _reorder_gates(params["we_ih"], H)
    we_hh = _reorder_gates(params["we_hh"], H)
    be = _reorder_gates(params["be"], H)
    wd_ih = _reorder_gates(params["wd_ih"], H)
    wd_hh = _reorder_gates(params["wd_hh"], H)
    bd = _reorder_gates(params["bd"], H)

    x_tb = jnp.transpose(x, (1, 0, 2))                                   # [T_in, B, E]
    xg = (x_tb.reshape(T_in * B, E) @ we_ih + be).reshape(T_in, B, 4 * H)
    xt0 = x[:, -1, E - D:]                                               # [B, D]
    xg0 = xt0 @ wd_ih + bd                                               # [B, 4H]
    wdp = params["wfc"] @ wd_ih + wd_hh                                  # [H, 4H]
    bdp = params["bfc"] @ wd_ih + bd                                     # [1, 4H]
    w_out = params["wfc"][:, D - 1:D].T                                  # [1, H]
    b_out = params["bfc"][:, D - 1:D]                                    # [1, 1]

    out_tb = pl.pallas_call(
        lstm_lstm_kernel,
        out_shape=jax.ShapeDtypeStruct((output_len, B), jnp.float32),
        in_specs=[pl.BlockSpec(memory_space=pltpu.MemorySpace.VMEM)] * 8,
        out_specs=pl.BlockSpec(memory_space=pltpu.MemorySpace.VMEM),
        scratch_shapes=[pltpu.VMEM((output_len, B, H), jnp.float32)],
    )(xg, we_hh, xg0, wd_hh, wdp, bdp, w_out, b_out)

    # [T_out, B] -> [B, T_out, 1]  (matches torch.cat(outputs, dim=1))
    return jnp.transpose(out_tb)[:, :, None]


def init_params(key, encoder_input_size, decoder_input_size, lstm_num_hidden):
    E, D, H = encoder_input_size, decoder_input_size, lstm_num_hidden
    bound = 1.0 / (H ** 0.5)
    keys = jax.random.split(key, 10)

    def u(k_, shape):
        return jax.random.uniform(k_, shape, jnp.float32, -bound, bound)

    # PyTorch parameter shapes
    we_ih = u(keys[0], (4 * H, E))
    we_hh = u(keys[1], (4 * H, H))
    be_ih = u(keys[2], (4 * H,))
    be_hh = u(keys[3], (4 * H,))
    wd_ih = u(keys[4], (4 * H, D))
    wd_hh = u(keys[5], (4 * H, H))
    bd_ih = u(keys[6], (4 * H,))
    bd_hh = u(keys[7], (4 * H,))
    wfc = u(keys[8], (D, H))
    bfc = u(keys[9], (D,))

    # pre-transpose to right-multiply form, fold the two LSTM biases together
    return dict(
        we_ih=we_ih.T, we_hh=we_hh.T, be=(be_ih + be_hh)[None, :],
        wd_ih=wd_ih.T, wd_hh=wd_hh.T, bd=(bd_ih + bd_hh)[None, :],
        wfc=wfc.T, bfc=bfc[None, :],
    )


def reference_forward(x, params, output_len):
    # pure-JAX reference replicating the PyTorch forward semantics (unfused,
    # PyTorch gate order [i, f, g, o])
    B, T_in, E = x.shape
    H = params["we_hh"].shape[0]
    D = params["wfc"].shape[1]

    def cell(x_t, h, c, w_ih, w_hh, b):
        gates = x_t @ w_ih + h @ w_hh + b
        i = jax.nn.sigmoid(gates[:, :H])
        f = jax.nn.sigmoid(gates[:, H:2 * H])
        g = jnp.tanh(gates[:, 2 * H:3 * H])
        o = jax.nn.sigmoid(gates[:, 3 * H:])
        c = f * c + i * g
        h = o * jnp.tanh(c)
        return h, c

    h = jnp.zeros((B, H), jnp.float32)
    c = jnp.zeros((B, H), jnp.float32)
    for t in range(T_in):
        h, c = cell(x[:, t, :], h, c, params["we_ih"], params["we_hh"], params["be"])

    xt = x[:, -1, E - D:]
    outs = []
    for _ in range(output_len):
        h, c = cell(xt, h, c, params["wd_ih"], params["wd_hh"], params["bd"])
        out = h @ params["wfc"] + params["bfc"]
        outs.append(out[:, -1:])
        xt = out
    return jnp.stack(outs, axis=1)  # [B, T_out, 1]


if __name__ == "__main__":
    # small shapes consistent with the module's forward
    B = 2
    encoder_input_size = 4      # E
    decoder_input_size = 2      # D (<= E, taken from the tail of the last input step)
    input_len = 8               # T_in
    output_len = 4              # T_out
    lstm_num_hidden = 32        # H

    key = jax.random.PRNGKey(0)
    kx, kp = jax.random.split(key)
    x = jax.random.normal(kx, (B, input_len, encoder_input_size), jnp.float32)
    params = init_params(kp, encoder_input_size, decoder_input_size, lstm_num_hidden)

    out = lstm_lstm_forward(x, params, output_len=output_len)
    out = jax.block_until_ready(out)

    assert out.shape == (B, output_len, 1), out.shape
    ref = reference_forward(x, params, output_len)
    max_err = float(jnp.max(jnp.abs(out - ref)))
    assert max_err < 1e-4, f"max_err={max_err}"
    print("KERNEL_OK")
</pallas_src>

<mosaic_0001>
module attributes {stable_mosaic.version = 11 : i64} {
  func.func @lstm_lstm_kernel(%arg0: memref<8x2x128xf32, #tpu.memory_space<vmem>>, %arg1: memref<32x128xf32, #tpu.memory_space<vmem>>, %arg2: memref<2x128xf32, #tpu.memory_space<vmem>>, %arg3: memref<32x128xf32, #tpu.memory_space<vmem>>, %arg4: memref<32x128xf32, #tpu.memory_space<vmem>>, %arg5: memref<1x128xf32, #tpu.memory_space<vmem>>, %arg6: memref<1x32xf32, #tpu.memory_space<vmem>>, %arg7: memref<1x1xf32, #tpu.memory_space<vmem>>, %arg8: memref<4x2xf32, #tpu.memory_space<vmem>>, %arg9: memref<4x2x32xf32, #tpu.memory_space<vmem>>) attributes {dimension_semantics = [], scalar_prefetch = 0 : i64, scratch_operands = 1 : i64, tpu.core_type = #tpu.core_type<tc>} {
    %c0 = arith.constant 0 : index
    %c0_0 = arith.constant 0 : index
    %0 = vector.load %arg1[%c0, %c0_0] : memref<32x128xf32, #tpu.memory_space<vmem>>, vector<32x128xf32>
    %c0_1 = arith.constant 0 : index
    %c0_2 = arith.constant 0 : index
    %1 = vector.load %arg3[%c0_1, %c0_2] : memref<32x128xf32, #tpu.memory_space<vmem>>, vector<32x128xf32>
    %c0_3 = arith.constant 0 : index
    %c0_4 = arith.constant 0 : index
    %2 = vector.load %arg4[%c0_3, %c0_4] : memref<32x128xf32, #tpu.memory_space<vmem>>, vector<32x128xf32>
    %c0_5 = arith.constant 0 : index
    %c0_6 = arith.constant 0 : index
    %3 = vector.load %arg5[%c0_5, %c0_6] : memref<1x128xf32, #tpu.memory_space<vmem>>, vector<1x128xf32>
    %4 = vector.shape_cast %3 : vector<1x128xf32> to vector<1x128xf32>
    %5 = vector.broadcast %4 : vector<1x128xf32> to vector<2x128xf32>
    %cst = arith.constant 0.000000e+00 : f32
    %6 = vector.broadcast %cst : f32 to vector<2x32xf32>
    %cst_7 = arith.constant 0.000000e+00 : f32
    %7 = vector.broadcast %cst_7 : f32 to vector<2x32xf32>
    %c0_i32 = arith.constant 0 : i32
    %8 = arith.index_cast %c0_i32 : i32 to index
    %c0_8 = arith.constant 0 : index
    %c0_9 = arith.constant 0 : index
    %9 = vector.load %arg0[%8, %c0_8, %c0_9] : memref<8x2x128xf32, #tpu.memory_space<vmem>>, vector<1x2x128xf32>
    %10 = vector.shape_cast %9 : vector<1x2x128xf32> to vector<2x128xf32>
    %cst_10 = arith.constant dense<0.000000e+00> : vector<2x128xf32>
    %11 = tpu.matmul %6, %0, %cst_10 {dimension_numbers = #tpu.dot_dimension_numbers<[1], [0], [0], [1], [0, 0, 1, 1], [], []>, precision = #tpu.contract_precision<fp32>} : vector<2x32xf32>, vector<32x128xf32>, vector<2x128xf32> -> vector<2x128xf32>
    %12 = arith.addf %10, %11 : vector<2x128xf32>
    %13 = vector.extract_strided_slice %12 {offsets = [0, 0], sizes = [2, 96], strides = [1, 1]} : vector<2x128xf32> to vector<2x96xf32>
    %14 = arith.negf %13 : vector<2x96xf32>
    %15 = math.exp %14 : vector<2x96xf32>
    %cst_11 = arith.constant 1.000000e+00 : f32
    %16 = vector.broadcast %cst_11 : f32 to vector<2x96xf32>
    %17 = arith.addf %16, %15 : vector<2x96xf32>
    %18 = arith.divf %16, %17 : vector<2x96xf32>
    %19 = vector.extract_strided_slice %18 {offsets = [0, 0], sizes = [2, 32], strides = [1, 1]} : vector<2x96xf32> to vector<2x32xf32>
    %20 = vector.extract_strided_slice %18 {offsets = [0, 32], sizes = [2, 32], strides = [1, 1]} : vector<2x96xf32> to vector<2x32xf32>
    %21 = vector.extract_strided_slice %18 {offsets = [0, 64], sizes = [2, 32], strides = [1, 1]} : vector<2x96xf32> to vector<2x32xf32>
    %22 = vector.extract_strided_slice %12 {offsets = [0, 96], sizes = [2, 32], strides = [1, 1]} : vector<2x128xf32> to vector<2x32xf32>
    %23 = math.tanh %22 : vector<2x32xf32>
    %24 = arith.mulf %20, %7 : vector<2x32xf32>
    %25 = arith.mulf %19, %23 : vector<2x32xf32>
    %26 = arith.addf %24, %25 : vector<2x32xf32>
    %27 = math.tanh %26 : vector<2x32xf32>
    %28 = arith.mulf %21, %27 : vector<2x32xf32>
    %c1_i32 = arith.constant 1 : i32
    %29 = arith.index_cast %c1_i32 : i32 to index
    %c0_12 = arith.constant 0 : index
    %c0_13 = arith.constant 0 : index
    %30 = vector.load %arg0[%29, %c0_12, %c0_13] : memref<8x2x128xf32, #tpu.memory_space<vmem>>, vector<1x2x128xf32>
    %31 = vector.shape_cast %30 : vector<1x2x128xf32> to vector<2x128xf32>
    %cst_14 = arith.constant dense<0.000000e+00> : vector<2x128xf32>
    %32 = tpu.matmul %28, %0, %cst_14 {dimension_numbers = #tpu.dot_dimension_numbers<[1], [0], [0], [1], [0, 0, 1, 1], [], []>, precision = #tpu.contract_precision<fp32>} : vector<2x32xf32>, vector<32x128xf32>, vector<2x128xf32> -> vector<2x128xf32>
    %33 = arith.addf %31, %32 : vector<2x128xf32>
    %34 = vector.extract_strided_slice %33 {offsets = [0, 0], sizes = [2, 96], strides = [1, 1]} : vector<2x128xf32> to vector<2x96xf32>
    %35 = arith.negf %34 : vector<2x96xf32>
    %36 = math.exp %35 : vector<2x96xf32>
    %cst_15 = arith.constant 1.000000e+00 : f32
    %37 = vector.broadcast %cst_15 : f32 to vector<2x96xf32>
    %38 = arith.addf %37, %36 : vector<2x96xf32>
    %39 = arith.divf %37, %38 : vector<2x96xf32>
    %40 = vector.extract_strided_slice %39 {offsets = [0, 0], sizes = [2, 32], strides = [1, 1]} : vector<2x96xf32> to vector<2x32xf32>
    %41 = vector.extract_strided_slice %39 {offsets = [0, 32], sizes = [2, 32], strides = [1, 1]} : vector<2x96xf32> to vector<2x32xf32>
    %42 = vector.extract_strided_slice %39 {offsets = [0, 64], sizes = [2, 32], strides = [1, 1]} : vector<2x96xf32> to vector<2x32xf32>
    %43 = vector.extract_strided_slice %33 {offsets = [0, 96], sizes = [2, 32], strides = [1, 1]} : vector<2x128xf32> to vector<2x32xf32>
    %44 = math.tanh %43 : vector<2x32xf32>
    %45 = arith.mulf %41, %26 : vector<2x32xf32>
    %46 = arith.mulf %40, %44 : vector<2x32xf32>
    %47 = arith.addf %45, %46 : vector<2x32xf32>
    %48 = math.tanh %47 : vector<2x32xf32>
    %49 = arith.mulf %42, %48 : vector<2x32xf32>
    %c2_i32 = arith.constant 2 : i32
    %50 = arith.index_cast %c2_i32 : i32 to index
    %c0_16 = arith.constant 0 : index
    %c0_17 = arith.constant 0 : index
    %51 = vector.load %arg0[%50, %c0_16, %c0_17] : memref<8x2x128xf32, #tpu.memory_space<vmem>>, vector<1x2x128xf32>
    %52 = vector.shape_cast %51 : vector<1x2x128xf32> to vector<2x128xf32>
    %cst_18 = arith.constant dense<0.000000e+00> : vector<2x128xf32>
    %53 = tpu.matmul %49, %0, %cst_18 {dimension_numbers = #tpu.dot_dimension_numbers<[1], [0], [0], [1], [0, 0, 1, 1], [], []>, precision = #tpu.contract_precision<fp32>} : vector<2x32xf32>, vector<32x128xf32>, vector<2x128xf32> -> vector<2x128xf32>
    %54 = arith.addf %52, %53 : vector<2x128xf32>
    %55 = vector.extract_strided_slice %54 {offsets = [0, 0], sizes = [2, 96], strides = [1, 1]} : vector<2x128xf32> to vector<2x96xf32>
    %56 = arith.negf %55 : vector<2x96xf32>
    %57 = math.exp %56 : vector<2x96xf32>
    %cst_19 = arith.constant 1.000000e+00 : f32
    %58 = vector.broadcast %cst_19 : f32 to vector<2x96xf32>
    %59 = arith.addf %58, %57 : vector<2x96xf32>
    %60 = arith.divf %58, %59 : vector<2x96xf32>
    %61 = vector.extract_strided_slice %60 {offsets = [0, 0], sizes = [2, 32], strides = [1, 1]} : vector<2x96xf32> to vector<2x32xf32>
    %62 = vector.extract_strided_slice %60 {offsets = [0, 32], sizes = [2, 32], strides = [1, 1]} : vector<2x96xf32> to vector<2x32xf32>
    %63 = vector.extract_strided_slice %60 {offsets = [0, 64], sizes = [2, 32], strides = [1, 1]} : vector<2x96xf32> to vector<2x32xf32>
    %64 = vector.extract_strided_slice %54 {offsets = [0, 96], sizes = [2, 32], strides = [1, 1]} : vector<2x128xf32> to vector<2x32xf32>
    %65 = math.tanh %64 : vector<2x32xf32>
    %66 = arith.mulf %62, %47 : vector<2x32xf32>
    %67 = arith.mulf %61, %65 : vector<2x32xf32>
    %68 = arith.addf %66, %67 : vector<2x32xf32>
    %69 = math.tanh %68 : vector<2x32xf32>
    %70 = arith.mulf %63, %69 : vector<2x32xf32>
    %c3_i32 = arith.constant 3 : i32
    %71 = arith.index_cast %c3_i32 : i32 to index
    %c0_20 = arith.constant 0 : index
    %c0_21 = arith.constant 0 : index
    %72 = vector.load %arg0[%71, %c0_20, %c0_21] : memref<8x2x128xf32, #tpu.memory_space<vmem>>, vector<1x2x128xf32>
    %73 = vector.shape_cast %72 : vector<1x2x128xf32> to vector<2x128xf32>
    %cst_22 = arith.constant dense<0.000000e+00> : vector<2x128xf32>
    %74 = tpu.matmul %70, %0, %cst_22 {dimension_numbers = #tpu.dot_dimension_numbers<[1], [0], [0], [1], [0, 0, 1, 1], [], []>, precision = #tpu.contract_precision<fp32>} : vector<2x32xf32>, vector<32x128xf32>, vector<2x128xf32> -> vector<2x128xf32>
    %75 = arith.addf %73, %74 : vector<2x128xf32>
    %76 = vector.extract_strided_slice %75 {offsets = [0, 0], sizes = [2, 96], strides = [1, 1]} : vector<2x128xf32> to vector<2x96xf32>
    %77 = arith.negf %76 : vector<2x96xf32>
    %78 = math.exp %77 : vector<2x96xf32>
    %cst_23 = arith.constant 1.000000e+00 : f32
    %79 = vector.broadcast %cst_23 : f32 to vector<2x96xf32>
    %80 = arith.addf %79, %78 : vector<2x96xf32>
    %81 = arith.divf %79, %80 : vector<2x96xf32>
    %82 = vector.extract_strided_slice %81 {offsets = [0, 0], sizes = [2, 32], strides = [1, 1]} : vector<2x96xf32> to vector<2x32xf32>
    %83 = vector.extract_strided_slice %81 {offsets = [0, 32], sizes = [2, 32], strides = [1, 1]} : vector<2x96xf32> to vector<2x32xf32>
    %84 = vector.extract_strided_slice %81 {offsets = [0, 64], sizes = [2, 32], strides = [1, 1]} : vector<2x96xf32> to vector<2x32xf32>
    %85 = vector.extract_strided_slice %75 {offsets = [0, 96], sizes = [2, 32], strides = [1, 1]} : vector<2x128xf32> to vector<2x32xf32>
    %86 = math.tanh %85 : vector<2x32xf32>
    %87 = arith.mulf %83, %68 : vector<2x32xf32>
    %88 = arith.mulf %82, %86 : vector<2x32xf32>
    %89 = arith.addf %87, %88 : vector<2x32xf32>
    %90 = math.tanh %89 : vector<2x32xf32>
    %91 = arith.mulf %84, %90 : vector<2x32xf32>
    %c4_i32 = arith.constant 4 : i32
    %92 = arith.index_cast %c4_i32 : i32 to index
    %c0_24 = arith.constant 0 : index
    %c0_25 = arith.constant 0 : index
    %93 = vector.load %arg0[%92, %c0_24, %c0_25] : memref<8x2x128xf32, #tpu.memory_space<vmem>>, vector<1x2x128xf32>
    %94 = vector.shape_cast %93 : vector<1x2x128xf32> to vector<2x128xf32>
    %cst_26 = arith.constant dense<0.000000e+00> : vector<2x128xf32>
    %95 = tpu.matmul %91, %0, %cst_26 {dimension_numbers = #tpu.dot_dimension_numbers<[1], [0], [0], [1], [0, 0, 1, 1], [], []>, precision = #tpu.contract_precision<fp32>} : vector<2x32xf32>, vector<32x128xf32>, vector<2x128xf32> -> vector<2x128xf32>
    %96 = arith.addf %94, %95 : vector<2x128xf32>
    %97 = vector.extract_strided_slice %96 {offsets = [0, 0], sizes = [2, 96], strides = [1, 1]} : vector<2x128xf32> to vector<2x96xf32>
    %98 = arith.negf %97 : vector<2x96xf32>
    %99 = math.exp %98 : vector<2x96xf32>
    %cst_27 = arith.constant 1.000000e+00 : f32
    %100 = vector.broadcast %cst_27 : f32 to vector<2x96xf32>
    %101 = arith.addf %100, %99 : vector<2x96xf32>
    %102 = arith.divf %100, %101 : vector<2x96xf32>
    %103 = vector.extract_strided_slice %102 {offsets = [0, 0], sizes = [2, 32], strides = [1, 1]} : vector<2x96xf32> to vector<2x32xf32>
    %104 = vector.extract_strided_slice %102 {offsets = [0, 32], sizes = [2, 32], strides = [1, 1]} : vector<2x96xf32> to vector<2x32xf32>
    %105 = vector.extract_strided_slice %102 {offsets = [0, 64], sizes = [2, 32], strides = [1, 1]} : vector<2x96xf32> to vector<2x32xf32>
    %106 = vector.extract_strided_slice %96 {offsets = [0, 96], sizes = [2, 32], strides = [1, 1]} : vector<2x128xf32> to vector<2x32xf32>
    %107 = math.tanh %106 : vector<2x32xf32>
    %108 = arith.mulf %104, %89 : vector<2x32xf32>
    %109 = arith.mulf %103, %107 : vector<2x32xf32>
    %110 = arith.addf %108, %109 : vector<2x32xf32>
    %111 = math.tanh %110 : vector<2x32xf32>
    %112 = arith.mulf %105, %111 : vector<2x32xf32>
    %c5_i32 = arith.constant 5 : i32
    %113 = arith.index_cast %c5_i32 : i32 to index
    %c0_28 = arith.constant 0 : index
    %c0_29 = arith.constant 0 : index
    %114 = vector.load %arg0[%113, %c0_28, %c0_29] : memref<8x2x128xf32, #tpu.memory_space<vmem>>, vector<1x2x128xf32>
    %115 = vector.shape_cast %114 : vector<1x2x128xf32> to vector<2x128xf32>
    %cst_30 = arith.constant dense<0.000000e+00> : vector<2x128xf32>
    %116 = tpu.matmul %112, %0, %cst_30 {dimension_numbers = #tpu.dot_dimension_numbers<[1], [0], [0], [1], [0, 0, 1, 1], [], []>, precision = #tpu.contract_precision<fp32>} : vector<2x32xf32>, vector<32x128xf32>, vector<2x128xf32> -> vector<2x128xf32>
    %117 = arith.addf %115, %116 : vector<2x128xf32>
    %118 = vector.extract_strided_slice %117 {offsets = [0, 0], sizes = [2, 96], strides = [1, 1]} : vector<2x128xf32> to vector<2x96xf32>
    %119 = arith.negf %118 : vector<2x96xf32>
    %120 = math.exp %119 : vector<2x96xf32>
    %cst_31 = arith.constant 1.000000e+00 : f32
    %121 = vector.broadcast %cst_31 : f32 to vector<2x96xf32>
    %122 = arith.addf %121, %120 : vector<2x96xf32>
    %123 = arith.divf %121, %122 : vector<2x96xf32>
    %124 = vector.extract_strided_slice %123 {offsets = [0, 0], sizes = [2, 32], strides = [1, 1]} : vector<2x96xf32> to vector<2x32xf32>
    %125 = vector.extract_strided_slice %123 {offsets = [0, 32], sizes = [2, 32], strides = [1, 1]} : vector<2x96xf32> to vector<2x32xf32>
    %126 = vector.extract_strided_slice %123 {offsets = [0, 64], sizes = [2, 32], strides = [1, 1]} : vector<2x96xf32> to vector<2x32xf32>
    %127 = vector.extract_strided_slice %117 {offsets = [0, 96], sizes = [2, 32], strides = [1, 1]} : vector<2x128xf32> to vector<2x32xf32>
    %128 = math.tanh %127 : vector<2x32xf32>
    %129 = arith.mulf %125, %110 : vector<2x32xf32>
    %130 = arith.mulf %124, %128 : vector<2x32xf32>
    %131 = arith.addf %129, %130 : vector<2x32xf32>
    %132 = math.tanh %131 : vector<2x32xf32>
    %133 = arith.mulf %126, %132 : vector<2x32xf32>
    %c6_i32 = arith.constant 6 : i32
    %134 = arith.index_cast %c6_i32 : i32 to index
    %c0_32 = arith.constant 0 : index
    %c0_33 = arith.constant 0 : index
    %135 = vector.load %arg0[%134, %c0_32, %c0_33] : memref<8x2x128xf32, #tpu.memory_space<vmem>>, vector<1x2x128xf32>
    %136 = vector.shape_cast %135 : vector<1x2x128xf32> to vector<2x128xf32>
    %cst_34 = arith.constant dense<0.000000e+00> : vector<2x128xf32>
    %137 = tpu.matmul %133, %0, %cst_34 {dimension_numbers = #tpu.dot_dimension_numbers<[1], [0], [0], [1], [0, 0, 1, 1], [], []>, precision = #tpu.contract_precision<fp32>} : vector<2x32xf32>, vector<32x128xf32>, vector<2x128xf32> -> vector<2x128xf32>
    %138 = arith.addf %136, %137 : vector<2x128xf32>
    %139 = vector.extract_strided_slice %138 {offsets = [0, 0], sizes = [2, 96], strides = [1, 1]} : vector<2x128xf32> to vector<2x96xf32>
    %140 = arith.negf %139 : vector<2x96xf32>
    %141 = math.exp %140 : vector<2x96xf32>
    %cst_35 = arith.constant 1.000000e+00 : f32
    %142 = vector.broadcast %cst_35 : f32 to vector<2x96xf32>
    %143 = arith.addf %142, %141 : vector<2x96xf32>
    %144 = arith.divf %142, %143 : vector<2x96xf32>
    %145 = vector.extract_strided_slice %144 {offsets = [0, 0], sizes = [2, 32], strides = [1, 1]} : vector<2x96xf32> to vector<2x32xf32>
    %146 = vector.extract_strided_slice %144 {offsets = [0, 32], sizes = [2, 32], strides = [1, 1]} : vector<2x96xf32> to vector<2x32xf32>
    %147 = vector.extract_strided_slice %144 {offsets = [0, 64], sizes = [2, 32], strides = [1, 1]} : vector<2x96xf32> to vector<2x32xf32>
    %148 = vector.extract_strided_slice %138 {offsets = [0, 96], sizes = [2, 32], strides = [1, 1]} : vector<2x128xf32> to vector<2x32xf32>
    %149 = math.tanh %148 : vector<2x32xf32>
    %150 = arith.mulf %146, %131 : vector<2x32xf32>
    %151 = arith.mulf %145, %149 : vector<2x32xf32>
    %152 = arith.addf %150, %151 : vector<2x32xf32>
    %153 = math.tanh %152 : vector<2x32xf32>
    %154 = arith.mulf %147, %153 : vector<2x32xf32>
    %c7_i32 = arith.constant 7 : i32
    %155 = arith.index_cast %c7_i32 : i32 to index
    %c0_36 = arith.constant 0 : index
    %c0_37 = arith.constant 0 : index
    %156 = vector.load %arg0[%155, %c0_36, %c0_37] : memref<8x2x128xf32, #tpu.memory_space<vmem>>, vector<1x2x128xf32>
    %157 = vector.shape_cast %156 : vector<1x2x128xf32> to vector<2x128xf32>
    %cst_38 = arith.constant dense<0.000000e+00> : vector<2x128xf32>
    %158 = tpu.matmul %154, %0, %cst_38 {dimension_numbers = #tpu.dot_dimension_numbers<[1], [0], [0], [1], [0, 0, 1, 1], [], []>, precision = #tpu.contract_precision<fp32>} : vector<2x32xf32>, vector<32x128xf32>, vector<2x128xf32> -> vector<2x128xf32>
    %159 = arith.addf %157, %158 : vector<2x128xf32>
    %160 = vector.extract_strided_slice %159 {offsets = [0, 0], sizes = [2, 96], strides = [1, 1]} : vector<2x128xf32> to vector<2x96xf32>
    %161 = arith.negf %160 : vector<2x96xf32>
    %162 = math.exp %161 : vector<2x96xf32>
    %cst_39 = arith.constant 1.000000e+00 : f32
    %163 = vector.broadcast %cst_39 : f32 to vector<2x96xf32>
    %164 = arith.addf %163, %162 : vector<2x96xf32>
    %165 = arith.divf %163, %164 : vector<2x96xf32>
    %166 = vector.extract_strided_slice %165 {offsets = [0, 0], sizes = [2, 32], strides = [1, 1]} : vector<2x96xf32> to vector<2x32xf32>
    %167 = vector.extract_strided_slice %165 {offsets = [0, 32], sizes = [2, 32], strides = [1, 1]} : vector<2x96xf32> to vector<2x32xf32>
    %168 = vector.extract_strided_slice %165 {offsets = [0, 64], sizes = [2, 32], strides = [1, 1]} : vector<2x96xf32> to vector<2x32xf32>
    %169 = vector.extract_strided_slice %159 {offsets = [0, 96], sizes = [2, 32], strides = [1, 1]} : vector<2x128xf32> to vector<2x32xf32>
    %170 = math.tanh %169 : vector<2x32xf32>
    %171 = arith.mulf %167, %152 : vector<2x32xf32>
    %172 = arith.mulf %166, %170 : vector<2x32xf32>
    %173 = arith.addf %171, %172 : vector<2x32xf32>
    %174 = math.tanh %173 : vector<2x32xf32>
    %175 = arith.mulf %168, %174 : vector<2x32xf32>
    %c8_i32 = arith.constant 8 : i32
    %c0_40 = arith.constant 0 : index
    %c0_41 = arith.constant 0 : index
    %176 = vector.load %arg2[%c0_40, %c0_41] : memref<2x128xf32, #tpu.memory_space<vmem>>, vector<2x128xf32>
    %cst_42 = arith.constant dense<0.000000e+00> : vector<2x128xf32>
    %177 = tpu.matmul %175, %1, %cst_42 {dimension_numbers = #tpu.dot_dimension_numbers<[1], [0], [0], [1], [0, 0, 1, 1], [], []>, precision = #tpu.contract_precision<fp32>} : vector<2x32xf32>, vector<32x128xf32>, vector<2x128xf32> -> vector<2x128xf32>
    %178 = arith.addf %176, %177 : vector<2x128xf32>
    %179 = vector.extract_strided_slice %178 {offsets = [0, 0], sizes = [2, 96], strides = [1, 1]} : vector<2x128xf32> to vector<2x96xf32>
    %180 = arith.negf %179 : vector<2x96xf32>
    %181 = math.exp %180 : vector<2x96xf32>
    %cst_43 = arith.constant 1.000000e+00 : f32
    %182 = vector.broadcast %cst_43 : f32 to vector<2x96xf32>
    %183 = arith.addf %182, %181 : vector<2x96xf32>
    %184 = arith.divf %182, %183 : vector<2x96xf32>
    %185 = vector.extract_strided_slice %184 {offsets = [0, 0], sizes = [2, 32], strides = [1, 1]} : vector<2x96xf32> to vector<2x32xf32>
    %186 = vector.extract_strided_slice %184 {offsets = [0, 32], sizes = [2, 32], strides = [1, 1]} : vector<2x96xf32> to vector<2x32xf32>
    %187 = vector.extract_strided_slice %184 {offsets = [0, 64], sizes = [2, 32], strides = [1, 1]} : vector<2x96xf32> to vector<2x32xf32>
    %188 = vector.extract_strided_slice %178 {offsets = [0, 96], sizes = [2, 32], strides = [1, 1]} : vector<2x128xf32> to vector<2x32xf32>
    %189 = math.tanh %188 : vector<2x32xf32>
    %190 = arith.mulf %186, %173 : vector<2x32xf32>
    %191 = arith.mulf %185, %189 : vector<2x32xf32>
    %192 = arith.addf %190, %191 : vector<2x32xf32>
    %193 = math.tanh %192 : vector<2x32xf32>
    %194 = arith.mulf %187, %193 : vector<2x32xf32>
    %c0_44 = arith.constant 0 : index
    %c0_45 = arith.constant 0 : index
    %c0_46 = arith.constant 0 : index
    %195 = vector.load %arg9[%c0_44, %c0_45, %c0_46] : memref<4x2x32xf32, #tpu.memory_space<vmem>>, vector<1x2x32xf32>
    %196 = vector.shape_cast %195 : vector<1x2x32xf32> to vector<2x32xf32>
    %197 = vector.shape_cast %194 : vector<2x32xf32> to vector<1x2x32xf32>
    tpu.vector_store %arg9[%c0_44, %c0_45, %c0_46], %197 {strides = array<i32>} : memref<4x2x32xf32, #tpu.memory_space<vmem>>, vector<1x2x32xf32>,
    %c1_i32_47 = arith.constant 1 : i32
    %cst_48 = arith.constant dense<0.000000e+00> : vector<2x128xf32>
    %198 = tpu.matmul %194, %2, %cst_48 {dimension_numbers = #tpu.dot_dimension_numbers<[1], [0], [0], [1], [0, 0, 1, 1], [], []>, precision = #tpu.contract_precision<fp32>} : vector<2x32xf32>, vector<32x128xf32>, vector<2x128xf32> -> vector<2x128xf32>
    %199 = arith.addf %198, %5 : vector<2x128xf32>
    %200 = vector.extract_strided_slice %199 {offsets = [0, 0], sizes = [2, 96], strides = [1, 1]} : vector<2x128xf32> to vector<2x96xf32>
    %201 = arith.negf %200 : vector<2x96xf32>
    %202 = math.exp %201 : vector<2x96xf32>
    %cst_49 = arith.constant 1.000000e+00 : f32
    %203 = vector.broadcast %cst_49 : f32 to vector<2x96xf32>
    %204 = arith.addf %203, %202 : vector<2x96xf32>
    %205 = arith.divf %203, %204 : vector<2x96xf32>
    %206 = vector.extract_strided_slice %205 {offsets = [0, 0], sizes = [2, 32], strides = [1, 1]} : vector<2x96xf32> to vector<2x32xf32>
    %207 = vector.extract_strided_slice %205 {offsets = [0, 32], sizes = [2, 32], strides = [1, 1]} : vector<2x96xf32> to vector<2x32xf32>
    %208 = vector.extract_strided_slice %205 {offsets = [0, 64], sizes = [2, 32], strides = [1, 1]} : vector<2x96xf32> to vector<2x32xf32>
    %209 = vector.extract_strided_slice %199 {offsets = [0, 96], sizes = [2, 32], strides = [1, 1]} : vector<2x128xf32> to vector<2x32xf32>
    %210 = math.tanh %209 : vector<2x32xf32>
    %211 = arith.mulf %207, %192 : vector<2x32xf32>
    %212 = arith.mulf %206, %210 : vector<2x32xf32>
    %213 = arith.addf %211, %212 : vector<2x32xf32>
    %214 = math.tanh %213 : vector<2x32xf32>
    %215 = arith.mulf %208, %214 : vector<2x32xf32>
    %216 = arith.index_cast %c1_i32_47 : i32 to index
    %c0_50 = arith.constant 0 : index
    %c0_51 = arith.constant 0 : index
    %217 = vector.load %arg9[%216, %c0_50, %c0_51] : memref<4x2x32xf32, #tpu.memory_space<vmem>>, vector<1x2x32xf32>
    %218 = vector.shape_cast %217 : vector<1x2x32xf32> to vector<2x32xf32>
    %219 = vector.shape_cast %215 : vector<2x32xf32> to vector<1x2x32xf32>
    tpu.vector_store %arg9[%216, %c0_50, %c0_51], %219 {strides = array<i32>} : memref<4x2x32xf32, #tpu.memory_space<vmem>>, vector<1x2x32xf32>,
    %c2_i32_52 = arith.constant 2 : i32
    %cst_53 = arith.constant dense<0.000000e+00> : vector<2x128xf32>
    %220 = tpu.matmul %215, %2, %cst_53 {dimension_numbers = #tpu.dot_dimension_numbers<[1], [0], [0], [1], [0, 0, 1, 1], [], []>, precision = #tpu.contract_precision<fp32>} : vector<2x32xf32>, vector<32x128xf32>, vector<2x128xf32> -> vector<2x128xf32>
    %221 = arith.addf %220, %5 : vector<2x128xf32>
    %222 = vector.extract_strided_slice %221 {offsets = [0, 0], sizes = [2, 96], strides = [1, 1]} : vector<2x128xf32> to vector<2x96xf32>
    %223 = arith.negf %222 : vector<2x96xf32>
    %224 = math.exp %223 : vector<2x96xf32>
    %cst_54 = arith.constant 1.000000e+00 : f32
    %225 = vector.broadcast %cst_54 : f32 to vector<2x96xf32>
    %226 = arith.addf %225, %224 : vector<2x96xf32>
    %227 = arith.divf %225, %226 : vector<2x96xf32>
    %228 = vector.extract_strided_slice %227 {offsets = [0, 0], sizes = [2, 32], strides = [1, 1]} : vector<2x96xf32> to vector<2x32xf32>
    %229 = vector.extract_strided_slice %227 {offsets = [0, 32], sizes = [2, 32], strides = [1, 1]} : vector<2x96xf32> to vector<2x32xf32>
    %230 = vector.extract_strided_slice %227 {offsets = [0, 64], sizes = [2, 32], strides = [1, 1]} : vector<2x96xf32> to vector<2x32xf32>
    %231 = vector.extract_strided_slice %221 {offsets = [0, 96], sizes = [2, 32], strides = [1, 1]} : vector<2x128xf32> to vector<2x32xf32>
    %232 = math.tanh %231 : vector<2x32xf32>
    %233 = arith.mulf %229, %213 : vector<2x32xf32>
    %234 = arith.mulf %228, %232 : vector<2x32xf32>
    %235 = arith.addf %233, %234 : vector<2x32xf32>
    %236 = math.tanh %235 : vector<2x32xf32>
    %237 = arith.mulf %230, %236 : vector<2x32xf32>
    %238 = arith.index_cast %c2_i32_52 : i32 to index
    %c0_55 = arith.constant 0 : index
    %c0_56 = arith.constant 0 : index
    %239 = vector.load %arg9[%238, %c0_55, %c0_56] : memref<4x2x32xf32, #tpu.memory_space<vmem>>, vector<1x2x32xf32>
    %240 = vector.shape_cast %239 : vector<1x2x32xf32> to vector<2x32xf32>
    %241 = vector.shape_cast %237 : vector<2x32xf32> to vector<1x2x32xf32>
    tpu.vector_store %arg9[%238, %c0_55, %c0_56], %241 {strides = array<i32>} : memref<4x2x32xf32, #tpu.memory_space<vmem>>, vector<1x2x32xf32>,
    %c3_i32_57 = arith.constant 3 : i32
    %cst_58 = arith.constant dense<0.000000e+00> : vector<2x128xf32>
    %242 = tpu.matmul %237, %2, %cst_58 {dimension_numbers = #tpu.dot_dimension_numbers<[1], [0], [0], [1], [0, 0, 1, 1], [], []>, precision = #tpu.contract_precision<fp32>} : vector<2x32xf32>, vector<32x128xf32>, vector<2x128xf32> -> vector<2x128xf32>
    %243 = arith.addf %242, %5 : vector<2x128xf32>
    %244 = vector.extract_strided_slice %243 {offsets = [0, 0], sizes = [2, 96], strides = [1, 1]} : vector<2x128xf32> to vector<2x96xf32>
    %245 = arith.negf %244 : vector<2x96xf32>
    %246 = math.exp %245 : vector<2x96xf32>
    %cst_59 = arith.constant 1.000000e+00 : f32
    %247 = vector.broadcast %cst_59 : f32 to vector<2x96xf32>
    %248 = arith.addf %247, %246 : vector<2x96xf32>
    %249 = arith.divf %247, %248 : vector<2x96xf32>
    %250 = vector.extract_strided_slice %249 {offsets = [0, 0], sizes = [2, 32], strides = [1, 1]} : vector<2x96xf32> to vector<2x32xf32>
    %251 = vector.extract_strided_slice %249 {offsets = [0, 32], sizes = [2, 32], strides = [1, 1]} : vector<2x96xf32> to vector<2x32xf32>
    %252 = vector.extract_strided_slice %249 {offsets = [0, 64], sizes = [2, 32], strides = [1, 1]} : vector<2x96xf32> to vector<2x32xf32>
    %253 = vector.extract_strided_slice %243 {offsets = [0, 96], sizes = [2, 32], strides = [1, 1]} : vector<2x128xf32> to vector<2x32xf32>
    %254 = math.tanh %253 : vector<2x32xf32>
    %255 = arith.mulf %251, %235 : vector<2x32xf32>
    %256 = arith.mulf %250, %254 : vector<2x32xf32>
    %257 = arith.addf %255, %256 : vector<2x32xf32>
    %258 = math.tanh %257 : vector<2x32xf32>
    %259 = arith.mulf %252, %258 : vector<2x32xf32>
    %260 = arith.index_cast %c3_i32_57 : i32 to index
    %c0_60 = arith.constant 0 : index
    %c0_61 = arith.constant 0 : index
    %261 = vector.load %arg9[%260, %c0_60, %c0_61] : memref<4x2x32xf32, #tpu.memory_space<vmem>>, vector<1x2x32xf32>
    %262 = vector.shape_cast %261 : vector<1x2x32xf32> to vector<2x32xf32>
    %263 = vector.shape_cast %259 : vector<2x32xf32> to vector<1x2x32xf32>
    tpu.vector_store %arg9[%260, %c0_60, %c0_61], %263 {strides = array<i32>} : memref<4x2x32xf32, #tpu.memory_space<vmem>>, vector<1x2x32xf32>,
    %c3_i32_62 = arith.constant 3 : i32
    %c0_63 = arith.constant 0 : index
    %c0_64 = arith.constant 0 : index
    %c0_65 = arith.constant 0 : index
    %264 = vector.load %arg9[%c0_63, %c0_64, %c0_65] : memref<4x2x32xf32, #tpu.memory_space<vmem>>, vector<4x2x32xf32>
    %c0_66 = arith.constant 0 : index
    %c0_67 = arith.constant 0 : index
    %265 = vector.load %arg6[%c0_66, %c0_67] : memref<1x32xf32, #tpu.memory_space<vmem>>, vector<1x32xf32>
    %266 = vector.shape_cast %265 : vector<1x32xf32> to vector<1x1x32xf32>
    %267 = vector.broadcast %266 : vector<1x1x32xf32> to vector<4x2x32xf32>
    %268 = arith.mulf %264, %267 : vector<4x2x32xf32>
    %cst_68 = arith.constant dense<0.000000e+00> : vector<4x2xf32>
    %269 = vector.multi_reduction <add>, %268, %cst_68 [2] : vector<4x2x32xf32> to vector<4x2xf32>
    %c0_69 = arith.constant 0 : index
    %c0_70 = arith.constant 0 : index
    %270 = vector.load %arg7[%c0_69, %c0_70] : memref<1x1xf32, #tpu.memory_space<vmem>>, vector<1x1xf32>
    %271 = vector.broadcast %270 : vector<1x1xf32> to vector<4x2xf32>
    %272 = arith.addf %269, %271 : vector<4x2xf32>
    %c0_71 = arith.constant 0 : index
    %c0_72 = arith.constant 0 : index
    %273 = vector.load %arg8[%c0_71, %c0_72] : memref<4x2xf32, #tpu.memory_space<vmem>>, vector<4x2xf32>
    tpu.vector_store %arg8[%c0_71, %c0_72], %272 {strides = array<i32>} : memref<4x2xf32, #tpu.memory_space<vmem>>, vector<4x2xf32>,
    return
  }
}

</mosaic_0001>

<llo_original>
// kernel: lstm_lstm_forward.1
$region0: #{lstm_lstm_forward.1}
  #allocation0 [shape = 'u32[]', space=smem, size = 0x4, offset = 0x4, fixed_abs, tag = 'smem constant byte address 0x4 - core index']
  #allocation1 [shape = 'u32[144,128]{1,0:T(1,128)}', space=vmem, size = 0x12000, scoped, tag = 'internal scratch']
  #allocation2 [shape = 'f32[4,2,32]{2,1,0:T(2,128)}', space=vmem, size = 0x1000, scoped, tag = 'scratch operand']
  #allocation3 [shape = 'f32[1,1]{1,0:T(1,128)S(1)}', space=vmem, size = 0x200, scoped, tag = 'scoped memory for lstm_lstm_forward.1']
  %s0 = inlined_call_operand.vmem [shape: f32[8,2,128], index: 0, kind: input, shape index: {}]
  %s1 = inlined_call_operand.vmem [shape: f32[32,128], index: 1, kind: input, shape index: {}]
  %s2 = inlined_call_operand.vmem [shape: f32[2,128], index: 2, kind: input, shape index: {}]
  %s3 = inlined_call_operand.vmem [shape: f32[32,128], index: 3, kind: input, shape index: {}]
  %s4 = inlined_call_operand.vmem [shape: f32[32,128], index: 4, kind: input, shape index: {}]
  %s5 = inlined_call_operand.vmem [shape: f32[1,128], index: 5, kind: input, shape index: {}]
  %s6 = inlined_call_operand.vmem [shape: f32[1,32], index: 6, kind: input, shape index: {}]
  %s7 = inlined_call_operand.<no memory space> [shape: f32[1,1], index: 7, kind: input, shape index: {}]
  %s8 = inlined_call_operand.vmem [shape: f32[4,2], index: 8, kind: output, shape index: {}]
  %s9 = sld [smem:[#allocation0]]
  $region42: #{lstm_lstm_forward.1} parent=0
    _
  %s11 = ssub.s32 1, %s9
  %s12 = scalar_select 0, %s11, %s9
  %v13 = vstv %s7
  %14 = vst [vmem:[#allocation3] sm:$0x1] %v13
  // Predicated region
  $region2: #{lstm_lstm_forward.1} parent=0 // pred_check
    _
  $region3: #{lstm_lstm_forward.1} parent=0 // pred_check_branch
    %16 = sbr.rel (0) target = $region5
  $region4: #{lstm_lstm_forward.1} parent=0 // pred_region
    _
  $region5: #{lstm_lstm_forward.1} parent=0 // pred_fallthru
    _
  // Predicated region
  $region6: #{lstm_lstm_forward.1} parent=0 // pred_check
    _
  $region7: #{lstm_lstm_forward.1} parent=0 // pred_check_branch
    %18 = sbr.rel (0) target = $region9
  $region8: #{lstm_lstm_forward.1} parent=0 // pred_region
    _
  $region9: #{lstm_lstm_forward.1} parent=0 // pred_fallthru
    _
  // Predicated region
  $region10: #{lstm_lstm_forward.1} parent=0 // pred_check
    _
  $region11: #{lstm_lstm_forward.1} parent=0 // pred_check_branch
    %20 = sbr.rel (0) target = $region13
  $region12: #{lstm_lstm_forward.1} parent=0 // pred_region
    _
  $region13: #{lstm_lstm_forward.1} parent=0 // pred_fallthru
    _
  // Predicated region
  $region14: #{lstm_lstm_forward.1} parent=0 // pred_check
    _
  $region15: #{lstm_lstm_forward.1} parent=0 // pred_check_branch
    %22 = sbr.rel (0) target = $region17
  $region16: #{lstm_lstm_forward.1} parent=0 // pred_region
    _
  $region17: #{lstm_lstm_forward.1} parent=0 // pred_fallthru
    _
  // Predicated region
  $region18: #{lstm_lstm_forward.1} parent=0 // pred_check
    _
  $region19: #{lstm_lstm_forward.1} parent=0 // pred_check_branch
    %24 = sbr.rel (0) target = $region21
  $region20: #{lstm_lstm_forward.1} parent=0 // pred_region
    _
  $region21: #{lstm_lstm_forward.1} parent=0 // pred_fallthru
    _
  // Predicated region
  $region22: #{lstm_lstm_forward.1} parent=0 // pred_check
    _
  $region23: #{lstm_lstm_forward.1} parent=0 // pred_check_branch
    %26 = sbr.rel (0) target = $region25
  $region24: #{lstm_lstm_forward.1} parent=0 // pred_region
    _
  $region25: #{lstm_lstm_forward.1} parent=0 // pred_fallthru
    _
  // Predicated region
  $region26: #{lstm_lstm_forward.1} parent=0 // pred_check
    _
  $region27: #{lstm_lstm_forward.1} parent=0 // pred_check_branch
    %28 = sbr.rel (0) target = $region29
  $region28: #{lstm_lstm_forward.1} parent=0 // pred_region
    _
  $region29: #{lstm_lstm_forward.1} parent=0 // pred_fallthru
    _
  // Predicated region
  $region30: #{lstm_lstm_forward.1} parent=0 // pred_check
    _
  $region31: #{lstm_lstm_forward.1} parent=0 // pred_check_branch
    %30 = sbr.rel (0) target = $region33
  $region32: #{lstm_lstm_forward.1} parent=0 // pred_region
    _
  $region33: #{lstm_lstm_forward.1} parent=0 // pred_fallthru
    _
  %v31 = vld [vmem:[%s1] sm:$0xff]
  %v32 = vld [vmem:[%s1 + $0x8] sm:$0xff]
  %v33 = vld [vmem:[%s1 + $0x10] sm:$0xff]
  %v34 = vld [vmem:[%s1 + $0x18] sm:$0xff]
  %v35 = vld [vmem:[%s3] sm:$0xff]
  %v36 = vld [vmem:[%s3 + $0x8] sm:$0xff]
  %v37 = vld [vmem:[%s3 + $0x10] sm:$0xff]
  %v38 = vld [vmem:[%s3 + $0x18] sm:$0xff]
  %v39 = vld [vmem:[%s4] sm:$0xff]
  %v40 = vld [vmem:[%s4 + $0x8] sm:$0xff]
  %v41 = vld [vmem:[%s4 + $0x10] sm:$0xff]
  %v42 = vld [vmem:[%s4 + $0x18] sm:$0xff]
  %v43 = vld [vmem:[%s5] sm:$0x1]
  %v45 = vlaneseq
  %v46 = vshrl.u32 %v45, 7
  %v47 = vsub.s32 0, %v46
  %v48 = vrot.slane %v43, %v47
  %v50 = vld [vmem:[%s0] sm:$0x3]
  %vm51 = vcmask 261120
  %v53 = vsel %vm51, 0.0, 0
  %55 = vmatprep.subr.mxu0 0.0
  %v56 = vand.u32 %v31, 4294901760
  %57 = vmatpush1.msra.mxu0 %v56
  %58 = vmatprep.subr.mxu0 0.0
  %v59 = vand.u32 %v32, 4294901760
  %60 = vmatpush1.msra.mxu0 %v59
  %61 = vmatprep.subr.mxu0 0.0
  %v62 = vand.u32 %v33, 4294901760
  %63 = vmatpush1.msra.mxu0 %v62
  %64 = vmatprep.subr.mxu0 0.0
  %v65 = vand.u32 %v34, 4294901760
  %66 = vmatpush1.msra.mxu0 %v65
  %67 = vmatprep.subr.mxu0 0.0
  %68 = vmatpush1.msra.mxu0 0.0
  %69 = vmatprep.subr.mxu0 0.0
  %70 = vmatpush1.msra.mxu0 0.0
  %71 = vmatprep.subr.mxu0 0.0
  %72 = vmatpush1.msra.mxu0 0.0
  %73 = vmatprep.subr.mxu0 0.0
  %74 = vmatpush1.msra.mxu0 0.0
  %75 = vmatprep.subr.mxu0 0.0
  %76 = vmatpush1.msra.mxu0 0.0
  %77 = vmatprep.subr.mxu0 0.0
  %78 = vmatpush1.msra.mxu0 0.0
  %79 = vmatprep.subr.mxu0 0.0
  %80 = vmatpush1.msra.mxu0 0.0
  %81 = vmatprep.subr.mxu0 0.0
  %82 = vmatpush1.msra.mxu0 0.0
  %83 = vmatprep.subr.mxu0 0.0
  %84 = vmatpush1.msra.mxu0 0.0
  %85 = vmatprep.subr.mxu0 0.0
  %86 = vmatpush1.msra.mxu0 0.0
  %87 = vmatprep.subr.mxu0 0.0
  %88 = vmatpush1.msra.mxu0 0.0
  %89 = vmatprep.subr.mxu0 0.0
  %90 = vmatpush1.msra.mxu0 0.0
  %91 = vmatprep.subr.mxu0 0.0
  %92 = vmatpush1.msra.mxu0 0.0
  %93 = vmatprep.subr.mxu0 0.0
  %94 = vmatpush1.msra.mxu0 0.0
  %95 = vmatprep.subr.mxu0 0.0
  %96 = vmatpush1.msra.mxu0 0.0
  %97 = vmatprep.subr.mxu0 0.0
  %98 = vmatpush1.msra.mxu0 0.0
  %99 = vmatprep.subr.mxu0 0.0
  %100 = vmatpush1.msra.mxu0 0.0
  %101 = vmatprep.subr.mxu0 0.0
  %102 = vmatpush1.msra.mxu0 0.0
  %103 = vmatprep.subr.mxu0 0.0
  %104 = vmatpush1.msra.mxu0 0.0
  %105 = vmatprep.subr.mxu0 0.0
  %106 = vmatpush1.msra.mxu0 0.0
  %107 = vmatprep.subr.mxu0 0.0
  %108 = vmatpush1.msra.mxu0 0.0
  %109 = vmatprep.subr.mxu0 0.0
  %110 = vmatpush1.msra.mxu0 0.0
  %111 = vmatprep.subr.mxu0 0.0
  %112 = vmatpush1.msra.mxu0 0.0
  %113 = vmatprep.subr.mxu0 0.0
  %114 = vmatpush1.msra.mxu0 0.0
  %115 = vmatprep.subr.mxu0 0.0
  %116 = vmatpush1.msra.mxu0 0.0
  %117 = vmatprep.subr.mxu0 0.0
  %118 = vmatpush1.msra.mxu0 0.0
  %119 = vmatprep.subr.mxu0 0.0
  %120 = vmatpush1.msra.mxu0 0.0
  %121 = vmatprep.subr.mxu0 0.0
  %122 = vmatpush1.msra.mxu0 0.0
  %123 = vmatprep.mubr.f32.mxu0 0.0
  %v124 = vand.u32 %v53, 4294901760
  %v125 = vsub.f32 %v53, %v124
  %v126 = vand.u32 %v125, 4294901760
  %v127 = vsub.f32 %v125, %v126
  %v128 = vand.u32 %v127, 4294901760
  %129 = vmatmul.mubr.f32.gmra.mrb[0].mxu0 %v128
  %v130 = vpop.f32.mrb[0].mxu0
  %v131 = vadd.f32 0.0, %v130
  %v132 = vpop.f32.mrb[0].mxu0
  %133 = vdwg.mxu0
  %134 = vmatprep.subr.mxu0 0.0
  %v135 = vand.u32 %v31, 4294901760
  %v136 = vsub.f32 %v31, %v135
  %v137 = vand.u32 %v136, 4294901760
  %v138 = vsub.f32 %v136, %v137
  %v139 = vand.u32 %v138, 4294901760
  %140 = vmatpush1.msra.mxu0 %v139
  %141 = vmatprep.subr.mxu0 0.0
  %v142 = vand.u32 %v32, 4294901760
  %v143 = vsub.f32 %v32, %v142
  %v144 = vand.u32 %v143, 4294901760
  %v145 = vsub.f32 %v143, %v144
  %v146 = vand.u32 %v145, 4294901760
  %147 = vmatpush1.msra.mxu0 %v146
  %148 = vmatprep.subr.mxu0 0.0
  %v149 = vand.u32 %v33, 4294901760
  %v150 = vsub.f32 %v33, %v149
  %v151 = vand.u32 %v150, 4294901760
  %v152 = vsub.f32 %v150, %v151
  %v153 = vand.u32 %v152, 4294901760
  %154 = vmatpush1.msra.mxu0 %v153
  %155 = vmatprep.subr.mxu0 0.0
  %v156 = vand.u32 %v34, 4294901760
  %v157 = vsub.f32 %v34, %v156
  %v158 = vand.u32 %v157, 4294901760
  %v159 = vsub.f32 %v157, %v158
  %v160 = vand.u32 %v159, 4294901760
  %161 = vmatpush1.msra.mxu0 %v160
  %162 = vmatprep.subr.mxu0 0.0
  %163 = vmatpush1.msra.mxu0 0.0
  %164 = vmatprep.subr.mxu0 0.0
  %165 = vmatpush1.msra.mxu0 0.0
  %166 = vmatprep.subr.mxu0 0.0
  %167 = vmatpush1.msra.mxu0 0.0
  %168 = vmatprep.subr.mxu0 0.0
  %169 = vmatpush1.msra.mxu0 0.0
  %170 = vmatprep.subr.mxu0 0.0
  %171 = vmatpush1.msra.mxu0 0.0
  %172 = vmatprep.subr.mxu0 0.0
  %173 = vmatpush1.msra.mxu0 0.0
  %174 = vmatprep.subr.mxu0 0.0
  %175 = vmatpush1.msra.mxu0 0.0
  %176 = vmatprep.subr.mxu0 0.0
  %177 = vmatpush1.msra.mxu0 0.0
  %178 = vmatprep.subr.mxu0 0.0
  %179 = vmatpush1.msra.mxu0 0.0
  %180 = vmatprep.subr.mxu0 0.0
  %181 = vmatpush1.msra.mxu0 0.0
  %182 = vmatprep.subr.mxu0 0.0
  %183 = vmatpush1.msra.mxu0 0.0
  %184 = vmatprep.subr.mxu0 0.0
  %185 = vmatpush1.msra.mxu0 0.0
  %186 = vmatprep.subr.mxu0 0.0
  %187 = vmatpush1.msra.mxu0 0.0
  %188 = vmatprep.subr.mxu0 0.0
  %189 = vmatpush1.msra.mxu0 0.0
  %190 = vmatprep.subr.mxu0 0.0
  %191 = vmatpush1.msra.mxu0 0.0
  %192 = vmatprep.subr.mxu0 0.0
  %193 = vmatpush1.msra.mxu0 0.0
  %194 = vmatprep.subr.mxu0 0.0
  %195 = vmatpush1.msra.mxu0 0.0
  %196 = vmatprep.subr.mxu0 0.0
  %197 = vmatpush1.msra.mxu0 0.0
  %198 = vmatprep.subr.mxu0 0.0
  %199 = vmatpush1.msra.mxu0 0.0
  %200 = vmatprep.subr.mxu0 0.0
  %201 = vmatpush1.msra.mxu0 0.0
  %202 = vmatprep.subr.mxu0 0.0
  %203 = vmatpush1.msra.mxu0 0.0
  %204 = vmatprep.subr.mxu0 0.0
  %205 = vmatpush1.msra.mxu0 0.0
  %206 = vmatprep.subr.mxu0 0.0
  %207 = vmatpush1.msra.mxu0 0.0
  %208 = vmatprep.subr.mxu0 0.0
  %209 = vmatpush1.msra.mxu0 0.0
  %210 = vmatprep.subr.mxu0 0.0
  %211 = vmatpush1.msra.mxu0 0.0
  %212 = vmatprep.subr.mxu0 0.0
  %213 = vmatpush1.msra.mxu0 0.0
  %214 = vmatprep.subr.mxu0 0.0
  %215 = vmatpush1.msra.mxu0 0.0
  %216 = vmatprep.subr.mxu0 0.0
  %217 = vmatpush1.msra.mxu0 0.0
  %218 = vmatprep.mubr.f32.mxu0 0.0
  %v219 = vand.u32 %v53, 4294901760
  %220 = vmatmul.mubr.f32.gmra.mrb[0].mxu0 %v219
  %v221 = vpop.f32.mrb[0].mxu0
  %v222 = vadd.f32 %v131, %v221
  %v223 = vpop.f32.mrb[0].mxu0
  %224 = vdwg.mxu0
  %225 = vmatprep.subr.mxu0 0.0
  %v226 = vand.u32 %v31, 4294901760
  %v227 = vsub.f32 %v31, %v226
  %228 = vmatpush1.msra.mxu0 %v227
  %229 = vmatprep.subr.mxu0 0.0
  %v230 = vand.u32 %v32, 4294901760
  %v231 = vsub.f32 %v32, %v230
  %232 = vmatpush1.msra.mxu0 %v231
  %233 = vmatprep.subr.mxu0 0.0
  %v234 = vand.u32 %v33, 4294901760
  %v235 = vsub.f32 %v33, %v234
  %236 = vmatpush1.msra.mxu0 %v235
  %237 = vmatprep.subr.mxu0 0.0
  %v238 = vand.u32 %v34, 4294901760
  %v239 = vsub.f32 %v34, %v238
  %240 = vmatpush1.msra.mxu0 %v239
  %241 = vmatprep.subr.mxu0 0.0
  %242 = vmatpush1.msra.mxu0 0.0
  %243 = vmatprep.subr.mxu0 0.0
  %244 = vmatpush1.msra.mxu0 0.0
  %245 = vmatprep.subr.mxu0 0.0
  %246 = vmatpush1.msra.mxu0 0.0
  %247 = vmatprep.subr.mxu0 0.0
  %248 = vmatpush1.msra.mxu0 0.0
  %249 = vmatprep.subr.mxu0 0.0
  %250 = vmatpush1.msra.mxu0 0.0
  %251 = vmatprep.subr.mxu0 0.0
  %252 = vmatpush1.msra.mxu0 0.0
  %253 = vmatprep.subr.mxu0 0.0
  %254 = vmatpush1.msra.mxu0 0.0
  %255 = vmatprep.subr.mxu0 0.0
  %256 = vmatpush1.msra.mxu0 0.0
  %257 = vmatprep.subr.mxu0 0.0
  %258 = vmatpush1.msra.mxu0 0.0
  %259 = vmatprep.subr.mxu0 0.0
  %260 = vmatpush1.msra.mxu0 0.0
  %261 = vmatprep.subr.mxu0 0.0
  %262 = vmatpush1.msra.mxu0 0.0
  %263 = vmatprep.subr.mxu0 0.0
  %264 = vmatpush1.msra.mxu0 0.0
  %265 = vmatprep.subr.mxu0 0.0
  %266 = vmatpush1.msra.mxu0 0.0
  %267 = vmatprep.subr.mxu0 0.0
  %268 = vmatpush1.msra.mxu0 0.0
  %269 = vmatprep.subr.mxu0 0.0
  %270 = vmatpush1.msra.mxu0 0.0
  %271 = vmatprep.subr.mxu0 0.0
  %272 = vmatpush1.msra.mxu0 0.0
  %273 = vmatprep.subr.mxu0 0.0
  %274 = vmatpush1.msra.mxu0 0.0
  %275 = vmatprep.subr.mxu0 0.0
  %276 = vmatpush1.msra.mxu0 0.0
  %277 = vmatprep.subr.mxu0 0.0
  %278 = vmatpush1.msra.mxu0 0.0
  %279 = vmatprep.subr.mxu0 0.0
  %280 = vmatpush1.msra.mxu0 0.0
  %281 = vmatprep.subr.mxu0 0.0
  %282 = vmatpush1.msra.mxu0 0.0
  %283 = vmatprep.subr.mxu0 0.0
  %284 = vmatpush1.msra.mxu0 0.0
  %285 = vmatprep.subr.mxu0 0.0
  %286 = vmatpush1.msra.mxu0 0.0
  %287 = vmatprep.subr.mxu0 0.0
  %288 = vmatpush1.msra.mxu0 0.0
  %289 = vmatprep.subr.mxu0 0.0
  %290 = vmatpush1.msra.mxu0 0.0
  %291 = vmatprep.subr.mxu0 0.0
  %292 = vmatpush1.msra.mxu0 0.0
  %293 = vmatprep.subr.mxu0 0.0
  %294 = vmatpush1.msra.mxu0 0.0
  %295 = vmatprep.subr.mxu0 0.0
  %296 = vmatpush1.msra.mxu0 0.0
  %297 = vmatprep.mubr.f32.mxu0 0.0
  %v298 = vand.u32 %v53, 4294901760
  %v299 = vsub.f32 %v53, %v298
  %300 = vmatmul.mubr.f32.gmra.mrb[0].mxu0 %v299
  %v301 = vpop.f32.mrb[0].mxu0
  %v302 = vadd.f32 %v222, %v301
  %v303 = vpop.f32.mrb[0].mxu0
  %304 = vdwg.mxu0
  %305 = vmatprep.subr.mxu0 0.0
  %v306 = vand.u32 %v31, 4294901760
  %307 = vmatpush1.msra.mxu0 %v306
  %308 = vmatprep.subr.mxu0 0.0
  %v309 = vand.u32 %v32, 4294901760
  %310 = vmatpush1.msra.mxu0 %v309
  %311 = vmatprep.subr.mxu0 0.0
  %v312 = vand.u32 %v33, 4294901760
  %313 = vmatpush1.msra.mxu0 %v312
  %314 = vmatprep.subr.mxu0 0.0
  %v315 = vand.u32 %v34, 4294901760
  %316 = vmatpush1.msra.mxu0 %v315
  %317 = vmatprep.subr.mxu0 0.0
  %318 = vmatpush1.msra.mxu0 0.0
  %319 = vmatprep.subr.mxu0 0.0
  %320 = vmatpush1.msra.mxu0 0.0
  %321 = vmatprep.subr.mxu0 0.0
  %322 = vmatpush1.msra.mxu0 0.0
  %323 = vmatprep.subr.mxu0 0.0
  %324 = vmatpush1.msra.mxu0 0.0
  %325 = vmatprep.subr.mxu0 0.0
  %326 = vmatpush1.msra.mxu0 0.0
  %327 = vmatprep.subr.mxu0 0.0
  %328 = vmatpush1.msra.mxu0 0.0
  %329 = vmatprep.subr.mxu0 0.0
  %330 = vmatpush1.msra.mxu0 0.0
  %331 = vmatprep.subr.mxu0 0.0
  %332 = vmatpush1.msra.mxu0 0.0
  %333 = vmatprep.subr.mxu0 0.0
  %334 = vmatpush1.msra.mxu0 0.0
  %335 = vmatprep.subr.mxu0 0.0
  %336 = vmatpush1.msra.mxu0 0.0
  %337 = vmatprep.subr.mxu0 0.0
  %338 = vmatpush1.msra.mxu0 0.0
  %339 = vmatprep.subr.mxu0 0.0
  %340 = vmatpush1.msra.mxu0 0.0
  %341 = vmatprep.subr.mxu0 0.0
  %342 = vmatpush1.msra.mxu0 0.0
  %343 = vmatprep.subr.mxu0 0.0
  %344 = vmatpush1.msra.mxu0 0.0
  %345 = vmatprep.subr.mxu0 0.0
  %346 = vmatpush1.msra.mxu0 0.0
  %347 = vmatprep.subr.mxu0 0.0
  %348 = vmatpush1.msra.mxu0 0.0
  %349 = vmatprep.subr.mxu0 0.0
  %350 = vmatpush1.msra.mxu0 0.0
  %351 = vmatprep.subr.mxu0 0.0
  %352 = vmatpush1.msra.mxu0 0.0
  %353 = vmatprep.subr.mxu0 0.0
  %354 = vmatpush1.msra.mxu0 0.0
  %355 = vmatprep.subr.mxu0 0.0
  %356 = vmatpush1.msra.mxu0 0.0
  %357 = vmatprep.subr.mxu0 0.0
  %358 = vmatpush1.msra.mxu0 0.0
  %359 = vmatprep.subr.mxu0 0.0
  %360 = vmatpush1.msra.mxu0 0.0
  %361 = vmatprep.subr.mxu0 0.0
  %362 = vmatpush1.msra.mxu0 0.0
  %363 = vmatprep.subr.mxu0 0.0
  %364 = vmatpush1.msra.mxu0 0.0
  %365 = vmatprep.subr.mxu0 0.0
  %366 = vmatpush1.msra.mxu0 0.0
  %367 = vmatprep.subr.mxu0 0.0
  %368 = vmatpush1.msra.mxu0 0.0
  %369 = vmatprep.subr.mxu0 0.0
  %370 = vmatpush1.msra.mxu0 0.0
  %371 = vmatprep.subr.mxu0 0.0
  %372 = vmatpush1.msra.mxu0 0.0
  %373 = vmatprep.mubr.f32.mxu0 0.0
  %v374 = vand.u32 %v53, 4294901760
  %v375 = vsub.f32 %v53, %v374
  %v376 = vand.u32 %v375, 4294901760
  %377 = vmatmul.mubr.f32.gmra.mrb[0].mxu0 %v376
  %v378 = vpop.f32.mrb[0].mxu0
  %v379 = vadd.f32 %v302, %v378
  %v380 = vpop.f32.mrb[0].mxu0
  %381 = vdwg.mxu0
  %382 = vmatprep.subr.mxu0 0.0
  %v383 = vand.u32 %v31, 4294901760
  %v384 = vsub.f32 %v31, %v383
  %v385 = vand.u32 %v384, 4294901760
  %386 = vmatpush1.msra.mxu0 %v385
  %387 = vmatprep.subr.mxu0 0.0
  %v388 = vand.u32 %v32, 4294901760
  %v389 = vsub.f32 %v32, %v388
  %v390 = vand.u32 %v389, 4294901760
  %391 = vmatpush1.msra.mxu0 %v390
  %392 = vmatprep.subr.mxu0 0.0
  %v393 = vand.u32 %v33, 4294901760
  %v394 = vsub.f32 %v33, %v393
  %v395 = vand.u32 %v394, 4294901760
  %396 = vmatpush1.msra.mxu0 %v395
  %397 = vmatprep.subr.mxu0 0.0
  %v398 = vand.u32 %v34, 4294901760
  %v399 = vsub.f32 %v34, %v398
  %v400 = vand.u32 %v399, 4294901760
  %401 = vmatpush1.msra.mxu0 %v400
  %402 = vmatprep.subr.mxu0 0.0
  %403 = vmatpush1.msra.mxu0 0.0
  %404 = vmatprep.subr.mxu0 0.0
  %405 = vmatpush1.msra.mxu0 0.0
  %406 = vmatprep.subr.mxu0 0.0
  %407 = vmatpush1.msra.mxu0 0.0
  %408 = vmatprep.subr.mxu0 0.0
  %409 = vmatpush1.msra.mxu0 0.0
  %410 = vmatprep.subr.mxu0 0.0
  %411 = vmatpush1.msra.mxu0 0.0
  %412 = vmatprep.subr.mxu0 0.0
  %413 = vmatpush1.msra.mxu0 0.0
  %414 = vmatprep.subr.mxu0 0.0
  %415 = vmatpush1.msra.mxu0 0.0
  %416 = vmatprep.subr.mxu0 0.0
  %417 = vmatpush1.msra.mxu0 0.0
  %418 = vmatprep.subr.mxu0 0.0
  %419 = vmatpush1.msra.mxu0 0.0
  %420 = vmatprep.subr.mxu0 0.0
  %421 = vmatpush1.msra.mxu0 0.0
  %422 = vmatprep.subr.mxu0 0.0
  %423 = vmatpush1.msra.mxu0 0.0
  %424 = vmatprep.subr.mxu0 0.0
  %425 = vmatpush1.msra.mxu0 0.0
  %426 = vmatprep.subr.mxu0 0.0
  %427 = vmatpush1.msra.mxu0 0.0
  %428 = vmatprep.subr.mxu0 0.0
  %429 = vmatpush1.msra.mxu0 0.0
  %430 = vmatprep.subr.mxu0 0.0
  %431 = vmatpush1.msra.mxu0 0.0
  %432 = vmatprep.subr.mxu0 0.0
  %433 = vmatpush1.msra.mxu0 0.0
  %434 = vmatprep.subr.mxu0 0.0
  %435 = vmatpush1.msra.mxu0 0.0
  %436 = vmatprep.subr.mxu0 0.0
  %437 = vmatpush1.msra.mxu0 0.0
  %438 = vmatprep.subr.mxu0 0.0
  %439 = vmatpush1.msra.mxu0 0.0
  %440 = vmatprep.subr.mxu0 0.0
  %441 = vmatpush1.msra.mxu0 0.0
  %442 = vmatprep.subr.mxu0 0.0
  %443 = vmatpush1.msra.mxu0 0.0
  %444 = vmatprep.subr.mxu0 0.0
  %445 = vmatpush1.msra.mxu0 0.0
  %446 = vmatprep.subr.mxu0 0.0
  %447 = vmatpush1.msra.mxu0 0.0
  %448 = vmatprep.subr.mxu0 0.0
  %449 = vmatpush1.msra.mxu0 0.0
  %450 = vmatprep.subr.mxu0 0.0
  %451 = vmatpush1.msra.mxu0 0.0
  %452 = vmatprep.subr.mxu0 0.0
  %453 = vmatpush1.msra.mxu0 0.0
  %454 = vmatprep.subr.mxu0 0.0
  %455 = vmatpush1.msra.mxu0 0.0
  %456 = vmatprep.subr.mxu0 0.0
  %457 = vmatpush1.msra.mxu0 0.0
  %458 = vmatprep.mubr.f32.mxu0 0.0
  %v459 = vand.u32 %v53, 4294901760
  %460 = vmatmul.mubr.f32.gmra.mrb[0].mxu0 %v459
  %v461 = vpop.f32.mrb[0].mxu0
  %v462 = vadd.f32 %v379, %v461
  %v463 = vpop.f32.mrb[0].mxu0
  %464 = vdwg.mxu0
  %465 = vmatprep.subr.mxu0 0.0
  %v466 = vand.u32 %v31, 4294901760
  %467 = vmatpush1.msra.mxu0 %v466
  %468 = vmatprep.subr.mxu0 0.0
  %v469 = vand.u32 %v32, 4294901760
  %470 = vmatpush1.msra.mxu0 %v469
  %471 = vmatprep.subr.mxu0 0.0
  %v472 = vand.u32 %v33, 4294901760
  %473 = vmatpush1.msra.mxu0 %v472
  %474 = vmatprep.subr.mxu0 0.0
  %v475 = vand.u32 %v34, 4294901760
  %476 = vmatpush1.msra.mxu0 %v475
  %477 = vmatprep.subr.mxu0 0.0
  %478 = vmatpush1.msra.mxu0 0.0
  %479 = vmatprep.subr.mxu0 0.0
  %480 = vmatpush1.msra.mxu0 0.0
  %481 = vmatprep.subr.mxu0 0.0
  %482 = vmatpush1.msra.mxu0 0.0
  %483 = vmatprep.subr.mxu0 0.0
  %484 = vmatpush1.msra.mxu0 0.0
  %485 = vmatprep.subr.mxu0 0.0
  %486 = vmatpush1.msra.mxu0 0.0
  %487 = vmatprep.subr.mxu0 0.0
  %488 = vmatpush1.msra.mxu0 0.0
  %489 = vmatprep.subr.mxu0 0.0
  %490 = vmatpush1.msra.mxu0 0.0
  %491 = vmatprep.subr.mxu0 0.0
  %492 = vmatpush1.msra.mxu0 0.0
  %493 = vmatprep.subr.mxu0 0.0
  %494 = vmatpush1.msra.mxu0 0.0
  %495 = vmatprep.subr.mxu0 0.0
  %496 = vmatpush1.msra.mxu0 0.0
  %497 = vmatprep.subr.mxu0 0.0
  %498 = vmatpush1.msra.mxu0 0.0
  %499 = vmatprep.subr.mxu0 0.0
  %500 = vmatpush1.msra.mxu0 0.0
  %501 = vmatprep.subr.mxu0 0.0
  %502 = vmatpush1.msra.mxu0 0.0
  %503 = vmatprep.subr.mxu0 0.0
  %504 = vmatpush1.msra.mxu0 0.0
  %505 = vmatprep.subr.mxu0 0.0
  %506 = vmatpush1.msra.mxu0 0.0
  %507 = vmatprep.subr.mxu0 0.0
  %508 = vmatpush1.msra.mxu0 0.0
  %509 = vmatprep.subr.mxu0 0.0
  %510 = vmatpush1.msra.mxu0 0.0
  %511 = vmatprep.subr.mxu0 0.0
  %512 = vmatpush1.msra.mxu0 0.0
  %513 = vmatprep.subr.mxu0 0.0
  %514 = vmatpush1.msra.mxu0 0.0
  %515 = vmatprep.subr.mxu0 0.0
  %516 = vmatpush1.msra.mxu0 0.0
  %517 = vmatprep.subr.mxu0 0.0
  %518 = vmatpush1.msra.mxu0 0.0
  %519 = vmatprep.subr.mxu0 0.0
  %520 = vmatpush1.msra.mxu0 0.0
  %521 = vmatprep.subr.mxu0 0.0
  %522 = vmatpush1.msra.mxu0 0.0
  %523 = vmatprep.subr.mxu0 0.0
  %524 = vmatpush1.msra.mxu0 0.0
  %525 = vmatprep.subr.mxu0 0.0
  %526 = vmatpush1.msra.mxu0 0.0
  %527 = vmatprep.subr.mxu0 0.0
  %528 = vmatpush1.msra.mxu0 0.0
  %529 = vmatprep.subr.mxu0 0.0
  %530 = vmatpush1.msra.mxu0 0.0
  %531 = vmatprep.subr.mxu0 0.0
  %532 = vmatpush1.msra.mxu0 0.0
  %533 = vmatprep.mubr.f32.mxu0 0.0
  %v534 = vand.u32 %v53, 4294901760
  %535 = vmatmul.mubr.f32.gmra.mrb[0].mxu0 %v534
  %v536 = vpop.f32.mrb[0].mxu0
  %v537 = vadd.f32 %v462, %v536
  %v538 = vpop.f32.mrb[0].mxu0
  %539 = vdwg.mxu0
  %v540 = vadd.f32 %v50, %v537
  %v541 = vxor.u32 %v540, 2147483648
  %v542 = vmul.f32 %v541, 1.442695
  %v543 = vpow.pop %v542
  %v544 = vadd.f32 %v543, 1.0
  %v545 = vrcp.pop %v544
  %v546 = vmul.f32 1.0, %v545
  %v547 = vtanh.pop %v540
  %v548 = vmul.f32 %v546, 0.0
  %550 = vrot.lane.b32.xlu0 %v547, 32
  %v551 = vpop.permute.xlu0 %550
  %v553 = vmul.f32 %v546, %v551
  %555 = vrot.lane.b32.xlu0 %v553, 32
  %v556 = vpop.permute.xlu0 %555
  %v558 = vadd.f32 %v548, %v556
  %v559 = vtanh.pop %v558
  %561 = vrot.lane.b32.xlu0 %v559, 32
  %v562 = vpop.permute.xlu0 %561
  %v564 = vmul.f32 %v546, %v562
  %s565 = scalar_lea.vmem %s0, 2
  %v566 = vld [vmem:[%s565] sm:$0x3]
  %568 = vrot.lane.b32.xlu0 %v564, 64
  %v569 = vpop.permute.xlu0 %568
  %v570 = vsel %vm51, %v569, 0
  %572 = vmatprep.subr.mxu0 0.0
  %v573 = vand.u32 %v31, 4294901760
  %574 = vmatpush1.msra.mxu0 %v573
  %575 = vmatprep.subr.mxu0 0.0
  %v576 = vand.u32 %v32, 4294901760
  %577 = vmatpush1.msra.mxu0 %v576
  %578 = vmatprep.subr.mxu0 0.0
  %v579 = vand.u32 %v33, 4294901760
  %580 = vmatpush1.msra.mxu0 %v579
  %581 = vmatprep.subr.mxu0 0.0
  %v582 = vand.u32 %v34, 4294901760
  %583 = vmatpush1.msra.mxu0 %v582
  %584 = vmatprep.subr.mxu0 0.0
  %585 = vmatpush1.msra.mxu0 0.0
  %586 = vmatprep.subr.mxu0 0.0
  %587 = vmatpush1.msra.mxu0 0.0
  %588 = vmatprep.subr.mxu0 0.0
  %589 = vmatpush1.msra.mxu0 0.0
  %590 = vmatprep.subr.mxu0 0.0
  %591 = vmatpush1.msra.mxu0 0.0
  %592 = vmatprep.subr.mxu0 0.0
  %593 = vmatpush1.msra.mxu0 0.0
  %594 = vmatprep.subr.mxu0 0.0
  %595 = vmatpush1.msra.mxu0 0.0
  %596 = vmatprep.subr.mxu0 0.0
  %597 = vmatpush1.msra.mxu0 0.0
  %598 = vmatprep.subr.mxu0 0.0
  %599 = vmatpush1.msra.mxu0 0.0
  %600 = vmatprep.subr.mxu0 0.0
  %601 = vmatpush1.msra.mxu0 0.0
  %602 = vmatprep.subr.mxu0 0.0
  %603 = vmatpush1.msra.mxu0 0.0
  %604 = vmatprep.subr.mxu0 0.0
  %605 = vmatpush1.msra.mxu0 0.0
  %606 = vmatprep.subr.mxu0 0.0
  %607 = vmatpush1.msra.mxu0 0.0
  %608 = vmatprep.subr.mxu0 0.0
  %609 = vmatpush1.msra.mxu0 0.0
  %610 = vmatprep.subr.mxu0 0.0
  %611 = vmatpush1.msra.mxu0 0.0
  %612 = vmatprep.subr.mxu0 0.0
  %613 = vmatpush1.msra.mxu0 0.0
  %614 = vmatprep.subr.mxu0 0.0
  %615 = vmatpush1.msra.mxu0 0.0
  %616 = vmatprep.subr.mxu0 0.0
  %617 = vmatpush1.msra.mxu0 0.0
  %618 = vmatprep.subr.mxu0 0.0
  %619 = vmatpush1.msra.mxu0 0.0
  %620 = vmatprep.subr.mxu0 0.0
  %621 = vmatpush1.msra.mxu0 0.0
  %622 = vmatprep.subr.mxu0 0.0
  %623 = vmatpush1.msra.mxu0 0.0
  %624 = vmatprep.subr.mxu0 0.0
  %625 = vmatpush1.msra.mxu0 0.0
  %626 = vmatprep.subr.mxu0 0.0
  %627 = vmatpush1.msra.mxu0 0.0
  %628 = vmatprep.subr.mxu0 0.0
  %629 = vmatpush1.msra.mxu0 0.0
  %630 = vmatprep.subr.mxu0 0.0
  %631 = vmatpush1.msra.mxu0 0.0
  %632 = vmatprep.subr.mxu0 0.0
  %633 = vmatpush1.msra.mxu0 0.0
  %634 = vmatprep.subr.mxu0 0.0
  %635 = vmatpush1.msra.mxu0 0.0
  %636 = vmatprep.subr.mxu0 0.0
  %637 = vmatpush1.msra.mxu0 0.0
  %638 = vmatprep.subr.mxu0 0.0
  %639 = vmatpush1.msra.mxu0 0.0
  %640 = vmatprep.mubr.f32.mxu0 0.0
  %v641 = vand.u32 %v570, 4294901760
  %v642 = vsub.f32 %v570, %v641
  %v643 = vand.u32 %v642, 4294901760
  %v644 = vsub.f32 %v642, %v643
  %v645 = vand.u32 %v644, 4294901760
  %646 = vmatmul.mubr.f32.gmra.mrb[0].mxu0 %v645
  %v647 = vpop.f32.mrb[0].mxu0
  %v648 = vadd.f32 0.0, %v647
  %v649 = vpop.f32.mrb[0].mxu0
  %650 = vdwg.mxu0
  %651 = vmatprep.subr.mxu0 0.0
  %v652 = vand.u32 %v31, 4294901760
  %v653 = vsub.f32 %v31, %v652
  %v654 = vand.u32 %v653, 4294901760
  %v655 = vsub.f32 %v653, %v654
  %v656 = vand.u32 %v655, 4294901760
  %657 = vmatpush1.msra.mxu0 %v656
  %658 = vmatprep.subr.mxu0 0.0
  %v659 = vand.u32 %v32, 4294901760
  %v660 = vsub.f32 %v32, %v659
  %v661 = vand.u32 %v660, 4294901760
  %v662 = vsub.f32 %v660, %v661
  %v663 = vand.u32 %v662, 4294901760
  %664 = vmatpush1.msra.mxu0 %v663
  %665 = vmatprep.subr.mxu0 0.0
  %v666 = vand.u32 %v33, 4294901760
  %v667 = vsub.f32 %v33, %v666
  %v668 = vand.u32 %v667, 4294901760
  %v669 = vsub.f32 %v667, %v668
  %v670 = vand.u32 %v669, 4294901760
  %671 = vmatpush1.msra.mxu0 %v670
  %672 = vmatprep.subr.mxu0 0.0
  %v673 = vand.u32 %v34, 4294901760
  %v674 = vsub.f32 %v34, %v673
  %v675 = vand.u32 %v674, 4294901760
  %v676 = vsub.f32 %v674, %v675
  %v677 = vand.u32 %v676, 4294901760
  %678 = vmatpush1.msra.mxu0 %v677
  %679 = vmatprep.subr.mxu0 0.0
  %680 = vmatpush1.msra.mxu0 0.0
  %681 = vmatprep.subr.mxu0 0.0
  %682 = vmatpush1.msra.mxu0 0.0
  %683 = vmatprep.subr.mxu0 0.0
  %684 = vmatpush1.msra.mxu0 0.0
  %685 = vmatprep.subr.mxu0 0.0
  %686 = vmatpush1.msra.mxu0 0.0
  %687 = vmatprep.subr.mxu0 0.0
  %688 = vmatpush1.msra.mxu0 0.0
  %689 = vmatprep.subr.mxu0 0.0
  %690 = vmatpush1.msra.mxu0 0.0
  %691 = vmatprep.subr.mxu0 0.0
  %692 = vmatpush1.msra.mxu0 0.0
  %693 = vmatprep.subr.mxu0 0.0
  %694 = vmatpush1.msra.mxu0 0.0
  %695 = vmatprep.subr.mxu0 0.0
  %696 = vmatpush1.msra.mxu0 0.0
  %697 = vmatprep.subr.mxu0 0.0
  %698 = vmatpush1.msra.mxu0 0.0
  %699 = vmatprep.subr.mxu0 0.0
  %700 = vmatpush1.msra.mxu0 0.0
  %701 = vmatprep.subr.mxu0 0.0
  %702 = vmatpush1.msra.mxu0 0.0
  %703 = vmatprep.subr.mxu0 0.0
  %704 = vmatpush1.msra.mxu0 0.0
  %705 = vmatprep.subr.mxu0 0.0
  %706 = vmatpush1.msra.mxu0 0.0
  %707 = vmatprep.subr.mxu0 0.0
  %708 = vmatpush1.msra.mxu0 0.0
  %709 = vmatprep.subr.mxu0 0.0
  %710 = vmatpush1.msra.mxu0 0.0
  %711 = vmatprep.subr.mxu0 0.0
  %712 = vmatpush1.msra.mxu0 0.0
  %713 = vmatprep.subr.mxu0 0.0
  %714 = vmatpush1.msra.mxu0 0.0
  %715 = vmatprep.subr.mxu0 0.0
  %716 = vmatpush1.msra.mxu0 0.0
  %717 = vmatprep.subr.mxu0 0.0
  %718 = vmatpush1.msra.mxu0 0.0
  %719 = vmatprep.subr.mxu0 0.0
  %720 = vmatpush1.msra.mxu0 0.0
  %721 = vmatprep.subr.mxu0 0.0
  %722 = vmatpush1.msra.mxu0 0.0
  %723 = vmatprep.subr.mxu0 0.0
  %724 = vmatpush1.msra.mxu0 0.0
  %725 = vmatprep.subr.mxu0 0.0
  %726 = vmatpush1.msra.mxu0 0.0
  %727 = vmatprep.subr.mxu0 0.0
  %728 = vmatpush1.msra.mxu0 0.0
  %729 = vmatprep.subr.mxu0 0.0
  %730 = vmatpush1.msra.mxu0 0.0
  %731 = vmatprep.subr.mxu0 0.0
  %732 = vmatpush1.msra.mxu0 0.0
  %733 = vmatprep.subr.mxu0 0.0
  %734 = vmatpush1.msra.mxu0 0.0
  %735 = vmatprep.mubr.f32.mxu0 0.0
  %v736 = vand.u32 %v570, 4294901760
  %737 = vmatmul.mubr.f32.gmra.mrb[0].mxu0 %v736
  %v738 = vpop.f32.mrb[0].mxu0
  %v739 = vadd.f32 %v648, %v738
  %v740 = vpop.f32.mrb[0].mxu0
  %741 = vdwg.mxu0
  %742 = vmatprep.subr.mxu0 0.0
  %v743 = vand.u32 %v31, 4294901760
  %v744 = vsub.f32 %v31, %v743
  %745 = vmatpush1.msra.mxu0 %v744
  %746 = vmatprep.subr.mxu0 0.0
  %v747 = vand.u32 %v32, 4294901760
  %v748 = vsub.f32 %v32, %v747
  %749 = vmatpush1.msra.mxu0 %v748
  %750 = vmatprep.subr.mxu0 0.0
  %v751 = vand.u32 %v33, 4294901760
  %v752 = vsub.f32 %v33, %v751
  %753 = vmatpush1.msra.mxu0 %v752
  %754 = vmatprep.subr.mxu0 0.0
  %v755 = vand.u32 %v34, 4294901760
  %v756 = vsub.f32 %v34, %v755
  %757 = vmatpush1.msra.mxu0 %v756
  %758 = vmatprep.subr.mxu0 0.0
  %759 = vmatpush1.msra.mxu0 0.0
  %760 = vmatprep.subr.mxu0 0.0
  %761 = vmatpush1.msra.mxu0 0.0
  %762 = vmatprep.subr.mxu0 0.0
  %763 = vmatpush1.msra.mxu0 0.0
  %764 = vmatprep.subr.mxu0 0.0
  %765 = vmatpush1.msra.mxu0 0.0
  %766 = vmatprep.subr.mxu0 0.0
  %767 = vmatpush1.msra.mxu0 0.0
  %768 = vmatprep.subr.mxu0 0.0
  %769 = vmatpush1.msra.mxu0 0.0
  %770 = vmatprep.subr.mxu0 0.0
  %771 = vmatpush1.msra.mxu0 0.0
  %772 = vmatprep.subr.mxu0 0.0
  %773 = vmatpush1.msra.mxu0 0.0
  %774 = vmatprep.subr.mxu0 0.0
  %775 = vmatpush1.msra.mxu0 0.0
  %776 = vmatprep.subr.mxu0 0.0
  %777 = vmatpush1.msra.mxu0 0.0
  %778 = vmatprep.subr.mxu0 0.0
  %779 = vmatpush1.msra.mxu0 0.0
  %780 = vmatprep.subr.mxu0 0.0
  %781 = vmatpush1.msra.mxu0 0.0
  %782 = vmatprep.subr.mxu0 0.0
  %783 = vmatpush1.msra.mxu0 0.0
  %784 = vmatprep.subr.mxu0 0.0
  %785 = vmatpush1.msra.mxu0 0.0
  %786 = vmatprep.subr.mxu0 0.0
  %787 = vmatpush1.msra.mxu0 0.0
  %788 = vmatprep.subr.mxu0 0.0
  %789 = vmatpush1.msra.mxu0 0.0
  %790 = vmatprep.subr.mxu0 0.0
  %791 = vmatpush1.msra.mxu0 0.0
  %792 = vmatprep.subr.mxu0 0.0
  %793 = vmatpush1.msra.mxu0 0.0
  %794 = vmatprep.subr.mxu0 0.0
  %795 = vmatpush1.msra.mxu0 0.0
  %796 = vmatprep.subr.mxu0 0.0
  %797 = vmatpush1.msra.mxu0 0.0
  %798 = vmatprep.subr.mxu0 0.0
  %799 = vmatpush1.msra.mxu0 0.0
  %800 = vmatprep.subr.mxu0 0.0
  %801 = vmatpush1.msra.mxu0 0.0
  %802 = vmatprep.subr.mxu0 0.0
  %803 = vmatpush1.msra.mxu0 0.0
  %804 = vmatprep.subr.mxu0 0.0
  %805 = vmatpush1.msra.mxu0 0.0
  %806 = vmatprep.subr.mxu0 0.0
  %807 = vmatpush1.msra.mxu0 0.0
  %808 = vmatprep.subr.mxu0 0.0
  %809 = vmatpush1.msra.mxu0 0.0
  %810 = vmatprep.subr.mxu0 0.0
  %811 = vmatpush1.msra.mxu0 0.0
  %812 = vmatprep.subr.mxu0 0.0
  %813 = vmatpush1.msra.mxu0 0.0
  %814 = vmatprep.mubr.f32.mxu0 0.0
  %v815 = vand.u32 %v570, 4294901760
  %v816 = vsub.f32 %v570, %v815
  %817 = vmatmul.mubr.f32.gmra.mrb[0].mxu0 %v816
  %v818 = vpop.f32.mrb[0].mxu0
  %v819 = vadd.f32 %v739, %v818
  %v820 = vpop.f32.mrb[0].mxu0
  %821 = vdwg.mxu0
  %822 = vmatprep.subr.mxu0 0.0
  %v823 = vand.u32 %v31, 4294901760
  %824 = vmatpush1.msra.mxu0 %v823
  %825 = vmatprep.subr.mxu0 0.0
  %v826 = vand.u32 %v32, 4294901760
  %827 = vmatpush1.msra.mxu0 %v826
  %828 = vmatprep.subr.mxu0 0.0
  %v829 = vand.u32 %v33, 4294901760
  %830 = vmatpush1.msra.mxu0 %v829
  %831 = vmatprep.subr.mxu0 0.0
  %v832 = vand.u32 %v34, 4294901760
  %833 = vmatpush1.msra.mxu0 %v832
  %834 = vmatprep.subr.mxu0 0.0
  %835 = vmatpush1.msra.mxu0 0.0
  %836 = vmatprep.subr.mxu0 0.0
  %837 = vmatpush1.msra.mxu0 0.0
  %838 = vmatprep.subr.mxu0 0.0
  %839 = vmatpush1.msra.mxu0 0.0
  %840 = vmatprep.subr.mxu0 0.0
  %841 = vmatpush1.msra.mxu0 0.0
  %842 = vmatprep.subr.mxu0 0.0
  %843 = vmatpush1.msra.mxu0 0.0
  %844 = vmatprep.subr.mxu0 0.0
  %845 = vmatpush1.msra.mxu0 0.0
  %846 = vmatprep.subr.mxu0 0.0
  %847 = vmatpush1.msra.mxu0 0.0
  %848 = vmatprep.subr.mxu0 0.0
  %849 = vmatpush1.msra.mxu0 0.0
  %850 = vmatprep.subr.mxu0 0.0
  %851 = vmatpush1.msra.mxu0 0.0
  %852 = vmatprep.subr.mxu0 0.0
  %853 = vmatpush1.msra.mxu0 0.0
  %854 = vmatprep.subr.mxu0 0.0
  %855 = vmatpush1.msra.mxu0 0.0
  %856 = vmatprep.subr.mxu0 0.0
  %857 = vmatpush1.msra.mxu0 0.0
  %858 = vmatprep.subr.mxu0 0.0
  %859 = vmatpush1.msra.mxu0 0.0
  %860 = vmatprep.subr.mxu0 0.0
  %861 = vmatpush1.msra.mxu0 0.0
  %862 = vmatprep.subr.mxu0 0.0
  %863 = vmatpush1.msra.mxu0 0.0
  %864 = vmatprep.subr.mxu0 0.0
  %865 = vmatpush1.msra.mxu0 0.0
  %866 = vmatprep.subr.mxu0 0.0
  %867 = vmatpush1.msra.mxu0 0.0
  %868 = vmatprep.subr.mxu0 0.0
  %869 = vmatpush1.msra.mxu0 0.0
  %870 = vmatprep.subr.mxu0 0.0
  %871 = vmatpush1.msra.mxu0 0.0
  %872 = vmatprep.subr.mxu0 0.0
  %873 = vmatpush1.msra.mxu0 0.0
  %874 = vmatprep.subr.mxu0 0.0
  %875 = vmatpush1.msra.mxu0 0.0
  %876 = vmatprep.subr.mxu0 0.0
  %877 = vmatpush1.msra.mxu0 0.0
  %878 = vmatprep.subr.mxu0 0.0
  %879 = vmatpush1.msra.mxu0 0.0
  %880 = vmatprep.subr.mxu0 0.0
  %881 = vmatpush1.msra.mxu0 0.0
  %882 = vmatprep.subr.mxu0 0.0
  %883 = vmatpush1.msra.mxu0 0.0
  %884 = vmatprep.subr.mxu0 0.0
  %885 = vmatpush1.msra.mxu0 0.0
  %886 = vmatprep.subr.mxu0 0.0
  %887 = vmatpush1.msra.mxu0 0.0
  %888 = vmatprep.subr.mxu0 0.0
  %889 = vmatpush1.msra.mxu0 0.0
  %890 = vmatprep.mubr.f32.mxu0 0.0
  %v891 = vand.u32 %v570, 4294901760
  %v892 = vsub.f32 %v570, %v891
  %v893 = vand.u32 %v892, 4294901760
  %894 = vmatmul.mubr.f32.gmra.mrb[0].mxu0 %v893
  %v895 = vpop.f32.mrb[0].mxu0
  %v896 = vadd.f32 %v819, %v895
  %v897 = vpop.f32.mrb[0].mxu0
  %898 = vdwg.mxu0
  %899 = vmatprep.subr.mxu0 0.0
  %v900 = vand.u32 %v31, 4294901760
  %v901 = vsub.f32 %v31, %v900
  %v902 = vand.u32 %v901, 4294901760
  %903 = vmatpush1.msra.mxu0 %v902
  %904 = vmatprep.subr.mxu0 0.0
  %v905 = vand.u32 %v32, 4294901760
  %v906 = vsub.f32 %v32, %v905
  %v907 = vand.u32 %v906, 4294901760
  %908 = vmatpush1.msra.mxu0 %v907
  %909 = vmatprep.subr.mxu0 0.0
  %v910 = vand.u32 %v33, 4294901760
  %v911 = vsub.f32 %v33, %v910
  %v912 = vand.u32 %v911, 4294901760
  %913 = vmatpush1.msra.mxu0 %v912
  %914 = vmatprep.subr.mxu0 0.0
  %v915 = vand.u32 %v34, 4294901760
  %v916 = vsub.f32 %v34, %v915
  %v917 = vand.u32 %v916, 4294901760
  %918 = vmatpush1.msra.mxu0 %v917
  %919 = vmatprep.subr.mxu0 0.0
  %920 = vmatpush1.msra.mxu0 0.0
  %921 = vmatprep.subr.mxu0 0.0
  %922 = vmatpush1.msra.mxu0 0.0
  %923 = vmatprep.subr.mxu0 0.0
  %924 = vmatpush1.msra.mxu0 0.0
  %925 = vmatprep.subr.mxu0 0.0
  %926 = vmatpush1.msra.mxu0 0.0
  %927 = vmatprep.subr.mxu0 0.0
  %928 = vmatpush1.msra.mxu0 0.0
  %929 = vmatprep.subr.mxu0 0.0
  %930 = vmatpush1.msra.mxu0 0.0
  %931 = vmatprep.subr.mxu0 0.0
  %932 = vmatpush1.msra.mxu0 0.0
  %933 = vmatprep.subr.mxu0 0.0
  %934 = vmatpush1.msra.mxu0 0.0
  %935 = vmatprep.subr.mxu0 0.0
  %936 = vmatpush1.msra.mxu0 0.0
  %937 = vmatprep.subr.mxu0 0.0
  %938 = vmatpush1.msra.mxu0 0.0
  %939 = vmatprep.subr.mxu0 0.0
  %940 = vmatpush1.msra.mxu0 0.0
  %941 = vmatprep.subr.mxu0 0.0
  %942 = vmatpush1.msra.mxu0 0.0
  %943 = vmatprep.subr.mxu0 0.0
  %944 = vmatpush1.msra.mxu0 0.0
  %945 = vmatprep.subr.mxu0 0.0
  %946 = vmatpush1.msra.mxu0 0.0
  %947 = vmatprep.subr.mxu0 0.0
  %948 = vmatpush1.msra.mxu0 0.0
  %949 = vmatprep.subr.mxu0 0.0
  %950 = vmatpush1.msra.mxu0 0.0
  %951 = vmatprep.subr.mxu0 0.0
  %952 = vmatpush1.msra.mxu0 0.0
  %953 = vmatprep.subr.mxu0 0.0
  %954 = vmatpush1.msra.mxu0 0.0
  %955 = vmatprep.subr.mxu0 0.0
  %956 = vmatpush1.msra.mxu0 0.0
  %957 = vmatprep.subr.mxu0 0.0
  %958 = vmatpush1.msra.mxu0 0.0
  %959 = vmatprep.subr.mxu0 0.0
  %960 = vmatpush1.msra.mxu0 0.0
  %961 = vmatprep.subr.mxu0 0.0
  %962 = vmatpush1.msra.mxu0 0.0
  %963 = vmatprep.subr.mxu0 0.0
  %964 = vmatpush1.msra.mxu0 0.0
  %965 = vmatprep.subr.mxu0 0.0
  %966 = vmatpush1.msra.mxu0 0.0
  %967 = vmatprep.subr.mxu0 0.0
  %968 = vmatpush1.msra.mxu0 0.0
  %969 = vmatprep.subr.mxu0 0.0
  %970 = vmatpush1.msra.mxu0 0.0
  %971 = vmatprep.subr.mxu0 0.0
  %972 = vmatpush1.msra.mxu0 0.0
  %973 = vmatprep.subr.mxu0 0.0
  %974 = vmatpush1.msra.mxu0 0.0
  %975 = vmatprep.mubr.f32.mxu0 0.0
  %v976 = vand.u32 %v570, 4294901760
  %977 = vmatmul.mubr.f32.gmra.mrb[0].mxu0 %v976
  %v978 = vpop.f32.mrb[0].mxu0
  %v979 = vadd.f32 %v896, %v978
  %v980 = vpop.f32.mrb[0].mxu0
  %981 = vdwg.mxu0
  %982 = vmatprep.subr.mxu0 0.0
  %v983 = vand.u32 %v31, 4294901760
  %984 = vmatpush1.msra.mxu0 %v983
  %985 = vmatprep.subr.mxu0 0.0
  %v986 = vand.u32 %v32, 4294901760
  %987 = vmatpush1.msra.mxu0 %v986
  %988 = vmatprep.subr.mxu0 0.0
  %v989 = vand.u32 %v33, 4294901760
  %990 = vmatpush1.msra.mxu0 %v989
  %991 = vmatprep.subr.mxu0 0.0
  %v992 = vand.u32 %v34, 4294901760
  %993 = vmatpush1.msra.mxu0 %v992
  %994 = vmatprep.subr.mxu0 0.0
  %995 = vmatpush1.msra.mxu0 0.0
  %996 = vmatprep.subr.mxu0 0.0
  %997 = vmatpush1.msra.mxu0 0.0
  %998 = vmatprep.subr.mxu0 0.0
  %999 = vmatpush1.msra.mxu0 0.0
  %1000 = vmatprep.subr.mxu0 0.0
  %1001 = vmatpush1.msra.mxu0 0.0
  %1002 = vmatprep.subr.mxu0 0.0
  %1003 = vmatpush1.msra.mxu0 0.0
  %1004 = vmatprep.subr.mxu0 0.0
  %1005 = vmatpush1.msra.mxu0 0.0
  %1006 = vmatprep.subr.mxu0 0.0
  %1007 = vmatpush1.msra.mxu0 0.0
  %1008 = vmatprep.subr.mxu0 0.0
  %1009 = vmatpush1.msra.mxu0 0.0
  %1010 = vmatprep.subr.mxu0 0.0
  %1011 = vmatpush1.msra.mxu0 0.0
  %1012 = vmatprep.subr.mxu0 0.0
  %1013 = vmatpush1.msra.mxu0 0.0
  %1014 = vmatprep.subr.mxu0 0.0
  %1015 = vmatpush1.msra.mxu0 0.0
  %1016 = vmatprep.subr.mxu0 0.0
  %1017 = vmatpush1.msra.mxu0 0.0
  %1018 = vmatprep.subr.mxu0 0.0
  %1019 = vmatpush1.msra.mxu0 0.0
  %1020 = vmatprep.subr.mxu0 0.0
  %1021 = vmatpush1.msra.mxu0 0.0
  %1022 = vmatprep.subr.mxu0 0.0
  %1023 = vmatpush1.msra.mxu0 0.0
  %1024 = vmatprep.subr.mxu0 0.0
  %1025 = vmatpush1.msra.mxu0 0.0
  %1026 = vmatprep.subr.mxu0 0.0
  %1027 = vmatpush1.msra.mxu0 0.0
  %1028 = vmatprep.subr.mxu0 0.0
  %1029 = vmatpush1.msra.mxu0 0.0
  %1030 = vmatprep.subr.mxu0 0.0
  %1031 = vmatpush1.msra.mxu0 0.0
  %1032 = vmatprep.subr.mxu0 0.0
  %1033 = vmatpush1.msra.mxu0 0.0
  %1034 = vmatprep.subr.mxu0 0.0
  %1035 = vmatpush1.msra.mxu0 0.0
  %1036 = vmatprep.subr.mxu0 0.0
  %1037 = vmatpush1.msra.mxu0 0.0
  %1038 = vmatprep.subr.mxu0 0.0
  %1039 = vmatpush1.msra.mxu0 0.0
  %1040 = vmatprep.subr.mxu0 0.0
  %1041 = vmatpush1.msra.mxu0 0.0
  %1042 = vmatprep.subr.mxu0 0.0
  %1043 = vmatpush1.msra.mxu0 0.0
  %1044 = vmatprep.subr.mxu0 0.0
  %1045 = vmatpush1.msra.mxu0 0.0
  %1046 = vmatprep.subr.mxu0 0.0
  %1047 = vmatpush1.msra.mxu0 0.0
  %1048 = vmatprep.subr.mxu0 0.0
  %1049 = vmatpush1.msra.mxu0 0.0
  %1050 = vmatprep.mubr.f32.mxu0 0.0
  %v1051 = vand.u32 %v570, 4294901760
  %1052 = vmatmul.mubr.f32.gmra.mrb[0].mxu0 %v1051
  %v1053 = vpop.f32.mrb[0].mxu0
  %v1054 = vadd.f32 %v979, %v1053
  %v1055 = vpop.f32.mrb[0].mxu0
  %1056 = vdwg.mxu0
  %v1057 = vadd.f32 %v566, %v1054
  %v1058 = vxor.u32 %v1057, 2147483648
  %v1059 = vmul.f32 %v1058, 1.442695
  %v1060 = vpow.pop %v1059
  %v1061 = vadd.f32 %v1060, 1.0
  %v1062 = vrcp.pop %v1061
  %v1063 = vmul.f32 1.0, %v1062
  %v1064 = vtanh.pop %v1057
  %v1065 = vmul.f32 %v1063, %v558
  %1067 = vrot.lane.b32.xlu0 %v1064, 32
  %v1068 = vpop.permute.xlu0 %1067
  %v1070 = vmul.f32 %v1063, %v1068
  %1072 = vrot.lane.b32.xlu0 %v1070, 32
  %v1073 = vpop.permute.xlu0 %1072
  %v1075 = vadd.f32 %v1065, %v1073
  %v1076 = vtanh.pop %v1075
  %1078 = vrot.lane.b32.xlu0 %v1076, 32
  %v1079 = vpop.permute.xlu0 %1078
  %v1081 = vmul.f32 %v1063, %v1079
  %s1082 = scalar_lea.vmem %s0, 4
  %v1083 = vld [vmem:[%s1082] sm:$0x3]
  %1085 = vrot.lane.b32.xlu0 %v1081, 64
  %v1086 = vpop.permute.xlu0 %1085
  %v1087 = vsel %vm51, %v1086, 0
  %1089 = vmatprep.subr.mxu0 0.0
  %v1090 = vand.u32 %v31, 4294901760
  %1091 = vmatpush1.msra.mxu0 %v1090
  %1092 = vmatprep.subr.mxu0 0.0
  %v1093 = vand.u32 %v32, 4294901760
  %1094 = vmatpush1.msra.mxu0 %v1093
  %1095 = vmatprep.subr.mxu0 0.0
  %v1096 = vand.u32 %v33, 4294901760
  %1097 = vmatpush1.msra.mxu0 %v1096
  %1098 = vmatprep.subr.mxu0 0.0
  %v1099 = vand.u32 %v34, 4294901760
  %1100 = vmatpush1.msra.mxu0 %v1099
  %1101 = vmatprep.subr.mxu0 0.0
  %1102 = vmatpush1.msra.mxu0 0.0
  %1103 = vmatprep.subr.mxu0 0.0
  %1104 = vmatpush1.msra.mxu0 0.0
  %1105 = vmatprep.subr.mxu0 0.0
  %1106 = vmatpush1.msra.mxu0 0.0
  %1107 = vmatprep.subr.mxu0 0.0
  %1108 = vmatpush1.msra.mxu0 0.0
  %1109 = vmatprep.subr.mxu0 0.0
  %1110 = vmatpush1.msra.mxu0 0.0
  %1111 = vmatprep.subr.mxu0 0.0
  %1112 = vmatpush1.msra.mxu0 0.0
  %1113 = vmatprep.subr.mxu0 0.0
  %1114 = vmatpush1.msra.mxu0 0.0
  %1115 = vmatprep.subr.mxu0 0.0
  %1116 = vmatpush1.msra.mxu0 0.0
  %1117 = vmatprep.subr.mxu0 0.0
  %1118 = vmatpush1.msra.mxu0 0.0
  %1119 = vmatprep.subr.mxu0 0.0
  %1120 = vmatpush1.msra.mxu0 0.0
  %1121 = vmatprep.subr.mxu0 0.0
  %1122 = vmatpush1.msra.mxu0 0.0
  %1123 = vmatprep.subr.mxu0 0.0
  %1124 = vmatpush1.msra.mxu0 0.0
  %1125 = vmatprep.subr.mxu0 0.0
  %1126 = vmatpush1.msra.mxu0 0.0
  %1127 = vmatprep.subr.mxu0 0.0
  %1128 = vmatpush1.msra.mxu0 0.0
  %1129 = vmatprep.subr.mxu0 0.0
  %1130 = vmatpush1.msra.mxu0 0.0
  %1131 = vmatprep.subr.mxu0 0.0
  %1132 = vmatpush1.msra.mxu0 0.0
  %1133 = vmatprep.subr.mxu0 0.0
  %1134 = vmatpush1.msra.mxu0 0.0
  %1135 = vmatprep.subr.mxu0 0.0
  %1136 = vmatpush1.msra.mxu0 0.0
  %1137 = vmatprep.subr.mxu0 0.0
  %1138 = vmatpush1.msra.mxu0 0.0
  %1139 = vmatprep.subr.mxu0 0.0
  %1140 = vmatpush1.msra.mxu0 0.0
  %1141 = vmatprep.subr.mxu0 0.0
  %1142 = vmatpush1.msra.mxu0 0.0
  %1143 = vmatprep.subr.mxu0 0.0
  %1144 = vmatpush1.msra.mxu0 0.0
  %1145 = vmatprep.subr.mxu0 0.0
  %1146 = vmatpush1.msra.mxu0 0.0
  %1147 = vmatprep.subr.mxu0 0.0
  %1148 = vmatpush1.msra.mxu0 0.0
  %1149 = vmatprep.subr.mxu0 0.0
  %1150 = vmatpush1.msra.mxu0 0.0
  %1151 = vmatprep.subr.mxu0 0.0
  %1152 = vmatpush1.msra.mxu0 0.0
  %1153 = vmatprep.subr.mxu0 0.0
  %1154 = vmatpush1.msra.mxu0 0.0
  %1155 = vmatprep.subr.mxu0 0.0
  %1156 = vmatpush1.msra.mxu0 0.0
  %1157 = vmatprep.mubr.f32.mxu0 0.0
  %v1158 = vand.u32 %v1087, 4294901760
  %v1159 = vsub.f32 %v1087, %v1158
  %v1160 = vand.u32 %v1159, 4294901760
  %v1161 = vsub.f32 %v1159, %v1160
  %v1162 = vand.u32 %v1161, 4294901760
  %1163 = vmatmul.mubr.f32.gmra.mrb[0].mxu0 %v1162
  %v1164 = vpop.f32.mrb[0].mxu0
  %v1165 = vadd.f32 0.0, %v1164
  %v1166 = vpop.f32.mrb[0].mxu0
  %1167 = vdwg.mxu0
  %1168 = vmatprep.subr.mxu0 0.0
  %v1169 = vand.u32 %v31, 4294901760
  %v1170 = vsub.f32 %v31, %v1169
  %v1171 = vand.u32 %v1170, 4294901760
  %v1172 = vsub.f32 %v1170, %v1171
  %v1173 = vand.u32 %v1172, 4294901760
  %1174 = vmatpush1.msra.mxu0 %v1173
  %1175 = vmatprep.subr.mxu0 0.0
  %v1176 = vand.u32 %v32, 4294901760
  %v1177 = vsub.f32 %v32, %v1176
  %v1178 = vand.u32 %v1177, 4294901760
  %v1179 = vsub.f32 %v1177, %v1178
  %v1180 = vand.u32 %v1179, 4294901760
  %1181 = vmatpush1.msra.mxu0 %v1180
  %1182 = vmatprep.subr.mxu0 0.0
  %v1183 = vand.u32 %v33, 4294901760
  %v1184 = vsub.f32 %v33, %v1183
  %v1185 = vand.u32 %v1184, 4294901760
  %v1186 = vsub.f32 %v1184, %v1185
  %v1187 = vand.u32 %v1186, 4294901760
  %1188 = vmatpush1.msra.mxu0 %v1187
  %1189 = vmatprep.subr.mxu0 0.0
  %v1190 = vand.u32 %v34, 4294901760
  %v1191 = vsub.f32 %v34, %v1190
  %v1192 = vand.u32 %v1191, 4294901760
  %v1193 = vsub.f32 %v1191, %v1192
  %v1194 = vand.u32 %v1193, 4294901760
  %1195 = vmatpush1.msra.mxu0 %v1194
  %1196 = vmatprep.subr.mxu0 0.0
  %1197 = vmatpush1.msra.mxu0 0.0
  %1198 = vmatprep.subr.mxu0 0.0
  %1199 = vmatpush1.msra.mxu0 0.0
  %1200 = vmatprep.subr.mxu0 0.0
  %1201 = vmatpush1.msra.mxu0 0.0
  %1202 = vmatprep.subr.mxu0 0.0
  %1203 = vmatpush1.msra.mxu0 0.0
  %1204 = vmatprep.subr.mxu0 0.0
  %1205 = vmatpush1.msra.mxu0 0.0
  %1206 = vmatprep.subr.mxu0 0.0
  %1207 = vmatpush1.msra.mxu0 0.0
  %1208 = vmatprep.subr.mxu0 0.0
  %1209 = vmatpush1.msra.mxu0 0.0
  %1210 = vmatprep.subr.mxu0 0.0
  %1211 = vmatpush1.msra.mxu0 0.0
  %1212 = vmatprep.subr.mxu0 0.0
  %1213 = vmatpush1.msra.mxu0 0.0
  %1214 = vmatprep.subr.mxu0 0.0
  %1215 = vmatpush1.msra.mxu0 0.0
  %1216 = vmatprep.subr.mxu0 0.0
  %1217 = vmatpush1.msra.mxu0 0.0
  %1218 = vmatprep.subr.mxu0 0.0
  %1219 = vmatpush1.msra.mxu0 0.0
  %1220 = vmatprep.subr.mxu0 0.0
  %1221 = vmatpush1.msra.mxu0 0.0
  %1222 = vmatprep.subr.mxu0 0.0
  %1223 = vmatpush1.msra.mxu0 0.0
  %1224 = vmatprep.subr.mxu0 0.0
  %1225 = vmatpush1.msra.mxu0 0.0
  %1226 = vmatprep.subr.mxu0 0.0
  %1227 = vmatpush1.msra.mxu0 0.0
  %1228 = vmatprep.subr.mxu0 0.0
  %1229 = vmatpush1.msra.mxu0 0.0
  %1230 = vmatprep.subr.mxu0 0.0
  %1231 = vmatpush1.msra.mxu0 0.0
  %1232 = vmatprep.subr.mxu0 0.0
  %1233 = vmatpush1.msra.mxu0 0.0
  %1234 = vmatprep.subr.mxu0 0.0
  %1235 = vmatpush1.msra.mxu0 0.0
  %1236 = vmatprep.subr.mxu0 0.0
  %1237 = vmatpush1.msra.mxu0 0.0
  %1238 = vmatprep.subr.mxu0 0.0
  %1239 = vmatpush1.msra.mxu0 0.0
  %1240 = vmatprep.subr.mxu0 0.0
  %1241 = vmatpush1.msra.mxu0 0.0
  %1242 = vmatprep.subr.mxu0 0.0
  %1243 = vmatpush1.msra.mxu0 0.0
  %1244 = vmatprep.subr.mxu0 0.0
  %1245 = vmatpush1.msra.mxu0 0.0
  %1246 = vmatprep.subr.mxu0 0.0
  %1247 = vmatpush1.msra.mxu0 0.0
  %1248 = vmatprep.subr.mxu0 0.0
  %1249 = vmatpush1.msra.mxu0 0.0
  %1250 = vmatprep.subr.mxu0 0.0
  %1251 = vmatpush1.msra.mxu0 0.0
  %1252 = vmatprep.mubr.f32.mxu0 0.0
  %v1253 = vand.u32 %v1087, 4294901760
  %1254 = vmatmul.mubr.f32.gmra.mrb[0].mxu0 %v1253
  %v1255 = vpop.f32.mrb[0].mxu0
  %v1256 = vadd.f32 %v1165, %v1255
  %v1257 = vpop.f32.mrb[0].mxu0
  %1258 = vdwg.mxu0
  %1259 = vmatprep.subr.mxu0 0.0
  %v1260 = vand.u32 %v31, 4294901760
  %v1261 = vsub.f32 %v31, %v1260
  %1262 = vmatpush1.msra.mxu0 %v1261
  %1263 = vmatprep.subr.mxu0 0.0
  %v1264 = vand.u32 %v32, 4294901760
  %v1265 = vsub.f32 %v32, %v1264
  %1266 = vmatpush1.msra.mxu0 %v1265
  %1267 = vmatprep.subr.mxu0 0.0
  %v1268 = vand.u32 %v33, 4294901760
  %v1269 = vsub.f32 %v33, %v1268
  %1270 = vmatpush1.msra.mxu0 %v1269
  %1271 = vmatprep.subr.mxu0 0.0
  %v1272 = vand.u32 %v34, 4294901760
  %v1273 = vsub.f32 %v34, %v1272
  %1274 = vmatpush1.msra.mxu0 %v1273
  %1275 = vmatprep.subr.mxu0 0.0
  %1276 = vmatpush1.msra.mxu0 0.0
  %1277 = vmatprep.subr.mxu0 0.0
  %1278 = vmatpush1.msra.mxu0 0.0
  %1279 = vmatprep.subr.mxu0 0.0
  %1280 = vmatpush1.msra.mxu0 0.0
  %1281 = vmatprep.subr.mxu0 0.0
  %1282 = vmatpush1.msra.mxu0 0.0
  %1283 = vmatprep.subr.mxu0 0.0
  %1284 = vmatpush1.msra.mxu0 0.0
  %1285 = vmatprep.subr.mxu0 0.0
  %1286 = vmatpush1.msra.mxu0 0.0
  %1287 = vmatprep.subr.mxu0 0.0
  %1288 = vmatpush1.msra.mxu0 0.0
  %1289 = vmatprep.subr.mxu0 0.0
  %1290 = vmatpush1.msra.mxu0 0.0
  %1291 = vmatprep.subr.mxu0 0.0
  %1292 = vmatpush1.msra.mxu0 0.0
  %1293 = vmatprep.subr.mxu0 0.0
  %1294 = vmatpush1.msra.mxu0 0.0
  %1295 = vmatprep.subr.mxu0 0.0
  %1296 = vmatpush1.msra.mxu0 0.0
  %1297 = vmatprep.subr.mxu0 0.0
  %1298 = vmatpush1.msra.mxu0 0.0
  %1299 = vmatprep.subr.mxu0 0.0
  %1300 = vmatpush1.msra.mxu0 0.0
  %1301 = vmatprep.subr.mxu0 0.0
  %1302 = vmatpush1.msra.mxu0 0.0
  %1303 = vmatprep.subr.mxu0 0.0
  %1304 = vmatpush1.msra.mxu0 0.0
  %1305 = vmatprep.subr.mxu0 0.0
  %1306 = vmatpush1.msra.mxu0 0.0
  %1307 = vmatprep.subr.mxu0 0.0
  %1308 = vmatpush1.msra.mxu0 0.0
  %1309 = vmatprep.subr.mxu0 0.0
  %1310 = vmatpush1.msra.mxu0 0.0
  %1311 = vmatprep.subr.mxu0 0.0
  %1312 = vmatpush1.msra.mxu0 0.0
  %1313 = vmatprep.subr.mxu0 0.0
  %1314 = vmatpush1.msra.mxu0 0.0
  %1315 = vmatprep.subr.mxu0 0.0
  %1316 = vmatpush1.msra.mxu0 0.0
  %1317 = vmatprep.subr.mxu0 0.0
  %1318 = vmatpush1.msra.mxu0 0.0
  %1319 = vmatprep.subr.mxu0 0.0
  %1320 = vmatpush1.msra.mxu0 0.0
  %1321 = vmatprep.subr.mxu0 0.0
  %1322 = vmatpush1.msra.mxu0 0.0
  %1323 = vmatprep.subr.mxu0 0.0
  %1324 = vmatpush1.msra.mxu0 0.0
  %1325 = vmatprep.subr.mxu0 0.0
  %1326 = vmatpush1.msra.mxu0 0.0
  %1327 = vmatprep.subr.mxu0 0.0
  %1328 = vmatpush1.msra.mxu0 0.0
  %1329 = vmatprep.subr.mxu0 0.0
  %1330 = vmatpush1.msra.mxu0 0.0
  %1331 = vmatprep.mubr.f32.mxu0 0.0
  %v1332 = vand.u32 %v1087, 4294901760
  %v1333 = vsub.f32 %v1087, %v1332
  %1334 = vmatmul.mubr.f32.gmra.mrb[0].mxu0 %v1333
  %v1335 = vpop.f32.mrb[0].mxu0
  %v1336 = vadd.f32 %v1256, %v1335
  %v1337 = vpop.f32.mrb[0].mxu0
  %1338 = vdwg.mxu0
  %1339 = vmatprep.subr.mxu0 0.0
  %v1340 = vand.u32 %v31, 4294901760
  %1341 = vmatpush1.msra.mxu0 %v1340
  %1342 = vmatprep.subr.mxu0 0.0
  %v1343 = vand.u32 %v32, 4294901760
  %1344 = vmatpush1.msra.mxu0 %v1343
  %1345 = vmatprep.subr.mxu0 0.0
  %v1346 = vand.u32 %v33, 4294901760
  %1347 = vmatpush1.msra.mxu0 %v1346
  %1348 = vmatprep.subr.mxu0 0.0
  %v1349 = vand.u32 %v34, 4294901760
  %1350 = vmatpush1.msra.mxu0 %v1349
  %1351 = vmatprep.subr.mxu0 0.0
  %1352 = vmatpush1.msra.mxu0 0.0
  %1353 = vmatprep.subr.mxu0 0.0
  %1354 = vmatpush1.msra.mxu0 0.0
  %1355 = vmatprep.subr.mxu0 0.0
  %1356 = vmatpush1.msra.mxu0 0.0
  %1357 = vmatprep.subr.mxu0 0.0
  %1358 = vmatpush1.msra.mxu0 0.0
  %1359 = vmatprep.subr.mxu0 0.0
  %1360 = vmatpush1.msra.mxu0 0.0
  %1361 = vmatprep.subr.mxu0 0.0
  %1362 = vmatpush1.msra.mxu0 0.0
  %1363 = vmatprep.subr.mxu0 0.0
  %1364 = vmatpush1.msra.mxu0 0.0
  %1365 = vmatprep.subr.mxu0 0.0
  %1366 = vmatpush1.msra.mxu0 0.0
  %1367 = vmatprep.subr.mxu0 0.0
  %1368 = vmatpush1.msra.mxu0 0.0
  %1369 = vmatprep.subr.mxu0 0.0
  %1370 = vmatpush1.msra.mxu0 0.0
  %1371 = vmatprep.subr.mxu0 0.0
  %1372 = vmatpush1.msra.mxu0 0.0
  %1373 = vmatprep.subr.mxu0 0.0
  %1374 = vmatpush1.msra.mxu0 0.0
  %1375 = vmatprep.subr.mxu0 0.0
  %1376 = vmatpush1.msra.mxu0 0.0
  %1377 = vmatprep.subr.mxu0 0.0
  %1378 = vmatpush1.msra.mxu0 0.0
  %1379 = vmatprep.subr.mxu0 0.0
  %1380 = vmatpush1.msra.mxu0 0.0
  %1381 = vmatprep.subr.mxu0 0.0
  %1382 = vmatpush1.msra.mxu0 0.0
  %1383 = vmatprep.subr.mxu0 0.0
  %1384 = vmatpush1.msra.mxu0 0.0
  %1385 = vmatprep.subr.mxu0 0.0
  %1386 = vmatpush1.msra.mxu0 0.0
  %1387 = vmatprep.subr.mxu0 0.0
  %1388 = vmatpush1.msra.mxu0 0.0
  %1389 = vmatprep.subr.mxu0 0.0
  %1390 = vmatpush1.msra.mxu0 0.0
  %1391 = vmatprep.subr.mxu0 0.0
  %1392 = vmatpush1.msra.mxu0 0.0
  %1393 = vmatprep.subr.mxu0 0.0
  %1394 = vmatpush1.msra.mxu0 0.0
  %1395 = vmatprep.subr.mxu0 0.0
  %1396 = vmatpush1.msra.mxu0 0.0
  %1397 = vmatprep.subr.mxu0 0.0
  %1398 = vmatpush1.msra.mxu0 0.0
  %1399 = vmatprep.subr.mxu0 0.0
  %1400 = vmatpush1.msra.mxu0 0.0
  %1401 = vmatprep.subr.mxu0 0.0
  %1402 = vmatpush1.msra.mxu0 0.0
  %1403 = vmatprep.subr.mxu0 0.0
  %1404 = vmatpush1.msra.mxu0 0.0
  %1405 = vmatprep.subr.mxu0 0.0
  %1406 = vmatpush1.msra.mxu0 0.0
  %1407 = vmatprep.mubr.f32.mxu0 0.0
  %v1408 = vand.u32 %v1087, 4294901760
  %v1409 = vsub.f32 %v1087, %v1408
  %v1410 = vand.u32 %v1409, 4294901760
  %1411 = vmatmul.mubr.f32.gmra.mrb[0].mxu0 %v1410
  %v1412 = vpop.f32.mrb[0].mxu0
  %v1413 = vadd.f32 %v1336, %v1412
  %v1414 = vpop.f32.mrb[0].mxu0
  %1415 = vdwg.mxu0
  %1416 = vmatprep.subr.mxu0 0.0
  %v1417 = vand.u32 %v31, 4294901760
  %v1418 = vsub.f32 %v31, %v1417
  %v1419 = vand.u32 %v1418, 4294901760
  %1420 = vmatpush1.msra.mxu0 %v1419
  %1421 = vmatprep.subr.mxu0 0.0
  %v1422 = vand.u32 %v32, 4294901760
  %v1423 = vsub.f32 %v32, %v1422
  %v1424 = vand.u32 %v1423, 4294901760
  %1425 = vmatpush1.msra.mxu0 %v1424
  %1426 = vmatprep.subr.mxu0 0.0
  %v1427 = vand.u32 %v33, 4294901760
  %v1428 = vsub.f32 %v33, %v1427
  %v1429 = vand.u32 %v1428, 4294901760
  %1430 = vmatpush1.msra.mxu0 %v1429
  %1431 = vmatprep.subr.mxu0 0.0
  %v1432 = vand.u32 %v34, 4294901760
  %v1433 = vsub.f32 %v34, %v1432
  %v1434 = vand.u32 %v1433, 4294901760
  %1435 = vmatpush1.msra.mxu0 %v1434
  %1436 = vmatprep.subr.mxu0 0.0
  %1437 = vmatpush1.msra.mxu0 0.0
  %1438 = vmatprep.subr.mxu0 0.0
  %1439 = vmatpush1.msra.mxu0 0.0
  %1440 = vmatprep.subr.mxu0 0.0
  %1441 = vmatpush1.msra.mxu0 0.0
  %1442 = vmatprep.subr.mxu0 0.0
  %1443 = vmatpush1.msra.mxu0 0.0
  %1444 = vmatprep.subr.mxu0 0.0
  %1445 = vmatpush1.msra.mxu0 0.0
  %1446 = vmatprep.subr.mxu0 0.0
  %1447 = vmatpush1.msra.mxu0 0.0
  %1448 = vmatprep.subr.mxu0 0.0
  %1449 = vmatpush1.msra.mxu0 0.0
  %1450 = vmatprep.subr.mxu0 0.0
  %1451 = vmatpush1.msra.mxu0 0.0
  %1452 = vmatprep.subr.mxu0 0.0
  %1453 = vmatpush1.msra.mxu0 0.0
  %1454 = vmatprep.subr.mxu0 0.0
  %1455 = vmatpush1.msra.mxu0 0.0
  %1456 = vmatprep.subr.mxu0 0.0
  %1457 = vmatpush1.msra.mxu0 0.0
  %1458 = vmatprep.subr.mxu0 0.0
  %1459 = vmatpush1.msra.mxu0 0.0
  %1460 = vmatprep.subr.mxu0 0.0
  %1461 = vmatpush1.msra.mxu0 0.0
  %1462 = vmatprep.subr.mxu0 0.0
  %1463 = vmatpush1.msra.mxu0 0.0
  %1464 = vmatprep.subr.mxu0 0.0
  %1465 = vmatpush1.msra.mxu0 0.0
  %1466 = vmatprep.subr.mxu0 0.0
  %1467 = vmatpush1.msra.mxu0 0.0
  %1468 = vmatprep.subr.mxu0 0.0
  %1469 = vmatpush1.msra.mxu0 0.0
  %1470 = vmatprep.subr.mxu0 0.0
  %1471 = vmatpush1.msra.mxu0 0.0
  %1472 = vmatprep.subr.mxu0 0.0
  %1473 = vmatpush1.msra.mxu0 0.0
  %1474 = vmatprep.subr.mxu0 0.0
  %1475 = vmatpush1.msra.mxu0 0.0
  %1476 = vmatprep.subr.mxu0 0.0
  %1477 = vmatpush1.msra.mxu0 0.0
  %1478 = vmatprep.subr.mxu0 0.0
  %1479 = vmatpush1.msra.mxu0 0.0
  %1480 = vmatprep.subr.mxu0 0.0
  %1481 = vmatpush1.msra.mxu0 0.0
  %1482 = vmatprep.subr.mxu0 0.0
  %1483 = vmatpush1.msra.mxu0 0.0
  %1484 = vmatprep.subr.mxu0 0.0
  %1485 = vmatpush1.msra.mxu0 0.0
  %1486 = vmatprep.subr.mxu0 0.0
  %1487 = vmatpush1.msra.mxu0 0.0
  %1488 = vmatprep.subr.mxu0 0.0
  %1489 = vmatpush1.msra.mxu0 0.0
  %1490 = vmatprep.subr.mxu0 0.0
  %1491 = vmatpush1.msra.mxu0 0.0
  %1492 = vmatprep.mubr.f32.mxu0 0.0
  %v1493 = vand.u32 %v1087, 4294901760
  %1494 = vmatmul.mubr.f32.gmra.mrb[0].mxu0 %v1493
  %v1495 = vpop.f32.mrb[0].mxu0
  %v1496 = vadd.f32 %v1413, %v1495
  %v1497 = vpop.f32.mrb[0].mxu0
  %1498 = vdwg.mxu0
  %1499 = vmatprep.subr.mxu0 0.0
  %v1500 = vand.u32 %v31, 4294901760
  %1501 = vmatpush1.msra.mxu0 %v1500
  %1502 = vmatprep.subr.mxu0 0.0
  %v1503 = vand.u32 %v32, 4294901760
  %1504 = vmatpush1.msra.mxu0 %v1503
  %1505 = vmatprep.subr.mxu0 0.0
  %v1506 = vand.u32 %v33, 4294901760
  %1507 = vmatpush1.msra.mxu0 %v1506
  %1508 = vmatprep.subr.mxu0 0.0
  %v1509 = vand.u32 %v34, 4294901760
  %1510 = vmatpush1.msra.mxu0 %v1509
  %1511 = vmatprep.subr.mxu0 0.0
  %1512 = vmatpush1.msra.mxu0 0.0
  %1513 = vmatprep.subr.mxu0 0.0
  %1514 = vmatpush1.msra.mxu0 0.0
  %1515 = vmatprep.subr.mxu0 0.0
  %1516 = vmatpush1.msra.mxu0 0.0
  %1517 = vmatprep.subr.mxu0 0.0
  %1518 = vmatpush1.msra.mxu0 0.0
  %1519 = vmatprep.subr.mxu0 0.0
  %1520 = vmatpush1.msra.mxu0 0.0
  %1521 = vmatprep.subr.mxu0 0.0
  %1522 = vmatpush1.msra.mxu0 0.0
  %1523 = vmatprep.subr.mxu0 0.0
  %1524 = vmatpush1.msra.mxu0 0.0
  %1525 = vmatprep.subr.mxu0 0.0
  %1526 = vmatpush1.msra.mxu0 0.0
  %1527 = vmatprep.subr.mxu0 0.0
  %1528 = vmatpush1.msra.mxu0 0.0
  %1529 = vmatprep.subr.mxu0 0.0
  %1530 = vmatpush1.msra.mxu0 0.0
  %1531 = vmatprep.subr.mxu0 0.0
  %1532 = vmatpush1.msra.mxu0 0.0
  %1533 = vmatprep.subr.mxu0 0.0
  %1534 = vmatpush1.msra.mxu0 0.0
  %1535 = vmatprep.subr.mxu0 0.0
  %1536 = vmatpush1.msra.mxu0 0.0
  %1537 = vmatprep.subr.mxu0 0.0
  %1538 = vmatpush1.msra.mxu0 0.0
  %1539 = vmatprep.subr.mxu0 0.0
  %1540 = vmatpush1.msra.mxu0 0.0
  %1541 = vmatprep.subr.mxu0 0.0
  %1542 = vmatpush1.msra.mxu0 0.0
  %1543 = vmatprep.subr.mxu0 0.0
  %1544 = vmatpush1.msra.mxu0 0.0
  %1545 = vmatprep.subr.mxu0 0.0
  %1546 = vmatpush1.msra.mxu0 0.0
  %1547 = vmatprep.subr.mxu0 0.0
  %1548 = vmatpush1.msra.mxu0 0.0
  %1549 = vmatprep.subr.mxu0 0.0
  %1550 = vmatpush1.msra.mxu0 0.0
  %1551 = vmatprep.subr.mxu0 0.0
  %1552 = vmatpush1.msra.mxu0 0.0
  %1553 = vmatprep.subr.mxu0 0.0
  %1554 = vmatpush1.msra.mxu0 0.0
  %1555 = vmatprep.subr.mxu0 0.0
  %1556 = vmatpush1.msra.mxu0 0.0
  %1557 = vmatprep.subr.mxu0 0.0
  %1558 = vmatpush1.msra.mxu0 0.0
  %1559 = vmatprep.subr.mxu0 0.0
  %1560 = vmatpush1.msra.mxu0 0.0
  %1561 = vmatprep.subr.mxu0 0.0
  %1562 = vmatpush1.msra.mxu0 0.0
  %1563 = vmatprep.subr.mxu0 0.0
  %1564 = vmatpush1.msra.mxu0 0.0
  %1565 = vmatprep.subr.mxu0 0.0
  %1566 = vmatpush1.msra.mxu0 0.0
  %1567 = vmatprep.mubr.f32.mxu0 0.0
  %v1568 = vand.u32 %v1087, 4294901760
  %1569 = vmatmul.mubr.f32.gmra.mrb[0].mxu0 %v1568
  %v1570 = vpop.f32.mrb[0].mxu0
  %v1571 = vadd.f32 %v1496, %v1570
  %v1572 = vpop.f32.mrb[0].mxu0
  %1573 = vdwg.mxu0
  %v1574 = vadd.f32 %v1083, %v1571
  %v1575 = vxor.u32 %v1574, 2147483648
  %v1576 = vmul.f32 %v1575, 1.442695
  %v1577 = vpow.pop %v1576
  %v1578 = vadd.f32 %v1577, 1.0
  %v1579 = vrcp.pop %v1578
  %v1580 = vmul.f32 1.0, %v1579
  %v1581 = vtanh.pop %v1574
  %v1582 = vmul.f32 %v1580, %v1075
  %1584 = vrot.lane.b32.xlu0 %v1581, 32
  %v1585 = vpop.permute.xlu0 %1584
  %v1587 = vmul.f32 %v1580, %v1585
  %1589 = vrot.lane.b32.xlu0 %v1587, 32
  %v1590 = vpop.permute.xlu0 %1589
  %v1592 = vadd.f32 %v1582, %v1590
  %v1593 = vtanh.pop %v1592
  %1595 = vrot.lane.b32.xlu0 %v1593, 32
  %v1596 = vpop.permute.xlu0 %1595
  %v1598 = vmul.f32 %v1580, %v1596
  %s1599 = scalar_lea.vmem %s0, 6
  %v1600 = vld [vmem:[%s1599] sm:$0x3]
  %1602 = vrot.lane.b32.xlu0 %v1598, 64
  %v1603 = vpop.permute.xlu0 %1602
  %v1604 = vsel %vm51, %v1603, 0
  %1606 = vmatprep.subr.mxu0 0.0
  %v1607 = vand.u32 %v31, 4294901760
  %1608 = vmatpush1.msra.mxu0 %v1607
  %1609 = vmatprep.subr.mxu0 0.0
  %v1610 = vand.u32 %v32, 4294901760
  %1611 = vmatpush1.msra.mxu0 %v1610
  %1612 = vmatprep.subr.mxu0 0.0
  %v1613 = vand.u32 %v33, 4294901760
  %1614 = vmatpush1.msra.mxu0 %v1613
  %1615 = vmatprep.subr.mxu0 0.0
  %v1616 = vand.u32 %v34, 4294901760
  %1617 = vmatpush1.msra.mxu0 %v1616
  %1618 = vmatprep.subr.mxu0 0.0
  %1619 = vmatpush1.msra.mxu0 0.0
  %1620 = vmatprep.subr.mxu0 0.0
  %1621 = vmatpush1.msra.mxu0 0.0
  %1622 = vmatprep.subr.mxu0 0.0
  %1623 = vmatpush1.msra.mxu0 0.0
  %1624 = vmatprep.subr.mxu0 0.0
  %1625 = vmatpush1.msra.mxu0 0.0
  %1626 = vmatprep.subr.mxu0 0.0
  %1627 = vmatpush1.msra.mxu0 0.0
  %1628 = vmatprep.subr.mxu0 0.0
  %1629 = vmatpush1.msra.mxu0 0.0
  %1630 = vmatprep.subr.mxu0 0.0
  %1631 = vmatpush1.msra.mxu0 0.0
  %1632 = vmatprep.subr.mxu0 0.0
  %1633 = vmatpush1.msra.mxu0 0.0
  %1634 = vmatprep.subr.mxu0 0.0
  %1635 = vmatpush1.msra.mxu0 0.0
  %1636 = vmatprep.subr.mxu0 0.0
  %1637 = vmatpush1.msra.mxu0 0.0
  %1638 = vmatprep.subr.mxu0 0.0
  %1639 = vmatpush1.msra.mxu0 0.0
  %1640 = vmatprep.subr.mxu0 0.0
  %1641 = vmatpush1.msra.mxu0 0.0
  %1642 = vmatprep.subr.mxu0 0.0
  %1643 = vmatpush1.msra.mxu0 0.0
  %1644 = vmatprep.subr.mxu0 0.0
  %1645 = vmatpush1.msra.mxu0 0.0
  %1646 = vmatprep.subr.mxu0 0.0
  %1647 = vmatpush1.msra.mxu0 0.0
  %1648 = vmatprep.subr.mxu0 0.0
  %1649 = vmatpush1.msra.mxu0 0.0
  %1650 = vmatprep.subr.mxu0 0.0
  %1651 = vmatpush1.msra.mxu0 0.0
  %1652 = vmatprep.subr.mxu0 0.0
  %1653 = vmatpush1.msra.mxu0 0.0
  %1654 = vmatprep.subr.mxu0 0.0
  %1655 = vmatpush1.msra.mxu0 0.0
  %1656 = vmatprep.subr.mxu0 0.0
  %1657 = vmatpush1.msra.mxu0 0.0
  %1658 = vmatprep.subr.mxu0 0.0
  %1659 = vmatpush1.msra.mxu0 0.0
  %1660 = vmatprep.subr.mxu0 0.0
  %1661 = vmatpush1.msra.mxu0 0.0
  %1662 = vmatprep.subr.mxu0 0.0
  %1663 = vmatpush1.msra.mxu0 0.0
  %1664 = vmatprep.subr.mxu0 0.0
  %1665 = vmatpush1.msra.mxu0 0.0
  %1666 = vmatprep.subr.mxu0 0.0
  %1667 = vmatpush1.msra.mxu0 0.0
  %1668 = vmatprep.subr.mxu0 0.0
  %1669 = vmatpush1.msra.mxu0 0.0
  %1670 = vmatprep.subr.mxu0 0.0
  %1671 = vmatpush1.msra.mxu0 0.0
  %1672 = vmatprep.subr.mxu0 0.0
  %1673 = vmatpush1.msra.mxu0 0.0
  %1674 = vmatprep.mubr.f32.mxu0 0.0
  %v1675 = vand.u32 %v1604, 4294901760
  %v1676 = vsub.f32 %v1604, %v1675
  %v1677 = vand.u32 %v1676, 4294901760
  %v1678 = vsub.f32 %v1676, %v1677
  %v1679 = vand.u32 %v1678, 4294901760
  %1680 = vmatmul.mubr.f32.gmra.mrb[0].mxu0 %v1679
  %v1681 = vpop.f32.mrb[0].mxu0
  %v1682 = vadd.f32 0.0, %v1681
  %v1683 = vpop.f32.mrb[0].mxu0
  %1684 = vdwg.mxu0
  %1685 = vmatprep.subr.mxu0 0.0
  %v1686 = vand.u32 %v31, 4294901760
  %v1687 = vsub.f32 %v31, %v1686
  %v1688 = vand.u32 %v1687, 4294901760
  %v1689 = vsub.f32 %v1687, %v1688
  %v1690 = vand.u32 %v1689, 4294901760
  %1691 = vmatpush1.msra.mxu0 %v1690
  %1692 = vmatprep.subr.mxu0 0.0
  %v1693 = vand.u32 %v32, 4294901760
  %v1694 = vsub.f32 %v32, %v1693
  %v1695 = vand.u32 %v1694, 4294901760
  %v1696 = vsub.f32 %v1694, %v1695
  %v1697 = vand.u32 %v1696, 4294901760
  %1698 = vmatpush1.msra.mxu0 %v1697
  %1699 = vmatprep.subr.mxu0 0.0
  %v1700 = vand.u32 %v33, 4294901760
  %v1701 = vsub.f32 %v33, %v1700
  %v1702 = vand.u32 %v1701, 4294901760
  %v1703 = vsub.f32 %v1701, %v1702
  %v1704 = vand.u32 %v1703, 4294901760
  %1705 = vmatpush1.msra.mxu0 %v1704
  %1706 = vmatprep.subr.mxu0 0.0
  %v1707 = vand.u32 %v34, 4294901760
  %v1708 = vsub.f32 %v34, %v1707
  %v1709 = vand.u32 %v1708, 4294901760
  %v1710 = vsub.f32 %v1708, %v1709
  %v1711 = vand.u32 %v1710, 4294901760
  %1712 = vmatpush1.msra.mxu0 %v1711
  %1713 = vmatprep.subr.mxu0 0.0
  %1714 = vmatpush1.msra.mxu0 0.0
  %1715 = vmatprep.subr.mxu0 0.0
  %1716 = vmatpush1.msra.mxu0 0.0
  %1717 = vmatprep.subr.mxu0 0.0
  %1718 = vmatpush1.msra.mxu0 0.0
  %1719 = vmatprep.subr.mxu0 0.0
  %1720 = vmatpush1.msra.mxu0 0.0
  %1721 = vmatprep.subr.mxu0 0.0
  %1722 = vmatpush1.msra.mxu0 0.0
  %1723 = vmatprep.subr.mxu0 0.0
  %1724 = vmatpush1.msra.mxu0 0.0
  %1725 = vmatprep.subr.mxu0 0.0
  %1726 = vmatpush1.msra.mxu0 0.0
  %1727 = vmatprep.subr.mxu0 0.0
  %1728 = vmatpush1.msra.mxu0 0.0
  %1729 = vmatprep.subr.mxu0 0.0
  %1730 = vmatpush1.msra.mxu0 0.0
  %1731 = vmatprep.subr.mxu0 0.0
  %1732 = vmatpush1.msra.mxu0 0.0
  %1733 = vmatprep.subr.mxu0 0.0
  %1734 = vmatpush1.msra.mxu0 0.0
  %1735 = vmatprep.subr.mxu0 0.0
  %1736 = vmatpush1.msra.mxu0 0.0
  %1737 = vmatprep.subr.mxu0 0.0
  %1738 = vmatpush1.msra.mxu0 0.0
  %1739 = vmatprep.subr.mxu0 0.0
  %1740 = vmatpush1.msra.mxu0 0.0
  %1741 = vmatprep.subr.mxu0 0.0
  %1742 = vmatpush1.msra.mxu0 0.0
  %1743 = vmatprep.subr.mxu0 0.0
  %1744 = vmatpush1.msra.mxu0 0.0
  %1745 = vmatprep.subr.mxu0 0.0
  %1746 = vmatpush1.msra.mxu0 0.0
  %1747 = vmatprep.subr.mxu0 0.0
  %1748 = vmatpush1.msra.mxu0 0.0
  %1749 = vmatprep.subr.mxu0 0.0
  %1750 = vmatpush1.msra.mxu0 0.0
  %1751 = vmatprep.subr.mxu0 0.0
  %1752 = vmatpush1.msra.mxu0 0.0
  %1753 = vmatprep.subr.mxu0 0.0
  %1754 = vmatpush1.msra.mxu0 0.0
  %1755 = vmatprep.subr.mxu0 0.0
  %1756 = vmatpush1.msra.mxu0 0.0
  %1757 = vmatprep.subr.mxu0 0.0
  %1758 = vmatpush1.msra.mxu0 0.0
  %1759 = vmatprep.subr.mxu0 0.0
  %1760 = vmatpush1.msra.mxu0 0.0
  %1761 = vmatprep.subr.mxu0 0.0
  %1762 = vmatpush1.msra.mxu0 0.0
  %1763 = vmatprep.subr.mxu0 0.0
  %1764 = vmatpush1.msra.mxu0 0.0
  %1765 = vmatprep.subr.mxu0 0.0
  %1766 = vmatpush1.msra.mxu0 0.0
  %1767 = vmatprep.subr.mxu0 0.0
  %1768 = vmatpush1.msra.mxu0 0.0
  %1769 = vmatprep.mubr.f32.mxu0 0.0
  %v1770 = vand.u32 %v1604, 4294901760
  %1771 = vmatmul.mubr.f32.gmra.mrb[0].mxu0 %v1770
  %v1772 = vpop.f32.mrb[0].mxu0
  %v1773 = vadd.f32 %v1682, %v1772
  %v1774 = vpop.f32.mrb[0].mxu0
  %1775 = vdwg.mxu0
  %1776 = vmatprep.subr.mxu0 0.0
  %v1777 = vand.u32 %v31, 4294901760
  %v1778 = vsub.f32 %v31, %v1777
  %1779 = vmatpush1.msra.mxu0 %v1778
  %1780 = vmatprep.subr.mxu0 0.0
  %v1781 = vand.u32 %v32, 4294901760
  %v1782 = vsub.f32 %v32, %v1781
  %1783 = vmatpush1.msra.mxu0 %v1782
  %1784 = vmatprep.subr.mxu0 0.0
  %v1785 = vand.u32 %v33, 4294901760
  %v1786 = vsub.f32 %v33, %v1785
  %1787 = vmatpush1.msra.mxu0 %v1786
  %1788 = vmatprep.subr.mxu0 0.0
  %v1789 = vand.u32 %v34, 4294901760
  %v1790 = vsub.f32 %v34, %v1789
  %1791 = vmatpush1.msra.mxu0 %v1790
  %1792 = vmatprep.subr.mxu0 0.0
  %1793 = vmatpush1.msra.mxu0 0.0
  %1794 = vmatprep.subr.mxu0 0.0
  %1795 = vmatpush1.msra.mxu0 0.0
  %1796 = vmatprep.subr.mxu0 0.0
  %1797 = vmatpush1.msra.mxu0 0.0
  %1798 = vmatprep.subr.mxu0 0.0
  %1799 = vmatpush1.msra.mxu0 0.0
  %1800 = vmatprep.subr.mxu0 0.0
  %1801 = vmatpush1.msra.mxu0 0.0
  %1802 = vmatprep.subr.mxu0 0.0
  %1803 = vmatpush1.msra.mxu0 0.0
  %1804 = vmatprep.subr.mxu0 0.0
  %1805 = vmatpush1.msra.mxu0 0.0
  %1806 = vmatprep.subr.mxu0 0.0
  %1807 = vmatpush1.msra.mxu0 0.0
  %1808 = vmatprep.subr.mxu0 0.0
  %1809 = vmatpush1.msra.mxu0 0.0
  %1810 = vmatprep.subr.mxu0 0.0
  %1811 = vmatpush1.msra.mxu0 0.0
  %1812 = vmatprep.subr.mxu0 0.0
  %1813 = vmatpush1.msra.mxu0 0.0
  %1814 = vmatprep.subr.mxu0 0.0
  %1815 = vmatpush1.msra.mxu0 0.0
  %1816 = vmatprep.subr.mxu0 0.0
  %1817 = vmatpush1.msra.mxu0 0.0
  %1818 = vmatprep.subr.mxu0 0.0
  %1819 = vmatpush1.msra.mxu0 0.0
  %1820 = vmatprep.subr.mxu0 0.0
  %1821 = vmatpush1.msra.mxu0 0.0
  %1822 = vmatprep.subr.mxu0 0.0
  %1823 = vmatpush1.msra.mxu0 0.0
  %1824 = vmatprep.subr.mxu0 0.0
  %1825 = vmatpush1.msra.mxu0 0.0
  %1826 = vmatprep.subr.mxu0 0.0
  %1827 = vmatpush1.msra.mxu0 0.0
  %1828 = vmatprep.subr.mxu0 0.0
  %1829 = vmatpush1.msra.mxu0 0.0
  %1830 = vmatprep.subr.mxu0 0.0
  %1831 = vmatpush1.msra.mxu0 0.0
  %1832 = vmatprep.subr.mxu0 0.0
  %1833 = vmatpush1.msra.mxu0 0.0
  %1834 = vmatprep.subr.mxu0 0.0
  %1835 = vmatpush1.msra.mxu0 0.0
  %1836 = vmatprep.subr.mxu0 0.0
  %1837 = vmatpush1.msra.mxu0 0.0
  %1838 = vmatprep.subr.mxu0 0.0
  %1839 = vmatpush1.msra.mxu0 0.0
  %1840 = vmatprep.subr.mxu0 0.0
  %1841 = vmatpush1.msra.mxu0 0.0
  %1842 = vmatprep.subr.mxu0 0.0
  %1843 = vmatpush1.msra.mxu0 0.0
  %1844 = vmatprep.subr.mxu0 0.0
  %1845 = vmatpush1.msra.mxu0 0.0
  %1846 = vmatprep.subr.mxu0 0.0
  %1847 = vmatpush1.msra.mxu0 0.0
  %1848 = vmatprep.mubr.f32.mxu0 0.0
  %v1849 = vand.u32 %v1604, 4294901760
  %v1850 = vsub.f32 %v1604, %v1849
  %1851 = vmatmul.mubr.f32.gmra.mrb[0].mxu0 %v1850
  %v1852 = vpop.f32.mrb[0].mxu0
  %v1853 = vadd.f32 %v1773, %v1852
  %v1854 = vpop.f32.mrb[0].mxu0
  %1855 = vdwg.mxu0
  %1856 = vmatprep.subr.mxu0 0.0
  %v1857 = vand.u32 %v31, 4294901760
  %1858 = vmatpush1.msra.mxu0 %v1857
  %1859 = vmatprep.subr.mxu0 0.0
  %v1860 = vand.u32 %v32, 4294901760
  %1861 = vmatpush1.msra.mxu0 %v1860
  %1862 = vmatprep.subr.mxu0 0.0
  %v1863 = vand.u32 %v33, 4294901760
  %1864 = vmatpush1.msra.mxu0 %v1863
  %1865 = vmatprep.subr.mxu0 0.0
  %v1866 = vand.u32 %v34, 4294901760
  %1867 = vmatpush1.msra.mxu0 %v1866
  %1868 = vmatprep.subr.mxu0 0.0
  %1869 = vmatpush1.msra.mxu0 0.0
  %1870 = vmatprep.subr.mxu0 0.0
  %1871 = vmatpush1.msra.mxu0 0.0
  %1872 = vmatprep.subr.mxu0 0.0
  %1873 = vmatpush1.msra.mxu0 0.0
  %1874 = vmatprep.subr.mxu0 0.0
  %1875 = vmatpush1.msra.mxu0 0.0
  %1876 = vmatprep.subr.mxu0 0.0
  %1877 = vmatpush1.msra.mxu0 0.0
  %1878 = vmatprep.subr.mxu0 0.0
  %1879 = vmatpush1.msra.mxu0 0.0
  %1880 = vmatprep.subr.mxu0 0.0
  %1881 = vmatpush1.msra.mxu0 0.0
  %1882 = vmatprep.subr.mxu0 0.0
  %1883 = vmatpush1.msra.mxu0 0.0
  %1884 = vmatprep.subr.mxu0 0.0
  %1885 = vmatpush1.msra.mxu0 0.0
  %1886 = vmatprep.subr.mxu0 0.0
  %1887 = vmatpush1.msra.mxu0 0.0
  %1888 = vmatprep.subr.mxu0 0.0
  %1889 = vmatpush1.msra.mxu0 0.0
  %1890 = vmatprep.subr.mxu0 0.0
  %1891 = vmatpush1.msra.mxu0 0.0
  %1892 = vmatprep.subr.mxu0 0.0
  %1893 = vmatpush1.msra.mxu0 0.0
  %1894 = vmatprep.subr.mxu0 0.0
  %1895 = vmatpush1.msra.mxu0 0.0
  %1896 = vmatprep.subr.mxu0 0.0
  %1897 = vmatpush1.msra.mxu0 0.0
  %1898 = vmatprep.subr.mxu0 0.0
  %1899 = vmatpush1.msra.mxu0 0.0
  %1900 = vmatprep.subr.mxu0 0.0
  %1901 = vmatpush1.msra.mxu0 0.0
  %1902 = vmatprep.subr.mxu0 0.0
  %1903 = vmatpush1.msra.mxu0 0.0
  %1904 = vmatprep.subr.mxu0 0.0
  %1905 = vmatpush1.msra.mxu0 0.0
  %1906 = vmatprep.subr.mxu0 0.0
  %1907 = vmatpush1.msra.mxu0 0.0
  %1908 = vmatprep.subr.mxu0 0.0
  %1909 = vmatpush1.msra.mxu0 0.0
  %1910 = vmatprep.subr.mxu0 0.0
  %1911 = vmatpush1.msra.mxu0 0.0
  %1912 = vmatprep.subr.mxu0 0.0
  %1913 = vmatpush1.msra.mxu0 0.0
  %1914 = vmatprep.subr.mxu0 0.0
  %1915 = vmatpush1.msra.mxu0 0.0
  %1916 = vmatprep.subr.mxu0 0.0
  %1917 = vmatpush1.msra.mxu0 0.0
  %1918 = vmatprep.subr.mxu0 0.0
  %1919 = vmatpush1.msra.mxu0 0.0
  %1920 = vmatprep.subr.mxu0 0.0
  %1921 = vmatpush1.msra.mxu0 0.0
  %1922 = vmatprep.subr.mxu0 0.0
  %1923 = vmatpush1.msra.mxu0 0.0
  %1924 = vmatprep.mubr.f32.mxu0 0.0
  %v1925 = vand.u32 %v1604, 4294901760
  %v1926 = vsub.f32 %v1604, %v1925
  %v1927 = vand.u32 %v1926, 4294901760
  %1928 = vmatmul.mubr.f32.gmra.mrb[0].mxu0 %v1927
  %v1929 = vpop.f32.mrb[0].mxu0
  %v1930 = vadd.f32 %v1853, %v1929
  %v1931 = vpop.f32.mrb[0].mxu0
  %1932 = vdwg.mxu0
  %1933 = vmatprep.subr.mxu0 0.0
  %v1934 = vand.u32 %v31, 4294901760
  %v1935 = vsub.f32 %v31, %v1934
  %v1936 = vand.u32 %v1935, 4294901760
  %1937 = vmatpush1.msra.mxu0 %v1936
  %1938 = vmatprep.subr.mxu0 0.0
  %v1939 = vand.u32 %v32, 4294901760
  %v1940 = vsub.f32 %v32, %v1939
  %v1941 = vand.u32 %v1940, 4294901760
  %1942 = vmatpush1.msra.mxu0 %v1941
  %1943 = vmatprep.subr.mxu0 0.0
  %v1944 = vand.u32 %v33, 4294901760
  %v1945 = vsub.f32 %v33, %v1944
  %v1946 = vand.u32 %v1945, 4294901760
  %1947 = vmatpush1.msra.mxu0 %v1946
  %1948 = vmatprep.subr.mxu0 0.0
  %v1949 = vand.u32 %v34, 4294901760
  %v1950 = vsub.f32 %v34, %v1949
  %v1951 = vand.u32 %v1950, 4294901760
  %1952 = vmatpush1.msra.mxu0 %v1951
  %1953 = vmatprep.subr.mxu0 0.0
  %1954 = vmatpush1.msra.mxu0 0.0
  %1955 = vmatprep.subr.mxu0 0.0
  %1956 = vmatpush1.msra.mxu0 0.0
  %1957 = vmatprep.subr.mxu0 0.0
  %1958 = vmatpush1.msra.mxu0 0.0
  %1959 = vmatprep.subr.mxu0 0.0
  %1960 = vmatpush1.msra.mxu0 0.0
  %1961 = vmatprep.subr.mxu0 0.0
  %1962 = vmatpush1.msra.mxu0 0.0
  %1963 = vmatprep.subr.mxu0 0.0
  %1964 = vmatpush1.msra.mxu0 0.0
  %1965 = vmatprep.subr.mxu0 0.0
  %1966 = vmatpush1.msra.mxu0 0.0
  %1967 = vmatprep.subr.mxu0 0.0
  %1968 = vmatpush1.msra.mxu0 0.0
  %1969 = vmatprep.subr.mxu0 0.0
  %1970 = vmatpush1.msra.mxu0 0.0
  %1971 = vmatprep.subr.mxu0 0.0
  %1972 = vmatpush1.msra.mxu0 0.0
  %1973 = vmatprep.subr.mxu0 0.0
  %1974 = vmatpush1.msra.mxu0 0.0
  %1975 = vmatprep.subr.mxu0 0.0
  %1976 = vmatpush1.msra.mxu0 0.0
  %1977 = vmatprep.subr.mxu0 0.0
  %1978 = vmatpush1.msra.mxu0 0.0
  %1979 = vmatprep.subr.mxu0 0.0
  %1980 = vmatpush1.msra.mxu0 0.0
  %1981 = vmatprep.subr.mxu0 0.0
  %1982 = vmatpush1.msra.mxu0 0.0
  %1983 = vmatprep.subr.mxu0 0.0
  %1984 = vmatpush1.msra.mxu0 0.0
  %1985 = vmatprep.subr.mxu0 0.0
  %1986 = vmatpush1.msra.mxu0 0.0
  %1987 = vmatprep.subr.mxu0 0.0
  %1988 = vmatpush1.msra.mxu0 0.0
  %1989 = vmatprep.subr.mxu0 0.0
  %1990 = vmatpush1.msra.mxu0 0.0
  %1991 = vmatprep.subr.mxu0 0.0
  %1992 = vmatpush1.msra.mxu0 0.0
  %1993 = vmatprep.subr.mxu0 0.0
  %1994 = vmatpush1.msra.mxu0 0.0
  %1995 = vmatprep.subr.mxu0 0.0
  %1996 = vmatpush1.msra.mxu0 0.0
  %1997 = vmatprep.subr.mxu0 0.0
  %1998 = vmatpush1.msra.mxu0 0.0
  %1999 = vmatprep.subr.mxu0 0.0
  %2000 = vmatpush1.msra.mxu0 0.0
  %2001 = vmatprep.subr.mxu0 0.0
  %2002 = vmatpush1.msra.mxu0 0.0
  %2003 = vmatprep.subr.mxu0 0.0
  %2004 = vmatpush1.msra.mxu0 0.0
  %2005 = vmatprep.subr.mxu0 0.0
  %2006 = vmatpush1.msra.mxu0 0.0
  %2007 = vmatprep.subr.mxu0 0.0
  %2008 = vmatpush1.msra.mxu0 0.0
  %2009 = vmatprep.mubr.f32.mxu0 0.0
  %v2010 = vand.u32 %v1604, 4294901760
  %2011 = vmatmul.mubr.f32.gmra.mrb[0].mxu0 %v2010
  %v2012 = vpop.f32.mrb[0].mxu0
  %v2013 = vadd.f32 %v1930, %v2012
  %v2014 = vpop.f32.mrb[0].mxu0
  %2015 = vdwg.mxu0
  %2016 = vmatprep.subr.mxu0 0.0
  %v2017 = vand.u32 %v31, 4294901760
  %2018 = vmatpush1.msra.mxu0 %v2017
  %2019 = vmatprep.subr.mxu0 0.0
  %v2020 = vand.u32 %v32, 4294901760
  %2021 = vmatpush1.msra.mxu0 %v2020
  %2022 = vmatprep.subr.mxu0 0.0
  %v2023 = vand.u32 %v33, 4294901760
  %2024 = vmatpush1.msra.mxu0 %v2023
  %2025 = vmatprep.subr.mxu0 0.0
  %v2026 = vand.u32 %v34, 4294901760
  %2027 = vmatpush1.msra.mxu0 %v2026
  %2028 = vmatprep.subr.mxu0 0.0
  %2029 = vmatpush1.msra.mxu0 0.0
  %2030 = vmatprep.subr.mxu0 0.0
  %2031 = vmatpush1.msra.mxu0 0.0
  %2032 = vmatprep.subr.mxu0 0.0
  %2033 = vmatpush1.msra.mxu0 0.0
  %2034 = vmatprep.subr.mxu0 0.0
  %2035 = vmatpush1.msra.mxu0 0.0
  %2036 = vmatprep.subr.mxu0 0.0
  %2037 = vmatpush1.msra.mxu0 0.0
  %2038 = vmatprep.subr.mxu0 0.0
  %2039 = vmatpush1.msra.mxu0 0.0
  %2040 = vmatprep.subr.mxu0 0.0
  %2041 = vmatpush1.msra.mxu0 0.0
  %2042 = vmatprep.subr.mxu0 0.0
  %2043 = vmatpush1.msra.mxu0 0.0
  %2044 = vmatprep.subr.mxu0 0.0
  %2045 = vmatpush1.msra.mxu0 0.0
  %2046 = vmatprep.subr.mxu0 0.0
  %2047 = vmatpush1.msra.mxu0 0.0
  %2048 = vmatprep.subr.mxu0 0.0
  %2049 = vmatpush1.msra.mxu0 0.0
  %2050 = vmatprep.subr.mxu0 0.0
  %2051 = vmatpush1.msra.mxu0 0.0
  %2052 = vmatprep.subr.mxu0 0.0
  %2053 = vmatpush1.msra.mxu0 0.0
  %2054 = vmatprep.subr.mxu0 0.0
  %2055 = vmatpush1.msra.mxu0 0.0
  %2056 = vmatprep.subr.mxu0 0.0
  %2057 = vmatpush1.msra.mxu0 0.0
  %2058 = vmatprep.subr.mxu0 0.0
  %2059 = vmatpush1.msra.mxu0 0.0
  %2060 = vmatprep.subr.mxu0 0.0
  %2061 = vmatpush1.msra.mxu0 0.0
  %2062 = vmatprep.subr.mxu0 0.0
  %2063 = vmatpush1.msra.mxu0 0.0
  %2064 = vmatprep.subr.mxu0 0.0
  %2065 = vmatpush1.msra.mxu0 0.0
  %2066 = vmatprep.subr.mxu0 0.0
  %2067 = vmatpush1.msra.mxu0 0.0
  %2068 = vmatprep.subr.mxu0 0.0
  %2069 = vmatpush1.msra.mxu0 0.0
  %2070 = vmatprep.subr.mxu0 0.0
  %2071 = vmatpush1.msra.mxu0 0.0
  %2072 = vmatprep.subr.mxu0 0.0
  %2073 = vmatpush1.msra.mxu0 0.0
  %2074 = vmatprep.subr.mxu0 0.0
  %2075 = vmatpush1.msra.mxu0 0.0
  %2076 = vmatprep.subr.mxu0 0.0
  %2077 = vmatpush1.msra.mxu0 0.0
  %2078 = vmatprep.subr.mxu0 0.0
  %2079 = vmatpush1.msra.mxu0 0.0
  %2080 = vmatprep.subr.mxu0 0.0
  %2081 = vmatpush1.msra.mxu0 0.0
  %2082 = vmatprep.subr.mxu0 0.0
  %2083 = vmatpush1.msra.mxu0 0.0
  %2084 = vmatprep.mubr.f32.mxu0 0.0
  %v2085 = vand.u32 %v1604, 4294901760
  %2086 = vmatmul.mubr.f32.gmra.mrb[0].mxu0 %v2085
  %v2087 = vpop.f32.mrb[0].mxu0
  %v2088 = vadd.f32 %v2013, %v2087
  %v2089 = vpop.f32.mrb[0].mxu0
  %2090 = vdwg.mxu0
  %v2091 = vadd.f32 %v1600, %v2088
  %v2092 = vxor.u32 %v2091, 2147483648
  %v2093 = vmul.f32 %v2092, 1.442695
  %v2094 = vpow.pop %v2093
  %v2095 = vadd.f32 %v2094, 1.0
  %v2096 = vrcp.pop %v2095
  %v2097 = vmul.f32 1.0, %v2096
  %v2098 = vtanh.pop %v2091
  %v2099 = vmul.f32 %v2097, %v1592
  %2101 = vrot.lane.b32.xlu0 %v2098, 32
  %v2102 = vpop.permute.xlu0 %2101
  %v2104 = vmul.f32 %v2097, %v2102
  %2106 = vrot.lane.b32.xlu0 %v2104, 32
  %v2107 = vpop.permute.xlu0 %2106
  %v2109 = vadd.f32 %v2099, %v2107
  %v2110 = vtanh.pop %v2109
  %2112 = vrot.lane.b32.xlu0 %v2110, 32
  %v2113 = vpop.permute.xlu0 %2112
  %v2115 = vmul.f32 %v2097, %v2113
  %s2116 = scalar_lea.vmem %s0, 8
  %v2117 = vld [vmem:[%s2116] sm:$0x3]
  %2119 = vrot.lane.b32.xlu0 %v2115, 64
  %v2120 = vpop.permute.xlu0 %2119
  %v2121 = vsel %vm51, %v2120, 0
  %2123 = vmatprep.subr.mxu0 0.0
  %v2124 = vand.u32 %v31, 4294901760
  %2125 = vmatpush1.msra.mxu0 %v2124
  %2126 = vmatprep.subr.mxu0 0.0
  %v2127 = vand.u32 %v32, 4294901760
  %2128 = vmatpush1.msra.mxu0 %v2127
  %2129 = vmatprep.subr.mxu0 0.0
  %v2130 = vand.u32 %v33, 4294901760
  %2131 = vmatpush1.msra.mxu0 %v2130
  %2132 = vmatprep.subr.mxu0 0.0
  %v2133 = vand.u32 %v34, 4294901760
  %2134 = vmatpush1.msra.mxu0 %v2133
  %2135 = vmatprep.subr.mxu0 0.0
  %2136 = vmatpush1.msra.mxu0 0.0
  %2137 = vmatprep.subr.mxu0 0.0
  %2138 = vmatpush1.msra.mxu0 0.0
  %2139 = vmatprep.subr.mxu0 0.0
  %2140 = vmatpush1.msra.mxu0 0.0
  %2141 = vmatprep.subr.mxu0 0.0
  %2142 = vmatpush1.msra.mxu0 0.0
  %2143 = vmatprep.subr.mxu0 0.0
  %2144 = vmatpush1.msra.mxu0 0.0
  %2145 = vmatprep.subr.mxu0 0.0
  %2146 = vmatpush1.msra.mxu0 0.0
  %2147 = vmatprep.subr.mxu0 0.0
  %2148 = vmatpush1.msra.mxu0 0.0
  %2149 = vmatprep.subr.mxu0 0.0
  %2150 = vmatpush1.msra.mxu0 0.0
  %2151 = vmatprep.subr.mxu0 0.0
  %2152 = vmatpush1.msra.mxu0 0.0
  %2153 = vmatprep.subr.mxu0 0.0
  %2154 = vmatpush1.msra.mxu0 0.0
  %2155 = vmatprep.subr.mxu0 0.0
  %2156 = vmatpush1.msra.mxu0 0.0
  %2157 = vmatprep.subr.mxu0 0.0
  %2158 = vmatpush1.msra.mxu0 0.0
  %2159 = vmatprep.subr.mxu0 0.0
  %2160 = vmatpush1.msra.mxu0 0.0
  %2161 = vmatprep.subr.mxu0 0.0
  %2162 = vmatpush1.msra.mxu0 0.0
  %2163 = vmatprep.subr.mxu0 0.0
  %2164 = vmatpush1.msra.mxu0 0.0
  %2165 = vmatprep.subr.mxu0 0.0
  %2166 = vmatpush1.msra.mxu0 0.0
  %2167 = vmatprep.subr.mxu0 0.0
  %2168 = vmatpush1.msra.mxu0 0.0
  %2169 = vmatprep.subr.mxu0 0.0
  %2170 = vmatpush1.msra.mxu0 0.0
  %2171 = vmatprep.subr.mxu0 0.0
  %2172 = vmatpush1.msra.mxu0 0.0
  %2173 = vmatprep.subr.mxu0 0.0
  %2174 = vmatpush1.msra.mxu0 0.0
  %2175 = vmatprep.subr.mxu0 0.0
  %2176 = vmatpush1.msra.mxu0 0.0
  %2177 = vmatprep.subr.mxu0 0.0
  %2178 = vmatpush1.msra.mxu0 0.0
  %2179 = vmatprep.subr.mxu0 0.0
  %2180 = vmatpush1.msra.mxu0 0.0
  %2181 = vmatprep.subr.mxu0 0.0
  %2182 = vmatpush1.msra.mxu0 0.0
  %2183 = vmatprep.subr.mxu0 0.0
  %2184 = vmatpush1.msra.mxu0 0.0
  %2185 = vmatprep.subr.mxu0 0.0
  %2186 = vmatpush1.msra.mxu0 0.0
  %2187 = vmatprep.subr.mxu0 0.0
  %2188 = vmatpush1.msra.mxu0 0.0
  %2189 = vmatprep.subr.mxu0 0.0
  %2190 = vmatpush1.msra.mxu0 0.0
  %2191 = vmatprep.mubr.f32.mxu0 0.0
  %v2192 = vand.u32 %v2121, 4294901760
  %v2193 = vsub.f32 %v2121, %v2192
  %v2194 = vand.u32 %v2193, 4294901760
  %v2195 = vsub.f32 %v2193, %v2194
  %v2196 = vand.u32 %v2195, 4294901760
  %2197 = vmatmul.mubr.f32.gmra.mrb[0].mxu0 %v2196
  %v2198 = vpop.f32.mrb[0].mxu0
  %v2199 = vadd.f32 0.0, %v2198
  %v2200 = vpop.f32.mrb[0].mxu0
  %2201 = vdwg.mxu0
  %2202 = vmatprep.subr.mxu0 0.0
  %v2203 = vand.u32 %v31, 4294901760
  %v2204 = vsub.f32 %v31, %v2203
  %v2205 = vand.u32 %v2204, 4294901760
  %v2206 = vsub.f32 %v2204, %v2205
  %v2207 = vand.u32 %v2206, 4294901760
  %2208 = vmatpush1.msra.mxu0 %v2207
  %2209 = vmatprep.subr.mxu0 0.0
  %v2210 = vand.u32 %v32, 4294901760
  %v2211 = vsub.f32 %v32, %v2210
  %v2212 = vand.u32 %v2211, 4294901760
  %v2213 = vsub.f32 %v2211, %v2212
  %v2214 = vand.u32 %v2213, 4294901760
  %2215 = vmatpush1.msra.mxu0 %v2214
  %2216 = vmatprep.subr.mxu0 0.0
  %v2217 = vand.u32 %v33, 4294901760
  %v2218 = vsub.f32 %v33, %v2217
  %v2219 = vand.u32 %v2218, 4294901760
  %v2220 = vsub.f32 %v2218, %v2219
  %v2221 = vand.u32 %v2220, 4294901760
  %2222 = vmatpush1.msra.mxu0 %v2221
  %2223 = vmatprep.subr.mxu0 0.0
  %v2224 = vand.u32 %v34, 4294901760
  %v2225 = vsub.f32 %v34, %v2224
  %v2226 = vand.u32 %v2225, 4294901760
  %v2227 = vsub.f32 %v2225, %v2226
  %v2228 = vand.u32 %v2227, 4294901760
  %2229 = vmatpush1.msra.mxu0 %v2228
  %2230 = vmatprep.subr.mxu0 0.0
  %2231 = vmatpush1.msra.mxu0 0.0
  %2232 = vmatprep.subr.mxu0 0.0
  %2233 = vmatpush1.msra.mxu0 0.0
  %2234 = vmatprep.subr.mxu0 0.0
  %2235 = vmatpush1.msra.mxu0 0.0
  %2236 = vmatprep.subr.mxu0 0.0
  %2237 = vmatpush1.msra.mxu0 0.0
  %2238 = vmatprep.subr.mxu0 0.0
  %2239 = vmatpush1.msra.mxu0 0.0
  %2240 = vmatprep.subr.mxu0 0.0
  %2241 = vmatpush1.msra.mxu0 0.0
  %2242 = vmatprep.subr.mxu0 0.0
  %2243 = vmatpush1.msra.mxu0 0.0
  %2244 = vmatprep.subr.mxu0 0.0
  %2245 = vmatpush1.msra.mxu0 0.0
  %2246 = vmatprep.subr.mxu0 0.0
  %2247 = vmatpush1.msra.mxu0 0.0
  %2248 = vmatprep.subr.mxu0 0.0
  %2249 = vmatpush1.msra.mxu0 0.0
  %2250 = vmatprep.subr.mxu0 0.0
  %2251 = vmatpush1.msra.mxu0 0.0
  %2252 = vmatprep.subr.mxu0 0.0
  %2253 = vmatpush1.msra.mxu0 0.0
  %2254 = vmatprep.subr.mxu0 0.0
  %2255 = vmatpush1.msra.mxu0 0.0
  %2256 = vmatprep.subr.mxu0 0.0
  %2257 = vmatpush1.msra.mxu0 0.0
  %2258 = vmatprep.subr.mxu0 0.0
  %2259 = vmatpush1.msra.mxu0 0.0
  %2260 = vmatprep.subr.mxu0 0.0
  %2261 = vmatpush1.msra.mxu0 0.0
  %2262 = vmatprep.subr.mxu0 0.0
  %2263 = vmatpush1.msra.mxu0 0.0
  %2264 = vmatprep.subr.mxu0 0.0
  %2265 = vmatpush1.msra.mxu0 0.0
  %2266 = vmatprep.subr.mxu0 0.0
  %2267 = vmatpush1.msra.mxu0 0.0
  %2268 = vmatprep.subr.mxu0 0.0
  %2269 = vmatpush1.msra.mxu0 0.0
  %2270 = vmatprep.subr.mxu0 0.0
  %2271 = vmatpush1.msra.mxu0 0.0
  %2272 = vmatprep.subr.mxu0 0.0
  %2273 = vmatpush1.msra.mxu0 0.0
  %2274 = vmatprep.subr.mxu0 0.0
  %2275 = vmatpush1.msra.mxu0 0.0
  %2276 = vmatprep.subr.mxu0 0.0
  %2277 = vmatpush1.msra.mxu0 0.0
  %2278 = vmatprep.subr.mxu0 0.0
  %2279 = vmatpush1.msra.mxu0 0.0
  %2280 = vmatprep.subr.mxu0 0.0
  %2281 = vmatpush1.msra.mxu0 0.0
  %2282 = vmatprep.subr.mxu0 0.0
  %2283 = vmatpush1.msra.mxu0 0.0
  %2284 = vmatprep.subr.mxu0 0.0
  %2285 = vmatpush1.msra.mxu0 0.0
  %2286 = vmatprep.mubr.f32.mxu0 0.0
  %v2287 = vand.u32 %v2121, 4294901760
  %2288 = vmatmul.mubr.f32.gmra.mrb[0].mxu0 %v2287
  %v2289 = vpop.f32.mrb[0].mxu0
  %v2290 = vadd.f32 %v2199, %v2289
  %v2291 = vpop.f32.mrb[0].mxu0
  %2292 = vdwg.mxu0
  %2293 = vmatprep.subr.mxu0 0.0
  %v2294 = vand.u32 %v31, 4294901760
  %v2295 = vsub.f32 %v31, %v2294
  %2296 = vmatpush1.msra.mxu0 %v2295
  %2297 = vmatprep.subr.mxu0 0.0
  %v2298 = vand.u32 %v32, 4294901760
  %v2299 = vsub.f32 %v32, %v2298
  %2300 = vmatpush1.msra.mxu0 %v2299
  %2301 = vmatprep.subr.mxu0 0.0
  %v2302 = vand.u32 %v33, 4294901760
  %v2303 = vsub.f32 %v33, %v2302
  %2304 = vmatpush1.msra.mxu0 %v2303
  %2305 = vmatprep.subr.mxu0 0.0
  %v2306 = vand.u32 %v34, 4294901760
  %v2307 = vsub.f32 %v34, %v2306
  %2308 = vmatpush1.msra.mxu0 %v2307
  %2309 = vmatprep.subr.mxu0 0.0
  %2310 = vmatpush1.msra.mxu0 0.0
  %2311 = vmatprep.subr.mxu0 0.0
  %2312 = vmatpush1.msra.mxu0 0.0
  %2313 = vmatprep.subr.mxu0 0.0
  %2314 = vmatpush1.msra.mxu0 0.0
  %2315 = vmatprep.subr.mxu0 0.0
  %2316 = vmatpush1.msra.mxu0 0.0
  %2317 = vmatprep.subr.mxu0 0.0
  %2318 = vmatpush1.msra.mxu0 0.0
  %2319 = vmatprep.subr.mxu0 0.0
  %2320 = vmatpush1.msra.mxu0 0.0
  %2321 = vmatprep.subr.mxu0 0.0
  %2322 = vmatpush1.msra.mxu0 0.0
  %2323 = vmatprep.subr.mxu0 0.0
  %2324 = vmatpush1.msra.mxu0 0.0
  %2325 = vmatprep.subr.mxu0 0.0
  %2326 = vmatpush1.msra.mxu0 0.0
  %2327 = vmatprep.subr.mxu0 0.0
  %2328 = vmatpush1.msra.mxu0 0.0
  %2329 = vmatprep.subr.mxu0 0.0
  %2330 = vmatpush1.msra.mxu0 0.0
  %2331 = vmatprep.subr.mxu0 0.0
  %2332 = vmatpush1.msra.mxu0 0.0
  %2333 = vmatprep.subr.mxu0 0.0
  %2334 = vmatpush1.msra.mxu0 0.0
  %2335 = vmatprep.subr.mxu0 0.0
  %2336 = vmatpush1.msra.mxu0 0.0
  %2337 = vmatprep.subr.mxu0 0.0
  %2338 = vmatpush1.msra.mxu0 0.0
  %2339 = vmatprep.subr.mxu0 0.0
  %2340 = vmatpush1.msra.mxu0 0.0
  %2341 = vmatprep.subr.mxu0 0.0
  %2342 = vmatpush1.msra.mxu0 0.0
  %2343 = vmatprep.subr.mxu0 0.0
  %2344 = vmatpush1.msra.mxu0 0.0
  %2345 = vmatprep.subr.mxu0 0.0
  %2346 = vmatpush1.msra.mxu0 0.0
  %2347 = vmatprep.subr.mxu0 0.0
  %2348 = vmatpush1.msra.mxu0 0.0
  %2349 = vmatprep.subr.mxu0 0.0
  %2350 = vmatpush1.msra.mxu0 0.0
  %2351 = vmatprep.subr.mxu0 0.0
  %2352 = vmatpush1.msra.mxu0 0.0
  %2353 = vmatprep.subr.mxu0 0.0
  %2354 = vmatpush1.msra.mxu0 0.0
  %2355 = vmatprep.subr.mxu0 0.0
  %2356 = vmatpush1.msra.mxu0 0.0
  %2357 = vmatprep.subr.mxu0 0.0
  %2358 = vmatpush1.msra.mxu0 0.0
  %2359 = vmatprep.subr.mxu0 0.0
  %2360 = vmatpush1.msra.mxu0 0.0
  %2361 = vmatprep.subr.mxu0 0.0
  %2362 = vmatpush1.msra.mxu0 0.0
  %2363 = vmatprep.subr.mxu0 0.0
  %2364 = vmatpush1.msra.mxu0 0.0
  %2365 = vmatprep.mubr.f32.mxu0 0.0
  %v2366 = vand.u32 %v2121, 4294901760
  %v2367 = vsub.f32 %v2121, %v2366
  %2368 = vmatmul.mubr.f32.gmra.mrb[0].mxu0 %v2367
  %v2369 = vpop.f32.mrb[0].mxu0
  %v2370 = vadd.f32 %v2290, %v2369
  %v2371 = vpop.f32.mrb[0].mxu0
  %2372 = vdwg.mxu0
  %2373 = vmatprep.subr.mxu0 0.0
  %v2374 = vand.u32 %v31, 4294901760
  %2375 = vmatpush1.msra.mxu0 %v2374
  %2376 = vmatprep.subr.mxu0 0.0
  %v2377 = vand.u32 %v32, 4294901760
  %2378 = vmatpush1.msra.mxu0 %v2377
  %2379 = vmatprep.subr.mxu0 0.0
  %v2380 = vand.u32 %v33, 4294901760
  %2381 = vmatpush1.msra.mxu0 %v2380
  %2382 = vmatprep.subr.mxu0 0.0
  %v2383 = vand.u32 %v34, 4294901760
  %2384 = vmatpush1.msra.mxu0 %v2383
  %2385 = vmatprep.subr.mxu0 0.0
  %2386 = vmatpush1.msra.mxu0 0.0
  %2387 = vmatprep.subr.mxu0 0.0
  %2388 = vmatpush1.msra.mxu0 0.0
  %2389 = vmatprep.subr.mxu0 0.0
  %2390 = vmatpush1.msra.mxu0 0.0
  %2391 = vmatprep.subr.mxu0 0.0
  %2392 = vmatpush1.msra.mxu0 0.0
  %2393 = vmatprep.subr.mxu0 0.0
  %2394 = vmatpush1.msra.mxu0 0.0
  %2395 = vmatprep.subr.mxu0 0.0
  %2396 = vmatpush1.msra.mxu0 0.0
  %2397 = vmatprep.subr.mxu0 0.0
  %2398 = vmatpush1.msra.mxu0 0.0
  %2399 = vmatprep.subr.mxu0 0.0
  %2400 = vmatpush1.msra.mxu0 0.0
  %2401 = vmatprep.subr.mxu0 0.0
  %2402 = vmatpush1.msra.mxu0 0.0
  %2403 = vmatprep.subr.mxu0 0.0
  %2404 = vmatpush1.msra.mxu0 0.0
  %2405 = vmatprep.subr.mxu0 0.0
  %2406 = vmatpush1.msra.mxu0 0.0
  %2407 = vmatprep.subr.mxu0 0.0
  %2408 = vmatpush1.msra.mxu0 0.0
  %2409 = vmatprep.subr.mxu0 0.0
  %2410 = vmatpush1.msra.mxu0 0.0
  %2411 = vmatprep.subr.mxu0 0.0
  %2412 = vmatpush1.msra.mxu0 0.0
  %2413 = vmatprep.subr.mxu0 0.0
  %2414 = vmatpush1.msra.mxu0 0.0
  %2415 = vmatprep.subr.mxu0 0.0
  %2416 = vmatpush1.msra.mxu0 0.0
  %2417 = vmatprep.subr.mxu0 0.0
  %2418 = vmatpush1.msra.mxu0 0.0
  %2419 = vmatprep.subr.mxu0 0.0
  %2420 = vmatpush1.msra.mxu0 0.0
  %2421 = vmatprep.subr.mxu0 0.0
  %2422 = vmatpush1.msra.mxu0 0.0
  %2423 = vmatprep.subr.mxu0 0.0
  %2424 = vmatpush1.msra.mxu0 0.0
  %2425 = vmatprep.subr.mxu0 0.0
  %2426 = vmatpush1.msra.mxu0 0.0
  %2427 = vmatprep.subr.mxu0 0.0
  %2428 = vmatpush1.msra.mxu0 0.0
  %2429 = vmatprep.subr.mxu0 0.0
  %2430 = vmatpush1.msra.mxu0 0.0
  %2431 = vmatprep.subr.mxu0 0.0
  %2432 = vmatpush1.msra.mxu0 0.0
  %2433 = vmatprep.subr.mxu0 0.0
  %2434 = vmatpush1.msra.mxu0 0.0
  %2435 = vmatprep.subr.mxu0 0.0
  %2436 = vmatpush1.msra.mxu0 0.0
  %2437 = vmatprep.subr.mxu0 0.0
  %2438 = vmatpush1.msra.mxu0 0.0
  %2439 = vmatprep.subr.mxu0 0.0
  %2440 = vmatpush1.msra.mxu0 0.0
  %2441 = vmatprep.mubr.f32.mxu0 0.0
  %v2442 = vand.u32 %v2121, 4294901760
  %v2443 = vsub.f32 %v2121, %v2442
  %v2444 = vand.u32 %v2443, 4294901760
  %2445 = vmatmul.mubr.f32.gmra.mrb[0].mxu0 %v2444
  %v2446 = vpop.f32.mrb[0].mxu0
  %v2447 = vadd.f32 %v2370, %v2446
  %v2448 = vpop.f32.mrb[0].mxu0
  %2449 = vdwg.mxu0
  %2450 = vmatprep.subr.mxu0 0.0
  %v2451 = vand.u32 %v31, 4294901760
  %v2452 = vsub.f32 %v31, %v2451
  %v2453 = vand.u32 %v2452, 4294901760
  %2454 = vmatpush1.msra.mxu0 %v2453
  %2455 = vmatprep.subr.mxu0 0.0
  %v2456 = vand.u32 %v32, 4294901760
  %v2457 = vsub.f32 %v32, %v2456
  %v2458 = vand.u32 %v2457, 4294901760
  %2459 = vmatpush1.msra.mxu0 %v2458
  %2460 = vmatprep.subr.mxu0 0.0
  %v2461 = vand.u32 %v33, 4294901760
  %v2462 = vsub.f32 %v33, %v2461
  %v2463 = vand.u32 %v2462, 4294901760
  %2464 = vmatpush1.msra.mxu0 %v2463
  %2465 = vmatprep.subr.mxu0 0.0
  %v2466 = vand.u32 %v34, 4294901760
  %v2467 = vsub.f32 %v34, %v2466
  %v2468 = vand.u32 %v2467, 4294901760
  %2469 = vmatpush1.msra.mxu0 %v2468
  %2470 = vmatprep.subr.mxu0 0.0
  %2471 = vmatpush1.msra.mxu0 0.0
  %2472 = vmatprep.subr.mxu0 0.0
  %2473 = vmatpush1.msra.mxu0 0.0
  %2474 = vmatprep.subr.mxu0 0.0
  %2475 = vmatpush1.msra.mxu0 0.0
  %2476 = vmatprep.subr.mxu0 0.0
  %2477 = vmatpush1.msra.mxu0 0.0
  %2478 = vmatprep.subr.mxu0 0.0
  %2479 = vmatpush1.msra.mxu0 0.0
  %2480 = vmatprep.subr.mxu0 0.0
  %2481 = vmatpush1.msra.mxu0 0.0
  %2482 = vmatprep.subr.mxu0 0.0
  %2483 = vmatpush1.msra.mxu0 0.0
  %2484 = vmatprep.subr.mxu0 0.0
  %2485 = vmatpush1.msra.mxu0 0.0
  %2486 = vmatprep.subr.mxu0 0.0
  %2487 = vmatpush1.msra.mxu0 0.0
  %2488 = vmatprep.subr.mxu0 0.0
  %2489 = vmatpush1.msra.mxu0 0.0
  %2490 = vmatprep.subr.mxu0 0.0
  %2491 = vmatpush1.msra.mxu0 0.0
  %2492 = vmatprep.subr.mxu0 0.0
  %2493 = vmatpush1.msra.mxu0 0.0
  %2494 = vmatprep.subr.mxu0 0.0
  %2495 = vmatpush1.msra.mxu0 0.0
  %2496 = vmatprep.subr.mxu0 0.0
  %2497 = vmatpush1.msra.mxu0 0.0
  %2498 = vmatprep.subr.mxu0 0.0
  %2499 = vmatpush1.msra.mxu0 0.0
  %2500 = vmatprep.subr.mxu0 0.0
  %2501 = vmatpush1.msra.mxu0 0.0
  %2502 = vmatprep.subr.mxu0 0.0
  %2503 = vmatpush1.msra.mxu0 0.0
  %2504 = vmatprep.subr.mxu0 0.0
  %2505 = vmatpush1.msra.mxu0 0.0
  %2506 = vmatprep.subr.mxu0 0.0
  %2507 = vmatpush1.msra.mxu0 0.0
  %2508 = vmatprep.subr.mxu0 0.0
  %2509 = vmatpush1.msra.mxu0 0.0
  %2510 = vmatprep.subr.mxu0 0.0
  %2511 = vmatpush1.msra.mxu0 0.0
  %2512 = vmatprep.subr.mxu0 0.0
  %2513 = vmatpush1.msra.mxu0 0.0
  %2514 = vmatprep.subr.mxu0 0.0
  %2515 = vmatpush1.msra.mxu0 0.0
  %2516 = vmatprep.subr.mxu0 0.0
  %2517 = vmatpush1.msra.mxu0 0.0
  %2518 = vmatprep.subr.mxu0 0.0
  %2519 = vmatpush1.msra.mxu0 0.0
  %2520 = vmatprep.subr.mxu0 0.0
  %2521 = vmatpush1.msra.mxu0 0.0
  %2522 = vmatprep.subr.mxu0 0.0
  %2523 = vmatpush1.msra.mxu0 0.0
  %2524 = vmatprep.subr.mxu0 0.0
  %2525 = vmatpush1.msra.mxu0 0.0
  %2526 = vmatprep.mubr.f32.mxu0 0.0
  %v2527 = vand.u32 %v2121, 4294901760
  %2528 = vmatmul.mubr.f32.gmra.mrb[0].mxu0 %v2527
  %v2529 = vpop.f32.mrb[0].mxu0
  %v2530 = vadd.f32 %v2447, %v2529
  %v2531 = vpop.f32.mrb[0].mxu0
  %2532 = vdwg.mxu0
  %2533 = vmatprep.subr.mxu0 0.0
  %v2534 = vand.u32 %v31, 4294901760
  %2535 = vmatpush1.msra.mxu0 %v2534
  %2536 = vmatprep.subr.mxu0 0.0
  %v2537 = vand.u32 %v32, 4294901760
  %2538 = vmatpush1.msra.mxu0 %v2537
  %2539 = vmatprep.subr.mxu0 0.0
  %v2540 = vand.u32 %v33, 4294901760
  %2541 = vmatpush1.msra.mxu0 %v2540
  %2542 = vmatprep.subr.mxu0 0.0
  %v2543 = vand.u32 %v34, 4294901760
  %2544 = vmatpush1.msra.mxu0 %v2543
  %2545 = vmatprep.subr.mxu0 0.0
  %2546 = vmatpush1.msra.mxu0 0.0
  %2547 = vmatprep.subr.mxu0 0.0
  %2548 = vmatpush1.msra.mxu0 0.0
  %2549 = vmatprep.subr.mxu0 0.0
  %2550 = vmatpush1.msra.mxu0 0.0
  %2551 = vmatprep.subr.mxu0 0.0
  %2552 = vmatpush1.msra.mxu0 0.0
  %2553 = vmatprep.subr.mxu0 0.0
  %2554 = vmatpush1.msra.mxu0 0.0
  %2555 = vmatprep.subr.mxu0 0.0
  %2556 = vmatpush1.msra.mxu0 0.0
  %2557 = vmatprep.subr.mxu0 0.0
  %2558 = vmatpush1.msra.mxu0 0.0
  %2559 = vmatprep.subr.mxu0 0.0
  %2560 = vmatpush1.msra.mxu0 0.0
  %2561 = vmatprep.subr.mxu0 0.0
  %2562 = vmatpush1.msra.mxu0 0.0
  %2563 = vmatprep.subr.mxu0 0.0
  %2564 = vmatpush1.msra.mxu0 0.0
  %2565 = vmatprep.subr.mxu0 0.0
  %2566 = vmatpush1.msra.mxu0 0.0
  %2567 = vmatprep.subr.mxu0 0.0
  %2568 = vmatpush1.msra.mxu0 0.0
  %2569 = vmatprep.subr.mxu0 0.0
  %2570 = vmatpush1.msra.mxu0 0.0
  %2571 = vmatprep.subr.mxu0 0.0
  %2572 = vmatpush1.msra.mxu0 0.0
  %2573 = vmatprep.subr.mxu0 0.0
  %2574 = vmatpush1.msra.mxu0 0.0
  %2575 = vmatprep.subr.mxu0 0.0
  %2576 = vmatpush1.msra.mxu0 0.0
  %2577 = vmatprep.subr.mxu0 0.0
  %2578 = vmatpush1.msra.mxu0 0.0
  %2579 = vmatprep.subr.mxu0 0.0
  %2580 = vmatpush1.msra.mxu0 0.0
  %2581 = vmatprep.subr.mxu0 0.0
  %2582 = vmatpush1.msra.mxu0 0.0
  %2583 = vmatprep.subr.mxu0 0.0
  %2584 = vmatpush1.msra.mxu0 0.0
  %2585 = vmatprep.subr.mxu0 0.0
  %2586 = vmatpush1.msra.mxu0 0.0
  %2587 = vmatprep.subr.mxu0 0.0
  %2588 = vmatpush1.msra.mxu0 0.0
  %2589 = vmatprep.subr.mxu0 0.0
  %2590 = vmatpush1.msra.mxu0 0.0
  %2591 = vmatprep.subr.mxu0 0.0
  %2592 = vmatpush1.msra.mxu0 0.0
  %2593 = vmatprep.subr.mxu0 0.0
  %2594 = vmatpush1.msra.mxu0 0.0
  %2595 = vmatprep.subr.mxu0 0.0
  %2596 = vmatpush1.msra.mxu0 0.0
  %2597 = vmatprep.subr.mxu0 0.0
  %2598 = vmatpush1.msra.mxu0 0.0
  %2599 = vmatprep.subr.mxu0 0.0
  %2600 = vmatpush1.msra.mxu0 0.0
  %2601 = vmatprep.mubr.f32.mxu0 0.0
  %v2602 = vand.u32 %v2121, 4294901760
  %2603 = vmatmul.mubr.f32.gmra.mrb[0].mxu0 %v2602
  %v2604 = vpop.f32.mrb[0].mxu0
  %v2605 = vadd.f32 %v2530, %v2604
  %v2606 = vpop.f32.mrb[0].mxu0
  %2607 = vdwg.mxu0
  %v2608 = vadd.f32 %v2117, %v2605
  %v2609 = vxor.u32 %v2608, 2147483648
  %v2610 = vmul.f32 %v2609, 1.442695
  %v2611 = vpow.pop %v2610
  %v2612 = vadd.f32 %v2611, 1.0
  %v2613 = vrcp.pop %v2612
  %v2614 = vmul.f32 1.0, %v2613
  %v2615 = vtanh.pop %v2608
  %v2616 = vmul.f32 %v2614, %v2109
  %2618 = vrot.lane.b32.xlu0 %v2615, 32
  %v2619 = vpop.permute.xlu0 %2618
  %v2621 = vmul.f32 %v2614, %v2619
  %2623 = vrot.lane.b32.xlu0 %v2621, 32
  %v2624 = vpop.permute.xlu0 %2623
  %v2626 = vadd.f32 %v2616, %v2624
  %v2627 = vtanh.pop %v2626
  %2629 = vrot.lane.b32.xlu0 %v2627, 32
  %v2630 = vpop.permute.xlu0 %2629
  %v2632 = vmul.f32 %v2614, %v2630
  %s2633 = scalar_lea.vmem %s0, 10
  %v2634 = vld [vmem:[%s2633] sm:$0x3]
  %2636 = vrot.lane.b32.xlu0 %v2632, 64
  %v2637 = vpop.permute.xlu0 %2636
  %v2638 = vsel %vm51, %v2637, 0
  %2640 = vmatprep.subr.mxu0 0.0
  %v2641 = vand.u32 %v31, 4294901760
  %2642 = vmatpush1.msra.mxu0 %v2641
  %2643 = vmatprep.subr.mxu0 0.0
  %v2644 = vand.u32 %v32, 4294901760
  %2645 = vmatpush1.msra.mxu0 %v2644
  %2646 = vmatprep.subr.mxu0 0.0
  %v2647 = vand.u32 %v33, 4294901760
  %2648 = vmatpush1.msra.mxu0 %v2647
  %2649 = vmatprep.subr.mxu0 0.0
  %v2650 = vand.u32 %v34, 4294901760
  %2651 = vmatpush1.msra.mxu0 %v2650
  %2652 = vmatprep.subr.mxu0 0.0
  %2653 = vmatpush1.msra.mxu0 0.0
  %2654 = vmatprep.subr.mxu0 0.0
  %2655 = vmatpush1.msra.mxu0 0.0
  %2656 = vmatprep.subr.mxu0 0.0
  %2657 = vmatpush1.msra.mxu0 0.0
  %2658 = vmatprep.subr.mxu0 0.0
  %2659 = vmatpush1.msra.mxu0 0.0
  %2660 = vmatprep.subr.mxu0 0.0
  %2661 = vmatpush1.msra.mxu0 0.0
  %2662 = vmatprep.subr.mxu0 0.0
  %2663 = vmatpush1.msra.mxu0 0.0
  %2664 = vmatprep.subr.mxu0 0.0
  %2665 = vmatpush1.msra.mxu0 0.0
  %2666 = vmatprep.subr.mxu0 0.0
  %2667 = vmatpush1.msra.mxu0 0.0
  %2668 = vmatprep.subr.mxu0 0.0
  %2669 = vmatpush1.msra.mxu0 0.0
  %2670 = vmatprep.subr.mxu0 0.0
  %2671 = vmatpush1.msra.mxu0 0.0
  %2672 = vmatprep.subr.mxu0 0.0
  %2673 = vmatpush1.msra.mxu0 0.0
  %2674 = vmatprep.subr.mxu0 0.0
  %2675 = vmatpush1.msra.mxu0 0.0
  %2676 = vmatprep.subr.mxu0 0.0
  %2677 = vmatpush1.msra.mxu0 0.0
  %2678 = vmatprep.subr.mxu0 0.0
  %2679 = vmatpush1.msra.mxu0 0.0
  %2680 = vmatprep.subr.mxu0 0.0
  %2681 = vmatpush1.msra.mxu0 0.0
  %2682 = vmatprep.subr.mxu0 0.0
  %2683 = vmatpush1.msra.mxu0 0.0
  %2684 = vmatprep.subr.mxu0 0.0
  %2685 = vmatpush1.msra.mxu0 0.0
  %2686 = vmatprep.subr.mxu0 0.0
  %2687 = vmatpush1.msra.mxu0 0.0
  %2688 = vmatprep.subr.mxu0 0.0
  %2689 = vmatpush1.msra.mxu0 0.0
  %2690 = vmatprep.subr.mxu0 0.0
  %2691 = vmatpush1.msra.mxu0 0.0
  %2692 = vmatprep.subr.mxu0 0.0
  %2693 = vmatpush1.msra.mxu0 0.0
  %2694 = vmatprep.subr.mxu0 0.0
  %2695 = vmatpush1.msra.mxu0 0.0
  %2696 = vmatprep.subr.mxu0 0.0
  %2697 = vmatpush1.msra.mxu0 0.0
  %2698 = vmatprep.subr.mxu0 0.0
  %2699 = vmatpush1.msra.mxu0 0.0
  %2700 = vmatprep.subr.mxu0 0.0
  %2701 = vmatpush1.msra.mxu0 0.0
  %2702 = vmatprep.subr.mxu0 0.0
  %2703 = vmatpush1.msra.mxu0 0.0
  %2704 = vmatprep.subr.mxu0 0.0
  %2705 = vmatpush1.msra.mxu0 0.0
  %2706 = vmatprep.subr.mxu0 0.0
  %2707 = vmatpush1.msra.mxu0 0.0
  %2708 = vmatprep.mubr.f32.mxu0 0.0
  %v2709 = vand.u32 %v2638, 4294901760
  %v2710 = vsub.f32 %v2638, %v2709
  %v2711 = vand.u32 %v2710, 4294901760
  %v2712 = vsub.f32 %v2710, %v2711
  %v2713 = vand.u32 %v2712, 4294901760
  %2714 = vmatmul.mubr.f32.gmra.mrb[0].mxu0 %v2713
  %v2715 = vpop.f32.mrb[0].mxu0
  %v2716 = vadd.f32 0.0, %v2715
  %v2717 = vpop.f32.mrb[0].mxu0
  %2718 = vdwg.mxu0
  %2719 = vmatprep.subr.mxu0 0.0
  %v2720 = vand.u32 %v31, 4294901760
  %v2721 = vsub.f32 %v31, %v2720
  %v2722 = vand.u32 %v2721, 4294901760
  %v2723 = vsub.f32 %v2721, %v2722
  %v2724 = vand.u32 %v2723, 4294901760
  %2725 = vmatpush1.msra.mxu0 %v2724
  %2726 = vmatprep.subr.mxu0 0.0
  %v2727 = vand.u32 %v32, 4294901760
  %v2728 = vsub.f32 %v32, %v2727
  %v2729 = vand.u32 %v2728, 4294901760
  %v2730 = vsub.f32 %v2728, %v2729
  %v2731 = vand.u32 %v2730, 4294901760
  %2732 = vmatpush1.msra.mxu0 %v2731
  %2733 = vmatprep.subr.mxu0 0.0
  %v2734 = vand.u32 %v33, 4294901760
  %v2735 = vsub.f32 %v33, %v2734
  %v2736 = vand.u32 %v2735, 4294901760
  %v2737 = vsub.f32 %v2735, %v2736
  %v2738 = vand.u32 %v2737, 4294901760
  %2739 = vmatpush1.msra.mxu0 %v2738
  %2740 = vmatprep.subr.mxu0 0.0
  %v2741 = vand.u32 %v34, 4294901760
  %v2742 = vsub.f32 %v34, %v2741
  %v2743 = vand.u32 %v2742, 4294901760
  %v2744 = vsub.f32 %v2742, %v2743
  %v2745 = vand.u32 %v2744, 4294901760
  %2746 = vmatpush1.msra.mxu0 %v2745
  %2747 = vmatprep.subr.mxu0 0.0
  %2748 = vmatpush1.msra.mxu0 0.0
  %2749 = vmatprep.subr.mxu0 0.0
  %2750 = vmatpush1.msra.mxu0 0.0
  %2751 = vmatprep.subr.mxu0 0.0
  %2752 = vmatpush1.msra.mxu0 0.0
  %2753 = vmatprep.subr.mxu0 0.0
  %2754 = vmatpush1.msra.mxu0 0.0
  %2755 = vmatprep.subr.mxu0 0.0
  %2756 = vmatpush1.msra.mxu0 0.0
  %2757 = vmatprep.subr.mxu0 0.0
  %2758 = vmatpush1.msra.mxu0 0.0
  %2759 = vmatprep.subr.mxu0 0.0
  %2760 = vmatpush1.msra.mxu0 0.0
  %2761 = vmatprep.subr.mxu0 0.0
  %2762 = vmatpush1.msra.mxu0 0.0
  %2763 = vmatprep.subr.mxu0 0.0
  %2764 = vmatpush1.msra.mxu0 0.0
  %2765 = vmatprep.subr.mxu0 0.0
  %2766 = vmatpush1.msra.mxu0 0.0
  %2767 = vmatprep.subr.mxu0 0.0
  %2768 = vmatpush1.msra.mxu0 0.0
  %2769 = vmatprep.subr.mxu0 0.0
  %2770 = vmatpush1.msra.mxu0 0.0
  %2771 = vmatprep.subr.mxu0 0.0
  %2772 = vmatpush1.msra.mxu0 0.0
  %2773 = vmatprep.subr.mxu0 0.0
  %2774 = vmatpush1.msra.mxu0 0.0
  %2775 = vmatprep.subr.mxu0 0.0
  %2776 = vmatpush1.msra.mxu0 0.0
  %2777 = vmatprep.subr.mxu0 0.0
  %2778 = vmatpush1.msra.mxu0 0.0
  %2779 = vmatprep.subr.mxu0 0.0
  %2780 = vmatpush1.msra.mxu0 0.0
  %2781 = vmatprep.subr.mxu0 0.0
  %2782 = vmatpush1.msra.mxu0 0.0
  %2783 = vmatprep.subr.mxu0 0.0
  %2784 = vmatpush1.msra.mxu0 0.0
  %2785 = vmatprep.subr.mxu0 0.0
  %2786 = vmatpush1.msra.mxu0 0.0
  %2787 = vmatprep.subr.mxu0 0.0
  %2788 = vmatpush1.msra.mxu0 0.0
  %2789 = vmatprep.subr.mxu0 0.0
  %2790 = vmatpush1.msra.mxu0 0.0
  %2791 = vmatprep.subr.mxu0 0.0
  %2792 = vmatpush1.msra.mxu0 0.0
  %2793 = vmatprep.subr.mxu0 0.0
  %2794 = vmatpush1.msra.mxu0 0.0
  %2795 = vmatprep.subr.mxu0 0.0
  %2796 = vmatpush1.msra.mxu0 0.0
  %2797 = vmatprep.subr.mxu0 0.0
  %2798 = vmatpush1.msra.mxu0 0.0
  %2799 = vmatprep.subr.mxu0 0.0
  %2800 = vmatpush1.msra.mxu0 0.0
  %2801 = vmatprep.subr.mxu0 0.0
  %2802 = vmatpush1.msra.mxu0 0.0
  %2803 = vmatprep.mubr.f32.mxu0 0.0
  %v2804 = vand.u32 %v2638, 4294901760
  %2805 = vmatmul.mubr.f32.gmra.mrb[0].mxu0 %v2804
  %v2806 = vpop.f32.mrb[0].mxu0
  %v2807 = vadd.f32 %v2716, %v2806
  %v2808 = vpop.f32.mrb[0].mxu0
  %2809 = vdwg.mxu0
  %2810 = vmatprep.subr.mxu0 0.0
  %v2811 = vand.u32 %v31, 4294901760
  %v2812 = vsub.f32 %v31, %v2811
  %2813 = vmatpush1.msra.mxu0 %v2812
  %2814 = vmatprep.subr.mxu0 0.0
  %v2815 = vand.u32 %v32, 4294901760
  %v2816 = vsub.f32 %v32, %v2815
  %2817 = vmatpush1.msra.mxu0 %v2816
  %2818 = vmatprep.subr.mxu0 0.0
  %v2819 = vand.u32 %v33, 4294901760
  %v2820 = vsub.f32 %v33, %v2819
  %2821 = vmatpush1.msra.mxu0 %v2820
  %2822 = vmatprep.subr.mxu0 0.0
  %v2823 = vand.u32 %v34, 4294901760
  %v2824 = vsub.f32 %v34, %v2823
  %2825 = vmatpush1.msra.mxu0 %v2824
  %2826 = vmatprep.subr.mxu0 0.0
  %2827 = vmatpush1.msra.mxu0 0.0
  %2828 = vmatprep.subr.mxu0 0.0
  %2829 = vmatpush1.msra.mxu0 0.0
  %2830 = vmatprep.subr.mxu0 0.0
  %2831 = vmatpush1.msra.mxu0 0.0
  %2832 = vmatprep.subr.mxu0 0.0
  %2833 = vmatpush1.msra.mxu0 0.0
  %2834 = vmatprep.subr.mxu0 0.0
  %2835 = vmatpush1.msra.mxu0 0.0
  %2836 = vmatprep.subr.mxu0 0.0
  %2837 = vmatpush1.msra.mxu0 0.0
  %2838 = vmatprep.subr.mxu0 0.0
  %2839 = vmatpush1.msra.mxu0 0.0
  %2840 = vmatprep.subr.mxu0 0.0
  %2841 = vmatpush1.msra.mxu0 0.0
  %2842 = vmatprep.subr.mxu0 0.0
  %2843 = vmatpush1.msra.mxu0 0.0
  %2844 = vmatprep.subr.mxu0 0.0
  %2845 = vmatpush1.msra.mxu0 0.0
  %2846 = vmatprep.subr.mxu0 0.0
  %2847 = vmatpush1.msra.mxu0 0.0
  %2848 = vmatprep.subr.mxu0 0.0
  %2849 = vmatpush1.msra.mxu0 0.0
  %2850 = vmatprep.subr.mxu0 0.0
  %2851 = vmatpush1.msra.mxu0 0.0
  %2852 = vmatprep.subr.mxu0 0.0
  %2853 = vmatpush1.msra.mxu0 0.0
  %2854 = vmatprep.subr.mxu0 0.0
  %2855 = vmatpush1.msra.mxu0 0.0
  %2856 = vmatprep.subr.mxu0 0.0
  %2857 = vmatpush1.msra.mxu0 0.0
  %2858 = vmatprep.subr.mxu0 0.0
  %2859 = vmatpush1.msra.mxu0 0.0
  %2860 = vmatprep.subr.mxu0 0.0
  %2861 = vmatpush1.msra.mxu0 0.0
  %2862 = vmatprep.subr.mxu0 0.0
  %2863 = vmatpush1.msra.mxu0 0.0
  %2864 = vmatprep.subr.mxu0 0.0
  %2865 = vmatpush1.msra.mxu0 0.0
  %2866 = vmatprep.subr.mxu0 0.0
  %2867 = vmatpush1.msra.mxu0 0.0
  %2868 = vmatprep.subr.mxu0 0.0
  %2869 = vmatpush1.msra.mxu0 0.0
  %2870 = vmatprep.subr.mxu0 0.0
  %2871 = vmatpush1.msra.mxu0 0.0
  %2872 = vmatprep.subr.mxu0 0.0
  %2873 = vmatpush1.msra.mxu0 0.0
  %2874 = vmatprep.subr.mxu0 0.0
  %2875 = vmatpush1.msra.mxu0 0.0
  %2876 = vmatprep.subr.mxu0 0.0
  %2877 = vmatpush1.msra.mxu0 0.0
  %2878 = vmatprep.subr.mxu0 0.0
  %2879 = vmatpush1.msra.mxu0 0.0
  %2880 = vmatprep.subr.mxu0 0.0
  %2881 = vmatpush1.msra.mxu0 0.0
  %2882 = vmatprep.mubr.f32.mxu0 0.0
  %v2883 = vand.u32 %v2638, 4294901760
  %v2884 = vsub.f32 %v2638, %v2883
  %2885 = vmatmul.mubr.f32.gmra.mrb[0].mxu0 %v2884
  %v2886 = vpop.f32.mrb[0].mxu0
  %v2887 = vadd.f32 %v2807, %v2886
  %v2888 = vpop.f32.mrb[0].mxu0
  %2889 = vdwg.mxu0
  %2890 = vmatprep.subr.mxu0 0.0
  %v2891 = vand.u32 %v31, 4294901760
  %2892 = vmatpush1.msra.mxu0 %v2891
  %2893 = vmatprep.subr.mxu0 0.0
  %v2894 = vand.u32 %v32, 4294901760
  %2895 = vmatpush1.msra.mxu0 %v2894
  %2896 = vmatprep.subr.mxu0 0.0
  %v2897 = vand.u32 %v33, 4294901760
  %2898 = vmatpush1.msra.mxu0 %v2897
  %2899 = vmatprep.subr.mxu0 0.0
  %v2900 = vand.u32 %v34, 4294901760
  %2901 = vmatpush1.msra.mxu0 %v2900
  %2902 = vmatprep.subr.mxu0 0.0
  %2903 = vmatpush1.msra.mxu0 0.0
  %2904 = vmatprep.subr.mxu0 0.0
  %2905 = vmatpush1.msra.mxu0 0.0
  %2906 = vmatprep.subr.mxu0 0.0
  %2907 = vmatpush1.msra.mxu0 0.0
  %2908 = vmatprep.subr.mxu0 0.0
  %2909 = vmatpush1.msra.mxu0 0.0
  %2910 = vmatprep.subr.mxu0 0.0
  %2911 = vmatpush1.msra.mxu0 0.0
  %2912 = vmatprep.subr.mxu0 0.0
  %2913 = vmatpush1.msra.mxu0 0.0
  %2914 = vmatprep.subr.mxu0 0.0
  %2915 = vmatpush1.msra.mxu0 0.0
  %2916 = vmatprep.subr.mxu0 0.0
  %2917 = vmatpush1.msra.mxu0 0.0
  %2918 = vmatprep.subr.mxu0 0.0
  %2919 = vmatpush1.msra.mxu0 0.0
  %2920 = vmatprep.subr.mxu0 0.0
  %2921 = vmatpush1.msra.mxu0 0.0
  %2922 = vmatprep.subr.mxu0 0.0
  %2923 = vmatpush1.msra.mxu0 0.0
  %2924 = vmatprep.subr.mxu0 0.0
  %2925 = vmatpush1.msra.mxu0 0.0
  %2926 = vmatprep.subr.mxu0 0.0
  %2927 = vmatpush1.msra.mxu0 0.0
  %2928 = vmatprep.subr.mxu0 0.0
  %2929 = vmatpush1.msra.mxu0 0.0
  %2930 = vmatprep.subr.mxu0 0.0
  %2931 = vmatpush1.msra.mxu0 0.0
  %2932 = vmatprep.subr.mxu0 0.0
  %2933 = vmatpush1.msra.mxu0 0.0
  %2934 = vmatprep.subr.mxu0 0.0
  %2935 = vmatpush1.msra.mxu0 0.0
  %2936 = vmatprep.subr.mxu0 0.0
  %2937 = vmatpush1.msra.mxu0 0.0
  %2938 = vmatprep.subr.mxu0 0.0
  %2939 = vmatpush1.msra.mxu0 0.0
  %2940 = vmatprep.subr.mxu0 0.0
  %2941 = vmatpush1.msra.mxu0 0.0
  %2942 = vmatprep.subr.mxu0 0.0
  %2943 = vmatpush1.msra.mxu0 0.0
  %2944 = vmatprep.subr.mxu0 0.0
  %2945 = vmatpush1.msra.mxu0 0.0
  %2946 = vmatprep.subr.mxu0 0.0
  %2947 = vmatpush1.msra.mxu0 0.0
  %2948 = vmatprep.subr.mxu0 0.0
  %2949 = vmatpush1.msra.mxu0 0.0
  %2950 = vmatprep.subr.mxu0 0.0
  %2951 = vmatpush1.msra.mxu0 0.0
  %2952 = vmatprep.subr.mxu0 0.0
  %2953 = vmatpush1.msra.mxu0 0.0
  %2954 = vmatprep.subr.mxu0 0.0
  %2955 = vmatpush1.msra.mxu0 0.0
  %2956 = vmatprep.subr.mxu0 0.0
  %2957 = vmatpush1.msra.mxu0 0.0
  %2958 = vmatprep.mubr.f32.mxu0 0.0
  %v2959 = vand.u32 %v2638, 4294901760
  %v2960 = vsub.f32 %v2638, %v2959
  %v2961 = vand.u32 %v2960, 4294901760
  %2962 = vmatmul.mubr.f32.gmra.mrb[0].mxu0 %v2961
  %v2963 = vpop.f32.mrb[0].mxu0
  %v2964 = vadd.f32 %v2887, %v2963
  %v2965 = vpop.f32.mrb[0].mxu0
  %2966 = vdwg.mxu0
  %2967 = vmatprep.subr.mxu0 0.0
  %v2968 = vand.u32 %v31, 4294901760
  %v2969 = vsub.f32 %v31, %v2968
  %v2970 = vand.u32 %v2969, 4294901760
  %2971 = vmatpush1.msra.mxu0 %v2970
  %2972 = vmatprep.subr.mxu0 0.0
  %v2973 = vand.u32 %v32, 4294901760
  %v2974 = vsub.f32 %v32, %v2973
  %v2975 = vand.u32 %v2974, 4294901760
  %2976 = vmatpush1.msra.mxu0 %v2975
  %2977 = vmatprep.subr.mxu0 0.0
  %v2978 = vand.u32 %v33, 4294901760
  %v2979 = vsub.f32 %v33, %v2978
  %v2980 = vand.u32 %v2979, 4294901760
  %2981 = vmatpush1.msra.mxu0 %v2980
  %2982 = vmatprep.subr.mxu0 0.0
  %v2983 = vand.u32 %v34, 4294901760
  %v2984 = vsub.f32 %v34, %v2983
  %v2985 = vand.u32 %v2984, 4294901760
  %2986 = vmatpush1.msra.mxu0 %v2985
  %2987 = vmatprep.subr.mxu0 0.0
  %2988 = vmatpush1.msra.mxu0 0.0
  %2989 = vmatprep.subr.mxu0 0.0
  %2990 = vmatpush1.msra.mxu0 0.0
  %2991 = vmatprep.subr.mxu0 0.0
  %2992 = vmatpush1.msra.mxu0 0.0
  %2993 = vmatprep.subr.mxu0 0.0
  %2994 = vmatpush1.msra.mxu0 0.0
  %2995 = vmatprep.subr.mxu0 0.0
  %2996 = vmatpush1.msra.mxu0 0.0
  %2997 = vmatprep.subr.mxu0 0.0
  %2998 = vmatpush1.msra.mxu0 0.0
  %2999 = vmatprep.subr.mxu0 0.0
  %3000 = vmatpush1.msra.mxu0 0.0
  %3001 = vmatprep.subr.mxu0 0.0
  %3002 = vmatpush1.msra.mxu0 0.0
  %3003 = vmatprep.subr.mxu0 0.0
  %3004 = vmatpush1.msra.mxu0 0.0
  %3005 = vmatprep.subr.mxu0 0.0
  %3006 = vmatpush1.msra.mxu0 0.0
  %3007 = vmatprep.subr.mxu0 0.0
  %3008 = vmatpush1.msra.mxu0 0.0
  %3009 = vmatprep.subr.mxu0 0.0
  %3010 = vmatpush1.msra.mxu0 0.0
  %3011 = vmatprep.subr.mxu0 0.0
  %3012 = vmatpush1.msra.mxu0 0.0
  %3013 = vmatprep.subr.mxu0 0.0
  %3014 = vmatpush1.msra.mxu0 0.0
  %3015 = vmatprep.subr.mxu0 0.0
  %3016 = vmatpush1.msra.mxu0 0.0
  %3017 = vmatprep.subr.mxu0 0.0
  %3018 = vmatpush1.msra.mxu0 0.0
  %3019 = vmatprep.subr.mxu0 0.0
  %3020 = vmatpush1.msra.mxu0 0.0
  %3021 = vmatprep.subr.mxu0 0.0
  %3022 = vmatpush1.msra.mxu0 0.0
  %3023 = vmatprep.subr.mxu0 0.0
  %3024 = vmatpush1.msra.mxu0 0.0
  %3025 = vmatprep.subr.mxu0 0.0
  %3026 = vmatpush1.msra.mxu0 0.0
  %3027 = vmatprep.subr.mxu0 0.0
  %3028 = vmatpush1.msra.mxu0 0.0
  %3029 = vmatprep.subr.mxu0 0.0
  %3030 = vmatpush1.msra.mxu0 0.0
  %3031 = vmatprep.subr.mxu0 0.0
  %3032 = vmatpush1.msra.mxu0 0.0
  %3033 = vmatprep.subr.mxu0 0.0
  %3034 = vmatpush1.msra.mxu0 0.0
  %3035 = vmatprep.subr.mxu0 0.0
  %3036 = vmatpush1.msra.mxu0 0.0
  %3037 = vmatprep.subr.mxu0 0.0
  %3038 = vmatpush1.msra.mxu0 0.0
  %3039 = vmatprep.subr.mxu0 0.0
  %3040 = vmatpush1.msra.mxu0 0.0
  %3041 = vmatprep.subr.mxu0 0.0
  %3042 = vmatpush1.msra.mxu0 0.0
  %3043 = vmatprep.mubr.f32.mxu0 0.0
  %v3044 = vand.u32 %v2638, 4294901760
  %3045 = vmatmul.mubr.f32.gmra.mrb[0].mxu0 %v3044
  %v3046 = vpop.f32.mrb[0].mxu0
  %v3047 = vadd.f32 %v2964, %v3046
  %v3048 = vpop.f32.mrb[0].mxu0
  %3049 = vdwg.mxu0
  %3050 = vmatprep.subr.mxu0 0.0
  %v3051 = vand.u32 %v31, 4294901760
  %3052 = vmatpush1.msra.mxu0 %v3051
  %3053 = vmatprep.subr.mxu0 0.0
  %v3054 = vand.u32 %v32, 4294901760
  %3055 = vmatpush1.msra.mxu0 %v3054
  %3056 = vmatprep.subr.mxu0 0.0
  %v3057 = vand.u32 %v33, 4294901760
  %3058 = vmatpush1.msra.mxu0 %v3057
  %3059 = vmatprep.subr.mxu0 0.0
  %v3060 = vand.u32 %v34, 4294901760
  %3061 = vmatpush1.msra.mxu0 %v3060
  %3062 = vmatprep.subr.mxu0 0.0
  %3063 = vmatpush1.msra.mxu0 0.0
  %3064 = vmatprep.subr.mxu0 0.0
  %3065 = vmatpush1.msra.mxu0 0.0
  %3066 = vmatprep.subr.mxu0 0.0
  %3067 = vmatpush1.msra.mxu0 0.0
  %3068 = vmatprep.subr.mxu0 0.0
  %3069 = vmatpush1.msra.mxu0 0.0
  %3070 = vmatprep.subr.mxu0 0.0
  %3071 = vmatpush1.msra.mxu0 0.0
  %3072 = vmatprep.subr.mxu0 0.0
  %3073 = vmatpush1.msra.mxu0 0.0
  %3074 = vmatprep.subr.mxu0 0.0
  %3075 = vmatpush1.msra.mxu0 0.0
  %3076 = vmatprep.subr.mxu0 0.0
  %3077 = vmatpush1.msra.mxu0 0.0
  %3078 = vmatprep.subr.mxu0 0.0
  %3079 = vmatpush1.msra.mxu0 0.0
  %3080 = vmatprep.subr.mxu0 0.0
  %3081 = vmatpush1.msra.mxu0 0.0
  %3082 = vmatprep.subr.mxu0 0.0
  %3083 = vmatpush1.msra.mxu0 0.0
  %3084 = vmatprep.subr.mxu0 0.0
  %3085 = vmatpush1.msra.mxu0 0.0
  %3086 = vmatprep.subr.mxu0 0.0
  %3087 = vmatpush1.msra.mxu0 0.0
  %3088 = vmatprep.subr.mxu0 0.0
  %3089 = vmatpush1.msra.mxu0 0.0
  %3090 = vmatprep.subr.mxu0 0.0
  %3091 = vmatpush1.msra.mxu0 0.0
  %3092 = vmatprep.subr.mxu0 0.0
  %3093 = vmatpush1.msra.mxu0 0.0
  %3094 = vmatprep.subr.mxu0 0.0
  %3095 = vmatpush1.msra.mxu0 0.0
  %3096 = vmatprep.subr.mxu0 0.0
  %3097 = vmatpush1.msra.mxu0 0.0
  %3098 = vmatprep.subr.mxu0 0.0
  %3099 = vmatpush1.msra.mxu0 0.0
  %3100 = vmatprep.subr.mxu0 0.0
  %3101 = vmatpush1.msra.mxu0 0.0
  %3102 = vmatprep.subr.mxu0 0.0
  %3103 = vmatpush1.msra.mxu0 0.0
  %3104 = vmatprep.subr.mxu0 0.0
  %3105 = vmatpush1.msra.mxu0 0.0
  %3106 = vmatprep.subr.mxu0 0.0
  %3107 = vmatpush1.msra.mxu0 0.0
  %3108 = vmatprep.subr.mxu0 0.0
  %3109 = vmatpush1.msra.mxu0 0.0
  %3110 = vmatprep.subr.mxu0 0.0
  %3111 = vmatpush1.msra.mxu0 0.0
  %3112 = vmatprep.subr.mxu0 0.0
  %3113 = vmatpush1.msra.mxu0 0.0
  %3114 = vmatprep.subr.mxu0 0.0
  %3115 = vmatpush1.msra.mxu0 0.0
  %3116 = vmatprep.subr.mxu0 0.0
  %3117 = vmatpush1.msra.mxu0 0.0
  %3118 = vmatprep.mubr.f32.mxu0 0.0
  %v3119 = vand.u32 %v2638, 4294901760
  %3120 = vmatmul.mubr.f32.gmra.mrb[0].mxu0 %v3119
  %v3121 = vpop.f32.mrb[0].mxu0
  %v3122 = vadd.f32 %v3047, %v3121
  %v3123 = vpop.f32.mrb[0].mxu0
  %3124 = vdwg.mxu0
  %v3125 = vadd.f32 %v2634, %v3122
  %v3126 = vxor.u32 %v3125, 2147483648
  %v3127 = vmul.f32 %v3126, 1.442695
  %v3128 = vpow.pop %v3127
  %v3129 = vadd.f32 %v3128, 1.0
  %v3130 = vrcp.pop %v3129
  %v3131 = vmul.f32 1.0, %v3130
  %v3132 = vtanh.pop %v3125
  %v3133 = vmul.f32 %v3131, %v2626
  %3135 = vrot.lane.b32.xlu0 %v3132, 32
  %v3136 = vpop.permute.xlu0 %3135
  %v3138 = vmul.f32 %v3131, %v3136
  %3140 = vrot.lane.b32.xlu0 %v3138, 32
  %v3141 = vpop.permute.xlu0 %3140
  %v3143 = vadd.f32 %v3133, %v3141
  %v3144 = vtanh.pop %v3143
  %3146 = vrot.lane.b32.xlu0 %v3144, 32
  %v3147 = vpop.permute.xlu0 %3146
  %v3149 = vmul.f32 %v3131, %v3147
  %s3150 = scalar_lea.vmem %s0, 12
  %v3151 = vld [vmem:[%s3150] sm:$0x3]
  %3153 = vrot.lane.b32.xlu0 %v3149, 64
  %v3154 = vpop.permute.xlu0 %3153
  %v3155 = vsel %vm51, %v3154, 0
  %3157 = vmatprep.subr.mxu0 0.0
  %v3158 = vand.u32 %v31, 4294901760
  %3159 = vmatpush1.msra.mxu0 %v3158
  %3160 = vmatprep.subr.mxu0 0.0
  %v3161 = vand.u32 %v32, 4294901760
  %3162 = vmatpush1.msra.mxu0 %v3161
  %3163 = vmatprep.subr.mxu0 0.0
  %v3164 = vand.u32 %v33, 4294901760
  %3165 = vmatpush1.msra.mxu0 %v3164
  %3166 = vmatprep.subr.mxu0 0.0
  %v3167 = vand.u32 %v34, 4294901760
  %3168 = vmatpush1.msra.mxu0 %v3167
  %3169 = vmatprep.subr.mxu0 0.0
  %3170 = vmatpush1.msra.mxu0 0.0
  %3171 = vmatprep.subr.mxu0 0.0
  %3172 = vmatpush1.msra.mxu0 0.0
  %3173 = vmatprep.subr.mxu0 0.0
  %3174 = vmatpush1.msra.mxu0 0.0
  %3175 = vmatprep.subr.mxu0 0.0
  %3176 = vmatpush1.msra.mxu0 0.0
  %3177 = vmatprep.subr.mxu0 0.0
  %3178 = vmatpush1.msra.mxu0 0.0
  %3179 = vmatprep.subr.mxu0 0.0
  %3180 = vmatpush1.msra.mxu0 0.0
  %3181 = vmatprep.subr.mxu0 0.0
  %3182 = vmatpush1.msra.mxu0 0.0
  %3183 = vmatprep.subr.mxu0 0.0
  %3184 = vmatpush1.msra.mxu0 0.0
  %3185 = vmatprep.subr.mxu0 0.0
  %3186 = vmatpush1.msra.mxu0 0.0
  %3187 = vmatprep.subr.mxu0 0.0
  %3188 = vmatpush1.msra.mxu0 0.0
  %3189 = vmatprep.subr.mxu0 0.0
  %3190 = vmatpush1.msra.mxu0 0.0
  %3191 = vmatprep.subr.mxu0 0.0
  %3192 = vmatpush1.msra.mxu0 0.0
  %3193 = vmatprep.subr.mxu0 0.0
  %3194 = vmatpush1.msra.mxu0 0.0
  %3195 = vmatprep.subr.mxu0 0.0
  %3196 = vmatpush1.msra.mxu0 0.0
  %3197 = vmatprep.subr.mxu0 0.0
  %3198 = vmatpush1.msra.mxu0 0.0
  %3199 = vmatprep.subr.mxu0 0.0
  %3200 = vmatpush1.msra.mxu0 0.0
  %3201 = vmatprep.subr.mxu0 0.0
  %3202 = vmatpush1.msra.mxu0 0.0
  %3203 = vmatprep.subr.mxu0 0.0
  %3204 = vmatpush1.msra.mxu0 0.0
  %3205 = vmatprep.subr.mxu0 0.0
  %3206 = vmatpush1.msra.mxu0 0.0
  %3207 = vmatprep.subr.mxu0 0.0
  %3208 = vmatpush1.msra.mxu0 0.0
  %3209 = vmatprep.subr.mxu0 0.0
  %3210 = vmatpush1.msra.mxu0 0.0
  %3211 = vmatprep.subr.mxu0 0.0
  %3212 = vmatpush1.msra.mxu0 0.0
  %3213 = vmatprep.subr.mxu0 0.0
  %3214 = vmatpush1.msra.mxu0 0.0
  %3215 = vmatprep.subr.mxu0 0.0
  %3216 = vmatpush1.msra.mxu0 0.0
  %3217 = vmatprep.subr.mxu0 0.0
  %3218 = vmatpush1.msra.mxu0 0.0
  %3219 = vmatprep.subr.mxu0 0.0
  %3220 = vmatpush1.msra.mxu0 0.0
  %3221 = vmatprep.subr.mxu0 0.0
  %3222 = vmatpush1.msra.mxu0 0.0
  %3223 = vmatprep.subr.mxu0 0.0
  %3224 = vmatpush1.msra.mxu0 0.0
  %3225 = vmatprep.mubr.f32.mxu0 0.0
  %v3226 = vand.u32 %v3155, 4294901760
  %v3227 = vsub.f32 %v3155, %v3226
  %v3228 = vand.u32 %v3227, 4294901760
  %v3229 = vsub.f32 %v3227, %v3228
  %v3230 = vand.u32 %v3229, 4294901760
  %3231 = vmatmul.mubr.f32.gmra.mrb[0].mxu0 %v3230
  %v3232 = vpop.f32.mrb[0].mxu0
  %v3233 = vadd.f32 0.0, %v3232
  %v3234 = vpop.f32.mrb[0].mxu0
  %3235 = vdwg.mxu0
  %3236 = vmatprep.subr.mxu0 0.0
  %v3237 = vand.u32 %v31, 4294901760
  %v3238 = vsub.f32 %v31, %v3237
  %v3239 = vand.u32 %v3238, 4294901760
  %v3240 = vsub.f32 %v3238, %v3239
  %v3241 = vand.u32 %v3240, 4294901760
  %3242 = vmatpush1.msra.mxu0 %v3241
  %3243 = vmatprep.subr.mxu0 0.0
  %v3244 = vand.u32 %v32, 4294901760
  %v3245 = vsub.f32 %v32, %v3244
  %v3246 = vand.u32 %v3245, 4294901760
  %v3247 = vsub.f32 %v3245, %v3246
  %v3248 = vand.u32 %v3247, 4294901760
  %3249 = vmatpush1.msra.mxu0 %v3248
  %3250 = vmatprep.subr.mxu0 0.0
  %v3251 = vand.u32 %v33, 4294901760
  %v3252 = vsub.f32 %v33, %v3251
  %v3253 = vand.u32 %v3252, 4294901760
  %v3254 = vsub.f32 %v3252, %v3253
  %v3255 = vand.u32 %v3254, 4294901760
  %3256 = vmatpush1.msra.mxu0 %v3255
  %3257 = vmatprep.subr.mxu0 0.0
  %v3258 = vand.u32 %v34, 4294901760
  %v3259 = vsub.f32 %v34, %v3258
  %v3260 = vand.u32 %v3259, 4294901760
  %v3261 = vsub.f32 %v3259, %v3260
  %v3262 = vand.u32 %v3261, 4294901760
  %3263 = vmatpush1.msra.mxu0 %v3262
  %3264 = vmatprep.subr.mxu0 0.0
  %3265 = vmatpush1.msra.mxu0 0.0
  %3266 = vmatprep.subr.mxu0 0.0
  %3267 = vmatpush1.msra.mxu0 0.0
  %3268 = vmatprep.subr.mxu0 0.0
  %3269 = vmatpush1.msra.mxu0 0.0
  %3270 = vmatprep.subr.mxu0 0.0
  %3271 = vmatpush1.msra.mxu0 0.0
  %3272 = vmatprep.subr.mxu0 0.0
  %3273 = vmatpush1.msra.mxu0 0.0
  %3274 = vmatprep.subr.mxu0 0.0
  %3275 = vmatpush1.msra.mxu0 0.0
  %3276 = vmatprep.subr.mxu0 0.0
  %3277 = vmatpush1.msra.mxu0 0.0
  %3278 = vmatprep.subr.mxu0 0.0
  %3279 = vmatpush1.msra.mxu0 0.0
  %3280 = vmatprep.subr.mxu0 0.0
  %3281 = vmatpush1.msra.mxu0 0.0
  %3282 = vmatprep.subr.mxu0 0.0
  %3283 = vmatpush1.msra.mxu0 0.0
  %3284 = vmatprep.subr.mxu0 0.0
  %3285 = vmatpush1.msra.mxu0 0.0
  %3286 = vmatprep.subr.mxu0 0.0
  %3287 = vmatpush1.msra.mxu0 0.0
  %3288 = vmatprep.subr.mxu0 0.0
  %3289 = vmatpush1.msra.mxu0 0.0
  %3290 = vmatprep.subr.mxu0 0.0
  %3291 = vmatpush1.msra.mxu0 0.0
  %3292 = vmatprep.subr.mxu0 0.0
  %3293 = vmatpush1.msra.mxu0 0.0
  %3294 = vmatprep.subr.mxu0 0.0
  %3295 = vmatpush1.msra.mxu0 0.0
  %3296 = vmatprep.subr.mxu0 0.0
  %3297 = vmatpush1.msra.mxu0 0.0
  %3298 = vmatprep.subr.mxu0 0.0
  %3299 = vmatpush1.msra.mxu0 0.0
  %3300 = vmatprep.subr.mxu0 0.0
  %3301 = vmatpush1.msra.mxu0 0.0
  %3302 = vmatprep.subr.mxu0 0.0
  %3303 = vmatpush1.msra.mxu0 0.0
  %3304 = vmatprep.subr.mxu0 0.0
  %3305 = vmatpush1.msra.mxu0 0.0
  %3306 = vmatprep.subr.mxu0 0.0
  %3307 = vmatpush1.msra.mxu0 0.0
  %3308 = vmatprep.subr.mxu0 0.0
  %3309 = vmatpush1.msra.mxu0 0.0
  %3310 = vmatprep.subr.mxu0 0.0
  %3311 = vmatpush1.msra.mxu0 0.0
  %3312 = vmatprep.subr.mxu0 0.0
  %3313 = vmatpush1.msra.mxu0 0.0
  %3314 = vmatprep.subr.mxu0 0.0
  %3315 = vmatpush1.msra.mxu0 0.0
  %3316 = vmatprep.subr.mxu0 0.0
  %3317 = vmatpush1.msra.mxu0 0.0
  %3318 = vmatprep.subr.mxu0 0.0
  %3319 = vmatpush1.msra.mxu0 0.0
  %3320 = vmatprep.mubr.f32.mxu0 0.0
  %v3321 = vand.u32 %v3155, 4294901760
  %3322 = vmatmul.mubr.f32.gmra.mrb[0].mxu0 %v3321
  %v3323 = vpop.f32.mrb[0].mxu0
  %v3324 = vadd.f32 %v3233, %v3323
  %v3325 = vpop.f32.mrb[0].mxu0
  %3326 = vdwg.mxu0
  %3327 = vmatprep.subr.mxu0 0.0
  %v3328 = vand.u32 %v31, 4294901760
  %v3329 = vsub.f32 %v31, %v3328
  %3330 = vmatpush1.msra.mxu0 %v3329
  %3331 = vmatprep.subr.mxu0 0.0
  %v3332 = vand.u32 %v32, 4294901760
  %v3333 = vsub.f32 %v32, %v3332
  %3334 = vmatpush1.msra.mxu0 %v3333
  %3335 = vmatprep.subr.mxu0 0.0
  %v3336 = vand.u32 %v33, 4294901760
  %v3337 = vsub.f32 %v33, %v3336
  %3338 = vmatpush1.msra.mxu0 %v3337
  %3339 = vmatprep.subr.mxu0 0.0
  %v3340 = vand.u32 %v34, 4294901760
  %v3341 = vsub.f32 %v34, %v3340
  %3342 = vmatpush1.msra.mxu0 %v3341
  %3343 = vmatprep.subr.mxu0 0.0
  %3344 = vmatpush1.msra.mxu0 0.0
  %3345 = vmatprep.subr.mxu0 0.0
  %3346 = vmatpush1.msra.mxu0 0.0
  %3347 = vmatprep.subr.mxu0 0.0
  %3348 = vmatpush1.msra.mxu0 0.0
  %3349 = vmatprep.subr.mxu0 0.0
  %3350 = vmatpush1.msra.mxu0 0.0
  %3351 = vmatprep.subr.mxu0 0.0
  %3352 = vmatpush1.msra.mxu0 0.0
  %3353 = vmatprep.subr.mxu0 0.0
  %3354 = vmatpush1.msra.mxu0 0.0
  %3355 = vmatprep.subr.mxu0 0.0
  %3356 = vmatpush1.msra.mxu0 0.0
  %3357 = vmatprep.subr.mxu0 0.0
  %3358 = vmatpush1.msra.mxu0 0.0
  %3359 = vmatprep.subr.mxu0 0.0
  %3360 = vmatpush1.msra.mxu0 0.0
  %3361 = vmatprep.subr.mxu0 0.0
  %3362 = vmatpush1.msra.mxu0 0.0
  %3363 = vmatprep.subr.mxu0 0.0
  %3364 = vmatpush1.msra.mxu0 0.0
  %3365 = vmatprep.subr.mxu0 0.0
  %3366 = vmatpush1.msra.mxu0 0.0
  %3367 = vmatprep.subr.mxu0 0.0
  %3368 = vmatpush1.msra.mxu0 0.0
  %3369 = vmatprep.subr.mxu0 0.0
  %3370 = vmatpush1.msra.mxu0 0.0
  %3371 = vmatprep.subr.mxu0 0.0
  %3372 = vmatpush1.msra.mxu0 0.0
  %3373 = vmatprep.subr.mxu0 0.0
  %3374 = vmatpush1.msra.mxu0 0.0
  %3375 = vmatprep.subr.mxu0 0.0
  %3376 = vmatpush1.msra.mxu0 0.0
  %3377 = vmatprep.subr.mxu0 0.0
  %3378 = vmatpush1.msra.mxu0 0.0
  %3379 = vmatprep.subr.mxu0 0.0
  %3380 = vmatpush1.msra.mxu0 0.0
  %3381 = vmatprep.subr.mxu0 0.0
  %3382 = vmatpush1.msra.mxu0 0.0
  %3383 = vmatprep.subr.mxu0 0.0
  %3384 = vmatpush1.msra.mxu0 0.0
  %3385 = vmatprep.subr.mxu0 0.0
  %3386 = vmatpush1.msra.mxu0 0.0
  %3387 = vmatprep.subr.mxu0 0.0
  %3388 = vmatpush1.msra.mxu0 0.0
  %3389 = vmatprep.subr.mxu0 0.0
  %3390 = vmatpush1.msra.mxu0 0.0
  %3391 = vmatprep.subr.mxu0 0.0
  %3392 = vmatpush1.msra.mxu0 0.0
  %3393 = vmatprep.subr.mxu0 0.0
  %3394 = vmatpush1.msra.mxu0 0.0
  %3395 = vmatprep.subr.mxu0 0.0
  %3396 = vmatpush1.msra.mxu0 0.0
  %3397 = vmatprep.subr.mxu0 0.0
  %3398 = vmatpush1.msra.mxu0 0.0
  %3399 = vmatprep.mubr.f32.mxu0 0.0
  %v3400 = vand.u32 %v3155, 4294901760
  %v3401 = vsub.f32 %v3155, %v3400
  %3402 = vmatmul.mubr.f32.gmra.mrb[0].mxu0 %v3401
  %v3403 = vpop.f32.mrb[0].mxu0
  %v3404 = vadd.f32 %v3324, %v3403
  %v3405 = vpop.f32.mrb[0].mxu0
  %3406 = vdwg.mxu0
  %3407 = vmatprep.subr.mxu0 0.0
  %v3408 = vand.u32 %v31, 4294901760
  %3409 = vmatpush1.msra.mxu0 %v3408
  %3410 = vmatprep.subr.mxu0 0.0
  %v3411 = vand.u32 %v32, 4294901760
  %3412 = vmatpush1.msra.mxu0 %v3411
  %3413 = vmatprep.subr.mxu0 0.0
  %v3414 = vand.u32 %v33, 4294901760
  %3415 = vmatpush1.msra.mxu0 %v3414
  %3416 = vmatprep.subr.mxu0 0.0
  %v3417 = vand.u32 %v34, 4294901760
  %3418 = vmatpush1.msra.mxu0 %v3417
  %3419 = vmatprep.subr.mxu0 0.0
  %3420 = vmatpush1.msra.mxu0 0.0
  %3421 = vmatprep.subr.mxu0 0.0
  %3422 = vmatpush1.msra.mxu0 0.0
  %3423 = vmatprep.subr.mxu0 0.0
  %3424 = vmatpush1.msra.mxu0 0.0
  %3425 = vmatprep.subr.mxu0 0.0
  %3426 = vmatpush1.msra.mxu0 0.0
  %3427 = vmatprep.subr.mxu0 0.0
  %3428 = vmatpush1.msra.mxu0 0.0
  %3429 = vmatprep.subr.mxu0 0.0
  %3430 = vmatpush1.msra.mxu0 0.0
  %3431 = vmatprep.subr.mxu0 0.0
  %3432 = vmatpush1.msra.mxu0 0.0
  %3433 = vmatprep.subr.mxu0 0.0
  %3434 = vmatpush1.msra.mxu0 0.0
  %3435 = vmatprep.subr.mxu0 0.0
  %3436 = vmatpush1.msra.mxu0 0.0
  %3437 = vmatprep.subr.mxu0 0.0
  %3438 = vmatpush1.msra.mxu0 0.0
  %3439 = vmatprep.subr.mxu0 0.0
  %3440 = vmatpush1.msra.mxu0 0.0
  %3441 = vmatprep.subr.mxu0 0.0
  %3442 = vmatpush1.msra.mxu0 0.0
  %3443 = vmatprep.subr.mxu0 0.0
  %3444 = vmatpush1.msra.mxu0 0.0
  %3445 = vmatprep.subr.mxu0 0.0
  %3446 = vmatpush1.msra.mxu0 0.0
  %3447 = vmatprep.subr.mxu0 0.0
  %3448 = vmatpush1.msra.mxu0 0.0
  %3449 = vmatprep.subr.mxu0 0.0
  %3450 = vmatpush1.msra.mxu0 0.0
  %3451 = vmatprep.subr.mxu0 0.0
  %3452 = vmatpush1.msra.mxu0 0.0
  %3453 = vmatprep.subr.mxu0 0.0
  %3454 = vmatpush1.msra.mxu0 0.0
  %3455 = vmatprep.subr.mxu0 0.0
  %3456 = vmatpush1.msra.mxu0 0.0
  %3457 = vmatprep.subr.mxu0 0.0
  %3458 = vmatpush1.msra.mxu0 0.0
  %3459 = vmatprep.subr.mxu0 0.0
  %3460 = vmatpush1.msra.mxu0 0.0
  %3461 = vmatprep.subr.mxu0 0.0
  %3462 = vmatpush1.msra.mxu0 0.0
  %3463 = vmatprep.subr.mxu0 0.0
  %3464 = vmatpush1.msra.mxu0 0.0
  %3465 = vmatprep.subr.mxu0 0.0
  %3466 = vmatpush1.msra.mxu0 0.0
  %3467 = vmatprep.subr.mxu0 0.0
  %3468 = vmatpush1.msra.mxu0 0.0
  %3469 = vmatprep.subr.mxu0 0.0
  %3470 = vmatpush1.msra.mxu0 0.0
  %3471 = vmatprep.subr.mxu0 0.0
  %3472 = vmatpush1.msra.mxu0 0.0
  %3473 = vmatprep.subr.mxu0 0.0
  %3474 = vmatpush1.msra.mxu0 0.0
  %3475 = vmatprep.mubr.f32.mxu0 0.0
  %v3476 = vand.u32 %v3155, 4294901760
  %v3477 = vsub.f32 %v3155, %v3476
  %v3478 = vand.u32 %v3477, 4294901760
  %3479 = vmatmul.mubr.f32.gmra.mrb[0].mxu0 %v3478
  %v3480 = vpop.f32.mrb[0].mxu0
  %v3481 = vadd.f32 %v3404, %v3480
  %v3482 = vpop.f32.mrb[0].mxu0
  %3483 = vdwg.mxu0
  %3484 = vmatprep.subr.mxu0 0.0
  %v3485 = vand.u32 %v31, 4294901760
  %v3486 = vsub.f32 %v31, %v3485
  %v3487 = vand.u32 %v3486, 4294901760
  %3488 = vmatpush1.msra.mxu0 %v3487
  %3489 = vmatprep.subr.mxu0 0.0
  %v3490 = vand.u32 %v32, 4294901760
  %v3491 = vsub.f32 %v32, %v3490
  %v3492 = vand.u32 %v3491, 4294901760
  %3493 = vmatpush1.msra.mxu0 %v3492
  %3494 = vmatprep.subr.mxu0 0.0
  %v3495 = vand.u32 %v33, 4294901760
  %v3496 = vsub.f32 %v33, %v3495
  %v3497 = vand.u32 %v3496, 4294901760
  %3498 = vmatpush1.msra.mxu0 %v3497
  %3499 = vmatprep.subr.mxu0 0.0
  %v3500 = vand.u32 %v34, 4294901760
  %v3501 = vsub.f32 %v34, %v3500
  %v3502 = vand.u32 %v3501, 4294901760
  %3503 = vmatpush1.msra.mxu0 %v3502
  %3504 = vmatprep.subr.mxu0 0.0
  %3505 = vmatpush1.msra.mxu0 0.0
  %3506 = vmatprep.subr.mxu0 0.0
  %3507 = vmatpush1.msra.mxu0 0.0
  %3508 = vmatprep.subr.mxu0 0.0
  %3509 = vmatpush1.msra.mxu0 0.0
  %3510 = vmatprep.subr.mxu0 0.0
  %3511 = vmatpush1.msra.mxu0 0.0
  %3512 = vmatprep.subr.mxu0 0.0
  %3513 = vmatpush1.msra.mxu0 0.0
  %3514 = vmatprep.subr.mxu0 0.0
  %3515 = vmatpush1.msra.mxu0 0.0
  %3516 = vmatprep.subr.mxu0 0.0
  %3517 = vmatpush1.msra.mxu0 0.0
  %3518 = vmatprep.subr.mxu0 0.0
  %3519 = vmatpush1.msra.mxu0 0.0
  %3520 = vmatprep.subr.mxu0 0.0
  %3521 = vmatpush1.msra.mxu0 0.0
  %3522 = vmatprep.subr.mxu0 0.0
  %3523 = vmatpush1.msra.mxu0 0.0
  %3524 = vmatprep.subr.mxu0 0.0
  %3525 = vmatpush1.msra.mxu0 0.0
  %3526 = vmatprep.subr.mxu0 0.0
  %3527 = vmatpush1.msra.mxu0 0.0
  %3528 = vmatprep.subr.mxu0 0.0
  %3529 = vmatpush1.msra.mxu0 0.0
  %3530 = vmatprep.subr.mxu0 0.0
  %3531 = vmatpush1.msra.mxu0 0.0
  %3532 = vmatprep.subr.mxu0 0.0
  %3533 = vmatpush1.msra.mxu0 0.0
  %3534 = vmatprep.subr.mxu0 0.0
  %3535 = vmatpush1.msra.mxu0 0.0
  %3536 = vmatprep.subr.mxu0 0.0
  %3537 = vmatpush1.msra.mxu0 0.0
  %3538 = vmatprep.subr.mxu0 0.0
  %3539 = vmatpush1.msra.mxu0 0.0
  %3540 = vmatprep.subr.mxu0 0.0
  %3541 = vmatpush1.msra.mxu0 0.0
  %3542 = vmatprep.subr.mxu0 0.0
  %3543 = vmatpush1.msra.mxu0 0.0
  %3544 = vmatprep.subr.mxu0 0.0
  %3545 = vmatpush1.msra.mxu0 0.0
  %3546 = vmatprep.subr.mxu0 0.0
  %3547 = vmatpush1.msra.mxu0 0.0
  %3548 = vmatprep.subr.mxu0 0.0
  %3549 = vmatpush1.msra.mxu0 0.0
  %3550 = vmatprep.subr.mxu0 0.0
  %3551 = vmatpush1.msra.mxu0 0.0
  %3552 = vmatprep.subr.mxu0 0.0
  %3553 = vmatpush1.msra.mxu0 0.0
  %3554 = vmatprep.subr.mxu0 0.0
  %3555 = vmatpush1.msra.mxu0 0.0
  %3556 = vmatprep.subr.mxu0 0.0
  %3557 = vmatpush1.msra.mxu0 0.0
  %3558 = vmatprep.subr.mxu0 0.0
  %3559 = vmatpush1.msra.mxu0 0.0
  %3560 = vmatprep.mubr.f32.mxu0 0.0
  %v3561 = vand.u32 %v3155, 4294901760
  %3562 = vmatmul.mubr.f32.gmra.mrb[0].mxu0 %v3561
  %v3563 = vpop.f32.mrb[0].mxu0
  %v3564 = vadd.f32 %v3481, %v3563
  %v3565 = vpop.f32.mrb[0].mxu0
  %3566 = vdwg.mxu0
  %3567 = vmatprep.subr.mxu0 0.0
  %v3568 = vand.u32 %v31, 4294901760
  %3569 = vmatpush1.msra.mxu0 %v3568
  %3570 = vmatprep.subr.mxu0 0.0
  %v3571 = vand.u32 %v32, 4294901760
  %3572 = vmatpush1.msra.mxu0 %v3571
  %3573 = vmatprep.subr.mxu0 0.0
  %v3574 = vand.u32 %v33, 4294901760
  %3575 = vmatpush1.msra.mxu0 %v3574
  %3576 = vmatprep.subr.mxu0 0.0
  %v3577 = vand.u32 %v34, 4294901760
  %3578 = vmatpush1.msra.mxu0 %v3577
  %3579 = vmatprep.subr.mxu0 0.0
  %3580 = vmatpush1.msra.mxu0 0.0
  %3581 = vmatprep.subr.mxu0 0.0
  %3582 = vmatpush1.msra.mxu0 0.0
  %3583 = vmatprep.subr.mxu0 0.0
  %3584 = vmatpush1.msra.mxu0 0.0
  %3585 = vmatprep.subr.mxu0 0.0
  %3586 = vmatpush1.msra.mxu0 0.0
  %3587 = vmatprep.subr.mxu0 0.0
  %3588 = vmatpush1.msra.mxu0 0.0
  %3589 = vmatprep.subr.mxu0 0.0
  %3590 = vmatpush1.msra.mxu0 0.0
  %3591 = vmatprep.subr.mxu0 0.0
  %3592 = vmatpush1.msra.mxu0 0.0
  %3593 = vmatprep.subr.mxu0 0.0
  %3594 = vmatpush1.msra.mxu0 0.0
  %3595 = vmatprep.subr.mxu0 0.0
  %3596 = vmatpush1.msra.mxu0 0.0
  %3597 = vmatprep.subr.mxu0 0.0
  %3598 = vmatpush1.msra.mxu0 0.0
  %3599 = vmatprep.subr.mxu0 0.0
  %3600 = vmatpush1.msra.mxu0 0.0
  %3601 = vmatprep.subr.mxu0 0.0
  %3602 = vmatpush1.msra.mxu0 0.0
  %3603 = vmatprep.subr.mxu0 0.0
  %3604 = vmatpush1.msra.mxu0 0.0
  %3605 = vmatprep.subr.mxu0 0.0
  %3606 = vmatpush1.msra.mxu0 0.0
  %3607 = vmatprep.subr.mxu0 0.0
  %3608 = vmatpush1.msra.mxu0 0.0
  %3609 = vmatprep.subr.mxu0 0.0
  %3610 = vmatpush1.msra.mxu0 0.0
  %3611 = vmatprep.subr.mxu0 0.0
  %3612 = vmatpush1.msra.mxu0 0.0
  %3613 = vmatprep.subr.mxu0 0.0
  %3614 = vmatpush1.msra.mxu0 0.0
  %3615 = vmatprep.subr.mxu0 0.0
  %3616 = vmatpush1.msra.mxu0 0.0
  %3617 = vmatprep.subr.mxu0 0.0
  %3618 = vmatpush1.msra.mxu0 0.0
  %3619 = vmatprep.subr.mxu0 0.0
  %3620 = vmatpush1.msra.mxu0 0.0
  %3621 = vmatprep.subr.mxu0 0.0
  %3622 = vmatpush1.msra.mxu0 0.0
  %3623 = vmatprep.subr.mxu0 0.0
  %3624 = vmatpush1.msra.mxu0 0.0
  %3625 = vmatprep.subr.mxu0 0.0
  %3626 = vmatpush1.msra.mxu0 0.0
  %3627 = vmatprep.subr.mxu0 0.0
  %3628 = vmatpush1.msra.mxu0 0.0
  %3629 = vmatprep.subr.mxu0 0.0
  %3630 = vmatpush1.msra.mxu0 0.0
  %3631 = vmatprep.subr.mxu0 0.0
  %3632 = vmatpush1.msra.mxu0 0.0
  %3633 = vmatprep.subr.mxu0 0.0
  %3634 = vmatpush1.msra.mxu0 0.0
  %3635 = vmatprep.mubr.f32.mxu0 0.0
  %v3636 = vand.u32 %v3155, 4294901760
  %3637 = vmatmul.mubr.f32.gmra.mrb[0].mxu0 %v3636
  %v3638 = vpop.f32.mrb[0].mxu0
  %v3639 = vadd.f32 %v3564, %v3638
  %v3640 = vpop.f32.mrb[0].mxu0
  %3641 = vdwg.mxu0
  %v3642 = vadd.f32 %v3151, %v3639
  %v3643 = vxor.u32 %v3642, 2147483648
  %v3644 = vmul.f32 %v3643, 1.442695
  %v3645 = vpow.pop %v3644
  %v3646 = vadd.f32 %v3645, 1.0
  %v3647 = vrcp.pop %v3646
  %v3648 = vmul.f32 1.0, %v3647
  %v3649 = vtanh.pop %v3642
  %v3650 = vmul.f32 %v3648, %v3143
  %3652 = vrot.lane.b32.xlu0 %v3649, 32
  %v3653 = vpop.permute.xlu0 %3652
  %v3655 = vmul.f32 %v3648, %v3653
  %3657 = vrot.lane.b32.xlu0 %v3655, 32
  %v3658 = vpop.permute.xlu0 %3657
  %v3660 = vadd.f32 %v3650, %v3658
  %v3661 = vtanh.pop %v3660
  %3663 = vrot.lane.b32.xlu0 %v3661, 32
  %v3664 = vpop.permute.xlu0 %3663
  %v3666 = vmul.f32 %v3648, %v3664
  %s3667 = scalar_lea.vmem %s0, 14
  %v3668 = vld [vmem:[%s3667] sm:$0x3]
  %3670 = vrot.lane.b32.xlu0 %v3666, 64
  %v3671 = vpop.permute.xlu0 %3670
  %v3672 = vsel %vm51, %v3671, 0
  %3674 = vmatprep.subr.mxu0 0.0
  %v3675 = vand.u32 %v31, 4294901760
  %3676 = vmatpush1.msra.mxu0 %v3675
  %3677 = vmatprep.subr.mxu0 0.0
  %v3678 = vand.u32 %v32, 4294901760
  %3679 = vmatpush1.msra.mxu0 %v3678
  %3680 = vmatprep.subr.mxu0 0.0
  %v3681 = vand.u32 %v33, 4294901760
  %3682 = vmatpush1.msra.mxu0 %v3681
  %3683 = vmatprep.subr.mxu0 0.0
  %v3684 = vand.u32 %v34, 4294901760
  %3685 = vmatpush1.msra.mxu0 %v3684
  %3686 = vmatprep.subr.mxu0 0.0
  %3687 = vmatpush1.msra.mxu0 0.0
  %3688 = vmatprep.subr.mxu0 0.0
  %3689 = vmatpush1.msra.mxu0 0.0
  %3690 = vmatprep.subr.mxu0 0.0
  %3691 = vmatpush1.msra.mxu0 0.0
  %3692 = vmatprep.subr.mxu0 0.0
  %3693 = vmatpush1.msra.mxu0 0.0
  %3694 = vmatprep.subr.mxu0 0.0
  %3695 = vmatpush1.msra.mxu0 0.0
  %3696 = vmatprep.subr.mxu0 0.0
  %3697 = vmatpush1.msra.mxu0 0.0
  %3698 = vmatprep.subr.mxu0 0.0
  %3699 = vmatpush1.msra.mxu0 0.0
  %3700 = vmatprep.subr.mxu0 0.0
  %3701 = vmatpush1.msra.mxu0 0.0
  %3702 = vmatprep.subr.mxu0 0.0
  %3703 = vmatpush1.msra.mxu0 0.0
  %3704 = vmatprep.subr.mxu0 0.0
  %3705 = vmatpush1.msra.mxu0 0.0
  %3706 = vmatprep.subr.mxu0 0.0
  %3707 = vmatpush1.msra.mxu0 0.0
  %3708 = vmatprep.subr.mxu0 0.0
  %3709 = vmatpush1.msra.mxu0 0.0
  %3710 = vmatprep.subr.mxu0 0.0
  %3711 = vmatpush1.msra.mxu0 0.0
  %3712 = vmatprep.subr.mxu0 0.0
  %3713 = vmatpush1.msra.mxu0 0.0
  %3714 = vmatprep.subr.mxu0 0.0
  %3715 = vmatpush1.msra.mxu0 0.0
  %3716 = vmatprep.subr.mxu0 0.0
  %3717 = vmatpush1.msra.mxu0 0.0
  %3718 = vmatprep.subr.mxu0 0.0
  %3719 = vmatpush1.msra.mxu0 0.0
  %3720 = vmatprep.subr.mxu0 0.0
  %3721 = vmatpush1.msra.mxu0 0.0
  %3722 = vmatprep.subr.mxu0 0.0
  %3723 = vmatpush1.msra.mxu0 0.0
  %3724 = vmatprep.subr.mxu0 0.0
  %3725 = vmatpush1.msra.mxu0 0.0
  %3726 = vmatprep.subr.mxu0 0.0
  %3727 = vmatpush1.msra.mxu0 0.0
  %3728 = vmatprep.subr.mxu0 0.0
  %3729 = vmatpush1.msra.mxu0 0.0
  %3730 = vmatprep.subr.mxu0 0.0
  %3731 = vmatpush1.msra.mxu0 0.0
  %3732 = vmatprep.subr.mxu0 0.0
  %3733 = vmatpush1.msra.mxu0 0.0
  %3734 = vmatprep.subr.mxu0 0.0
  %3735 = vmatpush1.msra.mxu0 0.0
  %3736 = vmatprep.subr.mxu0 0.0
  %3737 = vmatpush1.msra.mxu0 0.0
  %3738 = vmatprep.subr.mxu0 0.0
  %3739 = vmatpush1.msra.mxu0 0.0
  %3740 = vmatprep.subr.mxu0 0.0
  %3741 = vmatpush1.msra.mxu0 0.0
  %3742 = vmatprep.mubr.f32.mxu0 0.0
  %v3743 = vand.u32 %v3672, 4294901760
  %v3744 = vsub.f32 %v3672, %v3743
  %v3745 = vand.u32 %v3744, 4294901760
  %v3746 = vsub.f32 %v3744, %v3745
  %v3747 = vand.u32 %v3746, 4294901760
  %3748 = vmatmul.mubr.f32.gmra.mrb[0].mxu0 %v3747
  %v3749 = vpop.f32.mrb[0].mxu0
  %v3750 = vadd.f32 0.0, %v3749
  %v3751 = vpop.f32.mrb[0].mxu0
  %3752 = vdwg.mxu0
  %3753 = vmatprep.subr.mxu0 0.0
  %v3754 = vand.u32 %v31, 4294901760
  %v3755 = vsub.f32 %v31, %v3754
  %v3756 = vand.u32 %v3755, 4294901760
  %v3757 = vsub.f32 %v3755, %v3756
  %v3758 = vand.u32 %v3757, 4294901760
  %3759 = vmatpush1.msra.mxu0 %v3758
  %3760 = vmatprep.subr.mxu0 0.0
  %v3761 = vand.u32 %v32, 4294901760
  %v3762 = vsub.f32 %v32, %v3761
  %v3763 = vand.u32 %v3762, 4294901760
  %v3764 = vsub.f32 %v3762, %v3763
  %v3765 = vand.u32 %v3764, 4294901760
  %3766 = vmatpush1.msra.mxu0 %v3765
  %3767 = vmatprep.subr.mxu0 0.0
  %v3768 = vand.u32 %v33, 4294901760
  %v3769 = vsub.f32 %v33, %v3768
  %v3770 = vand.u32 %v3769, 4294901760
  %v3771 = vsub.f32 %v3769, %v3770
  %v3772 = vand.u32 %v3771, 4294901760
  %3773 = vmatpush1.msra.mxu0 %v3772
  %3774 = vmatprep.subr.mxu0 0.0
  %v3775 = vand.u32 %v34, 4294901760
  %v3776 = vsub.f32 %v34, %v3775
  %v3777 = vand.u32 %v3776, 4294901760
  %v3778 = vsub.f32 %v3776, %v3777
  %v3779 = vand.u32 %v3778, 4294901760
  %3780 = vmatpush1.msra.mxu0 %v3779
  %3781 = vmatprep.subr.mxu0 0.0
  %3782 = vmatpush1.msra.mxu0 0.0
  %3783 = vmatprep.subr.mxu0 0.0
  %3784 = vmatpush1.msra.mxu0 0.0
  %3785 = vmatprep.subr.mxu0 0.0
  %3786 = vmatpush1.msra.mxu0 0.0
  %3787 = vmatprep.subr.mxu0 0.0
  %3788 = vmatpush1.msra.mxu0 0.0
  %3789 = vmatprep.subr.mxu0 0.0
  %3790 = vmatpush1.msra.mxu0 0.0
  %3791 = vmatprep.subr.mxu0 0.0
  %3792 = vmatpush1.msra.mxu0 0.0
  %3793 = vmatprep.subr.mxu0 0.0
  %3794 = vmatpush1.msra.mxu0 0.0
  %3795 = vmatprep.subr.mxu0 0.0
  %3796 = vmatpush1.msra.mxu0 0.0
  %3797 = vmatprep.subr.mxu0 0.0
  %3798 = vmatpush1.msra.mxu0 0.0
  %3799 = vmatprep.subr.mxu0 0.0
  %3800 = vmatpush1.msra.mxu0 0.0
  %3801 = vmatprep.subr.mxu0 0.0
  %3802 = vmatpush1.msra.mxu0 0.0
  %3803 = vmatprep.subr.mxu0 0.0
  %3804 = vmatpush1.msra.mxu0 0.0
  %3805 = vmatprep.subr.mxu0 0.0
  %3806 = vmatpush1.msra.mxu0 0.0
  %3807 = vmatprep.subr.mxu0 0.0
  %3808 = vmatpush1.msra.mxu0 0.0
  %3809 = vmatprep.subr.mxu0 0.0
  %3810 = vmatpush1.msra.mxu0 0.0
  %3811 = vmatprep.subr.mxu0 0.0
  %3812 = vmatpush1.msra.mxu0 0.0
  %3813 = vmatprep.subr.mxu0 0.0
  %3814 = vmatpush1.msra.mxu0 0.0
  %3815 = vmatprep.subr.mxu0 0.0
  %3816 = vmatpush1.msra.mxu0 0.0
  %3817 = vmatprep.subr.mxu0 0.0
  %3818 = vmatpush1.msra.mxu0 0.0
  %3819 = vmatprep.subr.mxu0 0.0
  %3820 = vmatpush1.msra.mxu0 0.0
  %3821 = vmatprep.subr.mxu0 0.0
  %3822 = vmatpush1.msra.mxu0 0.0
  %3823 = vmatprep.subr.mxu0 0.0
  %3824 = vmatpush1.msra.mxu0 0.0
  %3825 = vmatprep.subr.mxu0 0.0
  %3826 = vmatpush1.msra.mxu0 0.0
  %3827 = vmatprep.subr.mxu0 0.0
  %3828 = vmatpush1.msra.mxu0 0.0
  %3829 = vmatprep.subr.mxu0 0.0
  %3830 = vmatpush1.msra.mxu0 0.0
  %3831 = vmatprep.subr.mxu0 0.0
  %3832 = vmatpush1.msra.mxu0 0.0
  %3833 = vmatprep.subr.mxu0 0.0
  %3834 = vmatpush1.msra.mxu0 0.0
  %3835 = vmatprep.subr.mxu0 0.0
  %3836 = vmatpush1.msra.mxu0 0.0
  %3837 = vmatprep.mubr.f32.mxu0 0.0
  %v3838 = vand.u32 %v3672, 4294901760
  %3839 = vmatmul.mubr.f32.gmra.mrb[0].mxu0 %v3838
  %v3840 = vpop.f32.mrb[0].mxu0
  %v3841 = vadd.f32 %v3750, %v3840
  %v3842 = vpop.f32.mrb[0].mxu0
  %3843 = vdwg.mxu0
  %3844 = vmatprep.subr.mxu0 0.0
  %v3845 = vand.u32 %v31, 4294901760
  %v3846 = vsub.f32 %v31, %v3845
  %3847 = vmatpush1.msra.mxu0 %v3846
  %3848 = vmatprep.subr.mxu0 0.0
  %v3849 = vand.u32 %v32, 4294901760
  %v3850 = vsub.f32 %v32, %v3849
  %3851 = vmatpush1.msra.mxu0 %v3850
  %3852 = vmatprep.subr.mxu0 0.0
  %v3853 = vand.u32 %v33, 4294901760
  %v3854 = vsub.f32 %v33, %v3853
  %3855 = vmatpush1.msra.mxu0 %v3854
  %3856 = vmatprep.subr.mxu0 0.0
  %v3857 = vand.u32 %v34, 4294901760
  %v3858 = vsub.f32 %v34, %v3857
  %3859 = vmatpush1.msra.mxu0 %v3858
  %3860 = vmatprep.subr.mxu0 0.0
  %3861 = vmatpush1.msra.mxu0 0.0
  %3862 = vmatprep.subr.mxu0 0.0
  %3863 = vmatpush1.msra.mxu0 0.0
  %3864 = vmatprep.subr.mxu0 0.0
  %3865 = vmatpush1.msra.mxu0 0.0
  %3866 = vmatprep.subr.mxu0 0.0
  %3867 = vmatpush1.msra.mxu0 0.0
  %3868 = vmatprep.subr.mxu0 0.0
  %3869 = vmatpush1.msra.mxu0 0.0
  %3870 = vmatprep.subr.mxu0 0.0
  %3871 = vmatpush1.msra.mxu0 0.0
  %3872 = vmatprep.subr.mxu0 0.0
  %3873 = vmatpush1.msra.mxu0 0.0
  %3874 = vmatprep.subr.mxu0 0.0
  %3875 = vmatpush1.msra.mxu0 0.0
  %3876 = vmatprep.subr.mxu0 0.0
  %3877 = vmatpush1.msra.mxu0 0.0
  %3878 = vmatprep.subr.mxu0 0.0
  %3879 = vmatpush1.msra.mxu0 0.0
  %3880 = vmatprep.subr.mxu0 0.0
  %3881 = vmatpush1.msra.mxu0 0.0
  %3882 = vmatprep.subr.mxu0 0.0
  %3883 = vmatpush1.msra.mxu0 0.0
  %3884 = vmatprep.subr.mxu0 0.0
  %3885 = vmatpush1.msra.mxu0 0.0
  %3886 = vmatprep.subr.mxu0 0.0
  %3887 = vmatpush1.msra.mxu0 0.0
  %3888 = vmatprep.subr.mxu0 0.0
  %3889 = vmatpush1.msra.mxu0 0.0
  %3890 = vmatprep.subr.mxu0 0.0
  %3891 = vmatpush1.msra.mxu0 0.0
  %3892 = vmatprep.subr.mxu0 0.0
  %3893 = vmatpush1.msra.mxu0 0.0
  %3894 = vmatprep.subr.mxu0 0.0
  %3895 = vmatpush1.msra.mxu0 0.0
  %3896 = vmatprep.subr.mxu0 0.0
  %3897 = vmatpush1.msra.mxu0 0.0
  %3898 = vmatprep.subr.mxu0 0.0
  %3899 = vmatpush1.msra.mxu0 0.0
  %3900 = vmatprep.subr.mxu0 0.0
  %3901 = vmatpush1.msra.mxu0 0.0
  %3902 = vmatprep.subr.mxu0 0.0
  %3903 = vmatpush1.msra.mxu0 0.0
  %3904 = vmatprep.subr.mxu0 0.0
  %3905 = vmatpush1.msra.mxu0 0.0
  %3906 = vmatprep.subr.mxu0 0.0
  %3907 = vmatpush1.msra.mxu0 0.0
  %3908 = vmatprep.subr.mxu0 0.0
  %3909 = vmatpush1.msra.mxu0 0.0
  %3910 = vmatprep.subr.mxu0 0.0
  %3911 = vmatpush1.msra.mxu0 0.0
  %3912 = vmatprep.subr.mxu0 0.0
  %3913 = vmatpush1.msra.mxu0 0.0
  %3914 = vmatprep.subr.mxu0 0.0
  %3915 = vmatpush1.msra.mxu0 0.0
  %3916 = vmatprep.mubr.f32.mxu0 0.0
  %v3917 = vand.u32 %v3672, 4294901760
  %v3918 = vsub.f32 %v3672, %v3917
  %3919 = vmatmul.mubr.f32.gmra.mrb[0].mxu0 %v3918
  %v3920 = vpop.f32.mrb[0].mxu0
  %v3921 = vadd.f32 %v3841, %v3920
  %v3922 = vpop.f32.mrb[0].mxu0
  %3923 = vdwg.mxu0
  %3924 = vmatprep.subr.mxu0 0.0
  %v3925 = vand.u32 %v31, 4294901760
  %3926 = vmatpush1.msra.mxu0 %v3925
  %3927 = vmatprep.subr.mxu0 0.0
  %v3928 = vand.u32 %v32, 4294901760
  %3929 = vmatpush1.msra.mxu0 %v3928
  %3930 = vmatprep.subr.mxu0 0.0
  %v3931 = vand.u32 %v33, 4294901760
  %3932 = vmatpush1.msra.mxu0 %v3931
  %3933 = vmatprep.subr.mxu0 0.0
  %v3934 = vand.u32 %v34, 4294901760
  %3935 = vmatpush1.msra.mxu0 %v3934
  %3936 = vmatprep.subr.mxu0 0.0
  %3937 = vmatpush1.msra.mxu0 0.0
  %3938 = vmatprep.subr.mxu0 0.0
  %3939 = vmatpush1.msra.mxu0 0.0
  %3940 = vmatprep.subr.mxu0 0.0
  %3941 = vmatpush1.msra.mxu0 0.0
  %3942 = vmatprep.subr.mxu0 0.0
  %3943 = vmatpush1.msra.mxu0 0.0
  %3944 = vmatprep.subr.mxu0 0.0
  %3945 = vmatpush1.msra.mxu0 0.0
  %3946 = vmatprep.subr.mxu0 0.0
  %3947 = vmatpush1.msra.mxu0 0.0
  %3948 = vmatprep.subr.mxu0 0.0
  %3949 = vmatpush1.msra.mxu0 0.0
  %3950 = vmatprep.subr.mxu0 0.0
  %3951 = vmatpush1.msra.mxu0 0.0
  %3952 = vmatprep.subr.mxu0 0.0
  %3953 = vmatpush1.msra.mxu0 0.0
  %3954 = vmatprep.subr.mxu0 0.0
  %3955 = vmatpush1.msra.mxu0 0.0
  %3956 = vmatprep.subr.mxu0 0.0
  %3957 = vmatpush1.msra.mxu0 0.0
  %3958 = vmatprep.subr.mxu0 0.0
  %3959 = vmatpush1.msra.mxu0 0.0
  %3960 = vmatprep.subr.mxu0 0.0
  %3961 = vmatpush1.msra.mxu0 0.0
  %3962 = vmatprep.subr.mxu0 0.0
  %3963 = vmatpush1.msra.mxu0 0.0
  %3964 = vmatprep.subr.mxu0 0.0
  %3965 = vmatpush1.msra.mxu0 0.0
  %3966 = vmatprep.subr.mxu0 0.0
  %3967 = vmatpush1.msra.mxu0 0.0
  %3968 = vmatprep.subr.mxu0 0.0
  %3969 = vmatpush1.msra.mxu0 0.0
  %3970 = vmatprep.subr.mxu0 0.0
  %3971 = vmatpush1.msra.mxu0 0.0
  %3972 = vmatprep.subr.mxu0 0.0
  %3973 = vmatpush1.msra.mxu0 0.0
  %3974 = vmatprep.subr.mxu0 0.0
  %3975 = vmatpush1.msra.mxu0 0.0
  %3976 = vmatprep.subr.mxu0 0.0
  %3977 = vmatpush1.msra.mxu0 0.0
  %3978 = vmatprep.subr.mxu0 0.0
  %3979 = vmatpush1.msra.mxu0 0.0
  %3980 = vmatprep.subr.mxu0 0.0
  %3981 = vmatpush1.msra.mxu0 0.0
  %3982 = vmatprep.subr.mxu0 0.0
  %3983 = vmatpush1.msra.mxu0 0.0
  %3984 = vmatprep.subr.mxu0 0.0
  %3985 = vmatpush1.msra.mxu0 0.0
  %3986 = vmatprep.subr.mxu0 0.0
  %3987 = vmatpush1.msra.mxu0 0.0
  %3988 = vmatprep.subr.mxu0 0.0
  %3989 = vmatpush1.msra.mxu0 0.0
  %3990 = vmatprep.subr.mxu0 0.0
  %3991 = vmatpush1.msra.mxu0 0.0
  %3992 = vmatprep.mubr.f32.mxu0 0.0
  %v3993 = vand.u32 %v3672, 4294901760
  %v3994 = vsub.f32 %v3672, %v3993
  %v3995 = vand.u32 %v3994, 4294901760
  %3996 = vmatmul.mubr.f32.gmra.mrb[0].mxu0 %v3995
  %v3997 = vpop.f32.mrb[0].mxu0
  %v3998 = vadd.f32 %v3921, %v3997
  %v3999 = vpop.f32.mrb[0].mxu0
  %4000 = vdwg.mxu0
  %4001 = vmatprep.subr.mxu0 0.0
  %v4002 = vand.u32 %v31, 4294901760
  %v4003 = vsub.f32 %v31, %v4002
  %v4004 = vand.u32 %v4003, 4294901760
  %4005 = vmatpush1.msra.mxu0 %v4004
  %4006 = vmatprep.subr.mxu0 0.0
  %v4007 = vand.u32 %v32, 4294901760
  %v4008 = vsub.f32 %v32, %v4007
  %v4009 = vand.u32 %v4008, 4294901760
  %4010 = vmatpush1.msra.mxu0 %v4009
  %4011 = vmatprep.subr.mxu0 0.0
  %v4012 = vand.u32 %v33, 4294901760
  %v4013 = vsub.f32 %v33, %v4012
  %v4014 = vand.u32 %v4013, 4294901760
  %4015 = vmatpush1.msra.mxu0 %v4014
  %4016 = vmatprep.subr.mxu0 0.0
  %v4017 = vand.u32 %v34, 4294901760
  %v4018 = vsub.f32 %v34, %v4017
  %v4019 = vand.u32 %v4018, 4294901760
  %4020 = vmatpush1.msra.mxu0 %v4019
  %4021 = vmatprep.subr.mxu0 0.0
  %4022 = vmatpush1.msra.mxu0 0.0
  %4023 = vmatprep.subr.mxu0 0.0
  %4024 = vmatpush1.msra.mxu0 0.0
  %4025 = vmatprep.subr.mxu0 0.0
  %4026 = vmatpush1.msra.mxu0 0.0
  %4027 = vmatprep.subr.mxu0 0.0
  %4028 = vmatpush1.msra.mxu0 0.0
  %4029 = vmatprep.subr.mxu0 0.0
  %4030 = vmatpush1.msra.mxu0 0.0
  %4031 = vmatprep.subr.mxu0 0.0
  %4032 = vmatpush1.msra.mxu0 0.0
  %4033 = vmatprep.subr.mxu0 0.0
  %4034 = vmatpush1.msra.mxu0 0.0
  %4035 = vmatprep.subr.mxu0 0.0
  %4036 = vmatpush1.msra.mxu0 0.0
  %4037 = vmatprep.subr.mxu0 0.0
  %4038 = vmatpush1.msra.mxu0 0.0
  %4039 = vmatprep.subr.mxu0 0.0
  %4040 = vmatpush1.msra.mxu0 0.0
  %4041 = vmatprep.subr.mxu0 0.0
  %4042 = vmatpush1.msra.mxu0 0.0
  %4043 = vmatprep.subr.mxu0 0.0
  %4044 = vmatpush1.msra.mxu0 0.0
  %4045 = vmatprep.subr.mxu0 0.0
  %4046 = vmatpush1.msra.mxu0 0.0
  %4047 = vmatprep.subr.mxu0 0.0
  %4048 = vmatpush1.msra.mxu0 0.0
  %4049 = vmatprep.subr.mxu0 0.0
  %4050 = vmatpush1.msra.mxu0 0.0
  %4051 = vmatprep.subr.mxu0 0.0
  %4052 = vmatpush1.msra.mxu0 0.0
  %4053 = vmatprep.subr.mxu0 0.0
  %4054 = vmatpush1.msra.mxu0 0.0
  %4055 = vmatprep.subr.mxu0 0.0
  %4056 = vmatpush1.msra.mxu0 0.0
  %4057 = vmatprep.subr.mxu0 0.0
  %4058 = vmatpush1.msra.mxu0 0.0
  %4059 = vmatprep.subr.mxu0 0.0
  %4060 = vmatpush1.msra.mxu0 0.0
  %4061 = vmatprep.subr.mxu0 0.0
  %4062 = vmatpush1.msra.mxu0 0.0
  %4063 = vmatprep.subr.mxu0 0.0
  %4064 = vmatpush1.msra.mxu0 0.0
  %4065 = vmatprep.subr.mxu0 0.0
  %4066 = vmatpush1.msra.mxu0 0.0
  %4067 = vmatprep.subr.mxu0 0.0
  %4068 = vmatpush1.msra.mxu0 0.0
  %4069 = vmatprep.subr.mxu0 0.0
  %4070 = vmatpush1.msra.mxu0 0.0
  %4071 = vmatprep.subr.mxu0 0.0
  %4072 = vmatpush1.msra.mxu0 0.0
  %4073 = vmatprep.subr.mxu0 0.0
  %4074 = vmatpush1.msra.mxu0 0.0
  %4075 = vmatprep.subr.mxu0 0.0
  %4076 = vmatpush1.msra.mxu0 0.0
  %4077 = vmatprep.mubr.f32.mxu0 0.0
  %v4078 = vand.u32 %v3672, 4294901760
  %4079 = vmatmul.mubr.f32.gmra.mrb[0].mxu0 %v4078
  %v4080 = vpop.f32.mrb[0].mxu0
  %v4081 = vadd.f32 %v3998, %v4080
  %v4082 = vpop.f32.mrb[0].mxu0
  %4083 = vdwg.mxu0
  %4084 = vmatprep.subr.mxu0 0.0
  %v4085 = vand.u32 %v31, 4294901760
  %4086 = vmatpush1.msra.mxu0 %v4085
  %4087 = vmatprep.subr.mxu0 0.0
  %v4088 = vand.u32 %v32, 4294901760
  %4089 = vmatpush1.msra.mxu0 %v4088
  %4090 = vmatprep.subr.mxu0 0.0
  %v4091 = vand.u32 %v33, 4294901760
  %4092 = vmatpush1.msra.mxu0 %v4091
  %4093 = vmatprep.subr.mxu0 0.0
  %v4094 = vand.u32 %v34, 4294901760
  %4095 = vmatpush1.msra.mxu0 %v4094
  %4096 = vmatprep.subr.mxu0 0.0
  %4097 = vmatpush1.msra.mxu0 0.0
  %4098 = vmatprep.subr.mxu0 0.0
  %4099 = vmatpush1.msra.mxu0 0.0
  %4100 = vmatprep.subr.mxu0 0.0
  %4101 = vmatpush1.msra.mxu0 0.0
  %4102 = vmatprep.subr.mxu0 0.0
  %4103 = vmatpush1.msra.mxu0 0.0
  %4104 = vmatprep.subr.mxu0 0.0
  %4105 = vmatpush1.msra.mxu0 0.0
  %4106 = vmatprep.subr.mxu0 0.0
  %4107 = vmatpush1.msra.mxu0 0.0
  %4108 = vmatprep.subr.mxu0 0.0
  %4109 = vmatpush1.msra.mxu0 0.0
  %4110 = vmatprep.subr.mxu0 0.0
  %4111 = vmatpush1.msra.mxu0 0.0
  %4112 = vmatprep.subr.mxu0 0.0
  %4113 = vmatpush1.msra.mxu0 0.0
  %4114 = vmatprep.subr.mxu0 0.0
  %4115 = vmatpush1.msra.mxu0 0.0
  %4116 = vmatprep.subr.mxu0 0.0
  %4117 = vmatpush1.msra.mxu0 0.0
  %4118 = vmatprep.subr.mxu0 0.0
  %4119 = vmatpush1.msra.mxu0 0.0
  %4120 = vmatprep.subr.mxu0 0.0
  %4121 = vmatpush1.msra.mxu0 0.0
  %4122 = vmatprep.subr.mxu0 0.0
  %4123 = vmatpush1.msra.mxu0 0.0
  %4124 = vmatprep.subr.mxu0 0.0
  %4125 = vmatpush1.msra.mxu0 0.0
  %4126 = vmatprep.subr.mxu0 0.0
  %4127 = vmatpush1.msra.mxu0 0.0
  %4128 = vmatprep.subr.mxu0 0.0
  %4129 = vmatpush1.msra.mxu0 0.0
  %4130 = vmatprep.subr.mxu0 0.0
  %4131 = vmatpush1.msra.mxu0 0.0
  %4132 = vmatprep.subr.mxu0 0.0
  %4133 = vmatpush1.msra.mxu0 0.0
  %4134 = vmatprep.subr.mxu0 0.0
  %4135 = vmatpush1.msra.mxu0 0.0
  %4136 = vmatprep.subr.mxu0 0.0
  %4137 = vmatpush1.msra.mxu0 0.0
  %4138 = vmatprep.subr.mxu0 0.0
  %4139 = vmatpush1.msra.mxu0 0.0
  %4140 = vmatprep.subr.mxu0 0.0
  %4141 = vmatpush1.msra.mxu0 0.0
  %4142 = vmatprep.subr.mxu0 0.0
  %4143 = vmatpush1.msra.mxu0 0.0
  %4144 = vmatprep.subr.mxu0 0.0
  %4145 = vmatpush1.msra.mxu0 0.0
  %4146 = vmatprep.subr.mxu0 0.0
  %4147 = vmatpush1.msra.mxu0 0.0
  %4148 = vmatprep.subr.mxu0 0.0
  %4149 = vmatpush1.msra.mxu0 0.0
  %4150 = vmatprep.subr.mxu0 0.0
  %4151 = vmatpush1.msra.mxu0 0.0
  %4152 = vmatprep.mubr.f32.mxu0 0.0
  %v4153 = vand.u32 %v3672, 4294901760
  %4154 = vmatmul.mubr.f32.gmra.mrb[0].mxu0 %v4153
  %v4155 = vpop.f32.mrb[0].mxu0
  %v4156 = vadd.f32 %v4081, %v4155
  %v4157 = vpop.f32.mrb[0].mxu0
  %4158 = vdwg.mxu0
  %v4159 = vadd.f32 %v3668, %v4156
  %v4160 = vxor.u32 %v4159, 2147483648
  %v4161 = vmul.f32 %v4160, 1.442695
  %v4162 = vpow.pop %v4161
  %v4163 = vadd.f32 %v4162, 1.0
  %v4164 = vrcp.pop %v4163
  %v4165 = vmul.f32 1.0, %v4164
  %v4166 = vtanh.pop %v4159
  %v4167 = vmul.f32 %v4165, %v3660
  %4169 = vrot.lane.b32.xlu0 %v4166, 32
  %v4170 = vpop.permute.xlu0 %4169
  %v4172 = vmul.f32 %v4165, %v4170
  %4174 = vrot.lane.b32.xlu0 %v4172, 32
  %v4175 = vpop.permute.xlu0 %4174
  %v4177 = vadd.f32 %v4167, %v4175
  %v4178 = vtanh.pop %v4177
  %4180 = vrot.lane.b32.xlu0 %v4178, 32
  %v4181 = vpop.permute.xlu0 %4180
  %v4183 = vmul.f32 %v4165, %v4181
  %v4184 = vld [vmem:[%s2] sm:$0x3]
  %4186 = vrot.lane.b32.xlu0 %v4183, 64
  %v4187 = vpop.permute.xlu0 %4186
  %v4188 = vsel %vm51, %v4187, 0
  %4190 = vmatprep.subr.mxu0 0.0
  %v4191 = vand.u32 %v35, 4294901760
  %4192 = vmatpush1.msra.mxu0 %v4191
  %4193 = vmatprep.subr.mxu0 0.0
  %v4194 = vand.u32 %v36, 4294901760
  %4195 = vmatpush1.msra.mxu0 %v4194
  %4196 = vmatprep.subr.mxu0 0.0
  %v4197 = vand.u32 %v37, 4294901760
  %4198 = vmatpush1.msra.mxu0 %v4197
  %4199 = vmatprep.subr.mxu0 0.0
  %v4200 = vand.u32 %v38, 4294901760
  %4201 = vmatpush1.msra.mxu0 %v4200
  %4202 = vmatprep.subr.mxu0 0.0
  %4203 = vmatpush1.msra.mxu0 0.0
  %4204 = vmatprep.subr.mxu0 0.0
  %4205 = vmatpush1.msra.mxu0 0.0
  %4206 = vmatprep.subr.mxu0 0.0
  %4207 = vmatpush1.msra.mxu0 0.0
  %4208 = vmatprep.subr.mxu0 0.0
  %4209 = vmatpush1.msra.mxu0 0.0
  %4210 = vmatprep.subr.mxu0 0.0
  %4211 = vmatpush1.msra.mxu0 0.0
  %4212 = vmatprep.subr.mxu0 0.0
  %4213 = vmatpush1.msra.mxu0 0.0
  %4214 = vmatprep.subr.mxu0 0.0
  %4215 = vmatpush1.msra.mxu0 0.0
  %4216 = vmatprep.subr.mxu0 0.0
  %4217 = vmatpush1.msra.mxu0 0.0
  %4218 = vmatprep.subr.mxu0 0.0
  %4219 = vmatpush1.msra.mxu0 0.0
  %4220 = vmatprep.subr.mxu0 0.0
  %4221 = vmatpush1.msra.mxu0 0.0
  %4222 = vmatprep.subr.mxu0 0.0
  %4223 = vmatpush1.msra.mxu0 0.0
  %4224 = vmatprep.subr.mxu0 0.0
  %4225 = vmatpush1.msra.mxu0 0.0
  %4226 = vmatprep.subr.mxu0 0.0
  %4227 = vmatpush1.msra.mxu0 0.0
  %4228 = vmatprep.subr.mxu0 0.0
  %4229 = vmatpush1.msra.mxu0 0.0
  %4230 = vmatprep.subr.mxu0 0.0
  %4231 = vmatpush1.msra.mxu0 0.0
  %4232 = vmatprep.subr.mxu0 0.0
  %4233 = vmatpush1.msra.mxu0 0.0
  %4234 = vmatprep.subr.mxu0 0.0
  %4235 = vmatpush1.msra.mxu0 0.0
  %4236 = vmatprep.subr.mxu0 0.0
  %4237 = vmatpush1.msra.mxu0 0.0
  %4238 = vmatprep.subr.mxu0 0.0
  %4239 = vmatpush1.msra.mxu0 0.0
  %4240 = vmatprep.subr.mxu0 0.0
  %4241 = vmatpush1.msra.mxu0 0.0
  %4242 = vmatprep.subr.mxu0 0.0
  %4243 = vmatpush1.msra.mxu0 0.0
  %4244 = vmatprep.subr.mxu0 0.0
  %4245 = vmatpush1.msra.mxu0 0.0
  %4246 = vmatprep.subr.mxu0 0.0
  %4247 = vmatpush1.msra.mxu0 0.0
  %4248 = vmatprep.subr.mxu0 0.0
  %4249 = vmatpush1.msra.mxu0 0.0
  %4250 = vmatprep.subr.mxu0 0.0
  %4251 = vmatpush1.msra.mxu0 0.0
  %4252 = vmatprep.subr.mxu0 0.0
  %4253 = vmatpush1.msra.mxu0 0.0
  %4254 = vmatprep.subr.mxu0 0.0
  %4255 = vmatpush1.msra.mxu0 0.0
  %4256 = vmatprep.subr.mxu0 0.0
  %4257 = vmatpush1.msra.mxu0 0.0
  %4258 = vmatprep.mubr.f32.mxu0 0.0
  %v4259 = vand.u32 %v4188, 4294901760
  %v4260 = vsub.f32 %v4188, %v4259
  %v4261 = vand.u32 %v4260, 4294901760
  %v4262 = vsub.f32 %v4260, %v4261
  %v4263 = vand.u32 %v4262, 4294901760
  %4264 = vmatmul.mubr.f32.gmra.mrb[0].mxu0 %v4263
  %v4265 = vpop.f32.mrb[0].mxu0
  %v4266 = vadd.f32 0.0, %v4265
  %v4267 = vpop.f32.mrb[0].mxu0
  %4268 = vdwg.mxu0
  %4269 = vmatprep.subr.mxu0 0.0
  %v4270 = vand.u32 %v35, 4294901760
  %v4271 = vsub.f32 %v35, %v4270
  %v4272 = vand.u32 %v4271, 4294901760
  %v4273 = vsub.f32 %v4271, %v4272
  %v4274 = vand.u32 %v4273, 4294901760
  %4275 = vmatpush1.msra.mxu0 %v4274
  %4276 = vmatprep.subr.mxu0 0.0
  %v4277 = vand.u32 %v36, 4294901760
  %v4278 = vsub.f32 %v36, %v4277
  %v4279 = vand.u32 %v4278, 4294901760
  %v4280 = vsub.f32 %v4278, %v4279
  %v4281 = vand.u32 %v4280, 4294901760
  %4282 = vmatpush1.msra.mxu0 %v4281
  %4283 = vmatprep.subr.mxu0 0.0
  %v4284 = vand.u32 %v37, 4294901760
  %v4285 = vsub.f32 %v37, %v4284
  %v4286 = vand.u32 %v4285, 4294901760
  %v4287 = vsub.f32 %v4285, %v4286
  %v4288 = vand.u32 %v4287, 4294901760
  %4289 = vmatpush1.msra.mxu0 %v4288
  %4290 = vmatprep.subr.mxu0 0.0
  %v4291 = vand.u32 %v38, 4294901760
  %v4292 = vsub.f32 %v38, %v4291
  %v4293 = vand.u32 %v4292, 4294901760
  %v4294 = vsub.f32 %v4292, %v4293
  %v4295 = vand.u32 %v4294, 4294901760
  %4296 = vmatpush1.msra.mxu0 %v4295
  %4297 = vmatprep.subr.mxu0 0.0
  %4298 = vmatpush1.msra.mxu0 0.0
  %4299 = vmatprep.subr.mxu0 0.0
  %4300 = vmatpush1.msra.mxu0 0.0
  %4301 = vmatprep.subr.mxu0 0.0
  %4302 = vmatpush1.msra.mxu0 0.0
  %4303 = vmatprep.subr.mxu0 0.0
  %4304 = vmatpush1.msra.mxu0 0.0
  %4305 = vmatprep.subr.mxu0 0.0
  %4306 = vmatpush1.msra.mxu0 0.0
  %4307 = vmatprep.subr.mxu0 0.0
  %4308 = vmatpush1.msra.mxu0 0.0
  %4309 = vmatprep.subr.mxu0 0.0
  %4310 = vmatpush1.msra.mxu0 0.0
  %4311 = vmatprep.subr.mxu0 0.0
  %4312 = vmatpush1.msra.mxu0 0.0
  %4313 = vmatprep.subr.mxu0 0.0
  %4314 = vmatpush1.msra.mxu0 0.0
  %4315 = vmatprep.subr.mxu0 0.0
  %4316 = vmatpush1.msra.mxu0 0.0
  %4317 = vmatprep.subr.mxu0 0.0
  %4318 = vmatpush1.msra.mxu0 0.0
  %4319 = vmatprep.subr.mxu0 0.0
  %4320 = vmatpush1.msra.mxu0 0.0
  %4321 = vmatprep.subr.mxu0 0.0
  %4322 = vmatpush1.msra.mxu0 0.0
  %4323 = vmatprep.subr.mxu0 0.0
  %4324 = vmatpush1.msra.mxu0 0.0
  %4325 = vmatprep.subr.mxu0 0.0
  %4326 = vmatpush1.msra.mxu0 0.0
  %4327 = vmatprep.subr.mxu0 0.0
  %4328 = vmatpush1.msra.mxu0 0.0
  %4329 = vmatprep.subr.mxu0 0.0
  %4330 = vmatpush1.msra.mxu0 0.0
  %4331 = vmatprep.subr.mxu0 0.0
  %4332 = vmatpush1.msra.mxu0 0.0
  %4333 = vmatprep.subr.mxu0 0.0
  %4334 = vmatpush1.msra.mxu0 0.0
  %4335 = vmatprep.subr.mxu0 0.0
  %4336 = vmatpush1.msra.mxu0 0.0
  %4337 = vmatprep.subr.mxu0 0.0
  %4338 = vmatpush1.msra.mxu0 0.0
  %4339 = vmatprep.subr.mxu0 0.0
  %4340 = vmatpush1.msra.mxu0 0.0
  %4341 = vmatprep.subr.mxu0 0.0
  %4342 = vmatpush1.msra.mxu0 0.0
  %4343 = vmatprep.subr.mxu0 0.0
  %4344 = vmatpush1.msra.mxu0 0.0
  %4345 = vmatprep.subr.mxu0 0.0
  %4346 = vmatpush1.msra.mxu0 0.0
  %4347 = vmatprep.subr.mxu0 0.0
  %4348 = vmatpush1.msra.mxu0 0.0
  %4349 = vmatprep.subr.mxu0 0.0
  %4350 = vmatpush1.msra.mxu0 0.0
  %4351 = vmatprep.subr.mxu0 0.0
  %4352 = vmatpush1.msra.mxu0 0.0
  %4353 = vmatprep.mubr.f32.mxu0 0.0
  %v4354 = vand.u32 %v4188, 4294901760
  %4355 = vmatmul.mubr.f32.gmra.mrb[0].mxu0 %v4354
  %v4356 = vpop.f32.mrb[0].mxu0
  %v4357 = vadd.f32 %v4266, %v4356
  %v4358 = vpop.f32.mrb[0].mxu0
  %4359 = vdwg.mxu0
  %4360 = vmatprep.subr.mxu0 0.0
  %v4361 = vand.u32 %v35, 4294901760
  %v4362 = vsub.f32 %v35, %v4361
  %4363 = vmatpush1.msra.mxu0 %v4362
  %4364 = vmatprep.subr.mxu0 0.0
  %v4365 = vand.u32 %v36, 4294901760
  %v4366 = vsub.f32 %v36, %v4365
  %4367 = vmatpush1.msra.mxu0 %v4366
  %4368 = vmatprep.subr.mxu0 0.0
  %v4369 = vand.u32 %v37, 4294901760
  %v4370 = vsub.f32 %v37, %v4369
  %4371 = vmatpush1.msra.mxu0 %v4370
  %4372 = vmatprep.subr.mxu0 0.0
  %v4373 = vand.u32 %v38, 4294901760
  %v4374 = vsub.f32 %v38, %v4373
  %4375 = vmatpush1.msra.mxu0 %v4374
  %4376 = vmatprep.subr.mxu0 0.0
  %4377 = vmatpush1.msra.mxu0 0.0
  %4378 = vmatprep.subr.mxu0 0.0
  %4379 = vmatpush1.msra.mxu0 0.0
  %4380 = vmatprep.subr.mxu0 0.0
  %4381 = vmatpush1.msra.mxu0 0.0
  %4382 = vmatprep.subr.mxu0 0.0
  %4383 = vmatpush1.msra.mxu0 0.0
  %4384 = vmatprep.subr.mxu0 0.0
  %4385 = vmatpush1.msra.mxu0 0.0
  %4386 = vmatprep.subr.mxu0 0.0
  %4387 = vmatpush1.msra.mxu0 0.0
  %4388 = vmatprep.subr.mxu0 0.0
  %4389 = vmatpush1.msra.mxu0 0.0
  %4390 = vmatprep.subr.mxu0 0.0
  %4391 = vmatpush1.msra.mxu0 0.0
  %4392 = vmatprep.subr.mxu0 0.0
  %4393 = vmatpush1.msra.mxu0 0.0
  %4394 = vmatprep.subr.mxu0 0.0
  %4395 = vmatpush1.msra.mxu0 0.0
  %4396 = vmatprep.subr.mxu0 0.0
  %4397 = vmatpush1.msra.mxu0 0.0
  %4398 = vmatprep.subr.mxu0 0.0
  %4399 = vmatpush1.msra.mxu0 0.0
  %4400 = vmatprep.subr.mxu0 0.0
  %4401 = vmatpush1.msra.mxu0 0.0
  %4402 = vmatprep.subr.mxu0 0.0
  %4403 = vmatpush1.msra.mxu0 0.0
  %4404 = vmatprep.subr.mxu0 0.0
  %4405 = vmatpush1.msra.mxu0 0.0
  %4406 = vmatprep.subr.mxu0 0.0
  %4407 = vmatpush1.msra.mxu0 0.0
  %4408 = vmatprep.subr.mxu0 0.0
  %4409 = vmatpush1.msra.mxu0 0.0
  %4410 = vmatprep.subr.mxu0 0.0
  %4411 = vmatpush1.msra.mxu0 0.0
  %4412 = vmatprep.subr.mxu0 0.0
  %4413 = vmatpush1.msra.mxu0 0.0
  %4414 = vmatprep.subr.mxu0 0.0
  %4415 = vmatpush1.msra.mxu0 0.0
  %4416 = vmatprep.subr.mxu0 0.0
  %4417 = vmatpush1.msra.mxu0 0.0
  %4418 = vmatprep.subr.mxu0 0.0
  %4419 = vmatpush1.msra.mxu0 0.0
  %4420 = vmatprep.subr.mxu0 0.0
  %4421 = vmatpush1.msra.mxu0 0.0
  %4422 = vmatprep.subr.mxu0 0.0
  %4423 = vmatpush1.msra.mxu0 0.0
  %4424 = vmatprep.subr.mxu0 0.0
  %4425 = vmatpush1.msra.mxu0 0.0
  %4426 = vmatprep.subr.mxu0 0.0
  %4427 = vmatpush1.msra.mxu0 0.0
  %4428 = vmatprep.subr.mxu0 0.0
  %4429 = vmatpush1.msra.mxu0 0.0
  %4430 = vmatprep.subr.mxu0 0.0
  %4431 = vmatpush1.msra.mxu0 0.0
  %4432 = vmatprep.mubr.f32.mxu0 0.0
  %v4433 = vand.u32 %v4188, 4294901760
  %v4434 = vsub.f32 %v4188, %v4433
  %4435 = vmatmul.mubr.f32.gmra.mrb[0].mxu0 %v4434
  %v4436 = vpop.f32.mrb[0].mxu0
  %v4437 = vadd.f32 %v4357, %v4436
  %v4438 = vpop.f32.mrb[0].mxu0
  %4439 = vdwg.mxu0
  %4440 = vmatprep.subr.mxu0 0.0
  %v4441 = vand.u32 %v35, 4294901760
  %4442 = vmatpush1.msra.mxu0 %v4441
  %4443 = vmatprep.subr.mxu0 0.0
  %v4444 = vand.u32 %v36, 4294901760
  %4445 = vmatpush1.msra.mxu0 %v4444
  %4446 = vmatprep.subr.mxu0 0.0
  %v4447 = vand.u32 %v37, 4294901760
  %4448 = vmatpush1.msra.mxu0 %v4447
  %4449 = vmatprep.subr.mxu0 0.0
  %v4450 = vand.u32 %v38, 4294901760
  %4451 = vmatpush1.msra.mxu0 %v4450
  %4452 = vmatprep.subr.mxu0 0.0
  %4453 = vmatpush1.msra.mxu0 0.0
  %4454 = vmatprep.subr.mxu0 0.0
  %4455 = vmatpush1.msra.mxu0 0.0
  %4456 = vmatprep.subr.mxu0 0.0
  %4457 = vmatpush1.msra.mxu0 0.0
  %4458 = vmatprep.subr.mxu0 0.0
  %4459 = vmatpush1.msra.mxu0 0.0
  %4460 = vmatprep.subr.mxu0 0.0
  %4461 = vmatpush1.msra.mxu0 0.0
  %4462 = vmatprep.subr.mxu0 0.0
  %4463 = vmatpush1.msra.mxu0 0.0
  %4464 = vmatprep.subr.mxu0 0.0
  %4465 = vmatpush1.msra.mxu0 0.0
  %4466 = vmatprep.subr.mxu0 0.0
  %4467 = vmatpush1.msra.mxu0 0.0
  %4468 = vmatprep.subr.mxu0 0.0
  %4469 = vmatpush1.msra.mxu0 0.0
  %4470 = vmatprep.subr.mxu0 0.0
  %4471 = vmatpush1.msra.mxu0 0.0
  %4472 = vmatprep.subr.mxu0 0.0
  %4473 = vmatpush1.msra.mxu0 0.0
  %4474 = vmatprep.subr.mxu0 0.0
  %4475 = vmatpush1.msra.mxu0 0.0
  %4476 = vmatprep.subr.mxu0 0.0
  %4477 = vmatpush1.msra.mxu0 0.0
  %4478 = vmatprep.subr.mxu0 0.0
  %4479 = vmatpush1.msra.mxu0 0.0
  %4480 = vmatprep.subr.mxu0 0.0
  %4481 = vmatpush1.msra.mxu0 0.0
  %4482 = vmatprep.subr.mxu0 0.0
  %4483 = vmatpush1.msra.mxu0 0.0
  %4484 = vmatprep.subr.mxu0 0.0
  %4485 = vmatpush1.msra.mxu0 0.0
  %4486 = vmatprep.subr.mxu0 0.0
  %4487 = vmatpush1.msra.mxu0 0.0
  %4488 = vmatprep.subr.mxu0 0.0
  %4489 = vmatpush1.msra.mxu0 0.0
  %4490 = vmatprep.subr.mxu0 0.0
  %4491 = vmatpush1.msra.mxu0 0.0
  %4492 = vmatprep.subr.mxu0 0.0
  %4493 = vmatpush1.msra.mxu0 0.0
  %4494 = vmatprep.subr.mxu0 0.0
  %4495 = vmatpush1.msra.mxu0 0.0
  %4496 = vmatprep.subr.mxu0 0.0
  %4497 = vmatpush1.msra.mxu0 0.0
  %4498 = vmatprep.subr.mxu0 0.0
  %4499 = vmatpush1.msra.mxu0 0.0
  %4500 = vmatprep.subr.mxu0 0.0
  %4501 = vmatpush1.msra.mxu0 0.0
  %4502 = vmatprep.subr.mxu0 0.0
  %4503 = vmatpush1.msra.mxu0 0.0
  %4504 = vmatprep.subr.mxu0 0.0
  %4505 = vmatpush1.msra.mxu0 0.0
  %4506 = vmatprep.subr.mxu0 0.0
  %4507 = vmatpush1.msra.mxu0 0.0
  %4508 = vmatprep.mubr.f32.mxu0 0.0
  %v4509 = vand.u32 %v4188, 4294901760
  %v4510 = vsub.f32 %v4188, %v4509
  %v4511 = vand.u32 %v4510, 4294901760
  %4512 = vmatmul.mubr.f32.gmra.mrb[0].mxu0 %v4511
  %v4513 = vpop.f32.mrb[0].mxu0
  %v4514 = vadd.f32 %v4437, %v4513
  %v4515 = vpop.f32.mrb[0].mxu0
  %4516 = vdwg.mxu0
  %4517 = vmatprep.subr.mxu0 0.0
  %v4518 = vand.u32 %v35, 4294901760
  %v4519 = vsub.f32 %v35, %v4518
  %v4520 = vand.u32 %v4519, 4294901760
  %4521 = vmatpush1.msra.mxu0 %v4520
  %4522 = vmatprep.subr.mxu0 0.0
  %v4523 = vand.u32 %v36, 4294901760
  %v4524 = vsub.f32 %v36, %v4523
  %v4525 = vand.u32 %v4524, 4294901760
  %4526 = vmatpush1.msra.mxu0 %v4525
  %4527 = vmatprep.subr.mxu0 0.0
  %v4528 = vand.u32 %v37, 4294901760
  %v4529 = vsub.f32 %v37, %v4528
  %v4530 = vand.u32 %v4529, 4294901760
  %4531 = vmatpush1.msra.mxu0 %v4530
  %4532 = vmatprep.subr.mxu0 0.0
  %v4533 = vand.u32 %v38, 4294901760
  %v4534 = vsub.f32 %v38, %v4533
  %v4535 = vand.u32 %v4534, 4294901760
  %4536 = vmatpush1.msra.mxu0 %v4535
  %4537 = vmatprep.subr.mxu0 0.0
  %4538 = vmatpush1.msra.mxu0 0.0
  %4539 = vmatprep.subr.mxu0 0.0
  %4540 = vmatpush1.msra.mxu0 0.0
  %4541 = vmatprep.subr.mxu0 0.0
  %4542 = vmatpush1.msra.mxu0 0.0
  %4543 = vmatprep.subr.mxu0 0.0
  %4544 = vmatpush1.msra.mxu0 0.0
  %4545 = vmatprep.subr.mxu0 0.0
  %4546 = vmatpush1.msra.mxu0 0.0
  %4547 = vmatprep.subr.mxu0 0.0
  %4548 = vmatpush1.msra.mxu0 0.0
  %4549 = vmatprep.subr.mxu0 0.0
  %4550 = vmatpush1.msra.mxu0 0.0
  %4551 = vmatprep.subr.mxu0 0.0
  %4552 = vmatpush1.msra.mxu0 0.0
  %4553 = vmatprep.subr.mxu0 0.0
  %4554 = vmatpush1.msra.mxu0 0.0
  %4555 = vmatprep.subr.mxu0 0.0
  %4556 = vmatpush1.msra.mxu0 0.0
  %4557 = vmatprep.subr.mxu0 0.0
  %4558 = vmatpush1.msra.mxu0 0.0
  %4559 = vmatprep.subr.mxu0 0.0
  %4560 = vmatpush1.msra.mxu0 0.0
  %4561 = vmatprep.subr.mxu0 0.0
  %4562 = vmatpush1.msra.mxu0 0.0
  %4563 = vmatprep.subr.mxu0 0.0
  %4564 = vmatpush1.msra.mxu0 0.0
  %4565 = vmatprep.subr.mxu0 0.0
  %4566 = vmatpush1.msra.mxu0 0.0
  %4567 = vmatprep.subr.mxu0 0.0
  %4568 = vmatpush1.msra.mxu0 0.0
  %4569 = vmatprep.subr.mxu0 0.0
  %4570 = vmatpush1.msra.mxu0 0.0
  %4571 = vmatprep.subr.mxu0 0.0
  %4572 = vmatpush1.msra.mxu0 0.0
  %4573 = vmatprep.subr.mxu0 0.0
  %4574 = vmatpush1.msra.mxu0 0.0
  %4575 = vmatprep.subr.mxu0 0.0
  %4576 = vmatpush1.msra.mxu0 0.0
  %4577 = vmatprep.subr.mxu0 0.0
  %4578 = vmatpush1.msra.mxu0 0.0
  %4579 = vmatprep.subr.mxu0 0.0
  %4580 = vmatpush1.msra.mxu0 0.0
  %4581 = vmatprep.subr.mxu0 0.0
  %4582 = vmatpush1.msra.mxu0 0.0
  %4583 = vmatprep.subr.mxu0 0.0
  %4584 = vmatpush1.msra.mxu0 0.0
  %4585 = vmatprep.subr.mxu0 0.0
  %4586 = vmatpush1.msra.mxu0 0.0
  %4587 = vmatprep.subr.mxu0 0.0
  %4588 = vmatpush1.msra.mxu0 0.0
  %4589 = vmatprep.subr.mxu0 0.0
  %4590 = vmatpush1.msra.mxu0 0.0
  %4591 = vmatprep.subr.mxu0 0.0
  %4592 = vmatpush1.msra.mxu0 0.0
  %4593 = vmatprep.mubr.f32.mxu0 0.0
  %v4594 = vand.u32 %v4188, 4294901760
  %4595 = vmatmul.mubr.f32.gmra.mrb[0].mxu0 %v4594
  %v4596 = vpop.f32.mrb[0].mxu0
  %v4597 = vadd.f32 %v4514, %v4596
  %v4598 = vpop.f32.mrb[0].mxu0
  %4599 = vdwg.mxu0
  %4600 = vmatprep.subr.mxu0 0.0
  %v4601 = vand.u32 %v35, 4294901760
  %4602 = vmatpush1.msra.mxu0 %v4601
  %4603 = vmatprep.subr.mxu0 0.0
  %v4604 = vand.u32 %v36, 4294901760
  %4605 = vmatpush1.msra.mxu0 %v4604
  %4606 = vmatprep.subr.mxu0 0.0
  %v4607 = vand.u32 %v37, 4294901760
  %4608 = vmatpush1.msra.mxu0 %v4607
  %4609 = vmatprep.subr.mxu0 0.0
  %v4610 = vand.u32 %v38, 4294901760
  %4611 = vmatpush1.msra.mxu0 %v4610
  %4612 = vmatprep.subr.mxu0 0.0
  %4613 = vmatpush1.msra.mxu0 0.0
  %4614 = vmatprep.subr.mxu0 0.0
  %4615 = vmatpush1.msra.mxu0 0.0
  %4616 = vmatprep.subr.mxu0 0.0
  %4617 = vmatpush1.msra.mxu0 0.0
  %4618 = vmatprep.subr.mxu0 0.0
  %4619 = vmatpush1.msra.mxu0 0.0
  %4620 = vmatprep.subr.mxu0 0.0
  %4621 = vmatpush1.msra.mxu0 0.0
  %4622 = vmatprep.subr.mxu0 0.0
  %4623 = vmatpush1.msra.mxu0 0.0
  %4624 = vmatprep.subr.mxu0 0.0
  %4625 = vmatpush1.msra.mxu0 0.0
  %4626 = vmatprep.subr.mxu0 0.0
  %4627 = vmatpush1.msra.mxu0 0.0
  %4628 = vmatprep.subr.mxu0 0.0
  %4629 = vmatpush1.msra.mxu0 0.0
  %4630 = vmatprep.subr.mxu0 0.0
  %4631 = vmatpush1.msra.mxu0 0.0
  %4632 = vmatprep.subr.mxu0 0.0
  %4633 = vmatpush1.msra.mxu0 0.0
  %4634 = vmatprep.subr.mxu0 0.0
  %4635 = vmatpush1.msra.mxu0 0.0
  %4636 = vmatprep.subr.mxu0 0.0
  %4637 = vmatpush1.msra.mxu0 0.0
  %4638 = vmatprep.subr.mxu0 0.0
  %4639 = vmatpush1.msra.mxu0 0.0
  %4640 = vmatprep.subr.mxu0 0.0
  %4641 = vmatpush1.msra.mxu0 0.0
  %4642 = vmatprep.subr.mxu0 0.0
  %4643 = vmatpush1.msra.mxu0 0.0
  %4644 = vmatprep.subr.mxu0 0.0
  %4645 = vmatpush1.msra.mxu0 0.0
  %4646 = vmatprep.subr.mxu0 0.0
  %4647 = vmatpush1.msra.mxu0 0.0
  %4648 = vmatprep.subr.mxu0 0.0
  %4649 = vmatpush1.msra.mxu0 0.0
  %4650 = vmatprep.subr.mxu0 0.0
  %4651 = vmatpush1.msra.mxu0 0.0
  %4652 = vmatprep.subr.mxu0 0.0
  %4653 = vmatpush1.msra.mxu0 0.0
  %4654 = vmatprep.subr.mxu0 0.0
  %4655 = vmatpush1.msra.mxu0 0.0
  %4656 = vmatprep.subr.mxu0 0.0
  %4657 = vmatpush1.msra.mxu0 0.0
  %4658 = vmatprep.subr.mxu0 0.0
  %4659 = vmatpush1.msra.mxu0 0.0
  %4660 = vmatprep.subr.mxu0 0.0
  %4661 = vmatpush1.msra.mxu0 0.0
  %4662 = vmatprep.subr.mxu0 0.0
  %4663 = vmatpush1.msra.mxu0 0.0
  %4664 = vmatprep.subr.mxu0 0.0
  %4665 = vmatpush1.msra.mxu0 0.0
  %4666 = vmatprep.subr.mxu0 0.0
  %4667 = vmatpush1.msra.mxu0 0.0
  %4668 = vmatprep.mubr.f32.mxu0 0.0
  %v4669 = vand.u32 %v4188, 4294901760
  %4670 = vmatmul.mubr.f32.gmra.mrb[0].mxu0 %v4669
  %v4671 = vpop.f32.mrb[0].mxu0
  %v4672 = vadd.f32 %v4597, %v4671
  %v4673 = vpop.f32.mrb[0].mxu0
  %4674 = vdwg.mxu0
  %v4675 = vadd.f32 %v4184, %v4672
  %v4676 = vxor.u32 %v4675, 2147483648
  %v4677 = vmul.f32 %v4676, 1.442695
  %v4678 = vpow.pop %v4677
  %v4679 = vadd.f32 %v4678, 1.0
  %v4680 = vrcp.pop %v4679
  %v4681 = vmul.f32 1.0, %v4680
  %v4682 = vtanh.pop %v4675
  %v4683 = vmul.f32 %v4681, %v4177
  %4685 = vrot.lane.b32.xlu0 %v4682, 32
  %v4686 = vpop.permute.xlu0 %4685
  %v4688 = vmul.f32 %v4681, %v4686
  %4690 = vrot.lane.b32.xlu0 %v4688, 32
  %v4691 = vpop.permute.xlu0 %4690
  %v4693 = vadd.f32 %v4683, %v4691
  %v4694 = vtanh.pop %v4693
  %4696 = vrot.lane.b32.xlu0 %v4694, 32
  %v4697 = vpop.permute.xlu0 %4696
  %v4699 = vmul.f32 %v4681, %v4697
  %4701 = vrot.lane.b32.xlu0 %v4699, 64
  %v4702 = vpop.permute.xlu0 %4701
  %vm4704 = vcmask 254976
  %4705 = vst.msk [vmem:[#allocation2] sm:$0x3] %vm4704, %v4702
  %v4706 = vsel %vm51, %v4702, 0
  %4708 = vmatprep.subr.mxu0 0.0
  %v4709 = vand.u32 %v39, 4294901760
  %4710 = vmatpush1.msra.mxu0 %v4709
  %4711 = vmatprep.subr.mxu0 0.0
  %v4712 = vand.u32 %v40, 4294901760
  %4713 = vmatpush1.msra.mxu0 %v4712
  %4714 = vmatprep.subr.mxu0 0.0
  %v4715 = vand.u32 %v41, 4294901760
  %4716 = vmatpush1.msra.mxu0 %v4715
  %4717 = vmatprep.subr.mxu0 0.0
  %v4718 = vand.u32 %v42, 4294901760
  %4719 = vmatpush1.msra.mxu0 %v4718
  %4720 = vmatprep.subr.mxu0 0.0
  %4721 = vmatpush1.msra.mxu0 0.0
  %4722 = vmatprep.subr.mxu0 0.0
  %4723 = vmatpush1.msra.mxu0 0.0
  %4724 = vmatprep.subr.mxu0 0.0
  %4725 = vmatpush1.msra.mxu0 0.0
  %4726 = vmatprep.subr.mxu0 0.0
  %4727 = vmatpush1.msra.mxu0 0.0
  %4728 = vmatprep.subr.mxu0 0.0
  %4729 = vmatpush1.msra.mxu0 0.0
  %4730 = vmatprep.subr.mxu0 0.0
  %4731 = vmatpush1.msra.mxu0 0.0
  %4732 = vmatprep.subr.mxu0 0.0
  %4733 = vmatpush1.msra.mxu0 0.0
  %4734 = vmatprep.subr.mxu0 0.0
  %4735 = vmatpush1.msra.mxu0 0.0
  %4736 = vmatprep.subr.mxu0 0.0
  %4737 = vmatpush1.msra.mxu0 0.0
  %4738 = vmatprep.subr.mxu0 0.0
  %4739 = vmatpush1.msra.mxu0 0.0
  %4740 = vmatprep.subr.mxu0 0.0
  %4741 = vmatpush1.msra.mxu0 0.0
  %4742 = vmatprep.subr.mxu0 0.0
  %4743 = vmatpush1.msra.mxu0 0.0
  %4744 = vmatprep.subr.mxu0 0.0
  %4745 = vmatpush1.msra.mxu0 0.0
  %4746 = vmatprep.subr.mxu0 0.0
  %4747 = vmatpush1.msra.mxu0 0.0
  %4748 = vmatprep.subr.mxu0 0.0
  %4749 = vmatpush1.msra.mxu0 0.0
  %4750 = vmatprep.subr.mxu0 0.0
  %4751 = vmatpush1.msra.mxu0 0.0
  %4752 = vmatprep.subr.mxu0 0.0
  %4753 = vmatpush1.msra.mxu0 0.0
  %4754 = vmatprep.subr.mxu0 0.0
  %4755 = vmatpush1.msra.mxu0 0.0
  %4756 = vmatprep.subr.mxu0 0.0
  %4757 = vmatpush1.msra.mxu0 0.0
  %4758 = vmatprep.subr.mxu0 0.0
  %4759 = vmatpush1.msra.mxu0 0.0
  %4760 = vmatprep.subr.mxu0 0.0
  %4761 = vmatpush1.msra.mxu0 0.0
  %4762 = vmatprep.subr.mxu0 0.0
  %4763 = vmatpush1.msra.mxu0 0.0
  %4764 = vmatprep.subr.mxu0 0.0
  %4765 = vmatpush1.msra.mxu0 0.0
  %4766 = vmatprep.subr.mxu0 0.0
  %4767 = vmatpush1.msra.mxu0 0.0
  %4768 = vmatprep.subr.mxu0 0.0
  %4769 = vmatpush1.msra.mxu0 0.0
  %4770 = vmatprep.subr.mxu0 0.0
  %4771 = vmatpush1.msra.mxu0 0.0
  %4772 = vmatprep.subr.mxu0 0.0
  %4773 = vmatpush1.msra.mxu0 0.0
  %4774 = vmatprep.subr.mxu0 0.0
  %4775 = vmatpush1.msra.mxu0 0.0
  %4776 = vmatprep.mubr.f32.mxu0 0.0
  %v4777 = vand.u32 %v4706, 4294901760
  %v4778 = vsub.f32 %v4706, %v4777
  %v4779 = vand.u32 %v4778, 4294901760
  %v4780 = vsub.f32 %v4778, %v4779
  %v4781 = vand.u32 %v4780, 4294901760
  %4782 = vmatmul.mubr.f32.gmra.mrb[0].mxu0 %v4781
  %v4783 = vpop.f32.mrb[0].mxu0
  %v4784 = vadd.f32 %v48, %v4783
  %v4785 = vpop.f32.mrb[0].mxu0
  %4786 = vdwg.mxu0
  %4787 = vmatprep.subr.mxu0 0.0
  %v4788 = vand.u32 %v39, 4294901760
  %v4789 = vsub.f32 %v39, %v4788
  %v4790 = vand.u32 %v4789, 4294901760
  %v4791 = vsub.f32 %v4789, %v4790
  %v4792 = vand.u32 %v4791, 4294901760
  %4793 = vmatpush1.msra.mxu0 %v4792
  %4794 = vmatprep.subr.mxu0 0.0
  %v4795 = vand.u32 %v40, 4294901760
  %v4796 = vsub.f32 %v40, %v4795
  %v4797 = vand.u32 %v4796, 4294901760
  %v4798 = vsub.f32 %v4796, %v4797
  %v4799 = vand.u32 %v4798, 4294901760
  %4800 = vmatpush1.msra.mxu0 %v4799
  %4801 = vmatprep.subr.mxu0 0.0
  %v4802 = vand.u32 %v41, 4294901760
  %v4803 = vsub.f32 %v41, %v4802
  %v4804 = vand.u32 %v4803, 4294901760
  %v4805 = vsub.f32 %v4803, %v4804
  %v4806 = vand.u32 %v4805, 4294901760
  %4807 = vmatpush1.msra.mxu0 %v4806
  %4808 = vmatprep.subr.mxu0 0.0
  %v4809 = vand.u32 %v42, 4294901760
  %v4810 = vsub.f32 %v42, %v4809
  %v4811 = vand.u32 %v4810, 4294901760
  %v4812 = vsub.f32 %v4810, %v4811
  %v4813 = vand.u32 %v4812, 4294901760
  %4814 = vmatpush1.msra.mxu0 %v4813
  %4815 = vmatprep.subr.mxu0 0.0
  %4816 = vmatpush1.msra.mxu0 0.0
  %4817 = vmatprep.subr.mxu0 0.0
  %4818 = vmatpush1.msra.mxu0 0.0
  %4819 = vmatprep.subr.mxu0 0.0
  %4820 = vmatpush1.msra.mxu0 0.0
  %4821 = vmatprep.subr.mxu0 0.0
  %4822 = vmatpush1.msra.mxu0 0.0
  %4823 = vmatprep.subr.mxu0 0.0
  %4824 = vmatpush1.msra.mxu0 0.0
  %4825 = vmatprep.subr.mxu0 0.0
  %4826 = vmatpush1.msra.mxu0 0.0
  %4827 = vmatprep.subr.mxu0 0.0
  %4828 = vmatpush1.msra.mxu0 0.0
  %4829 = vmatprep.subr.mxu0 0.0
  %4830 = vmatpush1.msra.mxu0 0.0
  %4831 = vmatprep.subr.mxu0 0.0
  %4832 = vmatpush1.msra.mxu0 0.0
  %4833 = vmatprep.subr.mxu0 0.0
  %4834 = vmatpush1.msra.mxu0 0.0
  %4835 = vmatprep.subr.mxu0 0.0
  %4836 = vmatpush1.msra.mxu0 0.0
  %4837 = vmatprep.subr.mxu0 0.0
  %4838 = vmatpush1.msra.mxu0 0.0
  %4839 = vmatprep.subr.mxu0 0.0
  %4840 = vmatpush1.msra.mxu0 0.0
  %4841 = vmatprep.subr.mxu0 0.0
  %4842 = vmatpush1.msra.mxu0 0.0
  %4843 = vmatprep.subr.mxu0 0.0
  %4844 = vmatpush1.msra.mxu0 0.0
  %4845 = vmatprep.subr.mxu0 0.0
  %4846 = vmatpush1.msra.mxu0 0.0
  %4847 = vmatprep.subr.mxu0 0.0
  %4848 = vmatpush1.msra.mxu0 0.0
  %4849 = vmatprep.subr.mxu0 0.0
  %4850 = vmatpush1.msra.mxu0 0.0
  %4851 = vmatprep.subr.mxu0 0.0
  %4852 = vmatpush1.msra.mxu0 0.0
  %4853 = vmatprep.subr.mxu0 0.0
  %4854 = vmatpush1.msra.mxu0 0.0
  %4855 = vmatprep.subr.mxu0 0.0
  %4856 = vmatpush1.msra.mxu0 0.0
  %4857 = vmatprep.subr.mxu0 0.0
  %4858 = vmatpush1.msra.mxu0 0.0
  %4859 = vmatprep.subr.mxu0 0.0
  %4860 = vmatpush1.msra.mxu0 0.0
  %4861 = vmatprep.subr.mxu0 0.0
  %4862 = vmatpush1.msra.mxu0 0.0
  %4863 = vmatprep.subr.mxu0 0.0
  %4864 = vmatpush1.msra.mxu0 0.0
  %4865 = vmatprep.subr.mxu0 0.0
  %4866 = vmatpush1.msra.mxu0 0.0
  %4867 = vmatprep.subr.mxu0 0.0
  %4868 = vmatpush1.msra.mxu0 0.0
  %4869 = vmatprep.subr.mxu0 0.0
  %4870 = vmatpush1.msra.mxu0 0.0
  %4871 = vmatprep.mubr.f32.mxu0 0.0
  %v4872 = vand.u32 %v4706, 4294901760
  %4873 = vmatmul.mubr.f32.gmra.mrb[0].mxu0 %v4872
  %v4874 = vpop.f32.mrb[0].mxu0
  %v4875 = vadd.f32 %v4784, %v4874
  %v4876 = vpop.f32.mrb[0].mxu0
  %4877 = vdwg.mxu0
  %4878 = vmatprep.subr.mxu0 0.0
  %v4879 = vand.u32 %v39, 4294901760
  %v4880 = vsub.f32 %v39, %v4879
  %4881 = vmatpush1.msra.mxu0 %v4880
  %4882 = vmatprep.subr.mxu0 0.0
  %v4883 = vand.u32 %v40, 4294901760
  %v4884 = vsub.f32 %v40, %v4883
  %4885 = vmatpush1.msra.mxu0 %v4884
  %4886 = vmatprep.subr.mxu0 0.0
  %v4887 = vand.u32 %v41, 4294901760
  %v4888 = vsub.f32 %v41, %v4887
  %4889 = vmatpush1.msra.mxu0 %v4888
  %4890 = vmatprep.subr.mxu0 0.0
  %v4891 = vand.u32 %v42, 4294901760
  %v4892 = vsub.f32 %v42, %v4891
  %4893 = vmatpush1.msra.mxu0 %v4892
  %4894 = vmatprep.subr.mxu0 0.0
  %4895 = vmatpush1.msra.mxu0 0.0
  %4896 = vmatprep.subr.mxu0 0.0
  %4897 = vmatpush1.msra.mxu0 0.0
  %4898 = vmatprep.subr.mxu0 0.0
  %4899 = vmatpush1.msra.mxu0 0.0
  %4900 = vmatprep.subr.mxu0 0.0
  %4901 = vmatpush1.msra.mxu0 0.0
  %4902 = vmatprep.subr.mxu0 0.0
  %4903 = vmatpush1.msra.mxu0 0.0
  %4904 = vmatprep.subr.mxu0 0.0
  %4905 = vmatpush1.msra.mxu0 0.0
  %4906 = vmatprep.subr.mxu0 0.0
  %4907 = vmatpush1.msra.mxu0 0.0
  %4908 = vmatprep.subr.mxu0 0.0
  %4909 = vmatpush1.msra.mxu0 0.0
  %4910 = vmatprep.subr.mxu0 0.0
  %4911 = vmatpush1.msra.mxu0 0.0
  %4912 = vmatprep.subr.mxu0 0.0
  %4913 = vmatpush1.msra.mxu0 0.0
  %4914 = vmatprep.subr.mxu0 0.0
  %4915 = vmatpush1.msra.mxu0 0.0
  %4916 = vmatprep.subr.mxu0 0.0
  %4917 = vmatpush1.msra.mxu0 0.0
  %4918 = vmatprep.subr.mxu0 0.0
  %4919 = vmatpush1.msra.mxu0 0.0
  %4920 = vmatprep.subr.mxu0 0.0
  %4921 = vmatpush1.msra.mxu0 0.0
  %4922 = vmatprep.subr.mxu0 0.0
  %4923 = vmatpush1.msra.mxu0 0.0
  %4924 = vmatprep.subr.mxu0 0.0
  %4925 = vmatpush1.msra.mxu0 0.0
  %4926 = vmatprep.subr.mxu0 0.0
  %4927 = vmatpush1.msra.mxu0 0.0
  %4928 = vmatprep.subr.mxu0 0.0
  %4929 = vmatpush1.msra.mxu0 0.0
  %4930 = vmatprep.subr.mxu0 0.0
  %4931 = vmatpush1.msra.mxu0 0.0
  %4932 = vmatprep.subr.mxu0 0.0
  %4933 = vmatpush1.msra.mxu0 0.0
  %4934 = vmatprep.subr.mxu0 0.0
  %4935 = vmatpush1.msra.mxu0 0.0
  %4936 = vmatprep.subr.mxu0 0.0
  %4937 = vmatpush1.msra.mxu0 0.0
  %4938 = vmatprep.subr.mxu0 0.0
  %4939 = vmatpush1.msra.mxu0 0.0
  %4940 = vmatprep.subr.mxu0 0.0
  %4941 = vmatpush1.msra.mxu0 0.0
  %4942 = vmatprep.subr.mxu0 0.0
  %4943 = vmatpush1.msra.mxu0 0.0
  %4944 = vmatprep.subr.mxu0 0.0
  %4945 = vmatpush1.msra.mxu0 0.0
  %4946 = vmatprep.subr.mxu0 0.0
  %4947 = vmatpush1.msra.mxu0 0.0
  %4948 = vmatprep.subr.mxu0 0.0
  %4949 = vmatpush1.msra.mxu0 0.0
  %4950 = vmatprep.mubr.f32.mxu0 0.0
  %v4951 = vand.u32 %v4706, 4294901760
  %v4952 = vsub.f32 %v4706, %v4951
  %4953 = vmatmul.mubr.f32.gmra.mrb[0].mxu0 %v4952
  %v4954 = vpop.f32.mrb[0].mxu0
  %v4955 = vadd.f32 %v4875, %v4954
  %v4956 = vpop.f32.mrb[0].mxu0
  %4957 = vdwg.mxu0
  %4958 = vmatprep.subr.mxu0 0.0
  %v4959 = vand.u32 %v39, 4294901760
  %4960 = vmatpush1.msra.mxu0 %v4959
  %4961 = vmatprep.subr.mxu0 0.0
  %v4962 = vand.u32 %v40, 4294901760
  %4963 = vmatpush1.msra.mxu0 %v4962
  %4964 = vmatprep.subr.mxu0 0.0
  %v4965 = vand.u32 %v41, 4294901760
  %4966 = vmatpush1.msra.mxu0 %v4965
  %4967 = vmatprep.subr.mxu0 0.0
  %v4968 = vand.u32 %v42, 4294901760
  %4969 = vmatpush1.msra.mxu0 %v4968
  %4970 = vmatprep.subr.mxu0 0.0
  %4971 = vmatpush1.msra.mxu0 0.0
  %4972 = vmatprep.subr.mxu0 0.0
  %4973 = vmatpush1.msra.mxu0 0.0
  %4974 = vmatprep.subr.mxu0 0.0
  %4975 = vmatpush1.msra.mxu0 0.0
  %4976 = vmatprep.subr.mxu0 0.0
  %4977 = vmatpush1.msra.mxu0 0.0
  %4978 = vmatprep.subr.mxu0 0.0
  %4979 = vmatpush1.msra.mxu0 0.0
  %4980 = vmatprep.subr.mxu0 0.0
  %4981 = vmatpush1.msra.mxu0 0.0
  %4982 = vmatprep.subr.mxu0 0.0
  %4983 = vmatpush1.msra.mxu0 0.0
  %4984 = vmatprep.subr.mxu0 0.0
  %4985 = vmatpush1.msra.mxu0 0.0
  %4986 = vmatprep.subr.mxu0 0.0
  %4987 = vmatpush1.msra.mxu0 0.0
  %4988 = vmatprep.subr.mxu0 0.0
  %4989 = vmatpush1.msra.mxu0 0.0
  %4990 = vmatprep.subr.mxu0 0.0
  %4991 = vmatpush1.msra.mxu0 0.0
  %4992 = vmatprep.subr.mxu0 0.0
  %4993 = vmatpush1.msra.mxu0 0.0
  %4994 = vmatprep.subr.mxu0 0.0
  %4995 = vmatpush1.msra.mxu0 0.0
  %4996 = vmatprep.subr.mxu0 0.0
  %4997 = vmatpush1.msra.mxu0 0.0
  %4998 = vmatprep.subr.mxu0 0.0
  %4999 = vmatpush1.msra.mxu0 0.0
  %5000 = vmatprep.subr.mxu0 0.0
  %5001 = vmatpush1.msra.mxu0 0.0
  %5002 = vmatprep.subr.mxu0 0.0
  %5003 = vmatpush1.msra.mxu0 0.0
  %5004 = vmatprep.subr.mxu0 0.0
  %5005 = vmatpush1.msra.mxu0 0.0
  %5006 = vmatprep.subr.mxu0 0.0
  %5007 = vmatpush1.msra.mxu0 0.0
  %5008 = vmatprep.subr.mxu0 0.0
  %5009 = vmatpush1.msra.mxu0 0.0
  %5010 = vmatprep.subr.mxu0 0.0
  %5011 = vmatpush1.msra.mxu0 0.0
  %5012 = vmatprep.subr.mxu0 0.0
  %5013 = vmatpush1.msra.mxu0 0.0
  %5014 = vmatprep.subr.mxu0 0.0
  %5015 = vmatpush1.msra.mxu0 0.0
  %5016 = vmatprep.subr.mxu0 0.0
  %5017 = vmatpush1.msra.mxu0 0.0
  %5018 = vmatprep.subr.mxu0 0.0
  %5019 = vmatpush1.msra.mxu0 0.0
  %5020 = vmatprep.subr.mxu0 0.0
  %5021 = vmatpush1.msra.mxu0 0.0
  %5022 = vmatprep.subr.mxu0 0.0
  %5023 = vmatpush1.msra.mxu0 0.0
  %5024 = vmatprep.subr.mxu0 0.0
  %5025 = vmatpush1.msra.mxu0 0.0
  %5026 = vmatprep.mubr.f32.mxu0 0.0
  %v5027 = vand.u32 %v4706, 4294901760
  %v5028 = vsub.f32 %v4706, %v5027
  %v5029 = vand.u32 %v5028, 4294901760
  %5030 = vmatmul.mubr.f32.gmra.mrb[0].mxu0 %v5029
  %v5031 = vpop.f32.mrb[0].mxu0
  %v5032 = vadd.f32 %v4955, %v5031
  %v5033 = vpop.f32.mrb[0].mxu0
  %5034 = vdwg.mxu0
  %5035 = vmatprep.subr.mxu0 0.0
  %v5036 = vand.u32 %v39, 4294901760
  %v5037 = vsub.f32 %v39, %v5036
  %v5038 = vand.u32 %v5037, 4294901760
  %5039 = vmatpush1.msra.mxu0 %v5038
  %5040 = vmatprep.subr.mxu0 0.0
  %v5041 = vand.u32 %v40, 4294901760
  %v5042 = vsub.f32 %v40, %v5041
  %v5043 = vand.u32 %v5042, 4294901760
  %5044 = vmatpush1.msra.mxu0 %v5043
  %5045 = vmatprep.subr.mxu0 0.0
  %v5046 = vand.u32 %v41, 4294901760
  %v5047 = vsub.f32 %v41, %v5046
  %v5048 = vand.u32 %v5047, 4294901760
  %5049 = vmatpush1.msra.mxu0 %v5048
  %5050 = vmatprep.subr.mxu0 0.0
  %v5051 = vand.u32 %v42, 4294901760
  %v5052 = vsub.f32 %v42, %v5051
  %v5053 = vand.u32 %v5052, 4294901760
  %5054 = vmatpush1.msra.mxu0 %v5053
  %5055 = vmatprep.subr.mxu0 0.0
  %5056 = vmatpush1.msra.mxu0 0.0
  %5057 = vmatprep.subr.mxu0 0.0
  %5058 = vmatpush1.msra.mxu0 0.0
  %5059 = vmatprep.subr.mxu0 0.0
  %5060 = vmatpush1.msra.mxu0 0.0
  %5061 = vmatprep.subr.mxu0 0.0
  %5062 = vmatpush1.msra.mxu0 0.0
  %5063 = vmatprep.subr.mxu0 0.0
  %5064 = vmatpush1.msra.mxu0 0.0
  %5065 = vmatprep.subr.mxu0 0.0
  %5066 = vmatpush1.msra.mxu0 0.0
  %5067 = vmatprep.subr.mxu0 0.0
  %5068 = vmatpush1.msra.mxu0 0.0
  %5069 = vmatprep.subr.mxu0 0.0
  %5070 = vmatpush1.msra.mxu0 0.0
  %5071 = vmatprep.subr.mxu0 0.0
  %5072 = vmatpush1.msra.mxu0 0.0
  %5073 = vmatprep.subr.mxu0 0.0
  %5074 = vmatpush1.msra.mxu0 0.0
  %5075 = vmatprep.subr.mxu0 0.0
  %5076 = vmatpush1.msra.mxu0 0.0
  %5077 = vmatprep.subr.mxu0 0.0
  %5078 = vmatpush1.msra.mxu0 0.0
  %5079 = vmatprep.subr.mxu0 0.0
  %5080 = vmatpush1.msra.mxu0 0.0
  %5081 = vmatprep.subr.mxu0 0.0
  %5082 = vmatpush1.msra.mxu0 0.0
  %5083 = vmatprep.subr.mxu0 0.0
  %5084 = vmatpush1.msra.mxu0 0.0
  %5085 = vmatprep.subr.mxu0 0.0
  %5086 = vmatpush1.msra.mxu0 0.0
  %5087 = vmatprep.subr.mxu0 0.0
  %5088 = vmatpush1.msra.mxu0 0.0
  %5089 = vmatprep.subr.mxu0 0.0
  %5090 = vmatpush1.msra.mxu0 0.0
  %5091 = vmatprep.subr.mxu0 0.0
  %5092 = vmatpush1.msra.mxu0 0.0
  %5093 = vmatprep.subr.mxu0 0.0
  %5094 = vmatpush1.msra.mxu0 0.0
  %5095 = vmatprep.subr.mxu0 0.0
  %5096 = vmatpush1.msra.mxu0 0.0
  %5097 = vmatprep.subr.mxu0 0.0
  %5098 = vmatpush1.msra.mxu0 0.0
  %5099 = vmatprep.subr.mxu0 0.0
  %5100 = vmatpush1.msra.mxu0 0.0
  %5101 = vmatprep.subr.mxu0 0.0
  %5102 = vmatpush1.msra.mxu0 0.0
  %5103 = vmatprep.subr.mxu0 0.0
  %5104 = vmatpush1.msra.mxu0 0.0
  %5105 = vmatprep.subr.mxu0 0.0
  %5106 = vmatpush1.msra.mxu0 0.0
  %5107 = vmatprep.subr.mxu0 0.0
  %5108 = vmatpush1.msra.mxu0 0.0
  %5109 = vmatprep.subr.mxu0 0.0
  %5110 = vmatpush1.msra.mxu0 0.0
  %5111 = vmatprep.mubr.f32.mxu0 0.0
  %v5112 = vand.u32 %v4706, 4294901760
  %5113 = vmatmul.mubr.f32.gmra.mrb[0].mxu0 %v5112
  %v5114 = vpop.f32.mrb[0].mxu0
  %v5115 = vadd.f32 %v5032, %v5114
  %v5116 = vpop.f32.mrb[0].mxu0
  %5117 = vdwg.mxu0
  %5118 = vmatprep.subr.mxu0 0.0
  %v5119 = vand.u32 %v39, 4294901760
  %5120 = vmatpush1.msra.mxu0 %v5119
  %5121 = vmatprep.subr.mxu0 0.0
  %v5122 = vand.u32 %v40, 4294901760
  %5123 = vmatpush1.msra.mxu0 %v5122
  %5124 = vmatprep.subr.mxu0 0.0
  %v5125 = vand.u32 %v41, 4294901760
  %5126 = vmatpush1.msra.mxu0 %v5125
  %5127 = vmatprep.subr.mxu0 0.0
  %v5128 = vand.u32 %v42, 4294901760
  %5129 = vmatpush1.msra.mxu0 %v5128
  %5130 = vmatprep.subr.mxu0 0.0
  %5131 = vmatpush1.msra.mxu0 0.0
  %5132 = vmatprep.subr.mxu0 0.0
  %5133 = vmatpush1.msra.mxu0 0.0
  %5134 = vmatprep.subr.mxu0 0.0
  %5135 = vmatpush1.msra.mxu0 0.0
  %5136 = vmatprep.subr.mxu0 0.0
  %5137 = vmatpush1.msra.mxu0 0.0
  %5138 = vmatprep.subr.mxu0 0.0
  %5139 = vmatpush1.msra.mxu0 0.0
  %5140 = vmatprep.subr.mxu0 0.0
  %5141 = vmatpush1.msra.mxu0 0.0
  %5142 = vmatprep.subr.mxu0 0.0
  %5143 = vmatpush1.msra.mxu0 0.0
  %5144 = vmatprep.subr.mxu0 0.0
  %5145 = vmatpush1.msra.mxu0 0.0
  %5146 = vmatprep.subr.mxu0 0.0
  %5147 = vmatpush1.msra.mxu0 0.0
  %5148 = vmatprep.subr.mxu0 0.0
  %5149 = vmatpush1.msra.mxu0 0.0
  %5150 = vmatprep.subr.mxu0 0.0
  %5151 = vmatpush1.msra.mxu0 0.0
  %5152 = vmatprep.subr.mxu0 0.0
  %5153 = vmatpush1.msra.mxu0 0.0
  %5154 = vmatprep.subr.mxu0 0.0
  %5155 = vmatpush1.msra.mxu0 0.0
  %5156 = vmatprep.subr.mxu0 0.0
  %5157 = vmatpush1.msra.mxu0 0.0
  %5158 = vmatprep.subr.mxu0 0.0
  %5159 = vmatpush1.msra.mxu0 0.0
  %5160 = vmatprep.subr.mxu0 0.0
  %5161 = vmatpush1.msra.mxu0 0.0
  %5162 = vmatprep.subr.mxu0 0.0
  %5163 = vmatpush1.msra.mxu0 0.0
  %5164 = vmatprep.subr.mxu0 0.0
  %5165 = vmatpush1.msra.mxu0 0.0
  %5166 = vmatprep.subr.mxu0 0.0
  %5167 = vmatpush1.msra.mxu0 0.0
  %5168 = vmatprep.subr.mxu0 0.0
  %5169 = vmatpush1.msra.mxu0 0.0
  %5170 = vmatprep.subr.mxu0 0.0
  %5171 = vmatpush1.msra.mxu0 0.0
  %5172 = vmatprep.subr.mxu0 0.0
  %5173 = vmatpush1.msra.mxu0 0.0
  %5174 = vmatprep.subr.mxu0 0.0
  %5175 = vmatpush1.msra.mxu0 0.0
  %5176 = vmatprep.subr.mxu0 0.0
  %5177 = vmatpush1.msra.mxu0 0.0
  %5178 = vmatprep.subr.mxu0 0.0
  %5179 = vmatpush1.msra.mxu0 0.0
  %5180 = vmatprep.subr.mxu0 0.0
  %5181 = vmatpush1.msra.mxu0 0.0
  %5182 = vmatprep.subr.mxu0 0.0
  %5183 = vmatpush1.msra.mxu0 0.0
  %5184 = vmatprep.subr.mxu0 0.0
  %5185 = vmatpush1.msra.mxu0 0.0
  %5186 = vmatprep.mubr.f32.mxu0 0.0
  %v5187 = vand.u32 %v4706, 4294901760
  %5188 = vmatmul.mubr.f32.gmra.mrb[0].mxu0 %v5187
  %v5189 = vpop.f32.mrb[0].mxu0
  %v5190 = vadd.f32 %v5115, %v5189
  %v5191 = vpop.f32.mrb[0].mxu0
  %5192 = vdwg.mxu0
  %v5193 = vxor.u32 %v5190, 2147483648
  %v5194 = vmul.f32 %v5193, 1.442695
  %v5195 = vpow.pop %v5194
  %v5196 = vadd.f32 %v5195, 1.0
  %v5197 = vrcp.pop %v5196
  %v5198 = vmul.f32 1.0, %v5197
  %v5199 = vtanh.pop %v5190
  %v5200 = vmul.f32 %v5198, %v4693
  %5202 = vrot.lane.b32.xlu0 %v5199, 32
  %v5203 = vpop.permute.xlu0 %5202
  %v5205 = vmul.f32 %v5198, %v5203
  %5207 = vrot.lane.b32.xlu0 %v5205, 32
  %v5208 = vpop.permute.xlu0 %5207
  %v5210 = vadd.f32 %v5200, %v5208
  %v5211 = vtanh.pop %v5210
  %5213 = vrot.lane.b32.xlu0 %v5211, 32
  %v5214 = vpop.permute.xlu0 %5213
  %v5216 = vmul.f32 %v5198, %v5214
  %5218 = vrot.lane.b32.xlu0 %v5216, 64
  %v5219 = vpop.permute.xlu0 %5218
  %s5221 = scalar_lea.vmem [#allocation2], 2
  %5222 = vst.msk [vmem:[%s5221] sm:$0x3] %vm4704, %v5219
  %v5223 = vsel %vm51, %v5219, 0
  %5225 = vmatprep.subr.mxu0 0.0
  %v5226 = vand.u32 %v39, 4294901760
  %5227 = vmatpush1.msra.mxu0 %v5226
  %5228 = vmatprep.subr.mxu0 0.0
  %v5229 = vand.u32 %v40, 4294901760
  %5230 = vmatpush1.msra.mxu0 %v5229
  %5231 = vmatprep.subr.mxu0 0.0
  %v5232 = vand.u32 %v41, 4294901760
  %5233 = vmatpush1.msra.mxu0 %v5232
  %5234 = vmatprep.subr.mxu0 0.0
  %v5235 = vand.u32 %v42, 4294901760
  %5236 = vmatpush1.msra.mxu0 %v5235
  %5237 = vmatprep.subr.mxu0 0.0
  %5238 = vmatpush1.msra.mxu0 0.0
  %5239 = vmatprep.subr.mxu0 0.0
  %5240 = vmatpush1.msra.mxu0 0.0
  %5241 = vmatprep.subr.mxu0 0.0
  %5242 = vmatpush1.msra.mxu0 0.0
  %5243 = vmatprep.subr.mxu0 0.0
  %5244 = vmatpush1.msra.mxu0 0.0
  %5245 = vmatprep.subr.mxu0 0.0
  %5246 = vmatpush1.msra.mxu0 0.0
  %5247 = vmatprep.subr.mxu0 0.0
  %5248 = vmatpush1.msra.mxu0 0.0
  %5249 = vmatprep.subr.mxu0 0.0
  %5250 = vmatpush1.msra.mxu0 0.0
  %5251 = vmatprep.subr.mxu0 0.0
  %5252 = vmatpush1.msra.mxu0 0.0
  %5253 = vmatprep.subr.mxu0 0.0
  %5254 = vmatpush1.msra.mxu0 0.0
  %5255 = vmatprep.subr.mxu0 0.0
  %5256 = vmatpush1.msra.mxu0 0.0
  %5257 = vmatprep.subr.mxu0 0.0
  %5258 = vmatpush1.msra.mxu0 0.0
  %5259 = vmatprep.subr.mxu0 0.0
  %5260 = vmatpush1.msra.mxu0 0.0
  %5261 = vmatprep.subr.mxu0 0.0
  %5262 = vmatpush1.msra.mxu0 0.0
  %5263 = vmatprep.subr.mxu0 0.0
  %5264 = vmatpush1.msra.mxu0 0.0
  %5265 = vmatprep.subr.mxu0 0.0
  %5266 = vmatpush1.msra.mxu0 0.0
  %5267 = vmatprep.subr.mxu0 0.0
  %5268 = vmatpush1.msra.mxu0 0.0
  %5269 = vmatprep.subr.mxu0 0.0
  %5270 = vmatpush1.msra.mxu0 0.0
  %5271 = vmatprep.subr.mxu0 0.0
  %5272 = vmatpush1.msra.mxu0 0.0
  %5273 = vmatprep.subr.mxu0 0.0
  %5274 = vmatpush1.msra.mxu0 0.0
  %5275 = vmatprep.subr.mxu0 0.0
  %5276 = vmatpush1.msra.mxu0 0.0
  %5277 = vmatprep.subr.mxu0 0.0
  %5278 = vmatpush1.msra.mxu0 0.0
  %5279 = vmatprep.subr.mxu0 0.0
  %5280 = vmatpush1.msra.mxu0 0.0
  %5281 = vmatprep.subr.mxu0 0.0
  %5282 = vmatpush1.msra.mxu0 0.0
  %5283 = vmatprep.subr.mxu0 0.0
  %5284 = vmatpush1.msra.mxu0 0.0
  %5285 = vmatprep.subr.mxu0 0.0
  %5286 = vmatpush1.msra.mxu0 0.0
  %5287 = vmatprep.subr.mxu0 0.0
  %5288 = vmatpush1.msra.mxu0 0.0
  %5289 = vmatprep.subr.mxu0 0.0
  %5290 = vmatpush1.msra.mxu0 0.0
  %5291 = vmatprep.subr.mxu0 0.0
  %5292 = vmatpush1.msra.mxu0 0.0
  %5293 = vmatprep.mubr.f32.mxu0 0.0
  %v5294 = vand.u32 %v5223, 4294901760
  %v5295 = vsub.f32 %v5223, %v5294
  %v5296 = vand.u32 %v5295, 4294901760
  %v5297 = vsub.f32 %v5295, %v5296
  %v5298 = vand.u32 %v5297, 4294901760
  %5299 = vmatmul.mubr.f32.gmra.mrb[0].mxu0 %v5298
  %v5300 = vpop.f32.mrb[0].mxu0
  %v5301 = vadd.f32 %v48, %v5300
  %v5302 = vpop.f32.mrb[0].mxu0
  %5303 = vdwg.mxu0
  %5304 = vmatprep.subr.mxu0 0.0
  %v5305 = vand.u32 %v39, 4294901760
  %v5306 = vsub.f32 %v39, %v5305
  %v5307 = vand.u32 %v5306, 4294901760
  %v5308 = vsub.f32 %v5306, %v5307
  %v5309 = vand.u32 %v5308, 4294901760
  %5310 = vmatpush1.msra.mxu0 %v5309
  %5311 = vmatprep.subr.mxu0 0.0
  %v5312 = vand.u32 %v40, 4294901760
  %v5313 = vsub.f32 %v40, %v5312
  %v5314 = vand.u32 %v5313, 4294901760
  %v5315 = vsub.f32 %v5313, %v5314
  %v5316 = vand.u32 %v5315, 4294901760
  %5317 = vmatpush1.msra.mxu0 %v5316
  %5318 = vmatprep.subr.mxu0 0.0
  %v5319 = vand.u32 %v41, 4294901760
  %v5320 = vsub.f32 %v41, %v5319
  %v5321 = vand.u32 %v5320, 4294901760
  %v5322 = vsub.f32 %v5320, %v5321
  %v5323 = vand.u32 %v5322, 4294901760
  %5324 = vmatpush1.msra.mxu0 %v5323
  %5325 = vmatprep.subr.mxu0 0.0
  %v5326 = vand.u32 %v42, 4294901760
  %v5327 = vsub.f32 %v42, %v5326
  %v5328 = vand.u32 %v5327, 4294901760
  %v5329 = vsub.f32 %v5327, %v5328
  %v5330 = vand.u32 %v5329, 4294901760
  %5331 = vmatpush1.msra.mxu0 %v5330
  %5332 = vmatprep.subr.mxu0 0.0
  %5333 = vmatpush1.msra.mxu0 0.0
  %5334 = vmatprep.subr.mxu0 0.0
  %5335 = vmatpush1.msra.mxu0 0.0
  %5336 = vmatprep.subr.mxu0 0.0
  %5337 = vmatpush1.msra.mxu0 0.0
  %5338 = vmatprep.subr.mxu0 0.0
  %5339 = vmatpush1.msra.mxu0 0.0
  %5340 = vmatprep.subr.mxu0 0.0
  %5341 = vmatpush1.msra.mxu0 0.0
  %5342 = vmatprep.subr.mxu0 0.0
  %5343 = vmatpush1.msra.mxu0 0.0
  %5344 = vmatprep.subr.mxu0 0.0
  %5345 = vmatpush1.msra.mxu0 0.0
  %5346 = vmatprep.subr.mxu0 0.0
  %5347 = vmatpush1.msra.mxu0 0.0
  %5348 = vmatprep.subr.mxu0 0.0
  %5349 = vmatpush1.msra.mxu0 0.0
  %5350 = vmatprep.subr.mxu0 0.0
  %5351 = vmatpush1.msra.mxu0 0.0
  %5352 = vmatprep.subr.mxu0 0.0
  %5353 = vmatpush1.msra.mxu0 0.0
  %5354 = vmatprep.subr.mxu0 0.0
  %5355 = vmatpush1.msra.mxu0 0.0
  %5356 = vmatprep.subr.mxu0 0.0
  %5357 = vmatpush1.msra.mxu0 0.0
  %5358 = vmatprep.subr.mxu0 0.0
  %5359 = vmatpush1.msra.mxu0 0.0
  %5360 = vmatprep.subr.mxu0 0.0
  %5361 = vmatpush1.msra.mxu0 0.0
  %5362 = vmatprep.subr.mxu0 0.0
  %5363 = vmatpush1.msra.mxu0 0.0
  %5364 = vmatprep.subr.mxu0 0.0
  %5365 = vmatpush1.msra.mxu0 0.0
  %5366 = vmatprep.subr.mxu0 0.0
  %5367 = vmatpush1.msra.mxu0 0.0
  %5368 = vmatprep.subr.mxu0 0.0
  %5369 = vmatpush1.msra.mxu0 0.0
  %5370 = vmatprep.subr.mxu0 0.0
  %5371 = vmatpush1.msra.mxu0 0.0
  %5372 = vmatprep.subr.mxu0 0.0
  %5373 = vmatpush1.msra.mxu0 0.0
  %5374 = vmatprep.subr.mxu0 0.0
  %5375 = vmatpush1.msra.mxu0 0.0
  %5376 = vmatprep.subr.mxu0 0.0
  %5377 = vmatpush1.msra.mxu0 0.0
  %5378 = vmatprep.subr.mxu0 0.0
  %5379 = vmatpush1.msra.mxu0 0.0
  %5380 = vmatprep.subr.mxu0 0.0
  %5381 = vmatpush1.msra.mxu0 0.0
  %5382 = vmatprep.subr.mxu0 0.0
  %5383 = vmatpush1.msra.mxu0 0.0
  %5384 = vmatprep.subr.mxu0 0.0
  %5385 = vmatpush1.msra.mxu0 0.0
  %5386 = vmatprep.subr.mxu0 0.0
  %5387 = vmatpush1.msra.mxu0 0.0
  %5388 = vmatprep.mubr.f32.mxu0 0.0
  %v5389 = vand.u32 %v5223, 4294901760
  %5390 = vmatmul.mubr.f32.gmra.mrb[0].mxu0 %v5389
  %v5391 = vpop.f32.mrb[0].mxu0
  %v5392 = vadd.f32 %v5301, %v5391
  %v5393 = vpop.f32.mrb[0].mxu0
  %5394 = vdwg.mxu0
  %5395 = vmatprep.subr.mxu0 0.0
  %v5396 = vand.u32 %v39, 4294901760
  %v5397 = vsub.f32 %v39, %v5396
  %5398 = vmatpush1.msra.mxu0 %v5397
  %5399 = vmatprep.subr.mxu0 0.0
  %v5400 = vand.u32 %v40, 4294901760
  %v5401 = vsub.f32 %v40, %v5400
  %5402 = vmatpush1.msra.mxu0 %v5401
  %5403 = vmatprep.subr.mxu0 0.0
  %v5404 = vand.u32 %v41, 4294901760
  %v5405 = vsub.f32 %v41, %v5404
  %5406 = vmatpush1.msra.mxu0 %v5405
  %5407 = vmatprep.subr.mxu0 0.0
  %v5408 = vand.u32 %v42, 4294901760
  %v5409 = vsub.f32 %v42, %v5408
  %5410 = vmatpush1.msra.mxu0 %v5409
  %5411 = vmatprep.subr.mxu0 0.0
  %5412 = vmatpush1.msra.mxu0 0.0
  %5413 = vmatprep.subr.mxu0 0.0
  %5414 = vmatpush1.msra.mxu0 0.0
  %5415 = vmatprep.subr.mxu0 0.0
  %5416 = vmatpush1.msra.mxu0 0.0
  %5417 = vmatprep.subr.mxu0 0.0
  %5418 = vmatpush1.msra.mxu0 0.0
  %5419 = vmatprep.subr.mxu0 0.0
  %5420 = vmatpush1.msra.mxu0 0.0
  %5421 = vmatprep.subr.mxu0 0.0
  %5422 = vmatpush1.msra.mxu0 0.0
  %5423 = vmatprep.subr.mxu0 0.0
  %5424 = vmatpush1.msra.mxu0 0.0
  %5425 = vmatprep.subr.mxu0 0.0
  %5426 = vmatpush1.msra.mxu0 0.0
  %5427 = vmatprep.subr.mxu0 0.0
  %5428 = vmatpush1.msra.mxu0 0.0
  %5429 = vmatprep.subr.mxu0 0.0
  %5430 = vmatpush1.msra.mxu0 0.0
  %5431 = vmatprep.subr.mxu0 0.0
  %5432 = vmatpush1.msra.mxu0 0.0
  %5433 = vmatprep.subr.mxu0 0.0
  %5434 = vmatpush1.msra.mxu0 0.0
  %5435 = vmatprep.subr.mxu0 0.0
  %5436 = vmatpush1.msra.mxu0 0.0
  %5437 = vmatprep.subr.mxu0 0.0
  %5438 = vmatpush1.msra.mxu0 0.0
  %5439 = vmatprep.subr.mxu0 0.0
  %5440 = vmatpush1.msra.mxu0 0.0
  %5441 = vmatprep.subr.mxu0 0.0
  %5442 = vmatpush1.msra.mxu0 0.0
  %5443 = vmatprep.subr.mxu0 0.0
  %5444 = vmatpush1.msra.mxu0 0.0
  %5445 = vmatprep.subr.mxu0 0.0
  %5446 = vmatpush1.msra.mxu0 0.0
  %5447 = vmatprep.subr.mxu0 0.0
  %5448 = vmatpush1.msra.mxu0 0.0
  %5449 = vmatprep.subr.mxu0 0.0
  %5450 = vmatpush1.msra.mxu0 0.0
  %5451 = vmatprep.subr.mxu0 0.0
  %5452 = vmatpush1.msra.mxu0 0.0
  %5453 = vmatprep.subr.mxu0 0.0
  %5454 = vmatpush1.msra.mxu0 0.0
  %5455 = vmatprep.subr.mxu0 0.0
  %5456 = vmatpush1.msra.mxu0 0.0
  %5457 = vmatprep.subr.mxu0 0.0
  %5458 = vmatpush1.msra.mxu0 0.0
  %5459 = vmatprep.subr.mxu0 0.0
  %5460 = vmatpush1.msra.mxu0 0.0
  %5461 = vmatprep.subr.mxu0 0.0
  %5462 = vmatpush1.msra.mxu0 0.0
  %5463 = vmatprep.subr.mxu0 0.0
  %5464 = vmatpush1.msra.mxu0 0.0
  %5465 = vmatprep.subr.mxu0 0.0
  %5466 = vmatpush1.msra.mxu0 0.0
  %5467 = vmatprep.mubr.f32.mxu0 0.0
  %v5468 = vand.u32 %v5223, 4294901760
  %v5469 = vsub.f32 %v5223, %v5468
  %5470 = vmatmul.mubr.f32.gmra.mrb[0].mxu0 %v5469
  %v5471 = vpop.f32.mrb[0].mxu0
  %v5472 = vadd.f32 %v5392, %v5471
  %v5473 = vpop.f32.mrb[0].mxu0
  %5474 = vdwg.mxu0
  %5475 = vmatprep.subr.mxu0 0.0
  %v5476 = vand.u32 %v39, 4294901760
  %5477 = vmatpush1.msra.mxu0 %v5476
  %5478 = vmatprep.subr.mxu0 0.0
  %v5479 = vand.u32 %v40, 4294901760
  %5480 = vmatpush1.msra.mxu0 %v5479
  %5481 = vmatprep.subr.mxu0 0.0
  %v5482 = vand.u32 %v41, 4294901760
  %5483 = vmatpush1.msra.mxu0 %v5482
  %5484 = vmatprep.subr.mxu0 0.0
  %v5485 = vand.u32 %v42, 4294901760
  %5486 = vmatpush1.msra.mxu0 %v5485
  %5487 = vmatprep.subr.mxu0 0.0
  %5488 = vmatpush1.msra.mxu0 0.0
  %5489 = vmatprep.subr.mxu0 0.0
  %5490 = vmatpush1.msra.mxu0 0.0
  %5491 = vmatprep.subr.mxu0 0.0
  %5492 = vmatpush1.msra.mxu0 0.0
  %5493 = vmatprep.subr.mxu0 0.0
  %5494 = vmatpush1.msra.mxu0 0.0
  %5495 = vmatprep.subr.mxu0 0.0
  %5496 = vmatpush1.msra.mxu0 0.0
  %5497 = vmatprep.subr.mxu0 0.0
  %5498 = vmatpush1.msra.mxu0 0.0
  %5499 = vmatprep.subr.mxu0 0.0
  %5500 = vmatpush1.msra.mxu0 0.0
  %5501 = vmatprep.subr.mxu0 0.0
  %5502 = vmatpush1.msra.mxu0 0.0
  %5503 = vmatprep.subr.mxu0 0.0
  %5504 = vmatpush1.msra.mxu0 0.0
  %5505 = vmatprep.subr.mxu0 0.0
  %5506 = vmatpush1.msra.mxu0 0.0
  %5507 = vmatprep.subr.mxu0 0.0
  %5508 = vmatpush1.msra.mxu0 0.0
  %5509 = vmatprep.subr.mxu0 0.0
  %5510 = vmatpush1.msra.mxu0 0.0
  %5511 = vmatprep.subr.mxu0 0.0
  %5512 = vmatpush1.msra.mxu0 0.0
  %5513 = vmatprep.subr.mxu0 0.0
  %5514 = vmatpush1.msra.mxu0 0.0
  %5515 = vmatprep.subr.mxu0 0.0
  %5516 = vmatpush1.msra.mxu0 0.0
  %5517 = vmatprep.subr.mxu0 0.0
  %5518 = vmatpush1.msra.mxu0 0.0
  %5519 = vmatprep.subr.mxu0 0.0
  %5520 = vmatpush1.msra.mxu0 0.0
  %5521 = vmatprep.subr.mxu0 0.0
  %5522 = vmatpush1.msra.mxu0 0.0
  %5523 = vmatprep.subr.mxu0 0.0
  %5524 = vmatpush1.msra.mxu0 0.0
  %5525 = vmatprep.subr.mxu0 0.0
  %5526 = vmatpush1.msra.mxu0 0.0
  %5527 = vmatprep.subr.mxu0 0.0
  %5528 = vmatpush1.msra.mxu0 0.0
  %5529 = vmatprep.subr.mxu0 0.0
  %5530 = vmatpush1.msra.mxu0 0.0
  %5531 = vmatprep.subr.mxu0 0.0
  %5532 = vmatpush1.msra.mxu0 0.0
  %5533 = vmatprep.subr.mxu0 0.0
  %5534 = vmatpush1.msra.mxu0 0.0
  %5535 = vmatprep.subr.mxu0 0.0
  %5536 = vmatpush1.msra.mxu0 0.0
  %5537 = vmatprep.subr.mxu0 0.0
  %5538 = vmatpush1.msra.mxu0 0.0
  %5539 = vmatprep.subr.mxu0 0.0
  %5540 = vmatpush1.msra.mxu0 0.0
  %5541 = vmatprep.subr.mxu0 0.0
  %5542 = vmatpush1.msra.mxu0 0.0
  %5543 = vmatprep.mubr.f32.mxu0 0.0
  %v5544 = vand.u32 %v5223, 4294901760
  %v5545 = vsub.f32 %v5223, %v5544
  %v5546 = vand.u32 %v5545, 4294901760
  %5547 = vmatmul.mubr.f32.gmra.mrb[0].mxu0 %v5546
  %v5548 = vpop.f32.mrb[0].mxu0
  %v5549 = vadd.f32 %v5472, %v5548
  %v5550 = vpop.f32.mrb[0].mxu0
  %5551 = vdwg.mxu0
  %5552 = vmatprep.subr.mxu0 0.0
  %v5553 = vand.u32 %v39, 4294901760
  %v5554 = vsub.f32 %v39, %v5553
  %v5555 = vand.u32 %v5554, 4294901760
  %5556 = vmatpush1.msra.mxu0 %v5555
  %5557 = vmatprep.subr.mxu0 0.0
  %v5558 = vand.u32 %v40, 4294901760
  %v5559 = vsub.f32 %v40, %v5558
  %v5560 = vand.u32 %v5559, 4294901760
  %5561 = vmatpush1.msra.mxu0 %v5560
  %5562 = vmatprep.subr.mxu0 0.0
  %v5563 = vand.u32 %v41, 4294901760
  %v5564 = vsub.f32 %v41, %v5563
  %v5565 = vand.u32 %v5564, 4294901760
  %5566 = vmatpush1.msra.mxu0 %v5565
  %5567 = vmatprep.subr.mxu0 0.0
  %v5568 = vand.u32 %v42, 4294901760
  %v5569 = vsub.f32 %v42, %v5568
  %v5570 = vand.u32 %v5569, 4294901760
  %5571 = vmatpush1.msra.mxu0 %v5570
  %5572 = vmatprep.subr.mxu0 0.0
  %5573 = vmatpush1.msra.mxu0 0.0
  %5574 = vmatprep.subr.mxu0 0.0
  %5575 = vmatpush1.msra.mxu0 0.0
  %5576 = vmatprep.subr.mxu0 0.0
  %5577 = vmatpush1.msra.mxu0 0.0
  %5578 = vmatprep.subr.mxu0 0.0
  %5579 = vmatpush1.msra.mxu0 0.0
  %5580 = vmatprep.subr.mxu0 0.0
  %5581 = vmatpush1.msra.mxu0 0.0
  %5582 = vmatprep.subr.mxu0 0.0
  %5583 = vmatpush1.msra.mxu0 0.0
  %5584 = vmatprep.subr.mxu0 0.0
  %5585 = vmatpush1.msra.mxu0 0.0
  %5586 = vmatprep.subr.mxu0 0.0
  %5587 = vmatpush1.msra.mxu0 0.0
  %5588 = vmatprep.subr.mxu0 0.0
  %5589 = vmatpush1.msra.mxu0 0.0
  %5590 = vmatprep.subr.mxu0 0.0
  %5591 = vmatpush1.msra.mxu0 0.0
  %5592 = vmatprep.subr.mxu0 0.0
  %5593 = vmatpush1.msra.mxu0 0.0
  %5594 = vmatprep.subr.mxu0 0.0
  %5595 = vmatpush1.msra.mxu0 0.0
  %5596 = vmatprep.subr.mxu0 0.0
  %5597 = vmatpush1.msra.mxu0 0.0
  %5598 = vmatprep.subr.mxu0 0.0
  %5599 = vmatpush1.msra.mxu0 0.0
  %5600 = vmatprep.subr.mxu0 0.0
  %5601 = vmatpush1.msra.mxu0 0.0
  %5602 = vmatprep.subr.mxu0 0.0
  %5603 = vmatpush1.msra.mxu0 0.0
  %5604 = vmatprep.subr.mxu0 0.0
  %5605 = vmatpush1.msra.mxu0 0.0
  %5606 = vmatprep.subr.mxu0 0.0
  %5607 = vmatpush1.msra.mxu0 0.0
  %5608 = vmatprep.subr.mxu0 0.0
  %5609 = vmatpush1.msra.mxu0 0.0
  %5610 = vmatprep.subr.mxu0 0.0
  %5611 = vmatpush1.msra.mxu0 0.0
  %5612 = vmatprep.subr.mxu0 0.0
  %5613 = vmatpush1.msra.mxu0 0.0
  %5614 = vmatprep.subr.mxu0 0.0
  %5615 = vmatpush1.msra.mxu0 0.0
  %5616 = vmatprep.subr.mxu0 0.0
  %5617 = vmatpush1.msra.mxu0 0.0
  %5618 = vmatprep.subr.mxu0 0.0
  %5619 = vmatpush1.msra.mxu0 0.0
  %5620 = vmatprep.subr.mxu0 0.0
  %5621 = vmatpush1.msra.mxu0 0.0
  %5622 = vmatprep.subr.mxu0 0.0
  %5623 = vmatpush1.msra.mxu0 0.0
  %5624 = vmatprep.subr.mxu0 0.0
  %5625 = vmatpush1.msra.mxu0 0.0
  %5626 = vmatprep.subr.mxu0 0.0
  %5627 = vmatpush1.msra.mxu0 0.0
  %5628 = vmatprep.mubr.f32.mxu0 0.0
  %v5629 = vand.u32 %v5223, 4294901760
  %5630 = vmatmul.mubr.f32.gmra.mrb[0].mxu0 %v5629
  %v5631 = vpop.f32.mrb[0].mxu0
  %v5632 = vadd.f32 %v5549, %v5631
  %v5633 = vpop.f32.mrb[0].mxu0
  %5634 = vdwg.mxu0
  %5635 = vmatprep.subr.mxu0 0.0
  %v5636 = vand.u32 %v39, 4294901760
  %5637 = vmatpush1.msra.mxu0 %v5636
  %5638 = vmatprep.subr.mxu0 0.0
  %v5639 = vand.u32 %v40, 4294901760
  %5640 = vmatpush1.msra.mxu0 %v5639
  %5641 = vmatprep.subr.mxu0 0.0
  %v5642 = vand.u32 %v41, 4294901760
  %5643 = vmatpush1.msra.mxu0 %v5642
  %5644 = vmatprep.subr.mxu0 0.0
  %v5645 = vand.u32 %v42, 4294901760
  %5646 = vmatpush1.msra.mxu0 %v5645
  %5647 = vmatprep.subr.mxu0 0.0
  %5648 = vmatpush1.msra.mxu0 0.0
  %5649 = vmatprep.subr.mxu0 0.0
  %5650 = vmatpush1.msra.mxu0 0.0
  %5651 = vmatprep.subr.mxu0 0.0
  %5652 = vmatpush1.msra.mxu0 0.0
  %5653 = vmatprep.subr.mxu0 0.0
  %5654 = vmatpush1.msra.mxu0 0.0
  %5655 = vmatprep.subr.mxu0 0.0
  %5656 = vmatpush1.msra.mxu0 0.0
  %5657 = vmatprep.subr.mxu0 0.0
  %5658 = vmatpush1.msra.mxu0 0.0
  %5659 = vmatprep.subr.mxu0 0.0
  %5660 = vmatpush1.msra.mxu0 0.0
  %5661 = vmatprep.subr.mxu0 0.0
  %5662 = vmatpush1.msra.mxu0 0.0
  %5663 = vmatprep.subr.mxu0 0.0
  %5664 = vmatpush1.msra.mxu0 0.0
  %5665 = vmatprep.subr.mxu0 0.0
  %5666 = vmatpush1.msra.mxu0 0.0
  %5667 = vmatprep.subr.mxu0 0.0
  %5668 = vmatpush1.msra.mxu0 0.0
  %5669 = vmatprep.subr.mxu0 0.0
  %5670 = vmatpush1.msra.mxu0 0.0
  %5671 = vmatprep.subr.mxu0 0.0
  %5672 = vmatpush1.msra.mxu0 0.0
  %5673 = vmatprep.subr.mxu0 0.0
  %5674 = vmatpush1.msra.mxu0 0.0
  %5675 = vmatprep.subr.mxu0 0.0
  %5676 = vmatpush1.msra.mxu0 0.0
  %5677 = vmatprep.subr.mxu0 0.0
  %5678 = vmatpush1.msra.mxu0 0.0
  %5679 = vmatprep.subr.mxu0 0.0
  %5680 = vmatpush1.msra.mxu0 0.0
  %5681 = vmatprep.subr.mxu0 0.0
  %5682 = vmatpush1.msra.mxu0 0.0
  %5683 = vmatprep.subr.mxu0 0.0
  %5684 = vmatpush1.msra.mxu0 0.0
  %5685 = vmatprep.subr.mxu0 0.0
  %5686 = vmatpush1.msra.mxu0 0.0
  %5687 = vmatprep.subr.mxu0 0.0
  %5688 = vmatpush1.msra.mxu0 0.0
  %5689 = vmatprep.subr.mxu0 0.0
  %5690 = vmatpush1.msra.mxu0 0.0
  %5691 = vmatprep.subr.mxu0 0.0
  %5692 = vmatpush1.msra.mxu0 0.0
  %5693 = vmatprep.subr.mxu0 0.0
  %5694 = vmatpush1.msra.mxu0 0.0
  %5695 = vmatprep.subr.mxu0 0.0
  %5696 = vmatpush1.msra.mxu0 0.0
  %5697 = vmatprep.subr.mxu0 0.0
  %5698 = vmatpush1.msra.mxu0 0.0
  %5699 = vmatprep.subr.mxu0 0.0
  %5700 = vmatpush1.msra.mxu0 0.0
  %5701 = vmatprep.subr.mxu0 0.0
  %5702 = vmatpush1.msra.mxu0 0.0
  %5703 = vmatprep.mubr.f32.mxu0 0.0
  %v5704 = vand.u32 %v5223, 4294901760
  %5705 = vmatmul.mubr.f32.gmra.mrb[0].mxu0 %v5704
  %v5706 = vpop.f32.mrb[0].mxu0
  %v5707 = vadd.f32 %v5632, %v5706
  %v5708 = vpop.f32.mrb[0].mxu0
  %5709 = vdwg.mxu0
  %v5710 = vxor.u32 %v5707, 2147483648
  %v5711 = vmul.f32 %v5710, 1.442695
  %v5712 = vpow.pop %v5711
  %v5713 = vadd.f32 %v5712, 1.0
  %v5714 = vrcp.pop %v5713
  %v5715 = vmul.f32 1.0, %v5714
  %v5716 = vtanh.pop %v5707
  %v5717 = vmul.f32 %v5715, %v5210
  %5719 = vrot.lane.b32.xlu0 %v5716, 32
  %v5720 = vpop.permute.xlu0 %5719
  %v5722 = vmul.f32 %v5715, %v5720
  %5724 = vrot.lane.b32.xlu0 %v5722, 32
  %v5725 = vpop.permute.xlu0 %5724
  %v5727 = vadd.f32 %v5717, %v5725
  %v5728 = vtanh.pop %v5727
  %5730 = vrot.lane.b32.xlu0 %v5728, 32
  %v5731 = vpop.permute.xlu0 %5730
  %v5733 = vmul.f32 %v5715, %v5731
  %5735 = vrot.lane.b32.xlu0 %v5733, 64
  %v5736 = vpop.permute.xlu0 %5735
  %s5738 = scalar_lea.vmem [#allocation2], 4
  %5739 = vst.msk [vmem:[%s5738] sm:$0x3] %vm4704, %v5736
  %v5740 = vsel %vm51, %v5736, 0
  %5742 = vmatprep.subr.mxu0 0.0
  %v5743 = vand.u32 %v39, 4294901760
  %5744 = vmatpush1.msra.mxu0 %v5743
  %5745 = vmatprep.subr.mxu0 0.0
  %v5746 = vand.u32 %v40, 4294901760
  %5747 = vmatpush1.msra.mxu0 %v5746
  %5748 = vmatprep.subr.mxu0 0.0
  %v5749 = vand.u32 %v41, 4294901760
  %5750 = vmatpush1.msra.mxu0 %v5749
  %5751 = vmatprep.subr.mxu0 0.0
  %v5752 = vand.u32 %v42, 4294901760
  %5753 = vmatpush1.msra.mxu0 %v5752
  %5754 = vmatprep.subr.mxu0 0.0
  %5755 = vmatpush1.msra.mxu0 0.0
  %5756 = vmatprep.subr.mxu0 0.0
  %5757 = vmatpush1.msra.mxu0 0.0
  %5758 = vmatprep.subr.mxu0 0.0
  %5759 = vmatpush1.msra.mxu0 0.0
  %5760 = vmatprep.subr.mxu0 0.0
  %5761 = vmatpush1.msra.mxu0 0.0
  %5762 = vmatprep.subr.mxu0 0.0
  %5763 = vmatpush1.msra.mxu0 0.0
  %5764 = vmatprep.subr.mxu0 0.0
  %5765 = vmatpush1.msra.mxu0 0.0
  %5766 = vmatprep.subr.mxu0 0.0
  %5767 = vmatpush1.msra.mxu0 0.0
  %5768 = vmatprep.subr.mxu0 0.0
  %5769 = vmatpush1.msra.mxu0 0.0
  %5770 = vmatprep.subr.mxu0 0.0
  %5771 = vmatpush1.msra.mxu0 0.0
  %5772 = vmatprep.subr.mxu0 0.0
  %5773 = vmatpush1.msra.mxu0 0.0
  %5774 = vmatprep.subr.mxu0 0.0
  %5775 = vmatpush1.msra.mxu0 0.0
  %5776 = vmatprep.subr.mxu0 0.0
  %5777 = vmatpush1.msra.mxu0 0.0
  %5778 = vmatprep.subr.mxu0 0.0
  %5779 = vmatpush1.msra.mxu0 0.0
  %5780 = vmatprep.subr.mxu0 0.0
  %5781 = vmatpush1.msra.mxu0 0.0
  %5782 = vmatprep.subr.mxu0 0.0
  %5783 = vmatpush1.msra.mxu0 0.0
  %5784 = vmatprep.subr.mxu0 0.0
  %5785 = vmatpush1.msra.mxu0 0.0
  %5786 = vmatprep.subr.mxu0 0.0
  %5787 = vmatpush1.msra.mxu0 0.0
  %5788 = vmatprep.subr.mxu0 0.0
  %5789 = vmatpush1.msra.mxu0 0.0
  %5790 = vmatprep.subr.mxu0 0.0
  %5791 = vmatpush1.msra.mxu0 0.0
  %5792 = vmatprep.subr.mxu0 0.0
  %5793 = vmatpush1.msra.mxu0 0.0
  %5794 = vmatprep.subr.mxu0 0.0
  %5795 = vmatpush1.msra.mxu0 0.0
  %5796 = vmatprep.subr.mxu0 0.0
  %5797 = vmatpush1.msra.mxu0 0.0
  %5798 = vmatprep.subr.mxu0 0.0
  %5799 = vmatpush1.msra.mxu0 0.0
  %5800 = vmatprep.subr.mxu0 0.0
  %5801 = vmatpush1.msra.mxu0 0.0
  %5802 = vmatprep.subr.mxu0 0.0
  %5803 = vmatpush1.msra.mxu0 0.0
  %5804 = vmatprep.subr.mxu0 0.0
  %5805 = vmatpush1.msra.mxu0 0.0
  %5806 = vmatprep.subr.mxu0 0.0
  %5807 = vmatpush1.msra.mxu0 0.0
  %5808 = vmatprep.subr.mxu0 0.0
  %5809 = vmatpush1.msra.mxu0 0.0
  %5810 = vmatprep.mubr.f32.mxu0 0.0
  %v5811 = vand.u32 %v5740, 4294901760
  %v5812 = vsub.f32 %v5740, %v5811
  %v5813 = vand.u32 %v5812, 4294901760
  %v5814 = vsub.f32 %v5812, %v5813
  %v5815 = vand.u32 %v5814, 4294901760
  %5816 = vmatmul.mubr.f32.gmra.mrb[0].mxu0 %v5815
  %v5817 = vpop.f32.mrb[0].mxu0
  %v5818 = vadd.f32 %v48, %v5817
  %v5819 = vpop.f32.mrb[0].mxu0
  %5820 = vdwg.mxu0
  %5821 = vmatprep.subr.mxu0 0.0
  %v5822 = vand.u32 %v39, 4294901760
  %v5823 = vsub.f32 %v39, %v5822
  %v5824 = vand.u32 %v5823, 4294901760
  %v5825 = vsub.f32 %v5823, %v5824
  %v5826 = vand.u32 %v5825, 4294901760
  %5827 = vmatpush1.msra.mxu0 %v5826
  %5828 = vmatprep.subr.mxu0 0.0
  %v5829 = vand.u32 %v40, 4294901760
  %v5830 = vsub.f32 %v40, %v5829
  %v5831 = vand.u32 %v5830, 4294901760
  %v5832 = vsub.f32 %v5830, %v5831
  %v5833 = vand.u32 %v5832, 4294901760
  %5834 = vmatpush1.msra.mxu0 %v5833
  %5835 = vmatprep.subr.mxu0 0.0
  %v5836 = vand.u32 %v41, 4294901760
  %v5837 = vsub.f32 %v41, %v5836
  %v5838 = vand.u32 %v5837, 4294901760
  %v5839 = vsub.f32 %v5837, %v5838
  %v5840 = vand.u32 %v5839, 4294901760
  %5841 = vmatpush1.msra.mxu0 %v5840
  %5842 = vmatprep.subr.mxu0 0.0
  %v5843 = vand.u32 %v42, 4294901760
  %v5844 = vsub.f32 %v42, %v5843
  %v5845 = vand.u32 %v5844, 4294901760
  %v5846 = vsub.f32 %v5844, %v5845
  %v5847 = vand.u32 %v5846, 4294901760
  %5848 = vmatpush1.msra.mxu0 %v5847
  %5849 = vmatprep.subr.mxu0 0.0
  %5850 = vmatpush1.msra.mxu0 0.0
  %5851 = vmatprep.subr.mxu0 0.0
  %5852 = vmatpush1.msra.mxu0 0.0
  %5853 = vmatprep.subr.mxu0 0.0
  %5854 = vmatpush1.msra.mxu0 0.0
  %5855 = vmatprep.subr.mxu0 0.0
  %5856 = vmatpush1.msra.mxu0 0.0
  %5857 = vmatprep.subr.mxu0 0.0
  %5858 = vmatpush1.msra.mxu0 0.0
  %5859 = vmatprep.subr.mxu0 0.0
  %5860 = vmatpush1.msra.mxu0 0.0
  %5861 = vmatprep.subr.mxu0 0.0
  %5862 = vmatpush1.msra.mxu0 0.0
  %5863 = vmatprep.subr.mxu0 0.0
  %5864 = vmatpush1.msra.mxu0 0.0
  %5865 = vmatprep.subr.mxu0 0.0
  %5866 = vmatpush1.msra.mxu0 0.0
  %5867 = vmatprep.subr.mxu0 0.0
  %5868 = vmatpush1.msra.mxu0 0.0
  %5869 = vmatprep.subr.mxu0 0.0
  %5870 = vmatpush1.msra.mxu0 0.0
  %5871 = vmatprep.subr.mxu0 0.0
  %5872 = vmatpush1.msra.mxu0 0.0
  %5873 = vmatprep.subr.mxu0 0.0
  %5874 = vmatpush1.msra.mxu0 0.0
  %5875 = vmatprep.subr.mxu0 0.0
  %5876 = vmatpush1.msra.mxu0 0.0
  %5877 = vmatprep.subr.mxu0 0.0
  %5878 = vmatpush1.msra.mxu0 0.0
  %5879 = vmatprep.subr.mxu0 0.0
  %5880 = vmatpush1.msra.mxu0 0.0
  %5881 = vmatprep.subr.mxu0 0.0
  %5882 = vmatpush1.msra.mxu0 0.0
  %5883 = vmatprep.subr.mxu0 0.0
  %5884 = vmatpush1.msra.mxu0 0.0
  %5885 = vmatprep.subr.mxu0 0.0
  %5886 = vmatpush1.msra.mxu0 0.0
  %5887 = vmatprep.subr.mxu0 0.0
  %5888 = vmatpush1.msra.mxu0 0.0
  %5889 = vmatprep.subr.mxu0 0.0
  %5890 = vmatpush1.msra.mxu0 0.0
  %5891 = vmatprep.subr.mxu0 0.0
  %5892 = vmatpush1.msra.mxu0 0.0
  %5893 = vmatprep.subr.mxu0 0.0
  %5894 = vmatpush1.msra.mxu0 0.0
  %5895 = vmatprep.subr.mxu0 0.0
  %5896 = vmatpush1.msra.mxu0 0.0
  %5897 = vmatprep.subr.mxu0 0.0
  %5898 = vmatpush1.msra.mxu0 0.0
  %5899 = vmatprep.subr.mxu0 0.0
  %5900 = vmatpush1.msra.mxu0 0.0
  %5901 = vmatprep.subr.mxu0 0.0
  %5902 = vmatpush1.msra.mxu0 0.0
  %5903 = vmatprep.subr.mxu0 0.0
  %5904 = vmatpush1.msra.mxu0 0.0
  %5905 = vmatprep.mubr.f32.mxu0 0.0
  %v5906 = vand.u32 %v5740, 4294901760
  %5907 = vmatmul.mubr.f32.gmra.mrb[0].mxu0 %v5906
  %v5908 = vpop.f32.mrb[0].mxu0
  %v5909 = vadd.f32 %v5818, %v5908
  %v5910 = vpop.f32.mrb[0].mxu0
  %5911 = vdwg.mxu0
  %5912 = vmatprep.subr.mxu0 0.0
  %v5913 = vand.u32 %v39, 4294901760
  %v5914 = vsub.f32 %v39, %v5913
  %5915 = vmatpush1.msra.mxu0 %v5914
  %5916 = vmatprep.subr.mxu0 0.0
  %v5917 = vand.u32 %v40, 4294901760
  %v5918 = vsub.f32 %v40, %v5917
  %5919 = vmatpush1.msra.mxu0 %v5918
  %5920 = vmatprep.subr.mxu0 0.0
  %v5921 = vand.u32 %v41, 4294901760
  %v5922 = vsub.f32 %v41, %v5921
  %5923 = vmatpush1.msra.mxu0 %v5922
  %5924 = vmatprep.subr.mxu0 0.0
  %v5925 = vand.u32 %v42, 4294901760
  %v5926 = vsub.f32 %v42, %v5925
  %5927 = vmatpush1.msra.mxu0 %v5926
  %5928 = vmatprep.subr.mxu0 0.0
  %5929 = vmatpush1.msra.mxu0 0.0
  %5930 = vmatprep.subr.mxu0 0.0
  %5931 = vmatpush1.msra.mxu0 0.0
  %5932 = vmatprep.subr.mxu0 0.0
  %5933 = vmatpush1.msra.mxu0 0.0
  %5934 = vmatprep.subr.mxu0 0.0
  %5935 = vmatpush1.msra.mxu0 0.0
  %5936 = vmatprep.subr.mxu0 0.0
  %5937 = vmatpush1.msra.mxu0 0.0
  %5938 = vmatprep.subr.mxu0 0.0
  %5939 = vmatpush1.msra.mxu0 0.0
  %5940 = vmatprep.subr.mxu0 0.0
  %5941 = vmatpush1.msra.mxu0 0.0
  %5942 = vmatprep.subr.mxu0 0.0
  %5943 = vmatpush1.msra.mxu0 0.0
  %5944 = vmatprep.subr.mxu0 0.0
  %5945 = vmatpush1.msra.mxu0 0.0
  %5946 = vmatprep.subr.mxu0 0.0
  %5947 = vmatpush1.msra.mxu0 0.0
  %5948 = vmatprep.subr.mxu0 0.0
  %5949 = vmatpush1.msra.mxu0 0.0
  %5950 = vmatprep.subr.mxu0 0.0
  %5951 = vmatpush1.msra.mxu0 0.0
  %5952 = vmatprep.subr.mxu0 0.0
  %5953 = vmatpush1.msra.mxu0 0.0
  %5954 = vmatprep.subr.mxu0 0.0
  %5955 = vmatpush1.msra.mxu0 0.0
  %5956 = vmatprep.subr.mxu0 0.0
  %5957 = vmatpush1.msra.mxu0 0.0
  %5958 = vmatprep.subr.mxu0 0.0
  %5959 = vmatpush1.msra.mxu0 0.0
  %5960 = vmatprep.subr.mxu0 0.0
  %5961 = vmatpush1.msra.mxu0 0.0
  %5962 = vmatprep.subr.mxu0 0.0
  %5963 = vmatpush1.msra.mxu0 0.0
  %5964 = vmatprep.subr.mxu0 0.0
  %5965 = vmatpush1.msra.mxu0 0.0
  %5966 = vmatprep.subr.mxu0 0.0
  %5967 = vmatpush1.msra.mxu0 0.0
  %5968 = vmatprep.subr.mxu0 0.0
  %5969 = vmatpush1.msra.mxu0 0.0
  %5970 = vmatprep.subr.mxu0 0.0
  %5971 = vmatpush1.msra.mxu0 0.0
  %5972 = vmatprep.subr.mxu0 0.0
  %5973 = vmatpush1.msra.mxu0 0.0
  %5974 = vmatprep.subr.mxu0 0.0
  %5975 = vmatpush1.msra.mxu0 0.0
  %5976 = vmatprep.subr.mxu0 0.0
  %5977 = vmatpush1.msra.mxu0 0.0
  %5978 = vmatprep.subr.mxu0 0.0
  %5979 = vmatpush1.msra.mxu0 0.0
  %5980 = vmatprep.subr.mxu0 0.0
  %5981 = vmatpush1.msra.mxu0 0.0
  %5982 = vmatprep.subr.mxu0 0.0
  %5983 = vmatpush1.msra.mxu0 0.0
  %5984 = vmatprep.mubr.f32.mxu0 0.0
  %v5985 = vand.u32 %v5740, 4294901760
  %v5986 = vsub.f32 %v5740, %v5985
  %5987 = vmatmul.mubr.f32.gmra.mrb[0].mxu0 %v5986
  %v5988 = vpop.f32.mrb[0].mxu0
  %v5989 = vadd.f32 %v5909, %v5988
  %v5990 = vpop.f32.mrb[0].mxu0
  %5991 = vdwg.mxu0
  %5992 = vmatprep.subr.mxu0 0.0
  %v5993 = vand.u32 %v39, 4294901760
  %5994 = vmatpush1.msra.mxu0 %v5993
  %5995 = vmatprep.subr.mxu0 0.0
  %v5996 = vand.u32 %v40, 4294901760
  %5997 = vmatpush1.msra.mxu0 %v5996
  %5998 = vmatprep.subr.mxu0 0.0
  %v5999 = vand.u32 %v41, 4294901760
  %6000 = vmatpush1.msra.mxu0 %v5999
  %6001 = vmatprep.subr.mxu0 0.0
  %v6002 = vand.u32 %v42, 4294901760
  %6003 = vmatpush1.msra.mxu0 %v6002
  %6004 = vmatprep.subr.mxu0 0.0
  %6005 = vmatpush1.msra.mxu0 0.0
  %6006 = vmatprep.subr.mxu0 0.0
  %6007 = vmatpush1.msra.mxu0 0.0
  %6008 = vmatprep.subr.mxu0 0.0
  %6009 = vmatpush1.msra.mxu0 0.0
  %6010 = vmatprep.subr.mxu0 0.0
  %6011 = vmatpush1.msra.mxu0 0.0
  %6012 = vmatprep.subr.mxu0 0.0
  %6013 = vmatpush1.msra.mxu0 0.0
  %6014 = vmatprep.subr.mxu0 0.0
  %6015 = vmatpush1.msra.mxu0 0.0
  %6016 = vmatprep.subr.mxu0 0.0
  %6017 = vmatpush1.msra.mxu0 0.0
  %6018 = vmatprep.subr.mxu0 0.0
  %6019 = vmatpush1.msra.mxu0 0.0
  %6020 = vmatprep.subr.mxu0 0.0
  %6021 = vmatpush1.msra.mxu0 0.0
  %6022 = vmatprep.subr.mxu0 0.0
  %6023 = vmatpush1.msra.mxu0 0.0
  %6024 = vmatprep.subr.mxu0 0.0
  %6025 = vmatpush1.msra.mxu0 0.0
  %6026 = vmatprep.subr.mxu0 0.0
  %6027 = vmatpush1.msra.mxu0 0.0
  %6028 = vmatprep.subr.mxu0 0.0
  %6029 = vmatpush1.msra.mxu0 0.0
  %6030 = vmatprep.subr.mxu0 0.0
  %6031 = vmatpush1.msra.mxu0 0.0
  %6032 = vmatprep.subr.mxu0 0.0
  %6033 = vmatpush1.msra.mxu0 0.0
  %6034 = vmatprep.subr.mxu0 0.0
  %6035 = vmatpush1.msra.mxu0 0.0
  %6036 = vmatprep.subr.mxu0 0.0
  %6037 = vmatpush1.msra.mxu0 0.0
  %6038 = vmatprep.subr.mxu0 0.0
  %6039 = vmatpush1.msra.mxu0 0.0
  %6040 = vmatprep.subr.mxu0 0.0
  %6041 = vmatpush1.msra.mxu0 0.0
  %6042 = vmatprep.subr.mxu0 0.0
  %6043 = vmatpush1.msra.mxu0 0.0
  %6044 = vmatprep.subr.mxu0 0.0
  %6045 = vmatpush1.msra.mxu0 0.0
  %6046 = vmatprep.subr.mxu0 0.0
  %6047 = vmatpush1.msra.mxu0 0.0
  %6048 = vmatprep.subr.mxu0 0.0
  %6049 = vmatpush1.msra.mxu0 0.0
  %6050 = vmatprep.subr.mxu0 0.0
  %6051 = vmatpush1.msra.mxu0 0.0
  %6052 = vmatprep.subr.mxu0 0.0
  %6053 = vmatpush1.msra.mxu0 0.0
  %6054 = vmatprep.subr.mxu0 0.0
  %6055 = vmatpush1.msra.mxu0 0.0
  %6056 = vmatprep.subr.mxu0 0.0
  %6057 = vmatpush1.msra.mxu0 0.0
  %6058 = vmatprep.subr.mxu0 0.0
  %6059 = vmatpush1.msra.mxu0 0.0
  %6060 = vmatprep.mubr.f32.mxu0 0.0
  %v6061 = vand.u32 %v5740, 4294901760
  %v6062 = vsub.f32 %v5740, %v6061
  %v6063 = vand.u32 %v6062, 4294901760
  %6064 = vmatmul.mubr.f32.gmra.mrb[0].mxu0 %v6063
  %v6065 = vpop.f32.mrb[0].mxu0
  %v6066 = vadd.f32 %v5989, %v6065
  %v6067 = vpop.f32.mrb[0].mxu0
  %6068 = vdwg.mxu0
  %6069 = vmatprep.subr.mxu0 0.0
  %v6070 = vand.u32 %v39, 4294901760
  %v6071 = vsub.f32 %v39, %v6070
  %v6072 = vand.u32 %v6071, 4294901760
  %6073 = vmatpush1.msra.mxu0 %v6072
  %6074 = vmatprep.subr.mxu0 0.0
  %v6075 = vand.u32 %v40, 4294901760
  %v6076 = vsub.f32 %v40, %v6075
  %v6077 = vand.u32 %v6076, 4294901760
  %6078 = vmatpush1.msra.mxu0 %v6077
  %6079 = vmatprep.subr.mxu0 0.0
  %v6080 = vand.u32 %v41, 4294901760
  %v6081 = vsub.f32 %v41, %v6080
  %v6082 = vand.u32 %v6081, 4294901760
  %6083 = vmatpush1.msra.mxu0 %v6082
  %6084 = vmatprep.subr.mxu0 0.0
  %v6085 = vand.u32 %v42, 4294901760
  %v6086 = vsub.f32 %v42, %v6085
  %v6087 = vand.u32 %v6086, 4294901760
  %6088 = vmatpush1.msra.mxu0 %v6087
  %6089 = vmatprep.subr.mxu0 0.0
  %6090 = vmatpush1.msra.mxu0 0.0
  %6091 = vmatprep.subr.mxu0 0.0
  %6092 = vmatpush1.msra.mxu0 0.0
  %6093 = vmatprep.subr.mxu0 0.0
  %6094 = vmatpush1.msra.mxu0 0.0
  %6095 = vmatprep.subr.mxu0 0.0
  %6096 = vmatpush1.msra.mxu0 0.0
  %6097 = vmatprep.subr.mxu0 0.0
  %6098 = vmatpush1.msra.mxu0 0.0
  %6099 = vmatprep.subr.mxu0 0.0
  %6100 = vmatpush1.msra.mxu0 0.0
  %6101 = vmatprep.subr.mxu0 0.0
  %6102 = vmatpush1.msra.mxu0 0.0
  %6103 = vmatprep.subr.mxu0 0.0
  %6104 = vmatpush1.msra.mxu0 0.0
  %6105 = vmatprep.subr.mxu0 0.0
  %6106 = vmatpush1.msra.mxu0 0.0
  %6107 = vmatprep.subr.mxu0 0.0
  %6108 = vmatpush1.msra.mxu0 0.0
  %6109 = vmatprep.subr.mxu0 0.0
  %6110 = vmatpush1.msra.mxu0 0.0
  %6111 = vmatprep.subr.mxu0 0.0
  %6112 = vmatpush1.msra.mxu0 0.0
  %6113 = vmatprep.subr.mxu0 0.0
  %6114 = vmatpush1.msra.mxu0 0.0
  %6115 = vmatprep.subr.mxu0 0.0
  %6116 = vmatpush1.msra.mxu0 0.0
  %6117 = vmatprep.subr.mxu0 0.0
  %6118 = vmatpush1.msra.mxu0 0.0
  %6119 = vmatprep.subr.mxu0 0.0
  %6120 = vmatpush1.msra.mxu0 0.0
  %6121 = vmatprep.subr.mxu0 0.0
  %6122 = vmatpush1.msra.mxu0 0.0
  %6123 = vmatprep.subr.mxu0 0.0
  %6124 = vmatpush1.msra.mxu0 0.0
  %6125 = vmatprep.subr.mxu0 0.0
  %6126 = vmatpush1.msra.mxu0 0.0
  %6127 = vmatprep.subr.mxu0 0.0
  %6128 = vmatpush1.msra.mxu0 0.0
  %6129 = vmatprep.subr.mxu0 0.0
  %6130 = vmatpush1.msra.mxu0 0.0
  %6131 = vmatprep.subr.mxu0 0.0
  %6132 = vmatpush1.msra.mxu0 0.0
  %6133 = vmatprep.subr.mxu0 0.0
  %6134 = vmatpush1.msra.mxu0 0.0
  %6135 = vmatprep.subr.mxu0 0.0
  %6136 = vmatpush1.msra.mxu0 0.0
  %6137 = vmatprep.subr.mxu0 0.0
  %6138 = vmatpush1.msra.mxu0 0.0
  %6139 = vmatprep.subr.mxu0 0.0
  %6140 = vmatpush1.msra.mxu0 0.0
  %6141 = vmatprep.subr.mxu0 0.0
  %6142 = vmatpush1.msra.mxu0 0.0
  %6143 = vmatprep.subr.mxu0 0.0
  %6144 = vmatpush1.msra.mxu0 0.0
  %6145 = vmatprep.mubr.f32.mxu0 0.0
  %v6146 = vand.u32 %v5740, 4294901760
  %6147 = vmatmul.mubr.f32.gmra.mrb[0].mxu0 %v6146
  %v6148 = vpop.f32.mrb[0].mxu0
  %v6149 = vadd.f32 %v6066, %v6148
  %v6150 = vpop.f32.mrb[0].mxu0
  %6151 = vdwg.mxu0
  %6152 = vmatprep.subr.mxu0 0.0
  %v6153 = vand.u32 %v39, 4294901760
  %6154 = vmatpush1.msra.mxu0 %v6153
  %6155 = vmatprep.subr.mxu0 0.0
  %v6156 = vand.u32 %v40, 4294901760
  %6157 = vmatpush1.msra.mxu0 %v6156
  %6158 = vmatprep.subr.mxu0 0.0
  %v6159 = vand.u32 %v41, 4294901760
  %6160 = vmatpush1.msra.mxu0 %v6159
  %6161 = vmatprep.subr.mxu0 0.0
  %v6162 = vand.u32 %v42, 4294901760
  %6163 = vmatpush1.msra.mxu0 %v6162
  %6164 = vmatprep.subr.mxu0 0.0
  %6165 = vmatpush1.msra.mxu0 0.0
  %6166 = vmatprep.subr.mxu0 0.0
  %6167 = vmatpush1.msra.mxu0 0.0
  %6168 = vmatprep.subr.mxu0 0.0
  %6169 = vmatpush1.msra.mxu0 0.0
  %6170 = vmatprep.subr.mxu0 0.0
  %6171 = vmatpush1.msra.mxu0 0.0
  %6172 = vmatprep.subr.mxu0 0.0
  %6173 = vmatpush1.msra.mxu0 0.0
  %6174 = vmatprep.subr.mxu0 0.0
  %6175 = vmatpush1.msra.mxu0 0.0
  %6176 = vmatprep.subr.mxu0 0.0
  %6177 = vmatpush1.msra.mxu0 0.0
  %6178 = vmatprep.subr.mxu0 0.0
  %6179 = vmatpush1.msra.mxu0 0.0
  %6180 = vmatprep.subr.mxu0 0.0
  %6181 = vmatpush1.msra.mxu0 0.0
  %6182 = vmatprep.subr.mxu0 0.0
  %6183 = vmatpush1.msra.mxu0 0.0
  %6184 = vmatprep.subr.mxu0 0.0
  %6185 = vmatpush1.msra.mxu0 0.0
  %6186 = vmatprep.subr.mxu0 0.0
  %6187 = vmatpush1.msra.mxu0 0.0
  %6188 = vmatprep.subr.mxu0 0.0
  %6189 = vmatpush1.msra.mxu0 0.0
  %6190 = vmatprep.subr.mxu0 0.0
  %6191 = vmatpush1.msra.mxu0 0.0
  %6192 = vmatprep.subr.mxu0 0.0
  %6193 = vmatpush1.msra.mxu0 0.0
  %6194 = vmatprep.subr.mxu0 0.0
  %6195 = vmatpush1.msra.mxu0 0.0
  %6196 = vmatprep.subr.mxu0 0.0
  %6197 = vmatpush1.msra.mxu0 0.0
  %6198 = vmatprep.subr.mxu0 0.0
  %6199 = vmatpush1.msra.mxu0 0.0
  %6200 = vmatprep.subr.mxu0 0.0
  %6201 = vmatpush1.msra.mxu0 0.0
  %6202 = vmatprep.subr.mxu0 0.0
  %6203 = vmatpush1.msra.mxu0 0.0
  %6204 = vmatprep.subr.mxu0 0.0
  %6205 = vmatpush1.msra.mxu0 0.0
  %6206 = vmatprep.subr.mxu0 0.0
  %6207 = vmatpush1.msra.mxu0 0.0
  %6208 = vmatprep.subr.mxu0 0.0
  %6209 = vmatpush1.msra.mxu0 0.0
  %6210 = vmatprep.subr.mxu0 0.0
  %6211 = vmatpush1.msra.mxu0 0.0
  %6212 = vmatprep.subr.mxu0 0.0
  %6213 = vmatpush1.msra.mxu0 0.0
  %6214 = vmatprep.subr.mxu0 0.0
  %6215 = vmatpush1.msra.mxu0 0.0
  %6216 = vmatprep.subr.mxu0 0.0
  %6217 = vmatpush1.msra.mxu0 0.0
  %6218 = vmatprep.subr.mxu0 0.0
  %6219 = vmatpush1.msra.mxu0 0.0
  %6220 = vmatprep.mubr.f32.mxu0 0.0
  %v6221 = vand.u32 %v5740, 4294901760
  %6222 = vmatmul.mubr.f32.gmra.mrb[0].mxu0 %v6221
  %v6223 = vpop.f32.mrb[0].mxu0
  %v6224 = vadd.f32 %v6149, %v6223
  %v6225 = vpop.f32.mrb[0].mxu0
  %6226 = vdwg.mxu0
  %v6227 = vxor.u32 %v6224, 2147483648
  %v6228 = vmul.f32 %v6227, 1.442695
  %v6229 = vpow.pop %v6228
  %v6230 = vadd.f32 %v6229, 1.0
  %v6231 = vrcp.pop %v6230
  %v6232 = vmul.f32 1.0, %v6231
  %v6233 = vtanh.pop %v6224
  %v6234 = vmul.f32 %v6232, %v5727
  %6236 = vrot.lane.b32.xlu0 %v6233, 32
  %v6237 = vpop.permute.xlu0 %6236
  %v6239 = vmul.f32 %v6232, %v6237
  %6241 = vrot.lane.b32.xlu0 %v6239, 32
  %v6242 = vpop.permute.xlu0 %6241
  %v6244 = vadd.f32 %v6234, %v6242
  %v6245 = vtanh.pop %v6244
  %6247 = vrot.lane.b32.xlu0 %v6245, 32
  %v6248 = vpop.permute.xlu0 %6247
  %v6250 = vmul.f32 %v6232, %v6248
  %6252 = vrot.lane.b32.xlu0 %v6250, 64
  %v6253 = vpop.permute.xlu0 %6252
  %s6255 = scalar_lea.vmem [#allocation2], 6
  %6256 = vst.msk [vmem:[%s6255] sm:$0x3] %vm4704, %v6253
  %v6257 = vld [vmem:[#allocation2] sm:$0x3]
  %v6258 = vld [vmem:[#allocation2 + $0x2] sm:$0x3]
  %v6259 = vld [vmem:[#allocation2 + $0x4] sm:$0x3]
  %v6260 = vld [vmem:[#allocation2 + $0x6] sm:$0x3]
  %v6261 = vld [vmem:[%s6] sm:$0x1]
  %v6263 = vlaneseq
  %v6264 = vshrl.u32 %v6263, 7
  %v6265 = vsub.s32 0, %v6264
  %v6266 = vrot.slane %v6261, %v6265
  %v6268 = vmul.f32 %v6257, %v6266
  %v6269 = vmul.f32 %v6258, %v6266
  %v6270 = vmul.f32 %v6259, %v6266
  %v6271 = vmul.f32 %v6260, %v6266
  %v6272 = vsel %vm4704, %v6268, 0.0
  %6273 = vadd.xlane.f32.xlu0 %v6272
  %v6274 = vpop.xlane.xlu0 %6273
  %v6275 = vsel %vm4704, %v6269, 0.0
  %6276 = vadd.xlane.f32.xlu0 %v6275
  %v6277 = vpop.xlane.xlu0 %6276
  %v6278 = vsel %vm4704, %v6270, 0.0
  %6279 = vadd.xlane.f32.xlu0 %v6278
  %v6280 = vpop.xlane.xlu0 %6279
  %v6281 = vsel %vm4704, %v6271, 0.0
  %6282 = vadd.xlane.f32.xlu0 %v6281
  %v6283 = vpop.xlane.xlu0 %6282
  %v6284 = vld [vmem:[#allocation3] sm:$0x1]
  %v6286 = vlaneseq
  %v6287 = vshrl.u32 %v6286, 7
  %v6288 = vsub.s32 0, %v6287
  %v6289 = vrot.slane %v6284, %v6288
  %6290 = vset.pattern.permute.xlu0 0
  %6291 = vperm.xlu0 %6290, %v6289
  %v6292 = vpop.permute.xlu0 %6291
  %v6294 = vadd.f32 %v6274, %v6292
  %v6295 = vadd.f32 %v6277, %v6292
  %v6296 = vadd.f32 %v6280, %v6292
  %v6297 = vadd.f32 %v6283, %v6292
  %v6302 = vlaneseq
  %v6303 = vand.u32 %v6302, 127
  %v6304 = vlaneseq
  %v6305 = vshrl.u32 %v6304, 7
  %v6306 = vsub.s32 %v6303, %v6305
  %v6307 = vrot.slane %v6294, %v6306
  %v6308 = vlaneseq
  %v6309 = vshrl.u32 %v6308, 7
  %v6310 = vsub.s32 %v6303, %v6309
  %v6311 = vrot.slane %v6295, %v6310
  %v6312 = vlaneseq
  %v6313 = vshrl.u32 %v6312, 7
  %v6314 = vsub.s32 %v6303, %v6313
  %v6315 = vrot.slane %v6296, %v6314
  %v6316 = vlaneseq
  %v6317 = vshrl.u32 %v6316, 7
  %v6318 = vsub.s32 %v6303, %v6317
  %v6319 = vrot.slane %v6297, %v6318
  %vm6320 = vcmask 1041409
  %v6321 = vsel %vm6320, %v6311, %v6307
  %vm6322 = vcmask 1042434
  %v6323 = vsel %vm6322, %v6315, %v6321
  %vm6324 = vcmask 1043459
  %v6325 = vsel %vm6324, %v6319, %v6323
  %vm6327 = vcmask 11264
  %6328 = vst.msk [vmem:[%s8] sm:$0xf] %vm6327, %v6325
  // Predicated region
  $region34: #{lstm_lstm_forward.1} parent=0 // pred_check
    _
  $region35: #{lstm_lstm_forward.1} parent=0 // pred_check_branch
    %6330 = sbr.rel (0) target = $region37
  $region36: #{lstm_lstm_forward.1} parent=0 // pred_region
    _
  $region37: #{lstm_lstm_forward.1} parent=0 // pred_fallthru
    _
  // Predicated region
  $region38: #{lstm_lstm_forward.1} parent=0 // pred_check
    _
  $region39: #{lstm_lstm_forward.1} parent=0 // pred_check_branch
    %6332 = sbr.rel (0) target = $region41
  $region40: #{lstm_lstm_forward.1} parent=0 // pred_region
    _
  $region41: #{lstm_lstm_forward.1} parent=0 // pred_fallthru
    _

</llo_original>
